<compile_context>
chip_gen: v6e
topology: v6e:2x2x1
jax: 0.10.0
libtpu: 0.0.40
codegen_flags: <defaults>
</compile_context>

<pallas_src>
import functools

import jax
import jax.numpy as jnp
from jax import lax
from jax.experimental import pallas as pl
from jax.experimental.pallas import tpu as pltpu

NEG_SLOPE = 0.01            # nn.LeakyReLU() default
BN_EPS = 1e-3               # norm_cfg eps
_VMEM_LIMIT = 64 * 1024 * 1024   # explicit scoped-VMEM cap (fits v7x physical VMEM)


def _pick_td(D, rows_per_d, target_rows):
    """Largest divisor of D whose (td*rows_per_d, N) f32 accumulator stays small."""
    for td in range(D, 0, -1):
        if D % td == 0 and td * rows_per_d <= target_rows:
            return td
    return 1


# --------------------------------------------------------------------------
# SubMConv3d (dense 'same' conv) -> LeakyReLU -> BatchNorm1d (inference affine)
# --------------------------------------------------------------------------
def _make_conv_kernel(kd, fold_scale):
    def kernel(xcol_ref, w_ref, aff_ref, o_ref):
        td, H, W, Co = o_ref.shape
        K = xcol_ref.shape[-1]                    # kh * kw * Ci
        M = td * H * W
        d0 = pl.program_id(1) * td
        # kd taps only: contiguous leading-axis slices of the resident slab.
        xs = xcol_ref[pl.ds(d0, td)].reshape(M, K)
        acc = jnp.dot(xs, w_ref[0], preferred_element_type=jnp.float32)
        for a in range(1, kd):
            xs = xcol_ref[pl.ds(d0 + a, td)].reshape(M, K)
            acc = acc + jnp.dot(xs, w_ref[a], preferred_element_type=jnp.float32)
        y = jnp.where(acc >= 0, acc, NEG_SLOPE * acc)        # LeakyReLU (f32)
        if fold_scale:
            y = y + aff_ref[...]                             # BN shift (scale folded)
        else:
            y = y * aff_ref[0:1, :] + aff_ref[1:2, :]        # full BN affine
        # TODO(synk): Co=32 store is lane-masked; lane-dense store needs a
        # (W,Co)->(W*Co) minor-dim relayout in-kernel.
        o_ref[...] = y.reshape(td, H, W, Co).astype(o_ref.dtype)
    return kernel


def conv_act_bn(x, w, scale, shift, padding, fold_bn_scale=True, target_rows=256):
    """x: (N,D,H,W,Ci); w: (kd,kh,kw,Ci,Co); padding: per-spatial-dim 'same' pad."""
    N, D, H, W, Ci = x.shape
    kd, kh, kw, _, Co = w.shape
    pd, ph, pw = padding
    assert kd - 1 == 2 * pd and kh - 1 == 2 * ph and kw - 1 == 2 * pw

    # BN scale folded into conv weights: valid only for scale > 0 (LeakyReLU is
    # positively homogeneous).  gamma is init'd to 1 in this module; use
    # fold_bn_scale=False for arbitrary trained gamma.
    if fold_bn_scale:
        wk = w * scale.reshape(1, 1, 1, 1, Co)
        aff = shift.reshape(1, Co)
    else:
        wk = w
        aff = jnp.stack([scale, shift], axis=0)              # (2, Co)
    K = kh * kw * Ci
    w2 = wk.reshape(kd, K, Co).astype(jnp.bfloat16)          # per-kd-tap flat weights

    # 'same' pad + (kh, kw) im2col fold in one fused XLA pass; bf16 operands.
    xpad = jnp.pad(x, ((0, 0), (pd, pd), (ph, ph), (pw, pw), (0, 0)))
    xcol = jnp.concatenate(
        [xpad[:, :, b:b + H, c:c + W, :] for b in range(kh) for c in range(kw)],
        axis=-1).astype(jnp.bfloat16)                        # (N, Dp, H, W, K)
    Dp = D + 2 * pd

    td = _pick_td(D, H * W, target_rows)
    kernel = _make_conv_kernel(kd, fold_bn_scale)
    return pl.pallas_call(
        kernel,
        out_shape=jax.ShapeDtypeStruct((N, D, H, W, Co), x.dtype),
        grid_spec=pltpu.PrefetchScalarGridSpec(
            num_scalar_prefetch=0,
            grid=(N, D // td),
            in_specs=[
                # per-batch padded slab stays resident across the D-tile axis
                pl.BlockSpec((None, Dp, H, W, K), lambda n, d: (n, 0, 0, 0, 0)),
                pl.BlockSpec((kd, K, Co), lambda n, d: (0, 0, 0)),
                pl.BlockSpec(aff.shape, lambda n, d: (0, 0)),
            ],
            out_specs=pl.BlockSpec((None, td, H, W, Co),
                                   lambda n, d: (n, d, 0, 0, 0)),
        ),
        compiler_params=pltpu.CompilerParams(
            dimension_semantics=("parallel", "arbitrary"),
            vmem_limit_bytes=_VMEM_LIMIT),
    )(xcol, w2, aff)


# --------------------------------------------------------------------------
# SparseInverseConv3d (stride-2 transposed conv, k=3) + skip, via subpixel octants
# --------------------------------------------------------------------------
def _inverse_weights(w):
    """Fold the (dh, dw) input offsets into K and pack all 8 output-parity
    octants along the matmul N axis.  Returns (2, 4*Ci, 8*Co): one wide weight
    per D input offset dd in {0,1}; non-participating (tap, octant) blocks are
    zero (octant column order is (rd, rh, rw) lexicographic)."""
    kd, kh, kw, Ci, Co = w.shape
    assert (kd, kh, kw) == (3, 3, 3)

    def kidx(r, d):
        # stride-2 transposed conv (pad 1, out-pad 1): output parity r, input
        # offset d -> kernel index; None if the tap does not exist.
        if r == 0:
            return 1 if d == 0 else None
        return 2 if d == 0 else 0

    zeros = jnp.zeros((Ci, Co), w.dtype)
    mats = []
    for dd in (0, 1):
        cols = []
        for rd in (0, 1):
            for rh in (0, 1):
                for rw in (0, 1):
                    akd = kidx(rd, dd)
                    rows = []
                    for dh in (0, 1):
                        for dw in (0, 1):
                            akh, akw = kidx(rh, dh), kidx(rw, dw)
                            if akd is None or akh is None or akw is None:
                                rows.append(zeros)
                            else:
                                rows.append(w[akd, akh, akw])
                    cols.append(jnp.concatenate(rows, axis=0))     # (4*Ci, Co)
        mats.append(jnp.concatenate(cols, axis=1))                 # (4*Ci, 8*Co)
    return jnp.stack(mats, axis=0).astype(jnp.bfloat16)            # (2, 4*Ci, 8*Co)


def _inverse_kernel(xcol_ref, w_ref, o_ref):
    td, H, W, Cw = o_ref.shape           # Cw = 8*Co -> lane-dense store
    K = xcol_ref.shape[-1]               # 4 * Ci
    M = td * H * W
    d0 = pl.program_id(1) * td
    xs0 = xcol_ref[pl.ds(d0, td)].reshape(M, K)
    xs1 = xcol_ref[pl.ds(d0 + 1, td)].reshape(M, K)
    acc = jnp.dot(xs0, w_ref[0], preferred_element_type=jnp.float32)
    acc = acc + jnp.dot(xs1, w_ref[1], preferred_element_type=jnp.float32)
    o_ref[...] = acc.reshape(td, H, W, Cw).astype(o_ref.dtype)


def inverse_conv_add(x, w, skip, target_rows=128):
    """Dense analogue of SparseInverseConv3d(k=3, bias=False) paired (indice_key)
    with a stride-2 SparseConv3d: stride-2 transposed conv (pad 1, out-pad 1),
    computed by output-parity-octant decomposition (no zero-dilated input), then
    + skip.features (fused with the octant interleave in the wrapper).
    # TODO(synk): spconv's sparse indice_key rulebook (output index set) has no
    # dense Pallas equivalent; this is the dense transposed-conv analogue."""
    N, D, H, W, Ci = x.shape
    Co = w.shape[-1]
    assert skip.shape == (N, 2 * D, 2 * H, 2 * W, Co)

    winv = _inverse_weights(w)                                 # (2, 4*Ci, 8*Co)
    K = 4 * Ci

    # right halo pad + (dh, dw) fold: only leading-axis D slices remain in-kernel
    xpad = jnp.pad(x, ((0, 0), (0, 1), (0, 1), (0, 1), (0, 0)))
    xcol = jnp.concatenate(
        [xpad[:, :, dh:dh + H, dw:dw + W, :] for dh in (0, 1) for dw in (0, 1)],
        axis=-1).astype(jnp.bfloat16)                          # (N, D+1, H, W, 4*Ci)

    td = _pick_td(D, H * W, target_rows)
    out_oct = pl.pallas_call(
        _inverse_kernel,
        out_shape=jax.ShapeDtypeStruct((N, D, H, W, 8 * Co), x.dtype),
        grid_spec=pltpu.PrefetchScalarGridSpec(
            num_scalar_prefetch=0,
            grid=(N, D // td),
            in_specs=[
                pl.BlockSpec((None, D + 1, H, W, K), lambda n, d: (n, 0, 0, 0, 0)),
                pl.BlockSpec((2, K, 8 * Co), lambda n, d: (0, 0, 0)),
            ],
            out_specs=pl.BlockSpec((None, td, H, W, 8 * Co),
                                   lambda n, d: (n, d, 0, 0, 0)),
        ),
        compiler_params=pltpu.CompilerParams(
            dimension_semantics=("parallel", "arbitrary"),
            vmem_limit_bytes=_VMEM_LIMIT),
    )(xcol, winv)

    # Interleave octants back to NDHWC and fuse the +skip add into the same
    # XLA pass (no skip pre-relayout, no in-kernel skip DMA).
    out = out_oct.reshape(N, D, H, W, 2, 2, 2, Co).transpose(0, 1, 4, 2, 5, 3, 6, 7)
    return out.reshape(N, 2 * D, 2 * H, 2 * W, Co) + skip


# --------------------------------------------------------------------------
# Parameters / forward / reference
# --------------------------------------------------------------------------
def init_params(key, in_filters, out_filters):
    """Synthetic parameters matching UpBlock.__init__ shapes; BN gamma=1, beta=0
    (weight_initialization), fresh running stats -> inference affine."""
    ks = jax.random.split(key, 5)

    def wconv(k, shape):
        fan_in = shape[0] * shape[1] * shape[2] * shape[3]
        return jax.random.normal(k, shape, jnp.float32) / jnp.sqrt(float(fan_in))

    gamma = jnp.ones((out_filters,), jnp.float32)
    beta = jnp.zeros((out_filters,), jnp.float32)
    r_mean = jnp.zeros((out_filters,), jnp.float32)
    r_var = jnp.ones((out_filters,), jnp.float32)
    scale = gamma / jnp.sqrt(r_var + BN_EPS)
    shift = beta - r_mean * scale

    return dict(
        w_trans=wconv(ks[0], (3, 3, 3, in_filters, out_filters)),   # conv3x3
        w_up=wconv(ks[1], (3, 3, 3, out_filters, out_filters)),     # up_subm
        w1=wconv(ks[2], (1, 3, 3, out_filters, out_filters)),       # conv1x3
        w2=wconv(ks[3], (3, 1, 3, out_filters, out_filters)),       # conv3x1
        w3=wconv(ks[4], (3, 3, 3, out_filters, out_filters)),       # conv3x3
        bn_trans_scale=scale, bn_trans_shift=shift,
        bn1_scale=scale, bn1_shift=shift,
        bn2_scale=scale, bn2_shift=shift,
        bn3_scale=scale, bn3_shift=shift,
    )


def upblock_forward(params, x, skip):
    p = params
    upA = conv_act_bn(x, p["w_trans"], p["bn_trans_scale"],
                      p["bn_trans_shift"], (1, 1, 1))
    upA = inverse_conv_add(upA, p["w_up"], skip)
    upE = conv_act_bn(upA, p["w1"], p["bn1_scale"], p["bn1_shift"], (0, 1, 1))
    upE = conv_act_bn(upE, p["w2"], p["bn2_scale"], p["bn2_shift"], (1, 0, 1))
    upE = conv_act_bn(upE, p["w3"], p["bn3_scale"], p["bn3_shift"], (1, 1, 1))
    return upE


def upblock_reference(params, x, skip):
    """Pure-XLA f32 reference (lax.conv_general_dilated) for correctness check."""
    p = params
    dn = ("NDHWC", "DHWIO", "NDHWC")

    def subm(x, w, scale, shift, pad):
        y = lax.conv_general_dilated(
            x, w, (1, 1, 1),
            [(pad[0], pad[0]), (pad[1], pad[1]), (pad[2], pad[2])],
            dimension_numbers=dn, precision=lax.Precision.HIGHEST)
        y = jnp.where(y >= 0, y, NEG_SLOPE * y)
        return y * scale + shift

    upA = subm(x, p["w_trans"], p["bn_trans_scale"], p["bn_trans_shift"], (1, 1, 1))
    wf = p["w_up"][::-1, ::-1, ::-1]
    up = lax.conv_general_dilated(
        upA, wf, (1, 1, 1), [(1, 2)] * 3, lhs_dilation=(2, 2, 2),
        dimension_numbers=dn, precision=lax.Precision.HIGHEST)
    upA = up + skip
    upE = subm(upA, p["w1"], p["bn1_scale"], p["bn1_shift"], (0, 1, 1))
    upE = subm(upE, p["w2"], p["bn2_scale"], p["bn2_shift"], (1, 0, 1))
    upE = subm(upE, p["w3"], p["bn3_scale"], p["bn3_shift"], (1, 1, 1))
    return upE


if __name__ == "__main__":
    key = jax.random.PRNGKey(0)
    k_param, k_x, k_skip = jax.random.split(key, 3)

    N, in_filters, out_filters = 2, 16, 32
    D, H, W = 4, 8, 8                        # low-res input (pre-upsample)

    params = init_params(k_param, in_filters, out_filters)
    x = 0.1 * jax.random.normal(k_x, (N, D, H, W, in_filters), jnp.float32)
    skip = 0.1 * jax.random.normal(
        k_skip, (N, 2 * D, 2 * H, 2 * W, out_filters), jnp.float32)

    fwd = jax.jit(functools.partial(upblock_forward, params))
    out = jax.block_until_ready(fwd(x, skip))
    assert out.shape == (N, 2 * D, 2 * H, 2 * W, out_filters)

    ref = jax.block_until_ready(
        jax.jit(functools.partial(upblock_reference, params))(x, skip))
    err = float(jnp.max(jnp.abs(out - ref)))
    # bf16 matmul operands vs f32 HIGHEST reference -> tolerance loosened.
    assert err < 2e-2, f"max abs error vs XLA reference too high: {err}"
    print("KERNEL_OK")
</pallas_src>

<mosaic_0001>
module attributes {stable_mosaic.version = 11 : i64} {
  func.func @kernel(%arg0: i32, %arg1: i32, %arg2: memref<1x6x8x8x144xbf16, #tpu.memory_space<vmem>>, %arg3: memref<3x144x32xbf16, #tpu.memory_space<vmem>>, %arg4: memref<1x32xf32, #tpu.memory_space<vmem>>, %arg5: memref<1x4x8x8x32xf32, #tpu.memory_space<vmem>>) attributes {dimension_semantics = [#tpu.dimension_semantics<parallel>, #tpu.dimension_semantics<arbitrary>], iteration_bounds = array<i64: 2, 1>, scalar_prefetch = 0 : i64, scratch_operands = 0 : i64, tpu.core_type = #tpu.core_type<tc>, window_params = [{transform_indices = @transform_0, window_bounds = array<i64: 1, 6, 8, 8, 144>}, {pipeline_mode = #tpu.pipeline_mode<synchronous>, transform_indices = @transform_1, window_bounds = array<i64: 3, 144, 32>}, {pipeline_mode = #tpu.pipeline_mode<synchronous>, transform_indices = @transform_2, window_bounds = array<i64: 1, 32>}, {transform_indices = @transform_3, window_bounds = array<i64: 1, 4, 8, 8, 32>}]} {
    %c4_i32 = arith.constant 4 : i32
    %0 = arith.muli %arg1, %c4_i32 : i32
    %c0 = arith.constant 0 : index
    %1 = arith.index_cast %0 : i32 to index
    %c0_0 = arith.constant 0 : index
    %c0_1 = arith.constant 0 : index
    %c0_2 = arith.constant 0 : index
    %2 = vector.load %arg2[%c0, %1, %c0_0, %c0_1, %c0_2] : memref<1x6x8x8x144xbf16, #tpu.memory_space<vmem>>, vector<1x4x8x8x144xbf16>
    %3 = vector.shape_cast %2 : vector<1x4x8x8x144xbf16> to vector<4x8x8x144xbf16>
    %4 = vector.shape_cast %3 : vector<4x8x8x144xbf16> to vector<256x144xbf16>
    %c0_3 = arith.constant 0 : index
    %c0_4 = arith.constant 0 : index
    %c0_5 = arith.constant 0 : index
    %5 = vector.load %arg3[%c0_3, %c0_4, %c0_5] : memref<3x144x32xbf16, #tpu.memory_space<vmem>>, vector<1x144x32xbf16>
    %6 = vector.shape_cast %5 : vector<1x144x32xbf16> to vector<144x32xbf16>
    %cst = arith.constant dense<0.000000e+00> : vector<256x32xf32>
    %7 = tpu.matmul %4, %6, %cst {dimension_numbers = #tpu.dot_dimension_numbers<[1], [0], [0], [1], [0, 0, 1, 1], [], []>} : vector<256x144xbf16>, vector<144x32xbf16>, vector<256x32xf32> -> vector<256x32xf32>
    %c1_i32 = arith.constant 1 : i32
    %8 = arith.addi %0, %c1_i32 : i32
    %c0_6 = arith.constant 0 : index
    %9 = arith.index_cast %8 : i32 to index
    %c0_7 = arith.constant 0 : index
    %c0_8 = arith.constant 0 : index
    %c0_9 = arith.constant 0 : index
    %10 = vector.load %arg2[%c0_6, %9, %c0_7, %c0_8, %c0_9] : memref<1x6x8x8x144xbf16, #tpu.memory_space<vmem>>, vector<1x4x8x8x144xbf16>
    %11 = vector.shape_cast %10 : vector<1x4x8x8x144xbf16> to vector<4x8x8x144xbf16>
    %12 = vector.shape_cast %11 : vector<4x8x8x144xbf16> to vector<256x144xbf16>
    %c1 = arith.constant 1 : index
    %c0_10 = arith.constant 0 : index
    %c0_11 = arith.constant 0 : index
    %13 = vector.load %arg3[%c1, %c0_10, %c0_11] : memref<3x144x32xbf16, #tpu.memory_space<vmem>>, vector<1x144x32xbf16>
    %14 = vector.shape_cast %13 : vector<1x144x32xbf16> to vector<144x32xbf16>
    %cst_12 = arith.constant dense<0.000000e+00> : vector<256x32xf32>
    %15 = tpu.matmul %12, %14, %cst_12 {dimension_numbers = #tpu.dot_dimension_numbers<[1], [0], [0], [1], [0, 0, 1, 1], [], []>} : vector<256x144xbf16>, vector<144x32xbf16>, vector<256x32xf32> -> vector<256x32xf32>
    %16 = arith.addf %7, %15 : vector<256x32xf32>
    %c2_i32 = arith.constant 2 : i32
    %17 = arith.addi %0, %c2_i32 : i32
    %c0_13 = arith.constant 0 : index
    %18 = arith.index_cast %17 : i32 to index
    %c0_14 = arith.constant 0 : index
    %c0_15 = arith.constant 0 : index
    %c0_16 = arith.constant 0 : index
    %19 = vector.load %arg2[%c0_13, %18, %c0_14, %c0_15, %c0_16] : memref<1x6x8x8x144xbf16, #tpu.memory_space<vmem>>, vector<1x4x8x8x144xbf16>
    %20 = vector.shape_cast %19 : vector<1x4x8x8x144xbf16> to vector<4x8x8x144xbf16>
    %21 = vector.shape_cast %20 : vector<4x8x8x144xbf16> to vector<256x144xbf16>
    %c2 = arith.constant 2 : index
    %c0_17 = arith.constant 0 : index
    %c0_18 = arith.constant 0 : index
    %22 = vector.load %arg3[%c2, %c0_17, %c0_18] : memref<3x144x32xbf16, #tpu.memory_space<vmem>>, vector<1x144x32xbf16>
    %23 = vector.shape_cast %22 : vector<1x144x32xbf16> to vector<144x32xbf16>
    %cst_19 = arith.constant dense<0.000000e+00> : vector<256x32xf32>
    %24 = tpu.matmul %21, %23, %cst_19 {dimension_numbers = #tpu.dot_dimension_numbers<[1], [0], [0], [1], [0, 0, 1, 1], [], []>} : vector<256x144xbf16>, vector<144x32xbf16>, vector<256x32xf32> -> vector<256x32xf32>
    %25 = arith.addf %16, %24 : vector<256x32xf32>
    %cst_20 = arith.constant 0.000000e+00 : f32
    %26 = vector.broadcast %cst_20 : f32 to vector<256x32xf32>
    %27 = arith.cmpf oge, %25, %26 : vector<256x32xf32>
    %cst_21 = arith.constant 0.00999999977 : f32
    %28 = vector.broadcast %cst_21 : f32 to vector<256x32xf32>
    %29 = arith.mulf %28, %25 : vector<256x32xf32>
    %30 = arith.select %27, %25, %29 : vector<256x32xi1>, vector<256x32xf32>
    %c0_22 = arith.constant 0 : index
    %c0_23 = arith.constant 0 : index
    %31 = vector.load %arg4[%c0_22, %c0_23] : memref<1x32xf32, #tpu.memory_space<vmem>>, vector<1x32xf32>
    %32 = vector.broadcast %31 : vector<1x32xf32> to vector<256x32xf32>
    %33 = arith.addf %30, %32 : vector<256x32xf32>
    %34 = vector.shape_cast %33 : vector<256x32xf32> to vector<4x8x8x32xf32>
    %c0_24 = arith.constant 0 : index
    %c0_25 = arith.constant 0 : index
    %c0_26 = arith.constant 0 : index
    %c0_27 = arith.constant 0 : index
    %c0_28 = arith.constant 0 : index
    %35 = vector.load %arg5[%c0_24, %c0_25, %c0_26, %c0_27, %c0_28] : memref<1x4x8x8x32xf32, #tpu.memory_space<vmem>>, vector<1x4x8x8x32xf32>
    %36 = vector.shape_cast %35 : vector<1x4x8x8x32xf32> to vector<4x8x8x32xf32>
    %37 = vector.shape_cast %34 : vector<4x8x8x32xf32> to vector<1x4x8x8x32xf32>
    tpu.vector_store %arg5[%c0_24, %c0_25, %c0_26, %c0_27, %c0_28], %37 {strides = array<i32>} : memref<1x4x8x8x32xf32, #tpu.memory_space<vmem>>, vector<1x4x8x8x32xf32>,
    return
  }
  func.func @transform_0(%arg0: i32, %arg1: i32) -> (i32, i32, i32, i32, i32) {
    %c0_i32 = arith.constant 0 : i32
    %c0_i32_0 = arith.constant 0 : i32
    %c0_i32_1 = arith.constant 0 : i32
    %c0_i32_2 = arith.constant 0 : i32
    %c0_i32_3 = arith.constant 0 : i32
    return %arg0, %c0_i32, %c0_i32_0, %c0_i32_1, %c0_i32_2 : i32, i32, i32, i32, i32
  }
  func.func @transform_1(%arg0: i32, %arg1: i32) -> (i32, i32, i32) {
    %c0_i32 = arith.constant 0 : i32
    %c0_i32_0 = arith.constant 0 : i32
    %c0_i32_1 = arith.constant 0 : i32
    %c0_i32_2 = arith.constant 0 : i32
    return %c0_i32, %c0_i32_0, %c0_i32_1 : i32, i32, i32
  }
  func.func @transform_2(%arg0: i32, %arg1: i32) -> (i32, i32) {
    %c0_i32 = arith.constant 0 : i32
    %c0_i32_0 = arith.constant 0 : i32
    %c0_i32_1 = arith.constant 0 : i32
    return %c0_i32, %c0_i32_0 : i32, i32
  }
  func.func @transform_3(%arg0: i32, %arg1: i32) -> (i32, i32, i32, i32, i32) {
    %c0_i32 = arith.constant 0 : i32
    %c0_i32_0 = arith.constant 0 : i32
    %c0_i32_1 = arith.constant 0 : i32
    %c0_i32_2 = arith.constant 0 : i32
    return %arg0, %arg1, %c0_i32, %c0_i32_0, %c0_i32_1 : i32, i32, i32, i32, i32
  }
}

module attributes {stable_mosaic.version = 11 : i64} {
  func.func @_inverse_kernel(%arg0: i32, %arg1: i32, %arg2: memref<1x5x8x8x128xbf16, #tpu.memory_space<vmem>>, %arg3: memref<2x128x256xbf16, #tpu.memory_space<vmem>>, %arg4: memref<1x2x8x8x256xf32, #tpu.memory_space<vmem>>) attributes {dimension_semantics = [#tpu.dimension_semantics<parallel>, #tpu.dimension_semantics<arbitrary>], iteration_bounds = array<i64: 2, 2>, scalar_prefetch = 0 : i64, scratch_operands = 0 : i64, tpu.core_type = #tpu.core_type<tc>, window_params = [{transform_indices = @transform_0, window_bounds = array<i64: 1, 5, 8, 8, 128>}, {pipeline_mode = #tpu.pipeline_mode<synchronous>, transform_indices = @transform_1, window_bounds = array<i64: 2, 128, 256>}, {transform_indices = @transform_2, window_bounds = array<i64: 1, 2, 8, 8, 256>}]} {
    %c2_i32 = arith.constant 2 : i32
    %0 = arith.muli %arg1, %c2_i32 : i32
    %c0 = arith.constant 0 : index
    %1 = arith.index_cast %0 : i32 to index
    %c0_0 = arith.constant 0 : index
    %c0_1 = arith.constant 0 : index
    %c0_2 = arith.constant 0 : index
    %2 = vector.load %arg2[%c0, %1, %c0_0, %c0_1, %c0_2] : memref<1x5x8x8x128xbf16, #tpu.memory_space<vmem>>, vector<1x2x8x8x128xbf16>
    %3 = vector.shape_cast %2 : vector<1x2x8x8x128xbf16> to vector<2x8x8x128xbf16>
    %4 = vector.shape_cast %3 : vector<2x8x8x128xbf16> to vector<128x128xbf16>
    %c1_i32 = arith.constant 1 : i32
    %5 = arith.addi %0, %c1_i32 : i32
    %c0_3 = arith.constant 0 : index
    %6 = arith.index_cast %5 : i32 to index
    %c0_4 = arith.constant 0 : index
    %c0_5 = arith.constant 0 : index
    %c0_6 = arith.constant 0 : index
    %7 = vector.load %arg2[%c0_3, %6, %c0_4, %c0_5, %c0_6] : memref<1x5x8x8x128xbf16, #tpu.memory_space<vmem>>, vector<1x2x8x8x128xbf16>
    %8 = vector.shape_cast %7 : vector<1x2x8x8x128xbf16> to vector<2x8x8x128xbf16>
    %9 = vector.shape_cast %8 : vector<2x8x8x128xbf16> to vector<128x128xbf16>
    %c0_7 = arith.constant 0 : index
    %c0_8 = arith.constant 0 : index
    %c0_9 = arith.constant 0 : index
    %10 = vector.load %arg3[%c0_7, %c0_8, %c0_9] : memref<2x128x256xbf16, #tpu.memory_space<vmem>>, vector<1x128x256xbf16>
    %11 = vector.shape_cast %10 : vector<1x128x256xbf16> to vector<128x256xbf16>
    %cst = arith.constant dense<0.000000e+00> : vector<128x256xf32>
    %12 = tpu.matmul %4, %11, %cst {dimension_numbers = #tpu.dot_dimension_numbers<[1], [0], [0], [1], [0, 0, 1, 1], [], []>} : vector<128x128xbf16>, vector<128x256xbf16>, vector<128x256xf32> -> vector<128x256xf32>
    %c1 = arith.constant 1 : index
    %c0_10 = arith.constant 0 : index
    %c0_11 = arith.constant 0 : index
    %13 = vector.load %arg3[%c1, %c0_10, %c0_11] : memref<2x128x256xbf16, #tpu.memory_space<vmem>>, vector<1x128x256xbf16>
    %14 = vector.shape_cast %13 : vector<1x128x256xbf16> to vector<128x256xbf16>
    %cst_12 = arith.constant dense<0.000000e+00> : vector<128x256xf32>
    %15 = tpu.matmul %9, %14, %cst_12 {dimension_numbers = #tpu.dot_dimension_numbers<[1], [0], [0], [1], [0, 0, 1, 1], [], []>} : vector<128x128xbf16>, vector<128x256xbf16>, vector<128x256xf32> -> vector<128x256xf32>
    %16 = arith.addf %12, %15 : vector<128x256xf32>
    %17 = vector.shape_cast %16 : vector<128x256xf32> to vector<2x8x8x256xf32>
    %c0_13 = arith.constant 0 : index
    %c0_14 = arith.constant 0 : index
    %c0_15 = arith.constant 0 : index
    %c0_16 = arith.constant 0 : index
    %c0_17 = arith.constant 0 : index
    %18 = vector.load %arg4[%c0_13, %c0_14, %c0_15, %c0_16, %c0_17] : memref<1x2x8x8x256xf32, #tpu.memory_space<vmem>>, vector<1x2x8x8x256xf32>
    %19 = vector.shape_cast %18 : vector<1x2x8x8x256xf32> to vector<2x8x8x256xf32>
    %20 = vector.shape_cast %17 : vector<2x8x8x256xf32> to vector<1x2x8x8x256xf32>
    tpu.vector_store %arg4[%c0_13, %c0_14, %c0_15, %c0_16, %c0_17], %20 {strides = array<i32>} : memref<1x2x8x8x256xf32, #tpu.memory_space<vmem>>, vector<1x2x8x8x256xf32>,
    return
  }
  func.func @transform_0(%arg0: i32, %arg1: i32) -> (i32, i32, i32, i32, i32) {
    %c0_i32 = arith.constant 0 : i32
    %c0_i32_0 = arith.constant 0 : i32
    %c0_i32_1 = arith.constant 0 : i32
    %c0_i32_2 = arith.constant 0 : i32
    %c0_i32_3 = arith.constant 0 : i32
    return %arg0, %c0_i32, %c0_i32_0, %c0_i32_1, %c0_i32_2 : i32, i32, i32, i32, i32
  }
  func.func @transform_1(%arg0: i32, %arg1: i32) -> (i32, i32, i32) {
    %c0_i32 = arith.constant 0 : i32
    %c0_i32_0 = arith.constant 0 : i32
    %c0_i32_1 = arith.constant 0 : i32
    %c0_i32_2 = arith.constant 0 : i32
    return %c0_i32, %c0_i32_0, %c0_i32_1 : i32, i32, i32
  }
  func.func @transform_2(%arg0: i32, %arg1: i32) -> (i32, i32, i32, i32, i32) {
    %c0_i32 = arith.constant 0 : i32
    %c0_i32_0 = arith.constant 0 : i32
    %c0_i32_1 = arith.constant 0 : i32
    %c0_i32_2 = arith.constant 0 : i32
    return %arg0, %arg1, %c0_i32, %c0_i32_0, %c0_i32_1 : i32, i32, i32, i32, i32
  }
}

module attributes {stable_mosaic.version = 11 : i64} {
  func.func @kernel(%arg0: i32, %arg1: i32, %arg2: memref<1x8x16x16x288xbf16, #tpu.memory_space<vmem>>, %arg3: memref<1x288x32xbf16, #tpu.memory_space<vmem>>, %arg4: memref<1x32xf32, #tpu.memory_space<vmem>>, %arg5: memref<1x1x16x16x32xf32, #tpu.memory_space<vmem>>) attributes {dimension_semantics = [#tpu.dimension_semantics<parallel>, #tpu.dimension_semantics<arbitrary>], iteration_bounds = array<i64: 2, 8>, scalar_prefetch = 0 : i64, scratch_operands = 0 : i64, tpu.core_type = #tpu.core_type<tc>, window_params = [{transform_indices = @transform_0, window_bounds = array<i64: 1, 8, 16, 16, 288>}, {pipeline_mode = #tpu.pipeline_mode<synchronous>, transform_indices = @transform_1, window_bounds = array<i64: 1, 288, 32>}, {pipeline_mode = #tpu.pipeline_mode<synchronous>, transform_indices = @transform_2, window_bounds = array<i64: 1, 32>}, {transform_indices = @transform_3, window_bounds = array<i64: 1, 1, 16, 16, 32>}]} {
    %c1_i32 = arith.constant 1 : i32
    %0 = arith.muli %arg1, %c1_i32 : i32
    %c0 = arith.constant 0 : index
    %1 = arith.index_cast %0 : i32 to index
    %c0_0 = arith.constant 0 : index
    %c0_1 = arith.constant 0 : index
    %c0_2 = arith.constant 0 : index
    %2 = vector.load %arg2[%c0, %1, %c0_0, %c0_1, %c0_2] : memref<1x8x16x16x288xbf16, #tpu.memory_space<vmem>>, vector<1x1x16x16x288xbf16>
    %3 = vector.shape_cast %2 : vector<1x1x16x16x288xbf16> to vector<1x16x16x288xbf16>
    %4 = vector.shape_cast %3 : vector<1x16x16x288xbf16> to vector<256x288xbf16>
    %c0_3 = arith.constant 0 : index
    %c0_4 = arith.constant 0 : index
    %c0_5 = arith.constant 0 : index
    %5 = vector.load %arg3[%c0_3, %c0_4, %c0_5] : memref<1x288x32xbf16, #tpu.memory_space<vmem>>, vector<1x288x32xbf16>
    %6 = vector.shape_cast %5 : vector<1x288x32xbf16> to vector<288x32xbf16>
    %cst = arith.constant dense<0.000000e+00> : vector<256x32xf32>
    %7 = tpu.matmul %4, %6, %cst {dimension_numbers = #tpu.dot_dimension_numbers<[1], [0], [0], [1], [0, 0, 1, 1], [], []>} : vector<256x288xbf16>, vector<288x32xbf16>, vector<256x32xf32> -> vector<256x32xf32>
    %cst_6 = arith.constant 0.000000e+00 : f32
    %8 = vector.broadcast %cst_6 : f32 to vector<256x32xf32>
    %9 = arith.cmpf oge, %7, %8 : vector<256x32xf32>
    %cst_7 = arith.constant 0.00999999977 : f32
    %10 = vector.broadcast %cst_7 : f32 to vector<256x32xf32>
    %11 = arith.mulf %10, %7 : vector<256x32xf32>
    %12 = arith.select %9, %7, %11 : vector<256x32xi1>, vector<256x32xf32>
    %c0_8 = arith.constant 0 : index
    %c0_9 = arith.constant 0 : index
    %13 = vector.load %arg4[%c0_8, %c0_9] : memref<1x32xf32, #tpu.memory_space<vmem>>, vector<1x32xf32>
    %14 = vector.broadcast %13 : vector<1x32xf32> to vector<256x32xf32>
    %15 = arith.addf %12, %14 : vector<256x32xf32>
    %16 = vector.shape_cast %15 : vector<256x32xf32> to vector<1x16x16x32xf32>
    %c0_10 = arith.constant 0 : index
    %c0_11 = arith.constant 0 : index
    %c0_12 = arith.constant 0 : index
    %c0_13 = arith.constant 0 : index
    %c0_14 = arith.constant 0 : index
    %17 = vector.load %arg5[%c0_10, %c0_11, %c0_12, %c0_13, %c0_14] : memref<1x1x16x16x32xf32, #tpu.memory_space<vmem>>, vector<1x1x16x16x32xf32>
    %18 = vector.shape_cast %17 : vector<1x1x16x16x32xf32> to vector<1x16x16x32xf32>
    %19 = vector.shape_cast %16 : vector<1x16x16x32xf32> to vector<1x1x16x16x32xf32>
    tpu.vector_store %arg5[%c0_10, %c0_11, %c0_12, %c0_13, %c0_14], %19 {strides = array<i32>} : memref<1x1x16x16x32xf32, #tpu.memory_space<vmem>>, vector<1x1x16x16x32xf32>,
    return
  }
  func.func @transform_0(%arg0: i32, %arg1: i32) -> (i32, i32, i32, i32, i32) {
    %c0_i32 = arith.constant 0 : i32
    %c0_i32_0 = arith.constant 0 : i32
    %c0_i32_1 = arith.constant 0 : i32
    %c0_i32_2 = arith.constant 0 : i32
    %c0_i32_3 = arith.constant 0 : i32
    return %arg0, %c0_i32, %c0_i32_0, %c0_i32_1, %c0_i32_2 : i32, i32, i32, i32, i32
  }
  func.func @transform_1(%arg0: i32, %arg1: i32) -> (i32, i32, i32) {
    %c0_i32 = arith.constant 0 : i32
    %c0_i32_0 = arith.constant 0 : i32
    %c0_i32_1 = arith.constant 0 : i32
    %c0_i32_2 = arith.constant 0 : i32
    return %c0_i32, %c0_i32_0, %c0_i32_1 : i32, i32, i32
  }
  func.func @transform_2(%arg0: i32, %arg1: i32) -> (i32, i32) {
    %c0_i32 = arith.constant 0 : i32
    %c0_i32_0 = arith.constant 0 : i32
    %c0_i32_1 = arith.constant 0 : i32
    return %c0_i32, %c0_i32_0 : i32, i32
  }
  func.func @transform_3(%arg0: i32, %arg1: i32) -> (i32, i32, i32, i32, i32) {
    %c0_i32 = arith.constant 0 : i32
    %c0_i32_0 = arith.constant 0 : i32
    %c0_i32_1 = arith.constant 0 : i32
    %c0_i32_2 = arith.constant 0 : i32
    return %arg0, %arg1, %c0_i32, %c0_i32_0, %c0_i32_1 : i32, i32, i32, i32, i32
  }
}

module attributes {stable_mosaic.version = 11 : i64} {
  func.func @kernel(%arg0: i32, %arg1: i32, %arg2: memref<1x10x16x16x96xbf16, #tpu.memory_space<vmem>>, %arg3: memref<3x96x32xbf16, #tpu.memory_space<vmem>>, %arg4: memref<1x32xf32, #tpu.memory_space<vmem>>, %arg5: memref<1x1x16x16x32xf32, #tpu.memory_space<vmem>>) attributes {dimension_semantics = [#tpu.dimension_semantics<parallel>, #tpu.dimension_semantics<arbitrary>], iteration_bounds = array<i64: 2, 8>, scalar_prefetch = 0 : i64, scratch_operands = 0 : i64, tpu.core_type = #tpu.core_type<tc>, window_params = [{transform_indices = @transform_0, window_bounds = array<i64: 1, 10, 16, 16, 96>}, {pipeline_mode = #tpu.pipeline_mode<synchronous>, transform_indices = @transform_1, window_bounds = array<i64: 3, 96, 32>}, {pipeline_mode = #tpu.pipeline_mode<synchronous>, transform_indices = @transform_2, window_bounds = array<i64: 1, 32>}, {transform_indices = @transform_3, window_bounds = array<i64: 1, 1, 16, 16, 32>}]} {
    %c1_i32 = arith.constant 1 : i32
    %0 = arith.muli %arg1, %c1_i32 : i32
    %c0 = arith.constant 0 : index
    %1 = arith.index_cast %0 : i32 to index
    %c0_0 = arith.constant 0 : index
    %c0_1 = arith.constant 0 : index
    %c0_2 = arith.constant 0 : index
    %2 = vector.load %arg2[%c0, %1, %c0_0, %c0_1, %c0_2] : memref<1x10x16x16x96xbf16, #tpu.memory_space<vmem>>, vector<1x1x16x16x96xbf16>
    %3 = vector.shape_cast %2 : vector<1x1x16x16x96xbf16> to vector<1x16x16x96xbf16>
    %4 = vector.shape_cast %3 : vector<1x16x16x96xbf16> to vector<256x96xbf16>
    %c0_3 = arith.constant 0 : index
    %c0_4 = arith.constant 0 : index
    %c0_5 = arith.constant 0 : index
    %5 = vector.load %arg3[%c0_3, %c0_4, %c0_5] : memref<3x96x32xbf16, #tpu.memory_space<vmem>>, vector<1x96x32xbf16>
    %6 = vector.shape_cast %5 : vector<1x96x32xbf16> to vector<96x32xbf16>
    %cst = arith.constant dense<0.000000e+00> : vector<256x32xf32>
    %7 = tpu.matmul %4, %6, %cst {dimension_numbers = #tpu.dot_dimension_numbers<[1], [0], [0], [1], [0, 0, 1, 1], [], []>} : vector<256x96xbf16>, vector<96x32xbf16>, vector<256x32xf32> -> vector<256x32xf32>
    %c1_i32_6 = arith.constant 1 : i32
    %8 = arith.addi %0, %c1_i32_6 : i32
    %c0_7 = arith.constant 0 : index
    %9 = arith.index_cast %8 : i32 to index
    %c0_8 = arith.constant 0 : index
    %c0_9 = arith.constant 0 : index
    %c0_10 = arith.constant 0 : index
    %10 = vector.load %arg2[%c0_7, %9, %c0_8, %c0_9, %c0_10] : memref<1x10x16x16x96xbf16, #tpu.memory_space<vmem>>, vector<1x1x16x16x96xbf16>
    %11 = vector.shape_cast %10 : vector<1x1x16x16x96xbf16> to vector<1x16x16x96xbf16>
    %12 = vector.shape_cast %11 : vector<1x16x16x96xbf16> to vector<256x96xbf16>
    %c1 = arith.constant 1 : index
    %c0_11 = arith.constant 0 : index
    %c0_12 = arith.constant 0 : index
    %13 = vector.load %arg3[%c1, %c0_11, %c0_12] : memref<3x96x32xbf16, #tpu.memory_space<vmem>>, vector<1x96x32xbf16>
    %14 = vector.shape_cast %13 : vector<1x96x32xbf16> to vector<96x32xbf16>
    %cst_13 = arith.constant dense<0.000000e+00> : vector<256x32xf32>
    %15 = tpu.matmul %12, %14, %cst_13 {dimension_numbers = #tpu.dot_dimension_numbers<[1], [0], [0], [1], [0, 0, 1, 1], [], []>} : vector<256x96xbf16>, vector<96x32xbf16>, vector<256x32xf32> -> vector<256x32xf32>
    %16 = arith.addf %7, %15 : vector<256x32xf32>
    %c2_i32 = arith.constant 2 : i32
    %17 = arith.addi %0, %c2_i32 : i32
    %c0_14 = arith.constant 0 : index
    %18 = arith.index_cast %17 : i32 to index
    %c0_15 = arith.constant 0 : index
    %c0_16 = arith.constant 0 : index
    %c0_17 = arith.constant 0 : index
    %19 = vector.load %arg2[%c0_14, %18, %c0_15, %c0_16, %c0_17] : memref<1x10x16x16x96xbf16, #tpu.memory_space<vmem>>, vector<1x1x16x16x96xbf16>
    %20 = vector.shape_cast %19 : vector<1x1x16x16x96xbf16> to vector<1x16x16x96xbf16>
    %21 = vector.shape_cast %20 : vector<1x16x16x96xbf16> to vector<256x96xbf16>
    %c2 = arith.constant 2 : index
    %c0_18 = arith.constant 0 : index
    %c0_19 = arith.constant 0 : index
    %22 = vector.load %arg3[%c2, %c0_18, %c0_19] : memref<3x96x32xbf16, #tpu.memory_space<vmem>>, vector<1x96x32xbf16>
    %23 = vector.shape_cast %22 : vector<1x96x32xbf16> to vector<96x32xbf16>
    %cst_20 = arith.constant dense<0.000000e+00> : vector<256x32xf32>
    %24 = tpu.matmul %21, %23, %cst_20 {dimension_numbers = #tpu.dot_dimension_numbers<[1], [0], [0], [1], [0, 0, 1, 1], [], []>} : vector<256x96xbf16>, vector<96x32xbf16>, vector<256x32xf32> -> vector<256x32xf32>
    %25 = arith.addf %16, %24 : vector<256x32xf32>
    %cst_21 = arith.constant 0.000000e+00 : f32
    %26 = vector.broadcast %cst_21 : f32 to vector<256x32xf32>
    %27 = arith.cmpf oge, %25, %26 : vector<256x32xf32>
    %cst_22 = arith.constant 0.00999999977 : f32
    %28 = vector.broadcast %cst_22 : f32 to vector<256x32xf32>
    %29 = arith.mulf %28, %25 : vector<256x32xf32>
    %30 = arith.select %27, %25, %29 : vector<256x32xi1>, vector<256x32xf32>
    %c0_23 = arith.constant 0 : index
    %c0_24 = arith.constant 0 : index
    %31 = vector.load %arg4[%c0_23, %c0_24] : memref<1x32xf32, #tpu.memory_space<vmem>>, vector<1x32xf32>
    %32 = vector.broadcast %31 : vector<1x32xf32> to vector<256x32xf32>
    %33 = arith.addf %30, %32 : vector<256x32xf32>
    %34 = vector.shape_cast %33 : vector<256x32xf32> to vector<1x16x16x32xf32>
    %c0_25 = arith.constant 0 : index
    %c0_26 = arith.constant 0 : index
    %c0_27 = arith.constant 0 : index
    %c0_28 = arith.constant 0 : index
    %c0_29 = arith.constant 0 : index
    %35 = vector.load %arg5[%c0_25, %c0_26, %c0_27, %c0_28, %c0_29] : memref<1x1x16x16x32xf32, #tpu.memory_space<vmem>>, vector<1x1x16x16x32xf32>
    %36 = vector.shape_cast %35 : vector<1x1x16x16x32xf32> to vector<1x16x16x32xf32>
    %37 = vector.shape_cast %34 : vector<1x16x16x32xf32> to vector<1x1x16x16x32xf32>
    tpu.vector_store %arg5[%c0_25, %c0_26, %c0_27, %c0_28, %c0_29], %37 {strides = array<i32>} : memref<1x1x16x16x32xf32, #tpu.memory_space<vmem>>, vector<1x1x16x16x32xf32>,
    return
  }
  func.func @transform_0(%arg0: i32, %arg1: i32) -> (i32, i32, i32, i32, i32) {
    %c0_i32 = arith.constant 0 : i32
    %c0_i32_0 = arith.constant 0 : i32
    %c0_i32_1 = arith.constant 0 : i32
    %c0_i32_2 = arith.constant 0 : i32
    %c0_i32_3 = arith.constant 0 : i32
    return %arg0, %c0_i32, %c0_i32_0, %c0_i32_1, %c0_i32_2 : i32, i32, i32, i32, i32
  }
  func.func @transform_1(%arg0: i32, %arg1: i32) -> (i32, i32, i32) {
    %c0_i32 = arith.constant 0 : i32
    %c0_i32_0 = arith.constant 0 : i32
    %c0_i32_1 = arith.constant 0 : i32
    %c0_i32_2 = arith.constant 0 : i32
    return %c0_i32, %c0_i32_0, %c0_i32_1 : i32, i32, i32
  }
  func.func @transform_2(%arg0: i32, %arg1: i32) -> (i32, i32) {
    %c0_i32 = arith.constant 0 : i32
    %c0_i32_0 = arith.constant 0 : i32
    %c0_i32_1 = arith.constant 0 : i32
    return %c0_i32, %c0_i32_0 : i32, i32
  }
  func.func @transform_3(%arg0: i32, %arg1: i32) -> (i32, i32, i32, i32, i32) {
    %c0_i32 = arith.constant 0 : i32
    %c0_i32_0 = arith.constant 0 : i32
    %c0_i32_1 = arith.constant 0 : i32
    %c0_i32_2 = arith.constant 0 : i32
    return %arg0, %arg1, %c0_i32, %c0_i32_0, %c0_i32_1 : i32, i32, i32, i32, i32
  }
}

module attributes {stable_mosaic.version = 11 : i64} {
  func.func @kernel(%arg0: i32, %arg1: i32, %arg2: memref<1x10x16x16x288xbf16, #tpu.memory_space<vmem>>, %arg3: memref<3x288x32xbf16, #tpu.memory_space<vmem>>, %arg4: memref<1x32xf32, #tpu.memory_space<vmem>>, %arg5: memref<1x1x16x16x32xf32, #tpu.memory_space<vmem>>) attributes {dimension_semantics = [#tpu.dimension_semantics<parallel>, #tpu.dimension_semantics<arbitrary>], iteration_bounds = array<i64: 2, 8>, scalar_prefetch = 0 : i64, scratch_operands = 0 : i64, tpu.core_type = #tpu.core_type<tc>, window_params = [{transform_indices = @transform_0, window_bounds = array<i64: 1, 10, 16, 16, 288>}, {pipeline_mode = #tpu.pipeline_mode<synchronous>, transform_indices = @transform_1, window_bounds = array<i64: 3, 288, 32>}, {pipeline_mode = #tpu.pipeline_mode<synchronous>, transform_indices = @transform_2, window_bounds = array<i64: 1, 32>}, {transform_indices = @transform_3, window_bounds = array<i64: 1, 1, 16, 16, 32>}]} {
    %c1_i32 = arith.constant 1 : i32
    %0 = arith.muli %arg1, %c1_i32 : i32
    %c0 = arith.constant 0 : index
    %1 = arith.index_cast %0 : i32 to index
    %c0_0 = arith.constant 0 : index
    %c0_1 = arith.constant 0 : index
    %c0_2 = arith.constant 0 : index
    %2 = vector.load %arg2[%c0, %1, %c0_0, %c0_1, %c0_2] : memref<1x10x16x16x288xbf16, #tpu.memory_space<vmem>>, vector<1x1x16x16x288xbf16>
    %3 = vector.shape_cast %2 : vector<1x1x16x16x288xbf16> to vector<1x16x16x288xbf16>
    %4 = vector.shape_cast %3 : vector<1x16x16x288xbf16> to vector<256x288xbf16>
    %c0_3 = arith.constant 0 : index
    %c0_4 = arith.constant 0 : index
    %c0_5 = arith.constant 0 : index
    %5 = vector.load %arg3[%c0_3, %c0_4, %c0_5] : memref<3x288x32xbf16, #tpu.memory_space<vmem>>, vector<1x288x32xbf16>
    %6 = vector.shape_cast %5 : vector<1x288x32xbf16> to vector<288x32xbf16>
    %cst = arith.constant dense<0.000000e+00> : vector<256x32xf32>
    %7 = tpu.matmul %4, %6, %cst {dimension_numbers = #tpu.dot_dimension_numbers<[1], [0], [0], [1], [0, 0, 1, 1], [], []>} : vector<256x288xbf16>, vector<288x32xbf16>, vector<256x32xf32> -> vector<256x32xf32>
    %c1_i32_6 = arith.constant 1 : i32
    %8 = arith.addi %0, %c1_i32_6 : i32
    %c0_7 = arith.constant 0 : index
    %9 = arith.index_cast %8 : i32 to index
    %c0_8 = arith.constant 0 : index
    %c0_9 = arith.constant 0 : index
    %c0_10 = arith.constant 0 : index
    %10 = vector.load %arg2[%c0_7, %9, %c0_8, %c0_9, %c0_10] : memref<1x10x16x16x288xbf16, #tpu.memory_space<vmem>>, vector<1x1x16x16x288xbf16>
    %11 = vector.shape_cast %10 : vector<1x1x16x16x288xbf16> to vector<1x16x16x288xbf16>
    %12 = vector.shape_cast %11 : vector<1x16x16x288xbf16> to vector<256x288xbf16>
    %c1 = arith.constant 1 : index
    %c0_11 = arith.constant 0 : index
    %c0_12 = arith.constant 0 : index
    %13 = vector.load %arg3[%c1, %c0_11, %c0_12] : memref<3x288x32xbf16, #tpu.memory_space<vmem>>, vector<1x288x32xbf16>
    %14 = vector.shape_cast %13 : vector<1x288x32xbf16> to vector<288x32xbf16>
    %cst_13 = arith.constant dense<0.000000e+00> : vector<256x32xf32>
    %15 = tpu.matmul %12, %14, %cst_13 {dimension_numbers = #tpu.dot_dimension_numbers<[1], [0], [0], [1], [0, 0, 1, 1], [], []>} : vector<256x288xbf16>, vector<288x32xbf16>, vector<256x32xf32> -> vector<256x32xf32>
    %16 = arith.addf %7, %15 : vector<256x32xf32>
    %c2_i32 = arith.constant 2 : i32
    %17 = arith.addi %0, %c2_i32 : i32
    %c0_14 = arith.constant 0 : index
    %18 = arith.index_cast %17 : i32 to index
    %c0_15 = arith.constant 0 : index
    %c0_16 = arith.constant 0 : index
    %c0_17 = arith.constant 0 : index
    %19 = vector.load %arg2[%c0_14, %18, %c0_15, %c0_16, %c0_17] : memref<1x10x16x16x288xbf16, #tpu.memory_space<vmem>>, vector<1x1x16x16x288xbf16>
    %20 = vector.shape_cast %19 : vector<1x1x16x16x288xbf16> to vector<1x16x16x288xbf16>
    %21 = vector.shape_cast %20 : vector<1x16x16x288xbf16> to vector<256x288xbf16>
    %c2 = arith.constant 2 : index
    %c0_18 = arith.constant 0 : index
    %c0_19 = arith.constant 0 : index
    %22 = vector.load %arg3[%c2, %c0_18, %c0_19] : memref<3x288x32xbf16, #tpu.memory_space<vmem>>, vector<1x288x32xbf16>
    %23 = vector.shape_cast %22 : vector<1x288x32xbf16> to vector<288x32xbf16>
    %cst_20 = arith.constant dense<0.000000e+00> : vector<256x32xf32>
    %24 = tpu.matmul %21, %23, %cst_20 {dimension_numbers = #tpu.dot_dimension_numbers<[1], [0], [0], [1], [0, 0, 1, 1], [], []>} : vector<256x288xbf16>, vector<288x32xbf16>, vector<256x32xf32> -> vector<256x32xf32>
    %25 = arith.addf %16, %24 : vector<256x32xf32>
    %cst_21 = arith.constant 0.000000e+00 : f32
    %26 = vector.broadcast %cst_21 : f32 to vector<256x32xf32>
    %27 = arith.cmpf oge, %25, %26 : vector<256x32xf32>
    %cst_22 = arith.constant 0.00999999977 : f32
    %28 = vector.broadcast %cst_22 : f32 to vector<256x32xf32>
    %29 = arith.mulf %28, %25 : vector<256x32xf32>
    %30 = arith.select %27, %25, %29 : vector<256x32xi1>, vector<256x32xf32>
    %c0_23 = arith.constant 0 : index
    %c0_24 = arith.constant 0 : index
    %31 = vector.load %arg4[%c0_23, %c0_24] : memref<1x32xf32, #tpu.memory_space<vmem>>, vector<1x32xf32>
    %32 = vector.broadcast %31 : vector<1x32xf32> to vector<256x32xf32>
    %33 = arith.addf %30, %32 : vector<256x32xf32>
    %34 = vector.shape_cast %33 : vector<256x32xf32> to vector<1x16x16x32xf32>
    %c0_25 = arith.constant 0 : index
    %c0_26 = arith.constant 0 : index
    %c0_27 = arith.constant 0 : index
    %c0_28 = arith.constant 0 : index
    %c0_29 = arith.constant 0 : index
    %35 = vector.load %arg5[%c0_25, %c0_26, %c0_27, %c0_28, %c0_29] : memref<1x1x16x16x32xf32, #tpu.memory_space<vmem>>, vector<1x1x16x16x32xf32>
    %36 = vector.shape_cast %35 : vector<1x1x16x16x32xf32> to vector<1x16x16x32xf32>
    %37 = vector.shape_cast %34 : vector<1x16x16x32xf32> to vector<1x1x16x16x32xf32>
    tpu.vector_store %arg5[%c0_25, %c0_26, %c0_27, %c0_28, %c0_29], %37 {strides = array<i32>} : memref<1x1x16x16x32xf32, #tpu.memory_space<vmem>>, vector<1x1x16x16x32xf32>,
    return
  }
  func.func @transform_0(%arg0: i32, %arg1: i32) -> (i32, i32, i32, i32, i32) {
    %c0_i32 = arith.constant 0 : i32
    %c0_i32_0 = arith.constant 0 : i32
    %c0_i32_1 = arith.constant 0 : i32
    %c0_i32_2 = arith.constant 0 : i32
    %c0_i32_3 = arith.constant 0 : i32
    return %arg0, %c0_i32, %c0_i32_0, %c0_i32_1, %c0_i32_2 : i32, i32, i32, i32, i32
  }
  func.func @transform_1(%arg0: i32, %arg1: i32) -> (i32, i32, i32) {
    %c0_i32 = arith.constant 0 : i32
    %c0_i32_0 = arith.constant 0 : i32
    %c0_i32_1 = arith.constant 0 : i32
    %c0_i32_2 = arith.constant 0 : i32
    return %c0_i32, %c0_i32_0, %c0_i32_1 : i32, i32, i32
  }
  func.func @transform_2(%arg0: i32, %arg1: i32) -> (i32, i32) {
    %c0_i32 = arith.constant 0 : i32
    %c0_i32_0 = arith.constant 0 : i32
    %c0_i32_1 = arith.constant 0 : i32
    return %c0_i32, %c0_i32_0 : i32, i32
  }
  func.func @transform_3(%arg0: i32, %arg1: i32) -> (i32, i32, i32, i32, i32) {
    %c0_i32 = arith.constant 0 : i32
    %c0_i32_0 = arith.constant 0 : i32
    %c0_i32_1 = arith.constant 0 : i32
    %c0_i32_2 = arith.constant 0 : i32
    return %arg0, %arg1, %c0_i32, %c0_i32_0, %c0_i32_1 : i32, i32, i32, i32, i32
  }
}

</mosaic_0001>

<llo_original>
// kernel: upblock_forward.5
$region0: #{upblock_forward.5}
  #allocation0 [shape = 'u32[]', space=smem, size = 0x4, offset = 0x4, fixed_abs, tag = 'smem constant byte address 0x4 - core index']
  #allocation1 [shape = 'u32[144,128]{1,0:T(1,128)}', space=vmem, size = 0x12000, scoped, tag = 'internal scratch']
  %s0 = inlined_call_operand.vmem [shape: bf16[2,6,8,8,144], index: 0, kind: input, shape index: {}]
  %s1 = inlined_call_operand.vmem [shape: bf16[3,144,32], index: 1, kind: input, shape index: {}]
  %s2 = inlined_call_operand.vmem [shape: f32[1,32], index: 2, kind: input, shape index: {}]
  %s3 = inlined_call_operand.vmem [shape: f32[2,4,8,8,32], index: 3, kind: output, shape index: {}]
  %s4 = sld [smem:[#allocation0]]
  $region45: #{upblock_forward.5} parent=0
    _
  %s6 = ssub.s32 1, %s4
  %s7 = scalar_select 0, %s6, %s4
  loop: start=0, step=1, limit=4
  $region2: #{upblock_forward.5} parent=0 // loop_pre_header
    _
  $region3: #{upblock_forward.5} parent=0 // loop_header
    %s9 = sphi 0, %s13
    %p10 = scmp.ge.s32.totalorder %s9, 4
    %s16 = sphi 0, %s28
    %s17 = sphi 0, %s24
    %s18 = sphi 0, %s16
    %s19 = sphi 0, %s17
    %s20 = sphi 0, %s18
    %s21 = sphi 0, %s19
    %s31 = sphi 0, %s33
    %s34 = sphi 0, %s31
    %s35 = sphi 0, %s34
    %s51 = sphi 0, %s35
    %s55 = sphi 0, %s55
    %s57 = sphi 0, %s55
    %s58 = sphi 0, %s57
    %s72 = sphi 0, %s58
    %s76 = sphi 0, %s76
    %s78 = sphi 0, %s76
    %s79 = sphi 0, %s78
    %s93 = sphi 0, %s79
    %s101 = sphi 0, %s103
    %s104 = sphi 0, %s101
    %s105 = sphi 0, %s104
    %s121 = sphi 0, %s105
  $region4: #{upblock_forward.5} parent=0 // loop_header_branch
    %12 = sbr.rel (%p10) target = $region8
  $region5: #{upblock_forward.5} parent=0 // loop_body
    %s14 = ssub.s32 %s9, 1
    %s15 = ssub.s32 %s9, 2
    %s22 = sadd.s32 1, %s17
    %p23 = scmp.ge.s32.totalorder %s22, 1
    %s24 = scalar_select %p23, 0, %s22
    %s25 = sadd.s32 1, %s16
    %s26 = scalar_select %p23, %s25, %s16
    %p27 = scmp.ge.s32.totalorder %s26, 2
    %s28 = scalar_select %p27, 0, %s26
    %s29 = ssub.s32 %s16, %s28
    %p30 = scmp.eq.s32.totalorder %s29, 0
    %s32 = sadd.s32 %s31, 1
    %s33 = scalar_select %p30, %s31, %s32
    %p36 = pneg %p30
    %p37 = scmp.eq.s32.totalorder %s9, 1
    %p38 = por %p36, %p37
    %p39 = scmp.ne.s32.totalorder %s31, %s34
    %p40 = scmp.eq.s32.totalorder %s9, 0
    %p41 = por %p39, %p40
    %p42 = scmp.ne.s32.totalorder %s31, %s34
    %p43 = scmp.eq.s32.totalorder %s14, 1
    %p44 = por %p42, %p43
    %p45 = scmp.ne.s32.totalorder %s34, %s35
    %p46 = scmp.eq.s32.totalorder %s14, 0
    %p47 = por %p45, %p46
    %p48 = scmp.ne.s32.totalorder %s34, %s35
    %p49 = scmp.eq.s32.totalorder %s15, 1
    %p50 = por %p48, %p49
    %p52 = scmp.ne.s32.totalorder %s35, %s51
    %p53 = scmp.eq.s32.totalorder %s15, 0
    %p54 = por %p52, %p53
    %s56 = sadd.s32 %s55, 1
    %p59 = scmp.eq.s32.totalorder %s9, 1
    %p60 = scmp.ne.s32.totalorder %s55, %s57
    %p61 = scmp.eq.s32.totalorder %s9, 0
    %p62 = por %p60, %p61
    %p63 = scmp.ne.s32.totalorder %s55, %s57
    %p64 = scmp.eq.s32.totalorder %s14, 1
    %p65 = por %p63, %p64
    %p66 = scmp.ne.s32.totalorder %s57, %s58
    %p67 = scmp.eq.s32.totalorder %s14, 0
    %p68 = por %p66, %p67
    %p69 = scmp.ne.s32.totalorder %s57, %s58
    %p70 = scmp.eq.s32.totalorder %s15, 1
    %p71 = por %p69, %p70
    %p73 = scmp.ne.s32.totalorder %s58, %s72
    %p74 = scmp.eq.s32.totalorder %s15, 0
    %p75 = por %p73, %p74
    %s77 = sadd.s32 %s76, 1
    %p80 = scmp.eq.s32.totalorder %s9, 1
    %p81 = scmp.ne.s32.totalorder %s76, %s78
    %p82 = scmp.eq.s32.totalorder %s9, 0
    %p83 = por %p81, %p82
    %p84 = scmp.ne.s32.totalorder %s76, %s78
    %p85 = scmp.eq.s32.totalorder %s14, 1
    %p86 = por %p84, %p85
    %p87 = scmp.ne.s32.totalorder %s78, %s79
    %p88 = scmp.eq.s32.totalorder %s14, 0
    %p89 = por %p87, %p88
    %p90 = scmp.ne.s32.totalorder %s78, %s79
    %p91 = scmp.eq.s32.totalorder %s15, 1
    %p92 = por %p90, %p91
    %p94 = scmp.ne.s32.totalorder %s79, %s93
    %p95 = scmp.eq.s32.totalorder %s15, 0
    %p96 = por %p94, %p95
    %s97 = ssub.s32 %s16, %s28
    %s98 = ssub.s32 %s17, %s24
    %s99 = sor.u32 %s97, %s98
    %p100 = scmp.eq.s32.totalorder %s99, 0
    %s102 = sadd.s32 %s101, 1
    %s103 = scalar_select %p100, %s101, %s102
    %p106 = pneg %p100
    %p107 = scmp.eq.s32.totalorder %s9, 1
    %p108 = por %p106, %p107
    %p109 = scmp.ne.s32.totalorder %s101, %s104
    %p110 = scmp.eq.s32.totalorder %s9, 0
    %p111 = por %p109, %p110
    %p112 = scmp.ne.s32.totalorder %s101, %s104
    %p113 = scmp.eq.s32.totalorder %s14, 1
    %p114 = por %p112, %p113
    %p115 = scmp.ne.s32.totalorder %s104, %s105
    %p116 = scmp.eq.s32.totalorder %s14, 0
    %p117 = por %p115, %p116
    %p118 = scmp.ne.s32.totalorder %s104, %s105
    %p119 = scmp.eq.s32.totalorder %s15, 1
    %p120 = por %p118, %p119
    %p122 = scmp.ne.s32.totalorder %s105, %s121
    %p123 = scmp.eq.s32.totalorder %s15, 0
    %p124 = por %p122, %p123
    %p125 = scmp.le.s32.totalorder 1, %s9
    %p126 = scmp.lt.s32.totalorder %s9, 3
    %p127 = pnand %p125, %p126
    %p128 = pneg %p127
    // Predicated region
    $region9: #{upblock_forward.5} parent=5 // pred_check
      _
    $region10: #{upblock_forward.5} parent=5 // pred_check_branch
      %130 = sbr.rel (%p127) target = $region12
    $region11: #{upblock_forward.5} parent=5 // pred_region
      %s131 = ssub.s32 %s9, 1
      // Predicated region
      $region13: #{upblock_forward.5} parent=11 // pred_check
        %p132 = pneg %p68
      $region14: #{upblock_forward.5} parent=11 // pred_check_branch
        %134 = sbr.rel (%p132) target = $region16
      $region15: #{upblock_forward.5} parent=11 // pred_region
        _
      $region16: #{upblock_forward.5} parent=11 // pred_fallthru
        _
      // Predicated region
      $region17: #{upblock_forward.5} parent=11 // pred_check
        %p135 = pneg %p89
      $region18: #{upblock_forward.5} parent=11 // pred_check_branch
        %137 = sbr.rel (%p135) target = $region20
      $region19: #{upblock_forward.5} parent=11 // pred_region
        _
      $region20: #{upblock_forward.5} parent=11 // pred_fallthru
        _
    $region12: #{upblock_forward.5} parent=5 // pred_fallthru
      _
    %p138 = scmp.lt.s32.totalorder %s9, 2
    // Predicated region
    $region21: #{upblock_forward.5} parent=5 // pred_check
      %p139 = pneg %p138
    $region22: #{upblock_forward.5} parent=5 // pred_check_branch
      %141 = sbr.rel (%p139) target = $region24
    $region23: #{upblock_forward.5} parent=5 // pred_region
      // Predicated region
      $region25: #{upblock_forward.5} parent=23 // pred_check
        %p142 = pneg %p41
      $region26: #{upblock_forward.5} parent=23 // pred_check_branch
        %144 = sbr.rel (%p142) target = $region28
      $region27: #{upblock_forward.5} parent=23 // pred_region
        %p145 = scmp.lt.s32.totalorder %s16, 1
        %s146 = scalar_select %p145, %s16, 1
        %s147 = smul.addr %s146, 96
        %s148 = smul.addr %s147, 4
        %s149 = scalar_lea.vmem %s0, %s148
      $region28: #{upblock_forward.5} parent=23 // pred_fallthru
        _
    $region24: #{upblock_forward.5} parent=5 // pred_fallthru
      _
    %p150 = scmp.le.s32.totalorder 1, %s9
    %p151 = scmp.lt.s32.totalorder %s9, 3
    %p152 = pnand %p150, %p151
    %p153 = pneg %p152
    // Predicated region
    $region29: #{upblock_forward.5} parent=5 // pred_check
      _
    $region30: #{upblock_forward.5} parent=5 // pred_check_branch
      %155 = sbr.rel (%p152) target = $region32
    $region31: #{upblock_forward.5} parent=5 // pred_region
      %s156 = ssub.s32 %s9, 1
      %p157 = scmp.lt.s32.totalorder %s18, 1
      %s158 = scalar_select %p157, %s18, 1
      %s159 = smul.addr %s158, 96
      %s160 = smul.addr %s159, 4
      %s161 = scalar_lea.vmem %s0, %s160
      %p162 = pneg %p47
      %p163 = pneg %p44
      %p164 = pneg %p68
      %p165 = pneg %p65
      %p166 = pneg %p89
      %p167 = pneg %p86
      %p168 = pneg %p117
      %p169 = pneg %p114
      %s170 = smul.u32 4, %s19
      %p171 = scmp.lt.s32.totalorder %s18, 1
      %s172 = scalar_select %p171, %s18, 1
      %p173 = scmp.lt.s32.totalorder %s170, 3
      %s174 = scalar_select %p173, %s170, 3
      %s175 = smul.addr %s174, 8
      %s176 = smul.addr %s172, 32
      %s177 = sadd.s32 %s175, %s176
      %s178 = smul.addr %s177, 8
      %s179 = scalar_lea.vmem %s3, %s178
      %p180 = scmp.lt.s32.totalorder %s18, 1
      %s181 = scalar_select %p180, %s18, 1
      %s182 = smul.addr %s181, 96
      %s183 = smul.addr %s182, 4
      %s184 = scalar_lea.vmem %s0, %s183
      %s185 = smul.u32 4, %s19
      %p186 = scmp.lt.s32.totalorder %s18, 1
      %s187 = scalar_select %p186, %s18, 1
      %p188 = scmp.lt.s32.totalorder %s185, 3
      %s189 = scalar_select %p188, %s185, 3
      %s190 = smul.addr %s189, 8
      %s191 = smul.addr %s187, 32
      %s192 = sadd.s32 %s190, %s191
      %s193 = smul.addr %s192, 8
      %s194 = scalar_lea.vmem %s3, %s193
      %s195 = smul.u32 4, %s19
      %s197 = smul.u32 %s19, 4
      %s198 = smul.u32 %s197, 16
      %s199 = smul.addr %s198, 4
      %s200 = scalar_lea.vmem %s184, %s199
      %v201 = vld [vmem:[%s200] sm:$0xff]
      %v202 = vld [vmem:[%s200 + $0x8] sm:$0xff]
      %v203 = vld [vmem:[%s200 + $0x10] sm:$0xff]
      %v204 = vld [vmem:[%s200 + $0x18] sm:$0xff]
      %v205 = vld [vmem:[%s200 + $0x20] sm:$0xff]
      %v206 = vld [vmem:[%s200 + $0x28] sm:$0xff]
      %v207 = vld [vmem:[%s200 + $0x30] sm:$0xff]
      %v208 = vld [vmem:[%s200 + $0x38] sm:$0xff]
      %v209 = vld [vmem:[%s200 + $0x40] sm:$0xff]
      %v210 = vld [vmem:[%s200 + $0x48] sm:$0xff]
      %v211 = vld [vmem:[%s200 + $0x50] sm:$0xff]
      %v212 = vld [vmem:[%s200 + $0x58] sm:$0xff]
      %v213 = vld [vmem:[%s200 + $0x60] sm:$0xff]
      %v214 = vld [vmem:[%s200 + $0x68] sm:$0xff]
      %v215 = vld [vmem:[%s200 + $0x70] sm:$0xff]
      %v216 = vld [vmem:[%s200 + $0x78] sm:$0xff]
      %v217 = vld [vmem:[%s200 + $0x80] sm:$0xff]
      %v218 = vld [vmem:[%s200 + $0x88] sm:$0xff]
      %v219 = vld [vmem:[%s200 + $0x90] sm:$0xff]
      %v220 = vld [vmem:[%s200 + $0x98] sm:$0xff]
      %v221 = vld [vmem:[%s200 + $0xa0] sm:$0xff]
      %v222 = vld [vmem:[%s200 + $0xa8] sm:$0xff]
      %v223 = vld [vmem:[%s200 + $0xb0] sm:$0xff]
      %v224 = vld [vmem:[%s200 + $0xb8] sm:$0xff]
      %v225 = vld [vmem:[%s200 + $0xc0] sm:$0xff]
      %v226 = vld [vmem:[%s200 + $0xc8] sm:$0xff]
      %v227 = vld [vmem:[%s200 + $0xd0] sm:$0xff]
      %v228 = vld [vmem:[%s200 + $0xd8] sm:$0xff]
      %v229 = vld [vmem:[%s200 + $0xe0] sm:$0xff]
      %v230 = vld [vmem:[%s200 + $0xe8] sm:$0xff]
      %v231 = vld [vmem:[%s200 + $0xf0] sm:$0xff]
      %v232 = vld [vmem:[%s200 + $0xf8] sm:$0xff]
      %v233 = vld [vmem:[%s1] sm:$0xf]
      %v234 = vld [vmem:[%s1 + $0x4] sm:$0xf]
      %v235 = vld [vmem:[%s1 + $0x8] sm:$0xf]
      %v236 = vld [vmem:[%s1 + $0xc] sm:$0xf]
      %v237 = vld [vmem:[%s1 + $0x10] sm:$0xf]
      %v238 = vld [vmem:[%s1 + $0x14] sm:$0xf]
      %v239 = vld [vmem:[%s1 + $0x18] sm:$0xf]
      %v240 = vld [vmem:[%s1 + $0x1c] sm:$0xf]
      %v241 = vld [vmem:[%s1 + $0x20] sm:$0xf]
      %v242 = vld [vmem:[%s1 + $0x24] sm:$0xf]
      %v243 = vld [vmem:[%s1 + $0x28] sm:$0xf]
      %v244 = vld [vmem:[%s1 + $0x2c] sm:$0xf]
      %v245 = vld [vmem:[%s1 + $0x30] sm:$0xf]
      %v246 = vld [vmem:[%s1 + $0x34] sm:$0xf]
      %v247 = vld [vmem:[%s1 + $0x38] sm:$0xf]
      %v248 = vld [vmem:[%s1 + $0x3c] sm:$0xf]
      %v249 = vld [vmem:[%s1 + $0x40] sm:$0xf]
      %v250 = vld [vmem:[%s1 + $0x44] sm:$0xf]
      %s251 = sadd.s32 %s197, 1
      %s252 = smul.u32 %s251, 16
      %s253 = smul.addr %s252, 4
      %s254 = scalar_lea.vmem %s184, %s253
      %v255 = vld [vmem:[%s254] sm:$0xff]
      %v256 = vld [vmem:[%s254 + $0x8] sm:$0xff]
      %v257 = vld [vmem:[%s254 + $0x10] sm:$0xff]
      %v258 = vld [vmem:[%s254 + $0x18] sm:$0xff]
      %v259 = vld [vmem:[%s254 + $0x20] sm:$0xff]
      %v260 = vld [vmem:[%s254 + $0x28] sm:$0xff]
      %v261 = vld [vmem:[%s254 + $0x30] sm:$0xff]
      %v262 = vld [vmem:[%s254 + $0x38] sm:$0xff]
      %v263 = vld [vmem:[%s254 + $0x40] sm:$0xff]
      %v264 = vld [vmem:[%s254 + $0x48] sm:$0xff]
      %v265 = vld [vmem:[%s254 + $0x50] sm:$0xff]
      %v266 = vld [vmem:[%s254 + $0x58] sm:$0xff]
      %v267 = vld [vmem:[%s254 + $0x60] sm:$0xff]
      %v268 = vld [vmem:[%s254 + $0x68] sm:$0xff]
      %v269 = vld [vmem:[%s254 + $0x70] sm:$0xff]
      %v270 = vld [vmem:[%s254 + $0x78] sm:$0xff]
      %v271 = vld [vmem:[%s254 + $0x80] sm:$0xff]
      %v272 = vld [vmem:[%s254 + $0x88] sm:$0xff]
      %v273 = vld [vmem:[%s254 + $0x90] sm:$0xff]
      %v274 = vld [vmem:[%s254 + $0x98] sm:$0xff]
      %v275 = vld [vmem:[%s254 + $0xa0] sm:$0xff]
      %v276 = vld [vmem:[%s254 + $0xa8] sm:$0xff]
      %v277 = vld [vmem:[%s254 + $0xb0] sm:$0xff]
      %v278 = vld [vmem:[%s254 + $0xb8] sm:$0xff]
      %v279 = vld [vmem:[%s254 + $0xc0] sm:$0xff]
      %v280 = vld [vmem:[%s254 + $0xc8] sm:$0xff]
      %v281 = vld [vmem:[%s254 + $0xd0] sm:$0xff]
      %v282 = vld [vmem:[%s254 + $0xd8] sm:$0xff]
      %v283 = vld [vmem:[%s254 + $0xe0] sm:$0xff]
      %v284 = vld [vmem:[%s254 + $0xe8] sm:$0xff]
      %v285 = vld [vmem:[%s254 + $0xf0] sm:$0xff]
      %v286 = vld [vmem:[%s254 + $0xf8] sm:$0xff]
      %s287 = scalar_lea.vmem %s1, 72
      %v288 = vld [vmem:[%s287] sm:$0xf]
      %v289 = vld [vmem:[%s287 + $0x4] sm:$0xf]
      %v290 = vld [vmem:[%s287 + $0x8] sm:$0xf]
      %v291 = vld [vmem:[%s287 + $0xc] sm:$0xf]
      %v292 = vld [vmem:[%s287 + $0x10] sm:$0xf]
      %v293 = vld [vmem:[%s287 + $0x14] sm:$0xf]
      %v294 = vld [vmem:[%s287 + $0x18] sm:$0xf]
      %v295 = vld [vmem:[%s287 + $0x1c] sm:$0xf]
      %v296 = vld [vmem:[%s287 + $0x20] sm:$0xf]
      %v297 = vld [vmem:[%s287 + $0x24] sm:$0xf]
      %v298 = vld [vmem:[%s287 + $0x28] sm:$0xf]
      %v299 = vld [vmem:[%s287 + $0x2c] sm:$0xf]
      %v300 = vld [vmem:[%s287 + $0x30] sm:$0xf]
      %v301 = vld [vmem:[%s287 + $0x34] sm:$0xf]
      %v302 = vld [vmem:[%s287 + $0x38] sm:$0xf]
      %v303 = vld [vmem:[%s287 + $0x3c] sm:$0xf]
      %v304 = vld [vmem:[%s287 + $0x40] sm:$0xf]
      %v305 = vld [vmem:[%s287 + $0x44] sm:$0xf]
      %v338 = vunpack.c.l.b16 %v255
      %v339 = vunpack.c.h.b16 %v255
      %v340 = vunpack.c.l.b16 %v256
      %v341 = vunpack.c.h.b16 %v256
      %v342 = vunpack.c.l.b16 %v257
      %v343 = vunpack.c.h.b16 %v257
      %v344 = vunpack.c.l.b16 %v258
      %v345 = vunpack.c.h.b16 %v258
      %v346 = vunpack.c.l.b16 %v259
      %v347 = vunpack.c.h.b16 %v259
      %v348 = vunpack.c.l.b16 %v260
      %v349 = vunpack.c.h.b16 %v260
      %v350 = vunpack.c.l.b16 %v261
      %v351 = vunpack.c.h.b16 %v261
      %v352 = vunpack.c.l.b16 %v262
      %v353 = vunpack.c.h.b16 %v262
      %v354 = vunpack.c.l.b16 %v263
      %v355 = vunpack.c.h.b16 %v263
      %v356 = vunpack.c.l.b16 %v264
      %v357 = vunpack.c.h.b16 %v264
      %v358 = vunpack.c.l.b16 %v265
      %v359 = vunpack.c.h.b16 %v265
      %v360 = vunpack.c.l.b16 %v266
      %v361 = vunpack.c.h.b16 %v266
      %v362 = vunpack.c.l.b16 %v267
      %v363 = vunpack.c.h.b16 %v267
      %v364 = vunpack.c.l.b16 %v268
      %v365 = vunpack.c.h.b16 %v268
      %v366 = vunpack.c.l.b16 %v269
      %v367 = vunpack.c.h.b16 %v269
      %v368 = vunpack.c.l.b16 %v270
      %v369 = vunpack.c.h.b16 %v270
      %v370 = vunpack.c.l.b16 %v271
      %v371 = vunpack.c.h.b16 %v271
      %v372 = vunpack.c.l.b16 %v272
      %v373 = vunpack.c.h.b16 %v272
      %v374 = vunpack.c.l.b16 %v273
      %v375 = vunpack.c.h.b16 %v273
      %v376 = vunpack.c.l.b16 %v274
      %v377 = vunpack.c.h.b16 %v274
      %v378 = vunpack.c.l.b16 %v275
      %v379 = vunpack.c.h.b16 %v275
      %v380 = vunpack.c.l.b16 %v276
      %v381 = vunpack.c.h.b16 %v276
      %v382 = vunpack.c.l.b16 %v277
      %v383 = vunpack.c.h.b16 %v277
      %v384 = vunpack.c.l.b16 %v278
      %v385 = vunpack.c.h.b16 %v278
      %v386 = vunpack.c.l.b16 %v279
      %v387 = vunpack.c.h.b16 %v279
      %v388 = vunpack.c.l.b16 %v280
      %v389 = vunpack.c.h.b16 %v280
      %v390 = vunpack.c.l.b16 %v281
      %v391 = vunpack.c.h.b16 %v281
      %v392 = vunpack.c.l.b16 %v282
      %v393 = vunpack.c.h.b16 %v282
      %v394 = vunpack.c.l.b16 %v283
      %v395 = vunpack.c.h.b16 %v283
      %v396 = vunpack.c.l.b16 %v284
      %v397 = vunpack.c.h.b16 %v284
      %v398 = vunpack.c.l.b16 %v285
      %v399 = vunpack.c.h.b16 %v285
      %v400 = vunpack.c.l.b16 %v286
      %v401 = vunpack.c.h.b16 %v286
      %v402 = vpack.c.b16 %v340, %v338
      %v403 = vpack.c.b16 %v341, %v339
      %v404 = vpack.c.b16 %v344, %v342
      %v405 = vpack.c.b16 %v345, %v343
      %v406 = vpack.c.b16 %v348, %v346
      %v407 = vpack.c.b16 %v349, %v347
      %v408 = vpack.c.b16 %v352, %v350
      %v409 = vpack.c.b16 %v353, %v351
      %v410 = vpack.c.b16 %v356, %v354
      %v411 = vpack.c.b16 %v357, %v355
      %v412 = vpack.c.b16 %v360, %v358
      %v413 = vpack.c.b16 %v361, %v359
      %v414 = vpack.c.b16 %v364, %v362
      %v415 = vpack.c.b16 %v365, %v363
      %v416 = vpack.c.b16 %v368, %v366
      %v417 = vpack.c.b16 %v369, %v367
      %v418 = vpack.c.b16 %v372, %v370
      %v419 = vpack.c.b16 %v373, %v371
      %v420 = vpack.c.b16 %v376, %v374
      %v421 = vpack.c.b16 %v377, %v375
      %v422 = vpack.c.b16 %v380, %v378
      %v423 = vpack.c.b16 %v381, %v379
      %v424 = vpack.c.b16 %v384, %v382
      %v425 = vpack.c.b16 %v385, %v383
      %v426 = vpack.c.b16 %v388, %v386
      %v427 = vpack.c.b16 %v389, %v387
      %v428 = vpack.c.b16 %v392, %v390
      %v429 = vpack.c.b16 %v393, %v391
      %v430 = vpack.c.b16 %v396, %v394
      %v431 = vpack.c.b16 %v397, %v395
      %v432 = vpack.c.b16 %v400, %v398
      %v433 = vpack.c.b16 %v401, %v399
      %v468 = vunpack.c.l.b16 %v288
      %v469 = vunpack.c.l.b16 %v289
      %v470 = vunpack.c.l.b16 %v290
      %v471 = vunpack.c.l.b16 %v291
      %v472 = vunpack.c.l.b16 %v292
      %v473 = vunpack.c.l.b16 %v293
      %v474 = vunpack.c.l.b16 %v294
      %v475 = vunpack.c.l.b16 %v295
      %v476 = vunpack.c.l.b16 %v296
      %v477 = vunpack.c.l.b16 %v297
      %v478 = vunpack.c.l.b16 %v298
      %v479 = vunpack.c.l.b16 %v299
      %v480 = vunpack.c.l.b16 %v300
      %v481 = vunpack.c.l.b16 %v301
      %v482 = vunpack.c.l.b16 %v302
      %v483 = vunpack.c.l.b16 %v303
      %v484 = vunpack.c.l.b16 %v304
      %v485 = vunpack.c.l.b16 %v305
      %v486 = vpack.c.b16 %v469, %v468
      %v487 = vpack.c.b16 %v471, %v470
      %v488 = vpack.c.b16 %v473, %v472
      %v489 = vpack.c.b16 %v475, %v474
      %v490 = vpack.c.b16 %v477, %v476
      %v491 = vpack.c.b16 %v479, %v478
      %v492 = vpack.c.b16 %v481, %v480
      %v493 = vpack.c.b16 %v483, %v482
      %v494 = vpack.c.b16 %v485, %v484
      %vm504 = vcmask 130048
      %v506 = vsel %vm504, %v403, 0
      %v509 = vsel %vm504, %v405, 0
      %v512 = vsel %vm504, %v407, 0
      %v515 = vsel %vm504, %v409, 0
      %v518 = vsel %vm504, %v411, 0
      %v521 = vsel %vm504, %v413, 0
      %v524 = vsel %vm504, %v415, 0
      %v527 = vsel %vm504, %v417, 0
      %v530 = vsel %vm504, %v419, 0
      %v533 = vsel %vm504, %v421, 0
      %v536 = vsel %vm504, %v423, 0
      %v539 = vsel %vm504, %v425, 0
      %v542 = vsel %vm504, %v427, 0
      %v545 = vsel %vm504, %v429, 0
      %v548 = vsel %vm504, %v431, 0
      %v551 = vsel %vm504, %v433, 0
      %553 = vmatprep.subr.bf16.mxu0 0
      %554 = vmatpush1.bf16.msra.mxu0 %v493
      %555 = vmatprep.subr.bf16.mxu0 0
      %556 = vmatpush1.bf16.msra.mxu0 %v492
      %557 = vmatprep.subr.bf16.mxu0 0
      %558 = vmatpush1.bf16.msra.mxu0 %v491
      %559 = vmatprep.subr.bf16.mxu0 0
      %560 = vmatpush1.bf16.msra.mxu0 %v490
      %561 = vmatprep.subr.bf16.mxu0 0
      %562 = vmatpush1.bf16.msra.mxu0 %v489
      %563 = vmatprep.subr.bf16.mxu0 0
      %564 = vmatpush1.bf16.msra.mxu0 %v488
      %565 = vmatprep.subr.bf16.mxu0 0
      %566 = vmatpush1.bf16.msra.mxu0 %v487
      %567 = vmatprep.subr.bf16.mxu0 0
      %568 = vmatpush1.bf16.msra.mxu0 %v486
      %569 = vmatprep.subr.bf16.mxu0 0
      %570 = vmatpush2.bf16.msra.mxu0 0
      %571 = vmatprep.subr.bf16.mxu0 0
      %572 = vmatpush2.bf16.msra.mxu0 0
      %573 = vmatprep.subr.bf16.mxu0 0
      %574 = vmatpush2.bf16.msra.mxu0 0
      %575 = vmatprep.subr.bf16.mxu0 0
      %576 = vmatpush2.bf16.msra.mxu0 0
      %577 = vmatprep.subr.bf16.mxu0 0
      %578 = vmatpush2.bf16.msra.mxu0 0
      %579 = vmatprep.subr.bf16.mxu0 0
      %580 = vmatpush2.bf16.msra.mxu0 0
      %581 = vmatprep.subr.bf16.mxu0 0
      %582 = vmatpush2.bf16.msra.mxu0 0
      %583 = vmatprep.subr.bf16.mxu0 0
      %584 = vmatpush2.bf16.msra.mxu0 %v494
      %585 = vmatprep.mubr.bf16.mxu0 %v506
      %586 = vmatmul.mubr.bf16.gmra.mxu0 %v402
      %v587 = vpop.f32.mrf.mxu0
      %v588 = vadd.f32 0.0, %v587
      %v589 = vpop.f32.mrf.mxu0
      %v590 = vpop.f32.mrf.mxu0
      %v591 = vadd.f32 0.0, %v590
      %v592 = vpop.f32.mrf.mxu0
      %593 = vmatprep.mubr.bf16.mxu0 %v509
      %594 = vmatmul.mubr.bf16.gmra.mxu0 %v404
      %v595 = vpop.f32.mrf.mxu0
      %v596 = vadd.f32 0.0, %v595
      %v597 = vpop.f32.mrf.mxu0
      %v598 = vpop.f32.mrf.mxu0
      %v599 = vadd.f32 0.0, %v598
      %v600 = vpop.f32.mrf.mxu0
      %601 = vmatprep.mubr.bf16.mxu0 %v512
      %602 = vmatmul.mubr.bf16.gmra.mxu0 %v406
      %v603 = vpop.f32.mrf.mxu0
      %v604 = vadd.f32 0.0, %v603
      %v605 = vpop.f32.mrf.mxu0
      %v606 = vpop.f32.mrf.mxu0
      %v607 = vadd.f32 0.0, %v606
      %v608 = vpop.f32.mrf.mxu0
      %609 = vmatprep.mubr.bf16.mxu0 %v515
      %610 = vmatmul.mubr.bf16.gmra.mxu0 %v408
      %v611 = vpop.f32.mrf.mxu0
      %v612 = vadd.f32 0.0, %v611
      %v613 = vpop.f32.mrf.mxu0
      %v614 = vpop.f32.mrf.mxu0
      %v615 = vadd.f32 0.0, %v614
      %v616 = vpop.f32.mrf.mxu0
      %617 = vmatprep.mubr.bf16.mxu0 %v518
      %618 = vmatmul.mubr.bf16.gmra.mxu0 %v410
      %v619 = vpop.f32.mrf.mxu0
      %v620 = vadd.f32 0.0, %v619
      %v621 = vpop.f32.mrf.mxu0
      %v622 = vpop.f32.mrf.mxu0
      %v623 = vadd.f32 0.0, %v622
      %v624 = vpop.f32.mrf.mxu0
      %625 = vmatprep.mubr.bf16.mxu0 %v521
      %626 = vmatmul.mubr.bf16.gmra.mxu0 %v412
      %v627 = vpop.f32.mrf.mxu0
      %v628 = vadd.f32 0.0, %v627
      %v629 = vpop.f32.mrf.mxu0
      %v630 = vpop.f32.mrf.mxu0
      %v631 = vadd.f32 0.0, %v630
      %v632 = vpop.f32.mrf.mxu0
      %633 = vmatprep.mubr.bf16.mxu0 %v524
      %634 = vmatmul.mubr.bf16.gmra.mxu0 %v414
      %v635 = vpop.f32.mrf.mxu0
      %v636 = vadd.f32 0.0, %v635
      %v637 = vpop.f32.mrf.mxu0
      %v638 = vpop.f32.mrf.mxu0
      %v639 = vadd.f32 0.0, %v638
      %v640 = vpop.f32.mrf.mxu0
      %641 = vmatprep.mubr.bf16.mxu0 %v527
      %642 = vmatmul.mubr.bf16.gmra.mxu0 %v416
      %v643 = vpop.f32.mrf.mxu0
      %v644 = vadd.f32 0.0, %v643
      %v645 = vpop.f32.mrf.mxu0
      %v646 = vpop.f32.mrf.mxu0
      %v647 = vadd.f32 0.0, %v646
      %v648 = vpop.f32.mrf.mxu0
      %649 = vmatprep.mubr.bf16.mxu0 %v530
      %650 = vmatmul.mubr.bf16.gmra.mxu0 %v418
      %v651 = vpop.f32.mrf.mxu0
      %v652 = vadd.f32 0.0, %v651
      %v653 = vpop.f32.mrf.mxu0
      %v654 = vpop.f32.mrf.mxu0
      %v655 = vadd.f32 0.0, %v654
      %v656 = vpop.f32.mrf.mxu0
      %657 = vmatprep.mubr.bf16.mxu0 %v533
      %658 = vmatmul.mubr.bf16.gmra.mxu0 %v420
      %v659 = vpop.f32.mrf.mxu0
      %v660 = vadd.f32 0.0, %v659
      %v661 = vpop.f32.mrf.mxu0
      %v662 = vpop.f32.mrf.mxu0
      %v663 = vadd.f32 0.0, %v662
      %v664 = vpop.f32.mrf.mxu0
      %665 = vmatprep.mubr.bf16.mxu0 %v536
      %666 = vmatmul.mubr.bf16.gmra.mxu0 %v422
      %v667 = vpop.f32.mrf.mxu0
      %v668 = vadd.f32 0.0, %v667
      %v669 = vpop.f32.mrf.mxu0
      %v670 = vpop.f32.mrf.mxu0
      %v671 = vadd.f32 0.0, %v670
      %v672 = vpop.f32.mrf.mxu0
      %673 = vmatprep.mubr.bf16.mxu0 %v539
      %674 = vmatmul.mubr.bf16.gmra.mxu0 %v424
      %v675 = vpop.f32.mrf.mxu0
      %v676 = vadd.f32 0.0, %v675
      %v677 = vpop.f32.mrf.mxu0
      %v678 = vpop.f32.mrf.mxu0
      %v679 = vadd.f32 0.0, %v678
      %v680 = vpop.f32.mrf.mxu0
      %681 = vmatprep.mubr.bf16.mxu0 %v542
      %682 = vmatmul.mubr.bf16.gmra.mxu0 %v426
      %v683 = vpop.f32.mrf.mxu0
      %v684 = vadd.f32 0.0, %v683
      %v685 = vpop.f32.mrf.mxu0
      %v686 = vpop.f32.mrf.mxu0
      %v687 = vadd.f32 0.0, %v686
      %v688 = vpop.f32.mrf.mxu0
      %689 = vmatprep.mubr.bf16.mxu0 %v545
      %690 = vmatmul.mubr.bf16.gmra.mxu0 %v428
      %v691 = vpop.f32.mrf.mxu0
      %v692 = vadd.f32 0.0, %v691
      %v693 = vpop.f32.mrf.mxu0
      %v694 = vpop.f32.mrf.mxu0
      %v695 = vadd.f32 0.0, %v694
      %v696 = vpop.f32.mrf.mxu0
      %697 = vmatprep.mubr.bf16.mxu0 %v548
      %698 = vmatmul.mubr.bf16.gmra.mxu0 %v430
      %v699 = vpop.f32.mrf.mxu0
      %v700 = vadd.f32 0.0, %v699
      %v701 = vpop.f32.mrf.mxu0
      %v702 = vpop.f32.mrf.mxu0
      %v703 = vadd.f32 0.0, %v702
      %v704 = vpop.f32.mrf.mxu0
      %705 = vmatprep.mubr.bf16.mxu0 %v551
      %706 = vmatmul.mubr.bf16.gmra.mxu0 %v432
      %v707 = vpop.f32.mrf.mxu0
      %v708 = vadd.f32 0.0, %v707
      %v709 = vpop.f32.mrf.mxu0
      %v710 = vpop.f32.mrf.mxu0
      %v711 = vadd.f32 0.0, %v710
      %v712 = vpop.f32.mrf.mxu0
      %713 = vdwg.mxu0
      %v746 = vunpack.c.l.b16 %v201
      %v747 = vunpack.c.h.b16 %v201
      %v748 = vunpack.c.l.b16 %v202
      %v749 = vunpack.c.h.b16 %v202
      %v750 = vunpack.c.l.b16 %v203
      %v751 = vunpack.c.h.b16 %v203
      %v752 = vunpack.c.l.b16 %v204
      %v753 = vunpack.c.h.b16 %v204
      %v754 = vunpack.c.l.b16 %v205
      %v755 = vunpack.c.h.b16 %v205
      %v756 = vunpack.c.l.b16 %v206
      %v757 = vunpack.c.h.b16 %v206
      %v758 = vunpack.c.l.b16 %v207
      %v759 = vunpack.c.h.b16 %v207
      %v760 = vunpack.c.l.b16 %v208
      %v761 = vunpack.c.h.b16 %v208
      %v762 = vunpack.c.l.b16 %v209
      %v763 = vunpack.c.h.b16 %v209
      %v764 = vunpack.c.l.b16 %v210
      %v765 = vunpack.c.h.b16 %v210
      %v766 = vunpack.c.l.b16 %v211
      %v767 = vunpack.c.h.b16 %v211
      %v768 = vunpack.c.l.b16 %v212
      %v769 = vunpack.c.h.b16 %v212
      %v770 = vunpack.c.l.b16 %v213
      %v771 = vunpack.c.h.b16 %v213
      %v772 = vunpack.c.l.b16 %v214
      %v773 = vunpack.c.h.b16 %v214
      %v774 = vunpack.c.l.b16 %v215
      %v775 = vunpack.c.h.b16 %v215
      %v776 = vunpack.c.l.b16 %v216
      %v777 = vunpack.c.h.b16 %v216
      %v778 = vunpack.c.l.b16 %v217
      %v779 = vunpack.c.h.b16 %v217
      %v780 = vunpack.c.l.b16 %v218
      %v781 = vunpack.c.h.b16 %v218
      %v782 = vunpack.c.l.b16 %v219
      %v783 = vunpack.c.h.b16 %v219
      %v784 = vunpack.c.l.b16 %v220
      %v785 = vunpack.c.h.b16 %v220
      %v786 = vunpack.c.l.b16 %v221
      %v787 = vunpack.c.h.b16 %v221
      %v788 = vunpack.c.l.b16 %v222
      %v789 = vunpack.c.h.b16 %v222
      %v790 = vunpack.c.l.b16 %v223
      %v791 = vunpack.c.h.b16 %v223
      %v792 = vunpack.c.l.b16 %v224
      %v793 = vunpack.c.h.b16 %v224
      %v794 = vunpack.c.l.b16 %v225
      %v795 = vunpack.c.h.b16 %v225
      %v796 = vunpack.c.l.b16 %v226
      %v797 = vunpack.c.h.b16 %v226
      %v798 = vunpack.c.l.b16 %v227
      %v799 = vunpack.c.h.b16 %v227
      %v800 = vunpack.c.l.b16 %v228
      %v801 = vunpack.c.h.b16 %v228
      %v802 = vunpack.c.l.b16 %v229
      %v803 = vunpack.c.h.b16 %v229
      %v804 = vunpack.c.l.b16 %v230
      %v805 = vunpack.c.h.b16 %v230
      %v806 = vunpack.c.l.b16 %v231
      %v807 = vunpack.c.h.b16 %v231
      %v808 = vunpack.c.l.b16 %v232
      %v809 = vunpack.c.h.b16 %v232
      %v810 = vpack.c.b16 %v748, %v746
      %v811 = vpack.c.b16 %v749, %v747
      %v812 = vpack.c.b16 %v752, %v750
      %v813 = vpack.c.b16 %v753, %v751
      %v814 = vpack.c.b16 %v756, %v754
      %v815 = vpack.c.b16 %v757, %v755
      %v816 = vpack.c.b16 %v760, %v758
      %v817 = vpack.c.b16 %v761, %v759
      %v818 = vpack.c.b16 %v764, %v762
      %v819 = vpack.c.b16 %v765, %v763
      %v820 = vpack.c.b16 %v768, %v766
      %v821 = vpack.c.b16 %v769, %v767
      %v822 = vpack.c.b16 %v772, %v770
      %v823 = vpack.c.b16 %v773, %v771
      %v824 = vpack.c.b16 %v776, %v774
      %v825 = vpack.c.b16 %v777, %v775
      %v826 = vpack.c.b16 %v780, %v778
      %v827 = vpack.c.b16 %v781, %v779
      %v828 = vpack.c.b16 %v784, %v782
      %v829 = vpack.c.b16 %v785, %v783
      %v830 = vpack.c.b16 %v788, %v786
      %v831 = vpack.c.b16 %v789, %v787
      %v832 = vpack.c.b16 %v792, %v790
      %v833 = vpack.c.b16 %v793, %v791
      %v834 = vpack.c.b16 %v796, %v794
      %v835 = vpack.c.b16 %v797, %v795
      %v836 = vpack.c.b16 %v800, %v798
      %v837 = vpack.c.b16 %v801, %v799
      %v838 = vpack.c.b16 %v804, %v802
      %v839 = vpack.c.b16 %v805, %v803
      %v840 = vpack.c.b16 %v808, %v806
      %v841 = vpack.c.b16 %v809, %v807
      %v876 = vunpack.c.l.b16 %v233
      %v877 = vunpack.c.l.b16 %v234
      %v878 = vunpack.c.l.b16 %v235
      %v879 = vunpack.c.l.b16 %v236
      %v880 = vunpack.c.l.b16 %v237
      %v881 = vunpack.c.l.b16 %v238
      %v882 = vunpack.c.l.b16 %v239
      %v883 = vunpack.c.l.b16 %v240
      %v884 = vunpack.c.l.b16 %v241
      %v885 = vunpack.c.l.b16 %v242
      %v886 = vunpack.c.l.b16 %v243
      %v887 = vunpack.c.l.b16 %v244
      %v888 = vunpack.c.l.b16 %v245
      %v889 = vunpack.c.l.b16 %v246
      %v890 = vunpack.c.l.b16 %v247
      %v891 = vunpack.c.l.b16 %v248
      %v892 = vunpack.c.l.b16 %v249
      %v893 = vunpack.c.l.b16 %v250
      %v894 = vpack.c.b16 %v877, %v876
      %v895 = vpack.c.b16 %v879, %v878
      %v896 = vpack.c.b16 %v881, %v880
      %v897 = vpack.c.b16 %v883, %v882
      %v898 = vpack.c.b16 %v885, %v884
      %v899 = vpack.c.b16 %v887, %v886
      %v900 = vpack.c.b16 %v889, %v888
      %v901 = vpack.c.b16 %v891, %v890
      %v902 = vpack.c.b16 %v893, %v892
      %v913 = vsel %vm504, %v811, 0
      %v916 = vsel %vm504, %v813, 0
      %v919 = vsel %vm504, %v815, 0
      %v922 = vsel %vm504, %v817, 0
      %v925 = vsel %vm504, %v819, 0
      %v928 = vsel %vm504, %v821, 0
      %v931 = vsel %vm504, %v823, 0
      %v934 = vsel %vm504, %v825, 0
      %v937 = vsel %vm504, %v827, 0
      %v940 = vsel %vm504, %v829, 0
      %v943 = vsel %vm504, %v831, 0
      %v946 = vsel %vm504, %v833, 0
      %v949 = vsel %vm504, %v835, 0
      %v952 = vsel %vm504, %v837, 0
      %v955 = vsel %vm504, %v839, 0
      %v958 = vsel %vm504, %v841, 0
      %960 = vmatprep.subr.bf16.mxu0 0
      %961 = vmatpush1.bf16.msra.mxu0 %v901
      %962 = vmatprep.subr.bf16.mxu0 0
      %963 = vmatpush1.bf16.msra.mxu0 %v900
      %964 = vmatprep.subr.bf16.mxu0 0
      %965 = vmatpush1.bf16.msra.mxu0 %v899
      %966 = vmatprep.subr.bf16.mxu0 0
      %967 = vmatpush1.bf16.msra.mxu0 %v898
      %968 = vmatprep.subr.bf16.mxu0 0
      %969 = vmatpush1.bf16.msra.mxu0 %v897
      %970 = vmatprep.subr.bf16.mxu0 0
      %971 = vmatpush1.bf16.msra.mxu0 %v896
      %972 = vmatprep.subr.bf16.mxu0 0
      %973 = vmatpush1.bf16.msra.mxu0 %v895
      %974 = vmatprep.subr.bf16.mxu0 0
      %975 = vmatpush1.bf16.msra.mxu0 %v894
      %976 = vmatprep.subr.bf16.mxu0 0
      %977 = vmatpush2.bf16.msra.mxu0 0
      %978 = vmatprep.subr.bf16.mxu0 0
      %979 = vmatpush2.bf16.msra.mxu0 0
      %980 = vmatprep.subr.bf16.mxu0 0
      %981 = vmatpush2.bf16.msra.mxu0 0
      %982 = vmatprep.subr.bf16.mxu0 0
      %983 = vmatpush2.bf16.msra.mxu0 0
      %984 = vmatprep.subr.bf16.mxu0 0
      %985 = vmatpush2.bf16.msra.mxu0 0
      %986 = vmatprep.subr.bf16.mxu0 0
      %987 = vmatpush2.bf16.msra.mxu0 0
      %988 = vmatprep.subr.bf16.mxu0 0
      %989 = vmatpush2.bf16.msra.mxu0 0
      %990 = vmatprep.subr.bf16.mxu0 0
      %991 = vmatpush2.bf16.msra.mxu0 %v902
      %992 = vmatprep.mubr.bf16.mxu0 %v913
      %993 = vmatmul.mubr.bf16.gmra.mxu0 %v810
      %v994 = vpop.f32.mrf.mxu0
      %v995 = vadd.f32 %v588, %v994
      %v996 = vpop.f32.mrf.mxu0
      %v997 = vpop.f32.mrf.mxu0
      %v998 = vadd.f32 %v591, %v997
      %v999 = vpop.f32.mrf.mxu0
      %1000 = vmatprep.mubr.bf16.mxu0 %v916
      %1001 = vmatmul.mubr.bf16.gmra.mxu0 %v812
      %v1002 = vpop.f32.mrf.mxu0
      %v1003 = vadd.f32 %v596, %v1002
      %v1004 = vpop.f32.mrf.mxu0
      %v1005 = vpop.f32.mrf.mxu0
      %v1006 = vadd.f32 %v599, %v1005
      %v1007 = vpop.f32.mrf.mxu0
      %1008 = vmatprep.mubr.bf16.mxu0 %v919
      %1009 = vmatmul.mubr.bf16.gmra.mxu0 %v814
      %v1010 = vpop.f32.mrf.mxu0
      %v1011 = vadd.f32 %v604, %v1010
      %v1012 = vpop.f32.mrf.mxu0
      %v1013 = vpop.f32.mrf.mxu0
      %v1014 = vadd.f32 %v607, %v1013
      %v1015 = vpop.f32.mrf.mxu0
      %1016 = vmatprep.mubr.bf16.mxu0 %v922
      %1017 = vmatmul.mubr.bf16.gmra.mxu0 %v816
      %v1018 = vpop.f32.mrf.mxu0
      %v1019 = vadd.f32 %v612, %v1018
      %v1020 = vpop.f32.mrf.mxu0
      %v1021 = vpop.f32.mrf.mxu0
      %v1022 = vadd.f32 %v615, %v1021
      %v1023 = vpop.f32.mrf.mxu0
      %1024 = vmatprep.mubr.bf16.mxu0 %v925
      %1025 = vmatmul.mubr.bf16.gmra.mxu0 %v818
      %v1026 = vpop.f32.mrf.mxu0
      %v1027 = vadd.f32 %v620, %v1026
      %v1028 = vpop.f32.mrf.mxu0
      %v1029 = vpop.f32.mrf.mxu0
      %v1030 = vadd.f32 %v623, %v1029
      %v1031 = vpop.f32.mrf.mxu0
      %1032 = vmatprep.mubr.bf16.mxu0 %v928
      %1033 = vmatmul.mubr.bf16.gmra.mxu0 %v820
      %v1034 = vpop.f32.mrf.mxu0
      %v1035 = vadd.f32 %v628, %v1034
      %v1036 = vpop.f32.mrf.mxu0
      %v1037 = vpop.f32.mrf.mxu0
      %v1038 = vadd.f32 %v631, %v1037
      %v1039 = vpop.f32.mrf.mxu0
      %1040 = vmatprep.mubr.bf16.mxu0 %v931
      %1041 = vmatmul.mubr.bf16.gmra.mxu0 %v822
      %v1042 = vpop.f32.mrf.mxu0
      %v1043 = vadd.f32 %v636, %v1042
      %v1044 = vpop.f32.mrf.mxu0
      %v1045 = vpop.f32.mrf.mxu0
      %v1046 = vadd.f32 %v639, %v1045
      %v1047 = vpop.f32.mrf.mxu0
      %1048 = vmatprep.mubr.bf16.mxu0 %v934
      %1049 = vmatmul.mubr.bf16.gmra.mxu0 %v824
      %v1050 = vpop.f32.mrf.mxu0
      %v1051 = vadd.f32 %v644, %v1050
      %v1052 = vpop.f32.mrf.mxu0
      %v1053 = vpop.f32.mrf.mxu0
      %v1054 = vadd.f32 %v647, %v1053
      %v1055 = vpop.f32.mrf.mxu0
      %1056 = vmatprep.mubr.bf16.mxu0 %v937
      %1057 = vmatmul.mubr.bf16.gmra.mxu0 %v826
      %v1058 = vpop.f32.mrf.mxu0
      %v1059 = vadd.f32 %v652, %v1058
      %v1060 = vpop.f32.mrf.mxu0
      %v1061 = vpop.f32.mrf.mxu0
      %v1062 = vadd.f32 %v655, %v1061
      %v1063 = vpop.f32.mrf.mxu0
      %1064 = vmatprep.mubr.bf16.mxu0 %v940
      %1065 = vmatmul.mubr.bf16.gmra.mxu0 %v828
      %v1066 = vpop.f32.mrf.mxu0
      %v1067 = vadd.f32 %v660, %v1066
      %v1068 = vpop.f32.mrf.mxu0
      %v1069 = vpop.f32.mrf.mxu0
      %v1070 = vadd.f32 %v663, %v1069
      %v1071 = vpop.f32.mrf.mxu0
      %1072 = vmatprep.mubr.bf16.mxu0 %v943
      %1073 = vmatmul.mubr.bf16.gmra.mxu0 %v830
      %v1074 = vpop.f32.mrf.mxu0
      %v1075 = vadd.f32 %v668, %v1074
      %v1076 = vpop.f32.mrf.mxu0
      %v1077 = vpop.f32.mrf.mxu0
      %v1078 = vadd.f32 %v671, %v1077
      %v1079 = vpop.f32.mrf.mxu0
      %1080 = vmatprep.mubr.bf16.mxu0 %v946
      %1081 = vmatmul.mubr.bf16.gmra.mxu0 %v832
      %v1082 = vpop.f32.mrf.mxu0
      %v1083 = vadd.f32 %v676, %v1082
      %v1084 = vpop.f32.mrf.mxu0
      %v1085 = vpop.f32.mrf.mxu0
      %v1086 = vadd.f32 %v679, %v1085
      %v1087 = vpop.f32.mrf.mxu0
      %1088 = vmatprep.mubr.bf16.mxu0 %v949
      %1089 = vmatmul.mubr.bf16.gmra.mxu0 %v834
      %v1090 = vpop.f32.mrf.mxu0
      %v1091 = vadd.f32 %v684, %v1090
      %v1092 = vpop.f32.mrf.mxu0
      %v1093 = vpop.f32.mrf.mxu0
      %v1094 = vadd.f32 %v687, %v1093
      %v1095 = vpop.f32.mrf.mxu0
      %1096 = vmatprep.mubr.bf16.mxu0 %v952
      %1097 = vmatmul.mubr.bf16.gmra.mxu0 %v836
      %v1098 = vpop.f32.mrf.mxu0
      %v1099 = vadd.f32 %v692, %v1098
      %v1100 = vpop.f32.mrf.mxu0
      %v1101 = vpop.f32.mrf.mxu0
      %v1102 = vadd.f32 %v695, %v1101
      %v1103 = vpop.f32.mrf.mxu0
      %1104 = vmatprep.mubr.bf16.mxu0 %v955
      %1105 = vmatmul.mubr.bf16.gmra.mxu0 %v838
      %v1106 = vpop.f32.mrf.mxu0
      %v1107 = vadd.f32 %v700, %v1106
      %v1108 = vpop.f32.mrf.mxu0
      %v1109 = vpop.f32.mrf.mxu0
      %v1110 = vadd.f32 %v703, %v1109
      %v1111 = vpop.f32.mrf.mxu0
      %1112 = vmatprep.mubr.bf16.mxu0 %v958
      %1113 = vmatmul.mubr.bf16.gmra.mxu0 %v840
      %v1114 = vpop.f32.mrf.mxu0
      %v1115 = vadd.f32 %v708, %v1114
      %v1116 = vpop.f32.mrf.mxu0
      %v1117 = vpop.f32.mrf.mxu0
      %v1118 = vadd.f32 %v711, %v1117
      %v1119 = vpop.f32.mrf.mxu0
      %1120 = vdwg.mxu0
      %s1121 = sadd.s32 %s197, 2
      %s1122 = smul.u32 %s1121, 16
      %s1123 = smul.addr %s1122, 4
      %s1124 = scalar_lea.vmem %s184, %s1123
      %v1125 = vld [vmem:[%s1124] sm:$0xff]
      %v1126 = vld [vmem:[%s1124 + $0x8] sm:$0xff]
      %v1127 = vld [vmem:[%s1124 + $0x10] sm:$0xff]
      %v1128 = vld [vmem:[%s1124 + $0x18] sm:$0xff]
      %v1129 = vld [vmem:[%s1124 + $0x20] sm:$0xff]
      %v1130 = vld [vmem:[%s1124 + $0x28] sm:$0xff]
      %v1131 = vld [vmem:[%s1124 + $0x30] sm:$0xff]
      %v1132 = vld [vmem:[%s1124 + $0x38] sm:$0xff]
      %v1133 = vld [vmem:[%s1124 + $0x40] sm:$0xff]
      %v1134 = vld [vmem:[%s1124 + $0x48] sm:$0xff]
      %v1135 = vld [vmem:[%s1124 + $0x50] sm:$0xff]
      %v1136 = vld [vmem:[%s1124 + $0x58] sm:$0xff]
      %v1137 = vld [vmem:[%s1124 + $0x60] sm:$0xff]
      %v1138 = vld [vmem:[%s1124 + $0x68] sm:$0xff]
      %v1139 = vld [vmem:[%s1124 + $0x70] sm:$0xff]
      %v1140 = vld [vmem:[%s1124 + $0x78] sm:$0xff]
      %v1141 = vld [vmem:[%s1124 + $0x80] sm:$0xff]
      %v1142 = vld [vmem:[%s1124 + $0x88] sm:$0xff]
      %v1143 = vld [vmem:[%s1124 + $0x90] sm:$0xff]
      %v1144 = vld [vmem:[%s1124 + $0x98] sm:$0xff]
      %v1145 = vld [vmem:[%s1124 + $0xa0] sm:$0xff]
      %v1146 = vld [vmem:[%s1124 + $0xa8] sm:$0xff]
      %v1147 = vld [vmem:[%s1124 + $0xb0] sm:$0xff]
      %v1148 = vld [vmem:[%s1124 + $0xb8] sm:$0xff]
      %v1149 = vld [vmem:[%s1124 + $0xc0] sm:$0xff]
      %v1150 = vld [vmem:[%s1124 + $0xc8] sm:$0xff]
      %v1151 = vld [vmem:[%s1124 + $0xd0] sm:$0xff]
      %v1152 = vld [vmem:[%s1124 + $0xd8] sm:$0xff]
      %v1153 = vld [vmem:[%s1124 + $0xe0] sm:$0xff]
      %v1154 = vld [vmem:[%s1124 + $0xe8] sm:$0xff]
      %v1155 = vld [vmem:[%s1124 + $0xf0] sm:$0xff]
      %v1156 = vld [vmem:[%s1124 + $0xf8] sm:$0xff]
      %s1157 = scalar_lea.vmem %s1, 144
      %v1158 = vld [vmem:[%s1157] sm:$0xf]
      %v1159 = vld [vmem:[%s1157 + $0x4] sm:$0xf]
      %v1160 = vld [vmem:[%s1157 + $0x8] sm:$0xf]
      %v1161 = vld [vmem:[%s1157 + $0xc] sm:$0xf]
      %v1162 = vld [vmem:[%s1157 + $0x10] sm:$0xf]
      %v1163 = vld [vmem:[%s1157 + $0x14] sm:$0xf]
      %v1164 = vld [vmem:[%s1157 + $0x18] sm:$0xf]
      %v1165 = vld [vmem:[%s1157 + $0x1c] sm:$0xf]
      %v1166 = vld [vmem:[%s1157 + $0x20] sm:$0xf]
      %v1167 = vld [vmem:[%s1157 + $0x24] sm:$0xf]
      %v1168 = vld [vmem:[%s1157 + $0x28] sm:$0xf]
      %v1169 = vld [vmem:[%s1157 + $0x2c] sm:$0xf]
      %v1170 = vld [vmem:[%s1157 + $0x30] sm:$0xf]
      %v1171 = vld [vmem:[%s1157 + $0x34] sm:$0xf]
      %v1172 = vld [vmem:[%s1157 + $0x38] sm:$0xf]
      %v1173 = vld [vmem:[%s1157 + $0x3c] sm:$0xf]
      %v1174 = vld [vmem:[%s1157 + $0x40] sm:$0xf]
      %v1175 = vld [vmem:[%s1157 + $0x44] sm:$0xf]
      %v1208 = vunpack.c.l.b16 %v1125
      %v1209 = vunpack.c.h.b16 %v1125
      %v1210 = vunpack.c.l.b16 %v1126
      %v1211 = vunpack.c.h.b16 %v1126
      %v1212 = vunpack.c.l.b16 %v1127
      %v1213 = vunpack.c.h.b16 %v1127
      %v1214 = vunpack.c.l.b16 %v1128
      %v1215 = vunpack.c.h.b16 %v1128
      %v1216 = vunpack.c.l.b16 %v1129
      %v1217 = vunpack.c.h.b16 %v1129
      %v1218 = vunpack.c.l.b16 %v1130
      %v1219 = vunpack.c.h.b16 %v1130
      %v1220 = vunpack.c.l.b16 %v1131
      %v1221 = vunpack.c.h.b16 %v1131
      %v1222 = vunpack.c.l.b16 %v1132
      %v1223 = vunpack.c.h.b16 %v1132
      %v1224 = vunpack.c.l.b16 %v1133
      %v1225 = vunpack.c.h.b16 %v1133
      %v1226 = vunpack.c.l.b16 %v1134
      %v1227 = vunpack.c.h.b16 %v1134
      %v1228 = vunpack.c.l.b16 %v1135
      %v1229 = vunpack.c.h.b16 %v1135
      %v1230 = vunpack.c.l.b16 %v1136
      %v1231 = vunpack.c.h.b16 %v1136
      %v1232 = vunpack.c.l.b16 %v1137
      %v1233 = vunpack.c.h.b16 %v1137
      %v1234 = vunpack.c.l.b16 %v1138
      %v1235 = vunpack.c.h.b16 %v1138
      %v1236 = vunpack.c.l.b16 %v1139
      %v1237 = vunpack.c.h.b16 %v1139
      %v1238 = vunpack.c.l.b16 %v1140
      %v1239 = vunpack.c.h.b16 %v1140
      %v1240 = vunpack.c.l.b16 %v1141
      %v1241 = vunpack.c.h.b16 %v1141
      %v1242 = vunpack.c.l.b16 %v1142
      %v1243 = vunpack.c.h.b16 %v1142
      %v1244 = vunpack.c.l.b16 %v1143
      %v1245 = vunpack.c.h.b16 %v1143
      %v1246 = vunpack.c.l.b16 %v1144
      %v1247 = vunpack.c.h.b16 %v1144
      %v1248 = vunpack.c.l.b16 %v1145
      %v1249 = vunpack.c.h.b16 %v1145
      %v1250 = vunpack.c.l.b16 %v1146
      %v1251 = vunpack.c.h.b16 %v1146
      %v1252 = vunpack.c.l.b16 %v1147
      %v1253 = vunpack.c.h.b16 %v1147
      %v1254 = vunpack.c.l.b16 %v1148
      %v1255 = vunpack.c.h.b16 %v1148
      %v1256 = vunpack.c.l.b16 %v1149
      %v1257 = vunpack.c.h.b16 %v1149
      %v1258 = vunpack.c.l.b16 %v1150
      %v1259 = vunpack.c.h.b16 %v1150
      %v1260 = vunpack.c.l.b16 %v1151
      %v1261 = vunpack.c.h.b16 %v1151
      %v1262 = vunpack.c.l.b16 %v1152
      %v1263 = vunpack.c.h.b16 %v1152
      %v1264 = vunpack.c.l.b16 %v1153
      %v1265 = vunpack.c.h.b16 %v1153
      %v1266 = vunpack.c.l.b16 %v1154
      %v1267 = vunpack.c.h.b16 %v1154
      %v1268 = vunpack.c.l.b16 %v1155
      %v1269 = vunpack.c.h.b16 %v1155
      %v1270 = vunpack.c.l.b16 %v1156
      %v1271 = vunpack.c.h.b16 %v1156
      %v1272 = vpack.c.b16 %v1210, %v1208
      %v1273 = vpack.c.b16 %v1211, %v1209
      %v1274 = vpack.c.b16 %v1214, %v1212
      %v1275 = vpack.c.b16 %v1215, %v1213
      %v1276 = vpack.c.b16 %v1218, %v1216
      %v1277 = vpack.c.b16 %v1219, %v1217
      %v1278 = vpack.c.b16 %v1222, %v1220
      %v1279 = vpack.c.b16 %v1223, %v1221
      %v1280 = vpack.c.b16 %v1226, %v1224
      %v1281 = vpack.c.b16 %v1227, %v1225
      %v1282 = vpack.c.b16 %v1230, %v1228
      %v1283 = vpack.c.b16 %v1231, %v1229
      %v1284 = vpack.c.b16 %v1234, %v1232
      %v1285 = vpack.c.b16 %v1235, %v1233
      %v1286 = vpack.c.b16 %v1238, %v1236
      %v1287 = vpack.c.b16 %v1239, %v1237
      %v1288 = vpack.c.b16 %v1242, %v1240
      %v1289 = vpack.c.b16 %v1243, %v1241
      %v1290 = vpack.c.b16 %v1246, %v1244
      %v1291 = vpack.c.b16 %v1247, %v1245
      %v1292 = vpack.c.b16 %v1250, %v1248
      %v1293 = vpack.c.b16 %v1251, %v1249
      %v1294 = vpack.c.b16 %v1254, %v1252
      %v1295 = vpack.c.b16 %v1255, %v1253
      %v1296 = vpack.c.b16 %v1258, %v1256
      %v1297 = vpack.c.b16 %v1259, %v1257
      %v1298 = vpack.c.b16 %v1262, %v1260
      %v1299 = vpack.c.b16 %v1263, %v1261
      %v1300 = vpack.c.b16 %v1266, %v1264
      %v1301 = vpack.c.b16 %v1267, %v1265
      %v1302 = vpack.c.b16 %v1270, %v1268
      %v1303 = vpack.c.b16 %v1271, %v1269
      %v1338 = vunpack.c.l.b16 %v1158
      %v1339 = vunpack.c.l.b16 %v1159
      %v1340 = vunpack.c.l.b16 %v1160
      %v1341 = vunpack.c.l.b16 %v1161
      %v1342 = vunpack.c.l.b16 %v1162
      %v1343 = vunpack.c.l.b16 %v1163
      %v1344 = vunpack.c.l.b16 %v1164
      %v1345 = vunpack.c.l.b16 %v1165
      %v1346 = vunpack.c.l.b16 %v1166
      %v1347 = vunpack.c.l.b16 %v1167
      %v1348 = vunpack.c.l.b16 %v1168
      %v1349 = vunpack.c.l.b16 %v1169
      %v1350 = vunpack.c.l.b16 %v1170
      %v1351 = vunpack.c.l.b16 %v1171
      %v1352 = vunpack.c.l.b16 %v1172
      %v1353 = vunpack.c.l.b16 %v1173
      %v1354 = vunpack.c.l.b16 %v1174
      %v1355 = vunpack.c.l.b16 %v1175
      %v1356 = vpack.c.b16 %v1339, %v1338
      %v1357 = vpack.c.b16 %v1341, %v1340
      %v1358 = vpack.c.b16 %v1343, %v1342
      %v1359 = vpack.c.b16 %v1345, %v1344
      %v1360 = vpack.c.b16 %v1347, %v1346
      %v1361 = vpack.c.b16 %v1349, %v1348
      %v1362 = vpack.c.b16 %v1351, %v1350
      %v1363 = vpack.c.b16 %v1353, %v1352
      %v1364 = vpack.c.b16 %v1355, %v1354
      %v1375 = vsel %vm504, %v1273, 0
      %v1378 = vsel %vm504, %v1275, 0
      %v1381 = vsel %vm504, %v1277, 0
      %v1384 = vsel %vm504, %v1279, 0
      %v1387 = vsel %vm504, %v1281, 0
      %v1390 = vsel %vm504, %v1283, 0
      %v1393 = vsel %vm504, %v1285, 0
      %v1396 = vsel %vm504, %v1287, 0
      %v1399 = vsel %vm504, %v1289, 0
      %v1402 = vsel %vm504, %v1291, 0
      %v1405 = vsel %vm504, %v1293, 0
      %v1408 = vsel %vm504, %v1295, 0
      %v1411 = vsel %vm504, %v1297, 0
      %v1414 = vsel %vm504, %v1299, 0
      %v1417 = vsel %vm504, %v1301, 0
      %v1420 = vsel %vm504, %v1303, 0
      %1422 = vmatprep.subr.bf16.mxu0 0
      %1423 = vmatpush1.bf16.msra.mxu0 %v1363
      %1424 = vmatprep.subr.bf16.mxu0 0
      %1425 = vmatpush1.bf16.msra.mxu0 %v1362
      %1426 = vmatprep.subr.bf16.mxu0 0
      %1427 = vmatpush1.bf16.msra.mxu0 %v1361
      %1428 = vmatprep.subr.bf16.mxu0 0
      %1429 = vmatpush1.bf16.msra.mxu0 %v1360
      %1430 = vmatprep.subr.bf16.mxu0 0
      %1431 = vmatpush1.bf16.msra.mxu0 %v1359
      %1432 = vmatprep.subr.bf16.mxu0 0
      %1433 = vmatpush1.bf16.msra.mxu0 %v1358
      %1434 = vmatprep.subr.bf16.mxu0 0
      %1435 = vmatpush1.bf16.msra.mxu0 %v1357
      %1436 = vmatprep.subr.bf16.mxu0 0
      %1437 = vmatpush1.bf16.msra.mxu0 %v1356
      %1438 = vmatprep.subr.bf16.mxu0 0
      %1439 = vmatpush2.bf16.msra.mxu0 0
      %1440 = vmatprep.subr.bf16.mxu0 0
      %1441 = vmatpush2.bf16.msra.mxu0 0
      %1442 = vmatprep.subr.bf16.mxu0 0
      %1443 = vmatpush2.bf16.msra.mxu0 0
      %1444 = vmatprep.subr.bf16.mxu0 0
      %1445 = vmatpush2.bf16.msra.mxu0 0
      %1446 = vmatprep.subr.bf16.mxu0 0
      %1447 = vmatpush2.bf16.msra.mxu0 0
      %1448 = vmatprep.subr.bf16.mxu0 0
      %1449 = vmatpush2.bf16.msra.mxu0 0
      %1450 = vmatprep.subr.bf16.mxu0 0
      %1451 = vmatpush2.bf16.msra.mxu0 0
      %1452 = vmatprep.subr.bf16.mxu0 0
      %1453 = vmatpush2.bf16.msra.mxu0 %v1364
      %1454 = vmatprep.mubr.bf16.mxu0 %v1375
      %1455 = vmatmul.mubr.bf16.gmra.mxu0 %v1272
      %v1456 = vpop.f32.mrf.mxu0
      %v1457 = vadd.f32 0.0, %v1456
      %v1458 = vpop.f32.mrf.mxu0
      %v1459 = vpop.f32.mrf.mxu0
      %v1460 = vadd.f32 0.0, %v1459
      %v1461 = vpop.f32.mrf.mxu0
      %1462 = vmatprep.mubr.bf16.mxu0 %v1378
      %1463 = vmatmul.mubr.bf16.gmra.mxu0 %v1274
      %v1464 = vpop.f32.mrf.mxu0
      %v1465 = vadd.f32 0.0, %v1464
      %v1466 = vpop.f32.mrf.mxu0
      %v1467 = vpop.f32.mrf.mxu0
      %v1468 = vadd.f32 0.0, %v1467
      %v1469 = vpop.f32.mrf.mxu0
      %1470 = vmatprep.mubr.bf16.mxu0 %v1381
      %1471 = vmatmul.mubr.bf16.gmra.mxu0 %v1276
      %v1472 = vpop.f32.mrf.mxu0
      %v1473 = vadd.f32 0.0, %v1472
      %v1474 = vpop.f32.mrf.mxu0
      %v1475 = vpop.f32.mrf.mxu0
      %v1476 = vadd.f32 0.0, %v1475
      %v1477 = vpop.f32.mrf.mxu0
      %1478 = vmatprep.mubr.bf16.mxu0 %v1384
      %1479 = vmatmul.mubr.bf16.gmra.mxu0 %v1278
      %v1480 = vpop.f32.mrf.mxu0
      %v1481 = vadd.f32 0.0, %v1480
      %v1482 = vpop.f32.mrf.mxu0
      %v1483 = vpop.f32.mrf.mxu0
      %v1484 = vadd.f32 0.0, %v1483
      %v1485 = vpop.f32.mrf.mxu0
      %1486 = vmatprep.mubr.bf16.mxu0 %v1387
      %1487 = vmatmul.mubr.bf16.gmra.mxu0 %v1280
      %v1488 = vpop.f32.mrf.mxu0
      %v1489 = vadd.f32 0.0, %v1488
      %v1490 = vpop.f32.mrf.mxu0
      %v1491 = vpop.f32.mrf.mxu0
      %v1492 = vadd.f32 0.0, %v1491
      %v1493 = vpop.f32.mrf.mxu0
      %1494 = vmatprep.mubr.bf16.mxu0 %v1390
      %1495 = vmatmul.mubr.bf16.gmra.mxu0 %v1282
      %v1496 = vpop.f32.mrf.mxu0
      %v1497 = vadd.f32 0.0, %v1496
      %v1498 = vpop.f32.mrf.mxu0
      %v1499 = vpop.f32.mrf.mxu0
      %v1500 = vadd.f32 0.0, %v1499
      %v1501 = vpop.f32.mrf.mxu0
      %1502 = vmatprep.mubr.bf16.mxu0 %v1393
      %1503 = vmatmul.mubr.bf16.gmra.mxu0 %v1284
      %v1504 = vpop.f32.mrf.mxu0
      %v1505 = vadd.f32 0.0, %v1504
      %v1506 = vpop.f32.mrf.mxu0
      %v1507 = vpop.f32.mrf.mxu0
      %v1508 = vadd.f32 0.0, %v1507
      %v1509 = vpop.f32.mrf.mxu0
      %1510 = vmatprep.mubr.bf16.mxu0 %v1396
      %1511 = vmatmul.mubr.bf16.gmra.mxu0 %v1286
      %v1512 = vpop.f32.mrf.mxu0
      %v1513 = vadd.f32 0.0, %v1512
      %v1514 = vpop.f32.mrf.mxu0
      %v1515 = vpop.f32.mrf.mxu0
      %v1516 = vadd.f32 0.0, %v1515
      %v1517 = vpop.f32.mrf.mxu0
      %1518 = vmatprep.mubr.bf16.mxu0 %v1399
      %1519 = vmatmul.mubr.bf16.gmra.mxu0 %v1288
      %v1520 = vpop.f32.mrf.mxu0
      %v1521 = vadd.f32 0.0, %v1520
      %v1522 = vpop.f32.mrf.mxu0
      %v1523 = vpop.f32.mrf.mxu0
      %v1524 = vadd.f32 0.0, %v1523
      %v1525 = vpop.f32.mrf.mxu0
      %1526 = vmatprep.mubr.bf16.mxu0 %v1402
      %1527 = vmatmul.mubr.bf16.gmra.mxu0 %v1290
      %v1528 = vpop.f32.mrf.mxu0
      %v1529 = vadd.f32 0.0, %v1528
      %v1530 = vpop.f32.mrf.mxu0
      %v1531 = vpop.f32.mrf.mxu0
      %v1532 = vadd.f32 0.0, %v1531
      %v1533 = vpop.f32.mrf.mxu0
      %1534 = vmatprep.mubr.bf16.mxu0 %v1405
      %1535 = vmatmul.mubr.bf16.gmra.mxu0 %v1292
      %v1536 = vpop.f32.mrf.mxu0
      %v1537 = vadd.f32 0.0, %v1536
      %v1538 = vpop.f32.mrf.mxu0
      %v1539 = vpop.f32.mrf.mxu0
      %v1540 = vadd.f32 0.0, %v1539
      %v1541 = vpop.f32.mrf.mxu0
      %1542 = vmatprep.mubr.bf16.mxu0 %v1408
      %1543 = vmatmul.mubr.bf16.gmra.mxu0 %v1294
      %v1544 = vpop.f32.mrf.mxu0
      %v1545 = vadd.f32 0.0, %v1544
      %v1546 = vpop.f32.mrf.mxu0
      %v1547 = vpop.f32.mrf.mxu0
      %v1548 = vadd.f32 0.0, %v1547
      %v1549 = vpop.f32.mrf.mxu0
      %1550 = vmatprep.mubr.bf16.mxu0 %v1411
      %1551 = vmatmul.mubr.bf16.gmra.mxu0 %v1296
      %v1552 = vpop.f32.mrf.mxu0
      %v1553 = vadd.f32 0.0, %v1552
      %v1554 = vpop.f32.mrf.mxu0
      %v1555 = vpop.f32.mrf.mxu0
      %v1556 = vadd.f32 0.0, %v1555
      %v1557 = vpop.f32.mrf.mxu0
      %1558 = vmatprep.mubr.bf16.mxu0 %v1414
      %1559 = vmatmul.mubr.bf16.gmra.mxu0 %v1298
      %v1560 = vpop.f32.mrf.mxu0
      %v1561 = vadd.f32 0.0, %v1560
      %v1562 = vpop.f32.mrf.mxu0
      %v1563 = vpop.f32.mrf.mxu0
      %v1564 = vadd.f32 0.0, %v1563
      %v1565 = vpop.f32.mrf.mxu0
      %1566 = vmatprep.mubr.bf16.mxu0 %v1417
      %1567 = vmatmul.mubr.bf16.gmra.mxu0 %v1300
      %v1568 = vpop.f32.mrf.mxu0
      %v1569 = vadd.f32 0.0, %v1568
      %v1570 = vpop.f32.mrf.mxu0
      %v1571 = vpop.f32.mrf.mxu0
      %v1572 = vadd.f32 0.0, %v1571
      %v1573 = vpop.f32.mrf.mxu0
      %1574 = vmatprep.mubr.bf16.mxu0 %v1420
      %1575 = vmatmul.mubr.bf16.gmra.mxu0 %v1302
      %v1576 = vpop.f32.mrf.mxu0
      %v1577 = vadd.f32 0.0, %v1576
      %v1578 = vpop.f32.mrf.mxu0
      %v1579 = vpop.f32.mrf.mxu0
      %v1580 = vadd.f32 0.0, %v1579
      %v1581 = vpop.f32.mrf.mxu0
      %1582 = vdwg.mxu0
      %v1583 = vadd.f32 %v995, %v1457
      %v1584 = vadd.f32 %v998, %v1460
      %v1585 = vadd.f32 %v1003, %v1465
      %v1586 = vadd.f32 %v1006, %v1468
      %v1587 = vadd.f32 %v1011, %v1473
      %v1588 = vadd.f32 %v1014, %v1476
      %v1589 = vadd.f32 %v1019, %v1481
      %v1590 = vadd.f32 %v1022, %v1484
      %v1591 = vadd.f32 %v1027, %v1489
      %v1592 = vadd.f32 %v1030, %v1492
      %v1593 = vadd.f32 %v1035, %v1497
      %v1594 = vadd.f32 %v1038, %v1500
      %v1595 = vadd.f32 %v1043, %v1505
      %v1596 = vadd.f32 %v1046, %v1508
      %v1597 = vadd.f32 %v1051, %v1513
      %v1598 = vadd.f32 %v1054, %v1516
      %v1599 = vadd.f32 %v1059, %v1521
      %v1600 = vadd.f32 %v1062, %v1524
      %v1601 = vadd.f32 %v1067, %v1529
      %v1602 = vadd.f32 %v1070, %v1532
      %v1603 = vadd.f32 %v1075, %v1537
      %v1604 = vadd.f32 %v1078, %v1540
      %v1605 = vadd.f32 %v1083, %v1545
      %v1606 = vadd.f32 %v1086, %v1548
      %v1607 = vadd.f32 %v1091, %v1553
      %v1608 = vadd.f32 %v1094, %v1556
      %v1609 = vadd.f32 %v1099, %v1561
      %v1610 = vadd.f32 %v1102, %v1564
      %v1611 = vadd.f32 %v1107, %v1569
      %v1612 = vadd.f32 %v1110, %v1572
      %v1613 = vadd.f32 %v1115, %v1577
      %v1614 = vadd.f32 %v1118, %v1580
      %vm1615 = vcmp.ge.f32.partialorder %v1583, 0.0
      %vm1616 = vcmp.ge.f32.partialorder %v1584, 0.0
      %vm1617 = vcmp.ge.f32.partialorder %v1585, 0.0
      %vm1618 = vcmp.ge.f32.partialorder %v1586, 0.0
      %vm1619 = vcmp.ge.f32.partialorder %v1587, 0.0
      %vm1620 = vcmp.ge.f32.partialorder %v1588, 0.0
      %vm1621 = vcmp.ge.f32.partialorder %v1589, 0.0
      %vm1622 = vcmp.ge.f32.partialorder %v1590, 0.0
      %vm1623 = vcmp.ge.f32.partialorder %v1591, 0.0
      %vm1624 = vcmp.ge.f32.partialorder %v1592, 0.0
      %vm1625 = vcmp.ge.f32.partialorder %v1593, 0.0
      %vm1626 = vcmp.ge.f32.partialorder %v1594, 0.0
      %vm1627 = vcmp.ge.f32.partialorder %v1595, 0.0
      %vm1628 = vcmp.ge.f32.partialorder %v1596, 0.0
      %vm1629 = vcmp.ge.f32.partialorder %v1597, 0.0
      %vm1630 = vcmp.ge.f32.partialorder %v1598, 0.0
      %vm1631 = vcmp.ge.f32.partialorder %v1599, 0.0
      %vm1632 = vcmp.ge.f32.partialorder %v1600, 0.0
      %vm1633 = vcmp.ge.f32.partialorder %v1601, 0.0
      %vm1634 = vcmp.ge.f32.partialorder %v1602, 0.0
      %vm1635 = vcmp.ge.f32.partialorder %v1603, 0.0
      %vm1636 = vcmp.ge.f32.partialorder %v1604, 0.0
      %vm1637 = vcmp.ge.f32.partialorder %v1605, 0.0
      %vm1638 = vcmp.ge.f32.partialorder %v1606, 0.0
      %vm1639 = vcmp.ge.f32.partialorder %v1607, 0.0
      %vm1640 = vcmp.ge.f32.partialorder %v1608, 0.0
      %vm1641 = vcmp.ge.f32.partialorder %v1609, 0.0
      %vm1642 = vcmp.ge.f32.partialorder %v1610, 0.0
      %vm1643 = vcmp.ge.f32.partialorder %v1611, 0.0
      %vm1644 = vcmp.ge.f32.partialorder %v1612, 0.0
      %vm1645 = vcmp.ge.f32.partialorder %v1613, 0.0
      %vm1646 = vcmp.ge.f32.partialorder %v1614, 0.0
      %v1647 = vmul.f32 %v1583, 0.01
      %v1648 = vmul.f32 %v1584, 0.01
      %v1649 = vmul.f32 %v1585, 0.01
      %v1650 = vmul.f32 %v1586, 0.01
      %v1651 = vmul.f32 %v1587, 0.01
      %v1652 = vmul.f32 %v1588, 0.01
      %v1653 = vmul.f32 %v1589, 0.01
      %v1654 = vmul.f32 %v1590, 0.01
      %v1655 = vmul.f32 %v1591, 0.01
      %v1656 = vmul.f32 %v1592, 0.01
      %v1657 = vmul.f32 %v1593, 0.01
      %v1658 = vmul.f32 %v1594, 0.01
      %v1659 = vmul.f32 %v1595, 0.01
      %v1660 = vmul.f32 %v1596, 0.01
      %v1661 = vmul.f32 %v1597, 0.01
      %v1662 = vmul.f32 %v1598, 0.01
      %v1663 = vmul.f32 %v1599, 0.01
      %v1664 = vmul.f32 %v1600, 0.01
      %v1665 = vmul.f32 %v1601, 0.01
      %v1666 = vmul.f32 %v1602, 0.01
      %v1667 = vmul.f32 %v1603, 0.01
      %v1668 = vmul.f32 %v1604, 0.01
      %v1669 = vmul.f32 %v1605, 0.01
      %v1670 = vmul.f32 %v1606, 0.01
      %v1671 = vmul.f32 %v1607, 0.01
      %v1672 = vmul.f32 %v1608, 0.01
      %v1673 = vmul.f32 %v1609, 0.01
      %v1674 = vmul.f32 %v1610, 0.01
      %v1675 = vmul.f32 %v1611, 0.01
      %v1676 = vmul.f32 %v1612, 0.01
      %v1677 = vmul.f32 %v1613, 0.01
      %v1678 = vmul.f32 %v1614, 0.01
      %v1679 = vsel %vm1615, %v1583, %v1647
      %v1680 = vsel %vm1616, %v1584, %v1648
      %v1681 = vsel %vm1617, %v1585, %v1649
      %v1682 = vsel %vm1618, %v1586, %v1650
      %v1683 = vsel %vm1619, %v1587, %v1651
      %v1684 = vsel %vm1620, %v1588, %v1652
      %v1685 = vsel %vm1621, %v1589, %v1653
      %v1686 = vsel %vm1622, %v1590, %v1654
      %v1687 = vsel %vm1623, %v1591, %v1655
      %v1688 = vsel %vm1624, %v1592, %v1656
      %v1689 = vsel %vm1625, %v1593, %v1657
      %v1690 = vsel %vm1626, %v1594, %v1658
      %v1691 = vsel %vm1627, %v1595, %v1659
      %v1692 = vsel %vm1628, %v1596, %v1660
      %v1693 = vsel %vm1629, %v1597, %v1661
      %v1694 = vsel %vm1630, %v1598, %v1662
      %v1695 = vsel %vm1631, %v1599, %v1663
      %v1696 = vsel %vm1632, %v1600, %v1664
      %v1697 = vsel %vm1633, %v1601, %v1665
      %v1698 = vsel %vm1634, %v1602, %v1666
      %v1699 = vsel %vm1635, %v1603, %v1667
      %v1700 = vsel %vm1636, %v1604, %v1668
      %v1701 = vsel %vm1637, %v1605, %v1669
      %v1702 = vsel %vm1638, %v1606, %v1670
      %v1703 = vsel %vm1639, %v1607, %v1671
      %v1704 = vsel %vm1640, %v1608, %v1672
      %v1705 = vsel %vm1641, %v1609, %v1673
      %v1706 = vsel %vm1642, %v1610, %v1674
      %v1707 = vsel %vm1643, %v1611, %v1675
      %v1708 = vsel %vm1644, %v1612, %v1676
      %v1709 = vsel %vm1645, %v1613, %v1677
      %v1710 = vsel %vm1646, %v1614, %v1678
      %v1711 = vld [vmem:[%s2] sm:$0x1]
      %v1713 = vlaneseq
      %v1714 = vshrl.u32 %v1713, 7
      %v1715 = vsub.s32 0, %v1714
      %v1716 = vrot.slane %v1711, %v1715
      %v1718 = vadd.f32 %v1679, %v1716
      %v1719 = vadd.f32 %v1680, %v1716
      %v1720 = vadd.f32 %v1681, %v1716
      %v1721 = vadd.f32 %v1682, %v1716
      %v1722 = vadd.f32 %v1683, %v1716
      %v1723 = vadd.f32 %v1684, %v1716
      %v1724 = vadd.f32 %v1685, %v1716
      %v1725 = vadd.f32 %v1686, %v1716
      %v1726 = vadd.f32 %v1687, %v1716
      %v1727 = vadd.f32 %v1688, %v1716
      %v1728 = vadd.f32 %v1689, %v1716
      %v1729 = vadd.f32 %v1690, %v1716
      %v1730 = vadd.f32 %v1691, %v1716
      %v1731 = vadd.f32 %v1692, %v1716
      %v1732 = vadd.f32 %v1693, %v1716
      %v1733 = vadd.f32 %v1694, %v1716
      %v1734 = vadd.f32 %v1695, %v1716
      %v1735 = vadd.f32 %v1696, %v1716
      %v1736 = vadd.f32 %v1697, %v1716
      %v1737 = vadd.f32 %v1698, %v1716
      %v1738 = vadd.f32 %v1699, %v1716
      %v1739 = vadd.f32 %v1700, %v1716
      %v1740 = vadd.f32 %v1701, %v1716
      %v1741 = vadd.f32 %v1702, %v1716
      %v1742 = vadd.f32 %v1703, %v1716
      %v1743 = vadd.f32 %v1704, %v1716
      %v1744 = vadd.f32 %v1705, %v1716
      %v1745 = vadd.f32 %v1706, %v1716
      %v1746 = vadd.f32 %v1707, %v1716
      %v1747 = vadd.f32 %v1708, %v1716
      %v1748 = vadd.f32 %v1709, %v1716
      %v1749 = vadd.f32 %v1710, %v1716
      %vm1750 = vcmask 261120
      %1751 = vst.msk [vmem:[%s194] sm:$0xff] %vm1750, %v1718
      %1752 = vst.msk [vmem:[%s194 + $0x8] sm:$0xff] %vm1750, %v1719
      %1753 = vst.msk [vmem:[%s194 + $0x10] sm:$0xff] %vm1750, %v1720
      %1754 = vst.msk [vmem:[%s194 + $0x18] sm:$0xff] %vm1750, %v1721
      %1755 = vst.msk [vmem:[%s194 + $0x20] sm:$0xff] %vm1750, %v1722
      %1756 = vst.msk [vmem:[%s194 + $0x28] sm:$0xff] %vm1750, %v1723
      %1757 = vst.msk [vmem:[%s194 + $0x30] sm:$0xff] %vm1750, %v1724
      %1758 = vst.msk [vmem:[%s194 + $0x38] sm:$0xff] %vm1750, %v1725
      %1759 = vst.msk [vmem:[%s194 + $0x40] sm:$0xff] %vm1750, %v1726
      %1760 = vst.msk [vmem:[%s194 + $0x48] sm:$0xff] %vm1750, %v1727
      %1761 = vst.msk [vmem:[%s194 + $0x50] sm:$0xff] %vm1750, %v1728
      %1762 = vst.msk [vmem:[%s194 + $0x58] sm:$0xff] %vm1750, %v1729
      %1763 = vst.msk [vmem:[%s194 + $0x60] sm:$0xff] %vm1750, %v1730
      %1764 = vst.msk [vmem:[%s194 + $0x68] sm:$0xff] %vm1750, %v1731
      %1765 = vst.msk [vmem:[%s194 + $0x70] sm:$0xff] %vm1750, %v1732
      %1766 = vst.msk [vmem:[%s194 + $0x78] sm:$0xff] %vm1750, %v1733
      %1767 = vst.msk [vmem:[%s194 + $0x80] sm:$0xff] %vm1750, %v1734
      %1768 = vst.msk [vmem:[%s194 + $0x88] sm:$0xff] %vm1750, %v1735
      %1769 = vst.msk [vmem:[%s194 + $0x90] sm:$0xff] %vm1750, %v1736
      %1770 = vst.msk [vmem:[%s194 + $0x98] sm:$0xff] %vm1750, %v1737
      %1771 = vst.msk [vmem:[%s194 + $0xa0] sm:$0xff] %vm1750, %v1738
      %1772 = vst.msk [vmem:[%s194 + $0xa8] sm:$0xff] %vm1750, %v1739
      %1773 = vst.msk [vmem:[%s194 + $0xb0] sm:$0xff] %vm1750, %v1740
      %1774 = vst.msk [vmem:[%s194 + $0xb8] sm:$0xff] %vm1750, %v1741
      %1775 = vst.msk [vmem:[%s194 + $0xc0] sm:$0xff] %vm1750, %v1742
      %1776 = vst.msk [vmem:[%s194 + $0xc8] sm:$0xff] %vm1750, %v1743
      %1777 = vst.msk [vmem:[%s194 + $0xd0] sm:$0xff] %vm1750, %v1744
      %1778 = vst.msk [vmem:[%s194 + $0xd8] sm:$0xff] %vm1750, %v1745
      %1779 = vst.msk [vmem:[%s194 + $0xe0] sm:$0xff] %vm1750, %v1746
      %1780 = vst.msk [vmem:[%s194 + $0xe8] sm:$0xff] %vm1750, %v1747
      %1781 = vst.msk [vmem:[%s194 + $0xf0] sm:$0xff] %vm1750, %v1748
      %1782 = vst.msk [vmem:[%s194 + $0xf8] sm:$0xff] %vm1750, %v1749
      %s1783 = smul.u32 4, %s19
      %p1784 = scmp.lt.s32.totalorder %s18, 1
      %s1785 = scalar_select %p1784, %s18, 1
      %p1786 = scmp.lt.s32.totalorder %s1783, 3
      %s1787 = scalar_select %p1786, %s1783, 3
      %s1788 = smul.addr %s1787, 8
      %s1789 = smul.addr %s1785, 32
      %s1790 = sadd.s32 %s1788, %s1789
      %s1791 = smul.addr %s1790, 8
      %s1792 = scalar_lea.vmem %s3, %s1791
      // Predicated region
      $region33: #{upblock_forward.5} parent=31 // pred_check
        %p1793 = pneg %p114
      $region34: #{upblock_forward.5} parent=31 // pred_check_branch
        %1795 = sbr.rel (%p1793) target = $region36
      $region35: #{upblock_forward.5} parent=31 // pred_region
        %s1796 = smul.u32 4, %s19
      $region36: #{upblock_forward.5} parent=31 // pred_fallthru
        _
    $region32: #{upblock_forward.5} parent=5 // pred_fallthru
      _
    %p1797 = scmp.le.s32.totalorder 2, %s9
    // Predicated region
    $region37: #{upblock_forward.5} parent=5 // pred_check
      %p1798 = pneg %p1797
    $region38: #{upblock_forward.5} parent=5 // pred_check_branch
      %1800 = sbr.rel (%p1798) target = $region40
    $region39: #{upblock_forward.5} parent=5 // pred_region
      %s1801 = ssub.s32 %s9, 2
      // Predicated region
      $region41: #{upblock_forward.5} parent=39 // pred_check
        %p1802 = pneg %p120
      $region42: #{upblock_forward.5} parent=39 // pred_check_branch
        %1804 = sbr.rel (%p1802) target = $region44
      $region43: #{upblock_forward.5} parent=39 // pred_region
        %s1805 = smul.u32 4, %s21
        %p1806 = scmp.lt.s32.totalorder %s20, 1
        %s1807 = scalar_select %p1806, %s20, 1
        %p1808 = scmp.lt.s32.totalorder %s1805, 3
        %s1809 = scalar_select %p1808, %s1805, 3
        %s1810 = smul.addr %s1809, 8
        %s1811 = smul.addr %s1807, 32
        %s1812 = sadd.s32 %s1810, %s1811
        %s1813 = smul.addr %s1812, 8
        %s1814 = scalar_lea.vmem %s3, %s1813
      $region44: #{upblock_forward.5} parent=39 // pred_fallthru
        _
    $region40: #{upblock_forward.5} parent=5 // pred_fallthru
      _
  $region6: #{upblock_forward.5} parent=0 // loop_footer
    %s13 = sadd.s32 1, %s9
  $region7: #{upblock_forward.5} parent=0 // loop_footer_branch
    %8 = sbr.rel target = $region3
  $region8: #{upblock_forward.5} parent=0 // loop_exit
    _

// kernel: upblock_forward.6
$region0: #{upblock_forward.6}
  #allocation0 [shape = 'u32[]', space=smem, size = 0x4, offset = 0x4, fixed_abs, tag = 'smem constant byte address 0x4 - core index']
  #allocation1 [shape = 'u32[144,128]{1,0:T(1,128)}', space=vmem, size = 0x12000, scoped, tag = 'internal scratch']
  %s0 = inlined_call_operand.vmem [shape: bf16[2,5,8,8,128], index: 0, kind: input, shape index: {}]
  %s1 = inlined_call_operand.vmem [shape: bf16[2,128,256], index: 1, kind: input, shape index: {}]
  %s2 = inlined_call_operand.vmem [shape: f32[2,4,8,8,256], index: 2, kind: output, shape index: {}]
  %s3 = sld [smem:[#allocation0]]
  $region41: #{upblock_forward.6} parent=0
    _
  %s5 = ssub.s32 1, %s3
  %s6 = scalar_select 0, %s5, %s3
  loop: start=0, step=1, limit=6
  $region2: #{upblock_forward.6} parent=0 // loop_pre_header
    _
  $region3: #{upblock_forward.6} parent=0 // loop_header
    %s8 = sphi 0, %s12
    %p9 = scmp.ge.s32.totalorder %s8, 6
    %s15 = sphi 0, %s27
    %s16 = sphi 0, %s23
    %s17 = sphi 0, %s15
    %s18 = sphi 0, %s16
    %s19 = sphi 0, %s17
    %s20 = sphi 0, %s18
    %s30 = sphi 0, %s32
    %s33 = sphi 0, %s30
    %s34 = sphi 0, %s33
    %s50 = sphi 0, %s34
    %s54 = sphi 0, %s54
    %s56 = sphi 0, %s54
    %s57 = sphi 0, %s56
    %s71 = sphi 0, %s57
    %s79 = sphi 0, %s81
    %s82 = sphi 0, %s79
    %s83 = sphi 0, %s82
    %s99 = sphi 0, %s83
  $region4: #{upblock_forward.6} parent=0 // loop_header_branch
    %11 = sbr.rel (%p9) target = $region8
  $region5: #{upblock_forward.6} parent=0 // loop_body
    %s13 = ssub.s32 %s8, 1
    %s14 = ssub.s32 %s8, 2
    %s21 = sadd.s32 1, %s16
    %p22 = scmp.ge.s32.totalorder %s21, 2
    %s23 = scalar_select %p22, 0, %s21
    %s24 = sadd.s32 1, %s15
    %s25 = scalar_select %p22, %s24, %s15
    %p26 = scmp.ge.s32.totalorder %s25, 2
    %s27 = scalar_select %p26, 0, %s25
    %s28 = ssub.s32 %s15, %s27
    %p29 = scmp.eq.s32.totalorder %s28, 0
    %s31 = sadd.s32 %s30, 1
    %s32 = scalar_select %p29, %s30, %s31
    %p35 = pneg %p29
    %p36 = scmp.eq.s32.totalorder %s8, 3
    %p37 = por %p35, %p36
    %p38 = scmp.ne.s32.totalorder %s30, %s33
    %p39 = scmp.eq.s32.totalorder %s8, 0
    %p40 = por %p38, %p39
    %p41 = scmp.ne.s32.totalorder %s30, %s33
    %p42 = scmp.eq.s32.totalorder %s13, 3
    %p43 = por %p41, %p42
    %p44 = scmp.ne.s32.totalorder %s33, %s34
    %p45 = scmp.eq.s32.totalorder %s13, 0
    %p46 = por %p44, %p45
    %p47 = scmp.ne.s32.totalorder %s33, %s34
    %p48 = scmp.eq.s32.totalorder %s14, 3
    %p49 = por %p47, %p48
    %p51 = scmp.ne.s32.totalorder %s34, %s50
    %p52 = scmp.eq.s32.totalorder %s14, 0
    %p53 = por %p51, %p52
    %s55 = sadd.s32 %s54, 1
    %p58 = scmp.eq.s32.totalorder %s8, 3
    %p59 = scmp.ne.s32.totalorder %s54, %s56
    %p60 = scmp.eq.s32.totalorder %s8, 0
    %p61 = por %p59, %p60
    %p62 = scmp.ne.s32.totalorder %s54, %s56
    %p63 = scmp.eq.s32.totalorder %s13, 3
    %p64 = por %p62, %p63
    %p65 = scmp.ne.s32.totalorder %s56, %s57
    %p66 = scmp.eq.s32.totalorder %s13, 0
    %p67 = por %p65, %p66
    %p68 = scmp.ne.s32.totalorder %s56, %s57
    %p69 = scmp.eq.s32.totalorder %s14, 3
    %p70 = por %p68, %p69
    %p72 = scmp.ne.s32.totalorder %s57, %s71
    %p73 = scmp.eq.s32.totalorder %s14, 0
    %p74 = por %p72, %p73
    %s75 = ssub.s32 %s15, %s27
    %s76 = ssub.s32 %s16, %s23
    %s77 = sor.u32 %s75, %s76
    %p78 = scmp.eq.s32.totalorder %s77, 0
    %s80 = sadd.s32 %s79, 1
    %s81 = scalar_select %p78, %s79, %s80
    %p84 = pneg %p78
    %p85 = scmp.eq.s32.totalorder %s8, 3
    %p86 = por %p84, %p85
    %p87 = scmp.ne.s32.totalorder %s79, %s82
    %p88 = scmp.eq.s32.totalorder %s8, 0
    %p89 = por %p87, %p88
    %p90 = scmp.ne.s32.totalorder %s79, %s82
    %p91 = scmp.eq.s32.totalorder %s13, 3
    %p92 = por %p90, %p91
    %p93 = scmp.ne.s32.totalorder %s82, %s83
    %p94 = scmp.eq.s32.totalorder %s13, 0
    %p95 = por %p93, %p94
    %p96 = scmp.ne.s32.totalorder %s82, %s83
    %p97 = scmp.eq.s32.totalorder %s14, 3
    %p98 = por %p96, %p97
    %p100 = scmp.ne.s32.totalorder %s83, %s99
    %p101 = scmp.eq.s32.totalorder %s14, 0
    %p102 = por %p100, %p101
    %p103 = scmp.le.s32.totalorder 1, %s8
    %p104 = scmp.lt.s32.totalorder %s8, 5
    %p105 = pnand %p103, %p104
    %p106 = pneg %p105
    // Predicated region
    $region9: #{upblock_forward.6} parent=5 // pred_check
      _
    $region10: #{upblock_forward.6} parent=5 // pred_check_branch
      %108 = sbr.rel (%p105) target = $region12
    $region11: #{upblock_forward.6} parent=5 // pred_region
      %s109 = ssub.s32 %s8, 1
      // Predicated region
      $region13: #{upblock_forward.6} parent=11 // pred_check
        %p110 = pneg %p67
      $region14: #{upblock_forward.6} parent=11 // pred_check_branch
        %112 = sbr.rel (%p110) target = $region16
      $region15: #{upblock_forward.6} parent=11 // pred_region
        _
      $region16: #{upblock_forward.6} parent=11 // pred_fallthru
        _
    $region12: #{upblock_forward.6} parent=5 // pred_fallthru
      _
    %p113 = scmp.lt.s32.totalorder %s8, 4
    // Predicated region
    $region17: #{upblock_forward.6} parent=5 // pred_check
      %p114 = pneg %p113
    $region18: #{upblock_forward.6} parent=5 // pred_check_branch
      %116 = sbr.rel (%p114) target = $region20
    $region19: #{upblock_forward.6} parent=5 // pred_region
      // Predicated region
      $region21: #{upblock_forward.6} parent=19 // pred_check
        %p117 = pneg %p40
      $region22: #{upblock_forward.6} parent=19 // pred_check_branch
        %119 = sbr.rel (%p117) target = $region24
      $region23: #{upblock_forward.6} parent=19 // pred_region
        %p120 = scmp.lt.s32.totalorder %s15, 1
        %s121 = scalar_select %p120, %s15, 1
        %s122 = smul.addr %s121, 40
        %s123 = smul.addr %s122, 4
        %s124 = scalar_lea.vmem %s0, %s123
      $region24: #{upblock_forward.6} parent=19 // pred_fallthru
        _
    $region20: #{upblock_forward.6} parent=5 // pred_fallthru
      _
    %p125 = scmp.le.s32.totalorder 1, %s8
    %p126 = scmp.lt.s32.totalorder %s8, 5
    %p127 = pnand %p125, %p126
    %p128 = pneg %p127
    // Predicated region
    $region25: #{upblock_forward.6} parent=5 // pred_check
      _
    $region26: #{upblock_forward.6} parent=5 // pred_check_branch
      %130 = sbr.rel (%p127) target = $region28
    $region27: #{upblock_forward.6} parent=5 // pred_region
      %s131 = ssub.s32 %s8, 1
      %p132 = scmp.lt.s32.totalorder %s17, 1
      %s133 = scalar_select %p132, %s17, 1
      %s134 = smul.addr %s133, 40
      %s135 = smul.addr %s134, 4
      %s136 = scalar_lea.vmem %s0, %s135
      %p137 = pneg %p46
      %p138 = pneg %p43
      %p139 = pneg %p67
      %p140 = pneg %p64
      %p141 = pneg %p95
      %p142 = pneg %p92
      %s143 = smul.u32 2, %s18
      %p144 = scmp.lt.s32.totalorder %s17, 1
      %s145 = scalar_select %p144, %s17, 1
      %p146 = scmp.lt.s32.totalorder %s143, 3
      %s147 = scalar_select %p146, %s143, 3
      %s148 = smul.addr %s147, 16
      %s149 = smul.addr %s145, 64
      %s150 = sadd.s32 %s148, %s149
      %s151 = smul.addr %s150, 8
      %s152 = scalar_lea.vmem %s2, %s151
      %p153 = scmp.lt.s32.totalorder %s17, 1
      %s154 = scalar_select %p153, %s17, 1
      %s155 = smul.addr %s154, 40
      %s156 = smul.addr %s155, 4
      %s157 = scalar_lea.vmem %s0, %s156
      %s158 = smul.u32 2, %s18
      %p159 = scmp.lt.s32.totalorder %s17, 1
      %s160 = scalar_select %p159, %s17, 1
      %p161 = scmp.lt.s32.totalorder %s158, 3
      %s162 = scalar_select %p161, %s158, 3
      %s163 = smul.addr %s162, 16
      %s164 = smul.addr %s160, 64
      %s165 = sadd.s32 %s163, %s164
      %s166 = smul.addr %s165, 8
      %s167 = scalar_lea.vmem %s2, %s166
      %s168 = smul.u32 2, %s18
      %s170 = smul.u32 %s18, 2
      %s171 = smul.u32 %s170, 8
      %s172 = smul.addr %s171, 4
      %s173 = scalar_lea.vmem %s157, %s172
      %v174 = vld [vmem:[%s173] sm:$0xf]
      %v175 = vld [vmem:[%s173 + $0x4] sm:$0xf]
      %v176 = vld [vmem:[%s173 + $0x8] sm:$0xf]
      %v177 = vld [vmem:[%s173 + $0xc] sm:$0xf]
      %v178 = vld [vmem:[%s173 + $0x10] sm:$0xf]
      %v179 = vld [vmem:[%s173 + $0x14] sm:$0xf]
      %v180 = vld [vmem:[%s173 + $0x18] sm:$0xf]
      %v181 = vld [vmem:[%s173 + $0x1c] sm:$0xf]
      %v182 = vld [vmem:[%s173 + $0x20] sm:$0xf]
      %v183 = vld [vmem:[%s173 + $0x24] sm:$0xf]
      %v184 = vld [vmem:[%s173 + $0x28] sm:$0xf]
      %v185 = vld [vmem:[%s173 + $0x2c] sm:$0xf]
      %v186 = vld [vmem:[%s173 + $0x30] sm:$0xf]
      %v187 = vld [vmem:[%s173 + $0x34] sm:$0xf]
      %v188 = vld [vmem:[%s173 + $0x38] sm:$0xf]
      %v189 = vld [vmem:[%s173 + $0x3c] sm:$0xf]
      %s190 = sadd.s32 %s170, 1
      %s191 = smul.u32 %s190, 8
      %s192 = smul.addr %s191, 4
      %s193 = scalar_lea.vmem %s157, %s192
      %v194 = vld [vmem:[%s193] sm:$0xf]
      %v195 = vld [vmem:[%s193 + $0x4] sm:$0xf]
      %v196 = vld [vmem:[%s193 + $0x8] sm:$0xf]
      %v197 = vld [vmem:[%s193 + $0xc] sm:$0xf]
      %v198 = vld [vmem:[%s193 + $0x10] sm:$0xf]
      %v199 = vld [vmem:[%s193 + $0x14] sm:$0xf]
      %v200 = vld [vmem:[%s193 + $0x18] sm:$0xf]
      %v201 = vld [vmem:[%s193 + $0x1c] sm:$0xf]
      %v202 = vld [vmem:[%s193 + $0x20] sm:$0xf]
      %v203 = vld [vmem:[%s193 + $0x24] sm:$0xf]
      %v204 = vld [vmem:[%s193 + $0x28] sm:$0xf]
      %v205 = vld [vmem:[%s193 + $0x2c] sm:$0xf]
      %v206 = vld [vmem:[%s193 + $0x30] sm:$0xf]
      %v207 = vld [vmem:[%s193 + $0x34] sm:$0xf]
      %v208 = vld [vmem:[%s193 + $0x38] sm:$0xf]
      %v209 = vld [vmem:[%s193 + $0x3c] sm:$0xf]
      %v210 = vld [vmem:[%s1] sm:$0xff]
      %v211 = vld [vmem:[%s1 + $0x8] sm:$0xff]
      %v212 = vld [vmem:[%s1 + $0x10] sm:$0xff]
      %v213 = vld [vmem:[%s1 + $0x18] sm:$0xff]
      %v214 = vld [vmem:[%s1 + $0x20] sm:$0xff]
      %v215 = vld [vmem:[%s1 + $0x28] sm:$0xff]
      %v216 = vld [vmem:[%s1 + $0x30] sm:$0xff]
      %v217 = vld [vmem:[%s1 + $0x38] sm:$0xff]
      %v218 = vld [vmem:[%s1 + $0x40] sm:$0xff]
      %v219 = vld [vmem:[%s1 + $0x48] sm:$0xff]
      %v220 = vld [vmem:[%s1 + $0x50] sm:$0xff]
      %v221 = vld [vmem:[%s1 + $0x58] sm:$0xff]
      %v222 = vld [vmem:[%s1 + $0x60] sm:$0xff]
      %v223 = vld [vmem:[%s1 + $0x68] sm:$0xff]
      %v224 = vld [vmem:[%s1 + $0x70] sm:$0xff]
      %v225 = vld [vmem:[%s1 + $0x78] sm:$0xff]
      %s226 = scalar_lea.vmem %s1, 128
      %v227 = vld [vmem:[%s226] sm:$0xff]
      %v228 = vld [vmem:[%s226 + $0x8] sm:$0xff]
      %v229 = vld [vmem:[%s226 + $0x10] sm:$0xff]
      %v230 = vld [vmem:[%s226 + $0x18] sm:$0xff]
      %v231 = vld [vmem:[%s226 + $0x20] sm:$0xff]
      %v232 = vld [vmem:[%s226 + $0x28] sm:$0xff]
      %v233 = vld [vmem:[%s226 + $0x30] sm:$0xff]
      %v234 = vld [vmem:[%s226 + $0x38] sm:$0xff]
      %v235 = vld [vmem:[%s226 + $0x40] sm:$0xff]
      %v236 = vld [vmem:[%s226 + $0x48] sm:$0xff]
      %v237 = vld [vmem:[%s226 + $0x50] sm:$0xff]
      %v238 = vld [vmem:[%s226 + $0x58] sm:$0xff]
      %v239 = vld [vmem:[%s226 + $0x60] sm:$0xff]
      %v240 = vld [vmem:[%s226 + $0x68] sm:$0xff]
      %v241 = vld [vmem:[%s226 + $0x70] sm:$0xff]
      %v242 = vld [vmem:[%s226 + $0x78] sm:$0xff]
      %v259 = vunpack.c.l.b16 %v194
      %v260 = vunpack.c.l.b16 %v195
      %v261 = vunpack.c.l.b16 %v196
      %v262 = vunpack.c.l.b16 %v197
      %v263 = vunpack.c.l.b16 %v198
      %v264 = vunpack.c.l.b16 %v199
      %v265 = vunpack.c.l.b16 %v200
      %v266 = vunpack.c.l.b16 %v201
      %v267 = vunpack.c.l.b16 %v202
      %v268 = vunpack.c.l.b16 %v203
      %v269 = vunpack.c.l.b16 %v204
      %v270 = vunpack.c.l.b16 %v205
      %v271 = vunpack.c.l.b16 %v206
      %v272 = vunpack.c.l.b16 %v207
      %v273 = vunpack.c.l.b16 %v208
      %v274 = vunpack.c.l.b16 %v209
      %v275 = vpack.c.b16 %v260, %v259
      %v276 = vpack.c.b16 %v262, %v261
      %v277 = vpack.c.b16 %v264, %v263
      %v278 = vpack.c.b16 %v266, %v265
      %v279 = vpack.c.b16 %v268, %v267
      %v280 = vpack.c.b16 %v270, %v269
      %v281 = vpack.c.b16 %v272, %v271
      %v282 = vpack.c.b16 %v274, %v273
      %v307 = vunpack.c.l.b16 %v227
      %v308 = vunpack.c.h.b16 %v227
      %v309 = vunpack.c.l.b16 %v228
      %v310 = vunpack.c.h.b16 %v228
      %v311 = vunpack.c.l.b16 %v229
      %v312 = vunpack.c.h.b16 %v229
      %v313 = vunpack.c.l.b16 %v230
      %v314 = vunpack.c.h.b16 %v230
      %v315 = vunpack.c.l.b16 %v231
      %v316 = vunpack.c.h.b16 %v231
      %v317 = vunpack.c.l.b16 %v232
      %v318 = vunpack.c.h.b16 %v232
      %v319 = vunpack.c.l.b16 %v233
      %v320 = vunpack.c.h.b16 %v233
      %v321 = vunpack.c.l.b16 %v234
      %v322 = vunpack.c.h.b16 %v234
      %v323 = vunpack.c.l.b16 %v235
      %v324 = vunpack.c.h.b16 %v235
      %v325 = vunpack.c.l.b16 %v236
      %v326 = vunpack.c.h.b16 %v236
      %v327 = vunpack.c.l.b16 %v237
      %v328 = vunpack.c.h.b16 %v237
      %v329 = vunpack.c.l.b16 %v238
      %v330 = vunpack.c.h.b16 %v238
      %v331 = vunpack.c.l.b16 %v239
      %v332 = vunpack.c.h.b16 %v239
      %v333 = vunpack.c.l.b16 %v240
      %v334 = vunpack.c.h.b16 %v240
      %v335 = vunpack.c.l.b16 %v241
      %v336 = vunpack.c.h.b16 %v241
      %v337 = vunpack.c.l.b16 %v242
      %v338 = vunpack.c.h.b16 %v242
      %v339 = vpack.c.b16 %v309, %v307
      %v340 = vpack.c.b16 %v310, %v308
      %v341 = vpack.c.b16 %v313, %v311
      %v342 = vpack.c.b16 %v314, %v312
      %v343 = vpack.c.b16 %v317, %v315
      %v344 = vpack.c.b16 %v318, %v316
      %v345 = vpack.c.b16 %v321, %v319
      %v346 = vpack.c.b16 %v322, %v320
      %v347 = vpack.c.b16 %v325, %v323
      %v348 = vpack.c.b16 %v326, %v324
      %v349 = vpack.c.b16 %v329, %v327
      %v350 = vpack.c.b16 %v330, %v328
      %v351 = vpack.c.b16 %v333, %v331
      %v352 = vpack.c.b16 %v334, %v332
      %v353 = vpack.c.b16 %v337, %v335
      %v354 = vpack.c.b16 %v338, %v336
      %371 = vmatprep.subr.bf16.mxu0 %v354
      %372 = vmatpush1.bf16.msra.mxu0 %v353
      %373 = vmatprep.subr.bf16.mxu0 %v352
      %374 = vmatpush1.bf16.msra.mxu0 %v351
      %375 = vmatprep.subr.bf16.mxu0 %v350
      %376 = vmatpush1.bf16.msra.mxu0 %v349
      %377 = vmatprep.subr.bf16.mxu0 %v348
      %378 = vmatpush1.bf16.msra.mxu0 %v347
      %379 = vmatprep.subr.bf16.mxu0 %v346
      %380 = vmatpush1.bf16.msra.mxu0 %v345
      %381 = vmatprep.subr.bf16.mxu0 %v344
      %382 = vmatpush1.bf16.msra.mxu0 %v343
      %383 = vmatprep.subr.bf16.mxu0 %v342
      %384 = vmatpush1.bf16.msra.mxu0 %v341
      %385 = vmatprep.subr.bf16.mxu0 %v340
      %386 = vmatpush1.bf16.msra.mxu0 %v339
      %387 = vmatprep.subr.bf16.mxu0 0
      %388 = vmatpush2.bf16.msra.mxu0 0
      %389 = vmatprep.subr.bf16.mxu0 0
      %390 = vmatpush2.bf16.msra.mxu0 0
      %391 = vmatprep.subr.bf16.mxu0 0
      %392 = vmatpush2.bf16.msra.mxu0 0
      %393 = vmatprep.subr.bf16.mxu0 0
      %394 = vmatpush2.bf16.msra.mxu0 0
      %395 = vmatprep.subr.bf16.mxu0 0
      %396 = vmatpush2.bf16.msra.mxu0 0
      %397 = vmatprep.subr.bf16.mxu0 0
      %398 = vmatpush2.bf16.msra.mxu0 0
      %399 = vmatprep.subr.bf16.mxu0 0
      %400 = vmatpush2.bf16.msra.mxu0 0
      %401 = vmatprep.subr.bf16.mxu0 0
      %402 = vmatpush2.bf16.msra.mxu0 0
      %403 = vmatprep.mubr.bf16.mxu0 0
      %404 = vmatmul.mubr.bf16.gmra.mxu0 %v275
      %v405 = vpop.f32.mrf.mxu0
      %v406 = vadd.f32 0.0, %v405
      %v407 = vpop.f32.mrf.mxu0
      %v408 = vadd.f32 0.0, %v407
      %v409 = vpop.f32.mrf.mxu0
      %v410 = vadd.f32 0.0, %v409
      %v411 = vpop.f32.mrf.mxu0
      %v412 = vadd.f32 0.0, %v411
      %413 = vmatprep.mubr.bf16.mxu0 0
      %414 = vmatmul.mubr.bf16.gmra.mxu0 %v276
      %v415 = vpop.f32.mrf.mxu0
      %v416 = vadd.f32 0.0, %v415
      %v417 = vpop.f32.mrf.mxu0
      %v418 = vadd.f32 0.0, %v417
      %v419 = vpop.f32.mrf.mxu0
      %v420 = vadd.f32 0.0, %v419
      %v421 = vpop.f32.mrf.mxu0
      %v422 = vadd.f32 0.0, %v421
      %423 = vmatprep.mubr.bf16.mxu0 0
      %424 = vmatmul.mubr.bf16.gmra.mxu0 %v277
      %v425 = vpop.f32.mrf.mxu0
      %v426 = vadd.f32 0.0, %v425
      %v427 = vpop.f32.mrf.mxu0
      %v428 = vadd.f32 0.0, %v427
      %v429 = vpop.f32.mrf.mxu0
      %v430 = vadd.f32 0.0, %v429
      %v431 = vpop.f32.mrf.mxu0
      %v432 = vadd.f32 0.0, %v431
      %433 = vmatprep.mubr.bf16.mxu0 0
      %434 = vmatmul.mubr.bf16.gmra.mxu0 %v278
      %v435 = vpop.f32.mrf.mxu0
      %v436 = vadd.f32 0.0, %v435
      %v437 = vpop.f32.mrf.mxu0
      %v438 = vadd.f32 0.0, %v437
      %v439 = vpop.f32.mrf.mxu0
      %v440 = vadd.f32 0.0, %v439
      %v441 = vpop.f32.mrf.mxu0
      %v442 = vadd.f32 0.0, %v441
      %443 = vmatprep.mubr.bf16.mxu0 0
      %444 = vmatmul.mubr.bf16.gmra.mxu0 %v279
      %v445 = vpop.f32.mrf.mxu0
      %v446 = vadd.f32 0.0, %v445
      %v447 = vpop.f32.mrf.mxu0
      %v448 = vadd.f32 0.0, %v447
      %v449 = vpop.f32.mrf.mxu0
      %v450 = vadd.f32 0.0, %v449
      %v451 = vpop.f32.mrf.mxu0
      %v452 = vadd.f32 0.0, %v451
      %453 = vmatprep.mubr.bf16.mxu0 0
      %454 = vmatmul.mubr.bf16.gmra.mxu0 %v280
      %v455 = vpop.f32.mrf.mxu0
      %v456 = vadd.f32 0.0, %v455
      %v457 = vpop.f32.mrf.mxu0
      %v458 = vadd.f32 0.0, %v457
      %v459 = vpop.f32.mrf.mxu0
      %v460 = vadd.f32 0.0, %v459
      %v461 = vpop.f32.mrf.mxu0
      %v462 = vadd.f32 0.0, %v461
      %463 = vmatprep.mubr.bf16.mxu0 0
      %464 = vmatmul.mubr.bf16.gmra.mxu0 %v281
      %v465 = vpop.f32.mrf.mxu0
      %v466 = vadd.f32 0.0, %v465
      %v467 = vpop.f32.mrf.mxu0
      %v468 = vadd.f32 0.0, %v467
      %v469 = vpop.f32.mrf.mxu0
      %v470 = vadd.f32 0.0, %v469
      %v471 = vpop.f32.mrf.mxu0
      %v472 = vadd.f32 0.0, %v471
      %473 = vmatprep.mubr.bf16.mxu0 0
      %474 = vmatmul.mubr.bf16.gmra.mxu0 %v282
      %v475 = vpop.f32.mrf.mxu0
      %v476 = vadd.f32 0.0, %v475
      %v477 = vpop.f32.mrf.mxu0
      %v478 = vadd.f32 0.0, %v477
      %v479 = vpop.f32.mrf.mxu0
      %v480 = vadd.f32 0.0, %v479
      %v481 = vpop.f32.mrf.mxu0
      %v482 = vadd.f32 0.0, %v481
      %483 = vdwg.mxu0
      %v500 = vunpack.c.l.b16 %v174
      %v501 = vunpack.c.l.b16 %v175
      %v502 = vunpack.c.l.b16 %v176
      %v503 = vunpack.c.l.b16 %v177
      %v504 = vunpack.c.l.b16 %v178
      %v505 = vunpack.c.l.b16 %v179
      %v506 = vunpack.c.l.b16 %v180
      %v507 = vunpack.c.l.b16 %v181
      %v508 = vunpack.c.l.b16 %v182
      %v509 = vunpack.c.l.b16 %v183
      %v510 = vunpack.c.l.b16 %v184
      %v511 = vunpack.c.l.b16 %v185
      %v512 = vunpack.c.l.b16 %v186
      %v513 = vunpack.c.l.b16 %v187
      %v514 = vunpack.c.l.b16 %v188
      %v515 = vunpack.c.l.b16 %v189
      %v516 = vpack.c.b16 %v501, %v500
      %v517 = vpack.c.b16 %v503, %v502
      %v518 = vpack.c.b16 %v505, %v504
      %v519 = vpack.c.b16 %v507, %v506
      %v520 = vpack.c.b16 %v509, %v508
      %v521 = vpack.c.b16 %v511, %v510
      %v522 = vpack.c.b16 %v513, %v512
      %v523 = vpack.c.b16 %v515, %v514
      %v548 = vunpack.c.l.b16 %v210
      %v549 = vunpack.c.h.b16 %v210
      %v550 = vunpack.c.l.b16 %v211
      %v551 = vunpack.c.h.b16 %v211
      %v552 = vunpack.c.l.b16 %v212
      %v553 = vunpack.c.h.b16 %v212
      %v554 = vunpack.c.l.b16 %v213
      %v555 = vunpack.c.h.b16 %v213
      %v556 = vunpack.c.l.b16 %v214
      %v557 = vunpack.c.h.b16 %v214
      %v558 = vunpack.c.l.b16 %v215
      %v559 = vunpack.c.h.b16 %v215
      %v560 = vunpack.c.l.b16 %v216
      %v561 = vunpack.c.h.b16 %v216
      %v562 = vunpack.c.l.b16 %v217
      %v563 = vunpack.c.h.b16 %v217
      %v564 = vunpack.c.l.b16 %v218
      %v565 = vunpack.c.h.b16 %v218
      %v566 = vunpack.c.l.b16 %v219
      %v567 = vunpack.c.h.b16 %v219
      %v568 = vunpack.c.l.b16 %v220
      %v569 = vunpack.c.h.b16 %v220
      %v570 = vunpack.c.l.b16 %v221
      %v571 = vunpack.c.h.b16 %v221
      %v572 = vunpack.c.l.b16 %v222
      %v573 = vunpack.c.h.b16 %v222
      %v574 = vunpack.c.l.b16 %v223
      %v575 = vunpack.c.h.b16 %v223
      %v576 = vunpack.c.l.b16 %v224
      %v577 = vunpack.c.h.b16 %v224
      %v578 = vunpack.c.l.b16 %v225
      %v579 = vunpack.c.h.b16 %v225
      %v580 = vpack.c.b16 %v550, %v548
      %v581 = vpack.c.b16 %v551, %v549
      %v582 = vpack.c.b16 %v554, %v552
      %v583 = vpack.c.b16 %v555, %v553
      %v584 = vpack.c.b16 %v558, %v556
      %v585 = vpack.c.b16 %v559, %v557
      %v586 = vpack.c.b16 %v562, %v560
      %v587 = vpack.c.b16 %v563, %v561
      %v588 = vpack.c.b16 %v566, %v564
      %v589 = vpack.c.b16 %v567, %v565
      %v590 = vpack.c.b16 %v570, %v568
      %v591 = vpack.c.b16 %v571, %v569
      %v592 = vpack.c.b16 %v574, %v572
      %v593 = vpack.c.b16 %v575, %v573
      %v594 = vpack.c.b16 %v578, %v576
      %v595 = vpack.c.b16 %v579, %v577
      %612 = vmatprep.subr.bf16.mxu0 %v595
      %613 = vmatpush1.bf16.msra.mxu0 %v594
      %614 = vmatprep.subr.bf16.mxu0 %v593
      %615 = vmatpush1.bf16.msra.mxu0 %v592
      %616 = vmatprep.subr.bf16.mxu0 %v591
      %617 = vmatpush1.bf16.msra.mxu0 %v590
      %618 = vmatprep.subr.bf16.mxu0 %v589
      %619 = vmatpush1.bf16.msra.mxu0 %v588
      %620 = vmatprep.subr.bf16.mxu0 %v587
      %621 = vmatpush1.bf16.msra.mxu0 %v586
      %622 = vmatprep.subr.bf16.mxu0 %v585
      %623 = vmatpush1.bf16.msra.mxu0 %v584
      %624 = vmatprep.subr.bf16.mxu0 %v583
      %625 = vmatpush1.bf16.msra.mxu0 %v582
      %626 = vmatprep.subr.bf16.mxu0 %v581
      %627 = vmatpush1.bf16.msra.mxu0 %v580
      %628 = vmatprep.subr.bf16.mxu0 0
      %629 = vmatpush2.bf16.msra.mxu0 0
      %630 = vmatprep.subr.bf16.mxu0 0
      %631 = vmatpush2.bf16.msra.mxu0 0
      %632 = vmatprep.subr.bf16.mxu0 0
      %633 = vmatpush2.bf16.msra.mxu0 0
      %634 = vmatprep.subr.bf16.mxu0 0
      %635 = vmatpush2.bf16.msra.mxu0 0
      %636 = vmatprep.subr.bf16.mxu0 0
      %637 = vmatpush2.bf16.msra.mxu0 0
      %638 = vmatprep.subr.bf16.mxu0 0
      %639 = vmatpush2.bf16.msra.mxu0 0
      %640 = vmatprep.subr.bf16.mxu0 0
      %641 = vmatpush2.bf16.msra.mxu0 0
      %642 = vmatprep.subr.bf16.mxu0 0
      %643 = vmatpush2.bf16.msra.mxu0 0
      %644 = vmatprep.mubr.bf16.mxu0 0
      %645 = vmatmul.mubr.bf16.gmra.mxu0 %v516
      %v646 = vpop.f32.mrf.mxu0
      %v647 = vadd.f32 %v406, %v646
      %v648 = vpop.f32.mrf.mxu0
      %v649 = vadd.f32 %v408, %v648
      %v650 = vpop.f32.mrf.mxu0
      %v651 = vadd.f32 %v410, %v650
      %v652 = vpop.f32.mrf.mxu0
      %v653 = vadd.f32 %v412, %v652
      %654 = vmatprep.mubr.bf16.mxu0 0
      %655 = vmatmul.mubr.bf16.gmra.mxu0 %v517
      %v656 = vpop.f32.mrf.mxu0
      %v657 = vadd.f32 %v416, %v656
      %v658 = vpop.f32.mrf.mxu0
      %v659 = vadd.f32 %v418, %v658
      %v660 = vpop.f32.mrf.mxu0
      %v661 = vadd.f32 %v420, %v660
      %v662 = vpop.f32.mrf.mxu0
      %v663 = vadd.f32 %v422, %v662
      %664 = vmatprep.mubr.bf16.mxu0 0
      %665 = vmatmul.mubr.bf16.gmra.mxu0 %v518
      %v666 = vpop.f32.mrf.mxu0
      %v667 = vadd.f32 %v426, %v666
      %v668 = vpop.f32.mrf.mxu0
      %v669 = vadd.f32 %v428, %v668
      %v670 = vpop.f32.mrf.mxu0
      %v671 = vadd.f32 %v430, %v670
      %v672 = vpop.f32.mrf.mxu0
      %v673 = vadd.f32 %v432, %v672
      %674 = vmatprep.mubr.bf16.mxu0 0
      %675 = vmatmul.mubr.bf16.gmra.mxu0 %v519
      %v676 = vpop.f32.mrf.mxu0
      %v677 = vadd.f32 %v436, %v676
      %v678 = vpop.f32.mrf.mxu0
      %v679 = vadd.f32 %v438, %v678
      %v680 = vpop.f32.mrf.mxu0
      %v681 = vadd.f32 %v440, %v680
      %v682 = vpop.f32.mrf.mxu0
      %v683 = vadd.f32 %v442, %v682
      %684 = vmatprep.mubr.bf16.mxu0 0
      %685 = vmatmul.mubr.bf16.gmra.mxu0 %v520
      %v686 = vpop.f32.mrf.mxu0
      %v687 = vadd.f32 %v446, %v686
      %v688 = vpop.f32.mrf.mxu0
      %v689 = vadd.f32 %v448, %v688
      %v690 = vpop.f32.mrf.mxu0
      %v691 = vadd.f32 %v450, %v690
      %v692 = vpop.f32.mrf.mxu0
      %v693 = vadd.f32 %v452, %v692
      %694 = vmatprep.mubr.bf16.mxu0 0
      %695 = vmatmul.mubr.bf16.gmra.mxu0 %v521
      %v696 = vpop.f32.mrf.mxu0
      %v697 = vadd.f32 %v456, %v696
      %v698 = vpop.f32.mrf.mxu0
      %v699 = vadd.f32 %v458, %v698
      %v700 = vpop.f32.mrf.mxu0
      %v701 = vadd.f32 %v460, %v700
      %v702 = vpop.f32.mrf.mxu0
      %v703 = vadd.f32 %v462, %v702
      %704 = vmatprep.mubr.bf16.mxu0 0
      %705 = vmatmul.mubr.bf16.gmra.mxu0 %v522
      %v706 = vpop.f32.mrf.mxu0
      %v707 = vadd.f32 %v466, %v706
      %v708 = vpop.f32.mrf.mxu0
      %v709 = vadd.f32 %v468, %v708
      %v710 = vpop.f32.mrf.mxu0
      %v711 = vadd.f32 %v470, %v710
      %v712 = vpop.f32.mrf.mxu0
      %v713 = vadd.f32 %v472, %v712
      %714 = vmatprep.mubr.bf16.mxu0 0
      %715 = vmatmul.mubr.bf16.gmra.mxu0 %v523
      %v716 = vpop.f32.mrf.mxu0
      %v717 = vadd.f32 %v476, %v716
      %v718 = vpop.f32.mrf.mxu0
      %v719 = vadd.f32 %v478, %v718
      %v720 = vpop.f32.mrf.mxu0
      %v721 = vadd.f32 %v480, %v720
      %v722 = vpop.f32.mrf.mxu0
      %v723 = vadd.f32 %v482, %v722
      %724 = vdwg.mxu0
      %725 = vst [vmem:[%s167] sm:$0xff] %v647
      %726 = vst [vmem:[%s167 + $0x8] sm:$0xff] %v649
      %727 = vst [vmem:[%s167 + $0x10] sm:$0xff] %v651
      %728 = vst [vmem:[%s167 + $0x18] sm:$0xff] %v653
      %729 = vst [vmem:[%s167 + $0x20] sm:$0xff] %v657
      %730 = vst [vmem:[%s167 + $0x28] sm:$0xff] %v659
      %731 = vst [vmem:[%s167 + $0x30] sm:$0xff] %v661
      %732 = vst [vmem:[%s167 + $0x38] sm:$0xff] %v663
      %733 = vst [vmem:[%s167 + $0x40] sm:$0xff] %v667
      %734 = vst [vmem:[%s167 + $0x48] sm:$0xff] %v669
      %735 = vst [vmem:[%s167 + $0x50] sm:$0xff] %v671
      %736 = vst [vmem:[%s167 + $0x58] sm:$0xff] %v673
      %737 = vst [vmem:[%s167 + $0x60] sm:$0xff] %v677
      %738 = vst [vmem:[%s167 + $0x68] sm:$0xff] %v679
      %739 = vst [vmem:[%s167 + $0x70] sm:$0xff] %v681
      %740 = vst [vmem:[%s167 + $0x78] sm:$0xff] %v683
      %741 = vst [vmem:[%s167 + $0x80] sm:$0xff] %v687
      %742 = vst [vmem:[%s167 + $0x88] sm:$0xff] %v689
      %743 = vst [vmem:[%s167 + $0x90] sm:$0xff] %v691
      %744 = vst [vmem:[%s167 + $0x98] sm:$0xff] %v693
      %745 = vst [vmem:[%s167 + $0xa0] sm:$0xff] %v697
      %746 = vst [vmem:[%s167 + $0xa8] sm:$0xff] %v699
      %747 = vst [vmem:[%s167 + $0xb0] sm:$0xff] %v701
      %748 = vst [vmem:[%s167 + $0xb8] sm:$0xff] %v703
      %749 = vst [vmem:[%s167 + $0xc0] sm:$0xff] %v707
      %750 = vst [vmem:[%s167 + $0xc8] sm:$0xff] %v709
      %751 = vst [vmem:[%s167 + $0xd0] sm:$0xff] %v711
      %752 = vst [vmem:[%s167 + $0xd8] sm:$0xff] %v713
      %753 = vst [vmem:[%s167 + $0xe0] sm:$0xff] %v717
      %754 = vst [vmem:[%s167 + $0xe8] sm:$0xff] %v719
      %755 = vst [vmem:[%s167 + $0xf0] sm:$0xff] %v721
      %756 = vst [vmem:[%s167 + $0xf8] sm:$0xff] %v723
      %s757 = smul.u32 2, %s18
      %p758 = scmp.lt.s32.totalorder %s17, 1
      %s759 = scalar_select %p758, %s17, 1
      %p760 = scmp.lt.s32.totalorder %s757, 3
      %s761 = scalar_select %p760, %s757, 3
      %s762 = smul.addr %s761, 16
      %s763 = smul.addr %s759, 64
      %s764 = sadd.s32 %s762, %s763
      %s765 = smul.addr %s764, 8
      %s766 = scalar_lea.vmem %s2, %s765
      // Predicated region
      $region29: #{upblock_forward.6} parent=27 // pred_check
        %p767 = pneg %p92
      $region30: #{upblock_forward.6} parent=27 // pred_check_branch
        %769 = sbr.rel (%p767) target = $region32
      $region31: #{upblock_forward.6} parent=27 // pred_region
        %s770 = smul.u32 2, %s18
      $region32: #{upblock_forward.6} parent=27 // pred_fallthru
        _
    $region28: #{upblock_forward.6} parent=5 // pred_fallthru
      _
    %p771 = scmp.le.s32.totalorder 2, %s8
    // Predicated region
    $region33: #{upblock_forward.6} parent=5 // pred_check
      %p772 = pneg %p771
    $region34: #{upblock_forward.6} parent=5 // pred_check_branch
      %774 = sbr.rel (%p772) target = $region36
    $region35: #{upblock_forward.6} parent=5 // pred_region
      %s775 = ssub.s32 %s8, 2
      // Predicated region
      $region37: #{upblock_forward.6} parent=35 // pred_check
        %p776 = pneg %p98
      $region38: #{upblock_forward.6} parent=35 // pred_check_branch
        %778 = sbr.rel (%p776) target = $region40
      $region39: #{upblock_forward.6} parent=35 // pred_region
        %s779 = smul.u32 2, %s20
        %p780 = scmp.lt.s32.totalorder %s19, 1
        %s781 = scalar_select %p780, %s19, 1
        %p782 = scmp.lt.s32.totalorder %s779, 3
        %s783 = scalar_select %p782, %s779, 3
        %s784 = smul.addr %s783, 16
        %s785 = smul.addr %s781, 64
        %s786 = sadd.s32 %s784, %s785
        %s787 = smul.addr %s786, 8
        %s788 = scalar_lea.vmem %s2, %s787
      $region40: #{upblock_forward.6} parent=35 // pred_fallthru
        _
    $region36: #{upblock_forward.6} parent=5 // pred_fallthru
      _
  $region6: #{upblock_forward.6} parent=0 // loop_footer
    %s12 = sadd.s32 1, %s8
  $region7: #{upblock_forward.6} parent=0 // loop_footer_branch
    %7 = sbr.rel target = $region3
  $region8: #{upblock_forward.6} parent=0 // loop_exit
    _

// kernel: upblock_forward.7
$region0: #{upblock_forward.7}
  #allocation0 [shape = 'u32[]', space=smem, size = 0x4, offset = 0x4, fixed_abs, tag = 'smem constant byte address 0x4 - core index']
  #allocation1 [shape = 'u32[144,128]{1,0:T(1,128)}', space=vmem, size = 0x12000, scoped, tag = 'internal scratch']
  %s0 = inlined_call_operand.vmem [shape: bf16[2,8,16,16,288], index: 0, kind: input, shape index: {}]
  %s1 = inlined_call_operand.vmem [shape: bf16[1,288,32], index: 1, kind: input, shape index: {}]
  %s2 = inlined_call_operand.vmem [shape: f32[1,32], index: 2, kind: input, shape index: {}]
  %s3 = inlined_call_operand.vmem [shape: f32[2,8,16,16,32], index: 3, kind: output, shape index: {}]
  %s4 = sld [smem:[#allocation0]]
  $region45: #{upblock_forward.7} parent=0
    _
  %s6 = ssub.s32 1, %s4
  %s7 = scalar_select 0, %s6, %s4
  loop: start=0, step=1, limit=18
  $region2: #{upblock_forward.7} parent=0 // loop_pre_header
    _
  $region3: #{upblock_forward.7} parent=0 // loop_header
    %s9 = sphi 0, %s13
    %p10 = scmp.ge.s32.totalorder %s9, 18
    %s16 = sphi 0, %s28
    %s17 = sphi 0, %s24
    %s18 = sphi 0, %s16
    %s19 = sphi 0, %s17
    %s20 = sphi 0, %s18
    %s21 = sphi 0, %s19
    %s31 = sphi 0, %s33
    %s34 = sphi 0, %s31
    %s35 = sphi 0, %s34
    %s51 = sphi 0, %s35
    %s55 = sphi 0, %s55
    %s57 = sphi 0, %s55
    %s58 = sphi 0, %s57
    %s72 = sphi 0, %s58
    %s76 = sphi 0, %s76
    %s78 = sphi 0, %s76
    %s79 = sphi 0, %s78
    %s93 = sphi 0, %s79
    %s101 = sphi 0, %s103
    %s104 = sphi 0, %s101
    %s105 = sphi 0, %s104
    %s121 = sphi 0, %s105
  $region4: #{upblock_forward.7} parent=0 // loop_header_branch
    %12 = sbr.rel (%p10) target = $region8
  $region5: #{upblock_forward.7} parent=0 // loop_body
    %s14 = ssub.s32 %s9, 1
    %s15 = ssub.s32 %s9, 2
    %s22 = sadd.s32 1, %s17
    %p23 = scmp.ge.s32.totalorder %s22, 8
    %s24 = scalar_select %p23, 0, %s22
    %s25 = sadd.s32 1, %s16
    %s26 = scalar_select %p23, %s25, %s16
    %p27 = scmp.ge.s32.totalorder %s26, 2
    %s28 = scalar_select %p27, 0, %s26
    %s29 = ssub.s32 %s16, %s28
    %p30 = scmp.eq.s32.totalorder %s29, 0
    %s32 = sadd.s32 %s31, 1
    %s33 = scalar_select %p30, %s31, %s32
    %p36 = pneg %p30
    %p37 = scmp.eq.s32.totalorder %s9, 15
    %p38 = por %p36, %p37
    %p39 = scmp.ne.s32.totalorder %s31, %s34
    %p40 = scmp.eq.s32.totalorder %s9, 0
    %p41 = por %p39, %p40
    %p42 = scmp.ne.s32.totalorder %s31, %s34
    %p43 = scmp.eq.s32.totalorder %s14, 15
    %p44 = por %p42, %p43
    %p45 = scmp.ne.s32.totalorder %s34, %s35
    %p46 = scmp.eq.s32.totalorder %s14, 0
    %p47 = por %p45, %p46
    %p48 = scmp.ne.s32.totalorder %s34, %s35
    %p49 = scmp.eq.s32.totalorder %s15, 15
    %p50 = por %p48, %p49
    %p52 = scmp.ne.s32.totalorder %s35, %s51
    %p53 = scmp.eq.s32.totalorder %s15, 0
    %p54 = por %p52, %p53
    %s56 = sadd.s32 %s55, 1
    %p59 = scmp.eq.s32.totalorder %s9, 15
    %p60 = scmp.ne.s32.totalorder %s55, %s57
    %p61 = scmp.eq.s32.totalorder %s9, 0
    %p62 = por %p60, %p61
    %p63 = scmp.ne.s32.totalorder %s55, %s57
    %p64 = scmp.eq.s32.totalorder %s14, 15
    %p65 = por %p63, %p64
    %p66 = scmp.ne.s32.totalorder %s57, %s58
    %p67 = scmp.eq.s32.totalorder %s14, 0
    %p68 = por %p66, %p67
    %p69 = scmp.ne.s32.totalorder %s57, %s58
    %p70 = scmp.eq.s32.totalorder %s15, 15
    %p71 = por %p69, %p70
    %p73 = scmp.ne.s32.totalorder %s58, %s72
    %p74 = scmp.eq.s32.totalorder %s15, 0
    %p75 = por %p73, %p74
    %s77 = sadd.s32 %s76, 1
    %p80 = scmp.eq.s32.totalorder %s9, 15
    %p81 = scmp.ne.s32.totalorder %s76, %s78
    %p82 = scmp.eq.s32.totalorder %s9, 0
    %p83 = por %p81, %p82
    %p84 = scmp.ne.s32.totalorder %s76, %s78
    %p85 = scmp.eq.s32.totalorder %s14, 15
    %p86 = por %p84, %p85
    %p87 = scmp.ne.s32.totalorder %s78, %s79
    %p88 = scmp.eq.s32.totalorder %s14, 0
    %p89 = por %p87, %p88
    %p90 = scmp.ne.s32.totalorder %s78, %s79
    %p91 = scmp.eq.s32.totalorder %s15, 15
    %p92 = por %p90, %p91
    %p94 = scmp.ne.s32.totalorder %s79, %s93
    %p95 = scmp.eq.s32.totalorder %s15, 0
    %p96 = por %p94, %p95
    %s97 = ssub.s32 %s16, %s28
    %s98 = ssub.s32 %s17, %s24
    %s99 = sor.u32 %s97, %s98
    %p100 = scmp.eq.s32.totalorder %s99, 0
    %s102 = sadd.s32 %s101, 1
    %s103 = scalar_select %p100, %s101, %s102
    %p106 = pneg %p100
    %p107 = scmp.eq.s32.totalorder %s9, 15
    %p108 = por %p106, %p107
    %p109 = scmp.ne.s32.totalorder %s101, %s104
    %p110 = scmp.eq.s32.totalorder %s9, 0
    %p111 = por %p109, %p110
    %p112 = scmp.ne.s32.totalorder %s101, %s104
    %p113 = scmp.eq.s32.totalorder %s14, 15
    %p114 = por %p112, %p113
    %p115 = scmp.ne.s32.totalorder %s104, %s105
    %p116 = scmp.eq.s32.totalorder %s14, 0
    %p117 = por %p115, %p116
    %p118 = scmp.ne.s32.totalorder %s104, %s105
    %p119 = scmp.eq.s32.totalorder %s15, 15
    %p120 = por %p118, %p119
    %p122 = scmp.ne.s32.totalorder %s105, %s121
    %p123 = scmp.eq.s32.totalorder %s15, 0
    %p124 = por %p122, %p123
    %p125 = scmp.le.s32.totalorder 1, %s9
    %p126 = scmp.lt.s32.totalorder %s9, 17
    %p127 = pnand %p125, %p126
    %p128 = pneg %p127
    // Predicated region
    $region9: #{upblock_forward.7} parent=5 // pred_check
      _
    $region10: #{upblock_forward.7} parent=5 // pred_check_branch
      %130 = sbr.rel (%p127) target = $region12
    $region11: #{upblock_forward.7} parent=5 // pred_region
      %s131 = ssub.s32 %s9, 1
      // Predicated region
      $region13: #{upblock_forward.7} parent=11 // pred_check
        %p132 = pneg %p68
      $region14: #{upblock_forward.7} parent=11 // pred_check_branch
        %134 = sbr.rel (%p132) target = $region16
      $region15: #{upblock_forward.7} parent=11 // pred_region
        _
      $region16: #{upblock_forward.7} parent=11 // pred_fallthru
        _
      // Predicated region
      $region17: #{upblock_forward.7} parent=11 // pred_check
        %p135 = pneg %p89
      $region18: #{upblock_forward.7} parent=11 // pred_check_branch
        %137 = sbr.rel (%p135) target = $region20
      $region19: #{upblock_forward.7} parent=11 // pred_region
        _
      $region20: #{upblock_forward.7} parent=11 // pred_fallthru
        _
    $region12: #{upblock_forward.7} parent=5 // pred_fallthru
      _
    %p138 = scmp.lt.s32.totalorder %s9, 16
    // Predicated region
    $region21: #{upblock_forward.7} parent=5 // pred_check
      %p139 = pneg %p138
    $region22: #{upblock_forward.7} parent=5 // pred_check_branch
      %141 = sbr.rel (%p139) target = $region24
    $region23: #{upblock_forward.7} parent=5 // pred_region
      // Predicated region
      $region25: #{upblock_forward.7} parent=23 // pred_check
        %p142 = pneg %p41
      $region26: #{upblock_forward.7} parent=23 // pred_check_branch
        %144 = sbr.rel (%p142) target = $region28
      $region27: #{upblock_forward.7} parent=23 // pred_region
        %p145 = scmp.lt.s32.totalorder %s16, 1
        %s146 = scalar_select %p145, %s16, 1
        %s147 = smul.addr %s146, 768
        %s148 = smul.addr %s147, 4
        %s149 = scalar_lea.vmem %s0, %s148
      $region28: #{upblock_forward.7} parent=23 // pred_fallthru
        _
    $region24: #{upblock_forward.7} parent=5 // pred_fallthru
      _
    %p150 = scmp.le.s32.totalorder 1, %s9
    %p151 = scmp.lt.s32.totalorder %s9, 17
    %p152 = pnand %p150, %p151
    %p153 = pneg %p152
    // Predicated region
    $region29: #{upblock_forward.7} parent=5 // pred_check
      _
    $region30: #{upblock_forward.7} parent=5 // pred_check_branch
      %155 = sbr.rel (%p152) target = $region32
    $region31: #{upblock_forward.7} parent=5 // pred_region
      %s156 = ssub.s32 %s9, 1
      %p157 = scmp.lt.s32.totalorder %s18, 1
      %s158 = scalar_select %p157, %s18, 1
      %s159 = smul.addr %s158, 768
      %s160 = smul.addr %s159, 4
      %s161 = scalar_lea.vmem %s0, %s160
      %p162 = pneg %p47
      %p163 = pneg %p44
      %p164 = pneg %p68
      %p165 = pneg %p65
      %p166 = pneg %p89
      %p167 = pneg %p86
      %p168 = pneg %p117
      %p169 = pneg %p114
      %p170 = scmp.lt.s32.totalorder %s18, 1
      %s171 = scalar_select %p170, %s18, 1
      %p172 = scmp.lt.s32.totalorder %s19, 7
      %s173 = scalar_select %p172, %s19, 7
      %s174 = smul.addr %s173, 32
      %s175 = smul.addr %s171, 256
      %s176 = sadd.s32 %s174, %s175
      %s177 = smul.addr %s176, 8
      %s178 = scalar_lea.vmem %s3, %s177
      %p179 = scmp.lt.s32.totalorder %s18, 1
      %s180 = scalar_select %p179, %s18, 1
      %s181 = smul.addr %s180, 768
      %s182 = smul.addr %s181, 4
      %s183 = scalar_lea.vmem %s0, %s182
      %p184 = scmp.lt.s32.totalorder %s18, 1
      %s185 = scalar_select %p184, %s18, 1
      %p186 = scmp.lt.s32.totalorder %s19, 7
      %s187 = scalar_select %p186, %s19, 7
      %s188 = smul.addr %s187, 32
      %s189 = smul.addr %s185, 256
      %s190 = sadd.s32 %s188, %s189
      %s191 = smul.addr %s190, 8
      %s192 = scalar_lea.vmem %s3, %s191
      %s194 = smul.u32 %s19, 96
      %s195 = smul.addr %s194, 4
      %s196 = scalar_lea.vmem %s183, %s195
      %v197 = vld [vmem:[%s196] sm:$0xff]
      %v198 = vld [vmem:[%s196 + $0x8] sm:$0xf]
      %v199 = vld [vmem:[%s196 + $0xc] sm:$0xff]
      %v200 = vld [vmem:[%s196 + $0x14] sm:$0xf]
      %v201 = vld [vmem:[%s196 + $0x18] sm:$0xff]
      %v202 = vld [vmem:[%s196 + $0x20] sm:$0xf]
      %v203 = vld [vmem:[%s196 + $0x24] sm:$0xff]
      %v204 = vld [vmem:[%s196 + $0x2c] sm:$0xf]
      %v205 = vld [vmem:[%s196 + $0x30] sm:$0xff]
      %v206 = vld [vmem:[%s196 + $0x38] sm:$0xf]
      %v207 = vld [vmem:[%s196 + $0x3c] sm:$0xff]
      %v208 = vld [vmem:[%s196 + $0x44] sm:$0xf]
      %v209 = vld [vmem:[%s196 + $0x48] sm:$0xff]
      %v210 = vld [vmem:[%s196 + $0x50] sm:$0xf]
      %v211 = vld [vmem:[%s196 + $0x54] sm:$0xff]
      %v212 = vld [vmem:[%s196 + $0x5c] sm:$0xf]
      %v213 = vld [vmem:[%s196 + $0x60] sm:$0xff]
      %v214 = vld [vmem:[%s196 + $0x68] sm:$0xf]
      %v215 = vld [vmem:[%s196 + $0x6c] sm:$0xff]
      %v216 = vld [vmem:[%s196 + $0x74] sm:$0xf]
      %v217 = vld [vmem:[%s196 + $0x78] sm:$0xff]
      %v218 = vld [vmem:[%s196 + $0x80] sm:$0xf]
      %v219 = vld [vmem:[%s196 + $0x84] sm:$0xff]
      %v220 = vld [vmem:[%s196 + $0x8c] sm:$0xf]
      %v221 = vld [vmem:[%s196 + $0x90] sm:$0xff]
      %v222 = vld [vmem:[%s196 + $0x98] sm:$0xf]
      %v223 = vld [vmem:[%s196 + $0x9c] sm:$0xff]
      %v224 = vld [vmem:[%s196 + $0xa4] sm:$0xf]
      %v225 = vld [vmem:[%s196 + $0xa8] sm:$0xff]
      %v226 = vld [vmem:[%s196 + $0xb0] sm:$0xf]
      %v227 = vld [vmem:[%s196 + $0xb4] sm:$0xff]
      %v228 = vld [vmem:[%s196 + $0xbc] sm:$0xf]
      %v229 = vld [vmem:[%s196 + $0xc0] sm:$0xff]
      %v230 = vld [vmem:[%s196 + $0xc8] sm:$0xf]
      %v231 = vld [vmem:[%s196 + $0xcc] sm:$0xff]
      %v232 = vld [vmem:[%s196 + $0xd4] sm:$0xf]
      %v233 = vld [vmem:[%s196 + $0xd8] sm:$0xff]
      %v234 = vld [vmem:[%s196 + $0xe0] sm:$0xf]
      %v235 = vld [vmem:[%s196 + $0xe4] sm:$0xff]
      %v236 = vld [vmem:[%s196 + $0xec] sm:$0xf]
      %v237 = vld [vmem:[%s196 + $0xf0] sm:$0xff]
      %v238 = vld [vmem:[%s196 + $0xf8] sm:$0xf]
      %v239 = vld [vmem:[%s196 + $0xfc] sm:$0xff]
      %v240 = vld [vmem:[%s196 + $0x104] sm:$0xf]
      %v241 = vld [vmem:[%s196 + $0x108] sm:$0xff]
      %v242 = vld [vmem:[%s196 + $0x110] sm:$0xf]
      %v243 = vld [vmem:[%s196 + $0x114] sm:$0xff]
      %v244 = vld [vmem:[%s196 + $0x11c] sm:$0xf]
      %v245 = vld [vmem:[%s196 + $0x120] sm:$0xff]
      %v246 = vld [vmem:[%s196 + $0x128] sm:$0xf]
      %v247 = vld [vmem:[%s196 + $0x12c] sm:$0xff]
      %v248 = vld [vmem:[%s196 + $0x134] sm:$0xf]
      %v249 = vld [vmem:[%s196 + $0x138] sm:$0xff]
      %v250 = vld [vmem:[%s196 + $0x140] sm:$0xf]
      %v251 = vld [vmem:[%s196 + $0x144] sm:$0xff]
      %v252 = vld [vmem:[%s196 + $0x14c] sm:$0xf]
      %v253 = vld [vmem:[%s196 + $0x150] sm:$0xff]
      %v254 = vld [vmem:[%s196 + $0x158] sm:$0xf]
      %v255 = vld [vmem:[%s196 + $0x15c] sm:$0xff]
      %v256 = vld [vmem:[%s196 + $0x164] sm:$0xf]
      %v257 = vld [vmem:[%s196 + $0x168] sm:$0xff]
      %v258 = vld [vmem:[%s196 + $0x170] sm:$0xf]
      %v259 = vld [vmem:[%s196 + $0x174] sm:$0xff]
      %v260 = vld [vmem:[%s196 + $0x17c] sm:$0xf]
      %v261 = vld [vmem:[%s1] sm:$0xf]
      %v262 = vld [vmem:[%s1 + $0x4] sm:$0xf]
      %v263 = vld [vmem:[%s1 + $0x8] sm:$0xf]
      %v264 = vld [vmem:[%s1 + $0xc] sm:$0xf]
      %v265 = vld [vmem:[%s1 + $0x10] sm:$0xf]
      %v266 = vld [vmem:[%s1 + $0x14] sm:$0xf]
      %v267 = vld [vmem:[%s1 + $0x18] sm:$0xf]
      %v268 = vld [vmem:[%s1 + $0x1c] sm:$0xf]
      %v269 = vld [vmem:[%s1 + $0x20] sm:$0xf]
      %v270 = vld [vmem:[%s1 + $0x24] sm:$0xf]
      %v271 = vld [vmem:[%s1 + $0x28] sm:$0xf]
      %v272 = vld [vmem:[%s1 + $0x2c] sm:$0xf]
      %v273 = vld [vmem:[%s1 + $0x30] sm:$0xf]
      %v274 = vld [vmem:[%s1 + $0x34] sm:$0xf]
      %v275 = vld [vmem:[%s1 + $0x38] sm:$0xf]
      %v276 = vld [vmem:[%s1 + $0x3c] sm:$0xf]
      %v277 = vld [vmem:[%s1 + $0x40] sm:$0xf]
      %v278 = vld [vmem:[%s1 + $0x44] sm:$0xf]
      %v279 = vld [vmem:[%s1 + $0x48] sm:$0xf]
      %v280 = vld [vmem:[%s1 + $0x4c] sm:$0xf]
      %v281 = vld [vmem:[%s1 + $0x50] sm:$0xf]
      %v282 = vld [vmem:[%s1 + $0x54] sm:$0xf]
      %v283 = vld [vmem:[%s1 + $0x58] sm:$0xf]
      %v284 = vld [vmem:[%s1 + $0x5c] sm:$0xf]
      %v285 = vld [vmem:[%s1 + $0x60] sm:$0xf]
      %v286 = vld [vmem:[%s1 + $0x64] sm:$0xf]
      %v287 = vld [vmem:[%s1 + $0x68] sm:$0xf]
      %v288 = vld [vmem:[%s1 + $0x6c] sm:$0xf]
      %v289 = vld [vmem:[%s1 + $0x70] sm:$0xf]
      %v290 = vld [vmem:[%s1 + $0x74] sm:$0xf]
      %v291 = vld [vmem:[%s1 + $0x78] sm:$0xf]
      %v292 = vld [vmem:[%s1 + $0x7c] sm:$0xf]
      %v293 = vld [vmem:[%s1 + $0x80] sm:$0xf]
      %v294 = vld [vmem:[%s1 + $0x84] sm:$0xf]
      %v295 = vld [vmem:[%s1 + $0x88] sm:$0xf]
      %v296 = vld [vmem:[%s1 + $0x8c] sm:$0xf]
      %v361 = vunpack.c.l.b16 %v197
      %v362 = vunpack.c.h.b16 %v197
      %v363 = vunpack.c.l.b16 %v198
      %v364 = vunpack.c.l.b16 %v199
      %v365 = vunpack.c.h.b16 %v199
      %v366 = vunpack.c.l.b16 %v200
      %v367 = vunpack.c.l.b16 %v201
      %v368 = vunpack.c.h.b16 %v201
      %v369 = vunpack.c.l.b16 %v202
      %v370 = vunpack.c.l.b16 %v203
      %v371 = vunpack.c.h.b16 %v203
      %v372 = vunpack.c.l.b16 %v204
      %v373 = vunpack.c.l.b16 %v205
      %v374 = vunpack.c.h.b16 %v205
      %v375 = vunpack.c.l.b16 %v206
      %v376 = vunpack.c.l.b16 %v207
      %v377 = vunpack.c.h.b16 %v207
      %v378 = vunpack.c.l.b16 %v208
      %v379 = vunpack.c.l.b16 %v209
      %v380 = vunpack.c.h.b16 %v209
      %v381 = vunpack.c.l.b16 %v210
      %v382 = vunpack.c.l.b16 %v211
      %v383 = vunpack.c.h.b16 %v211
      %v384 = vunpack.c.l.b16 %v212
      %v385 = vunpack.c.l.b16 %v213
      %v386 = vunpack.c.h.b16 %v213
      %v387 = vunpack.c.l.b16 %v214
      %v388 = vunpack.c.l.b16 %v215
      %v389 = vunpack.c.h.b16 %v215
      %v390 = vunpack.c.l.b16 %v216
      %v391 = vunpack.c.l.b16 %v217
      %v392 = vunpack.c.h.b16 %v217
      %v393 = vunpack.c.l.b16 %v218
      %v394 = vunpack.c.l.b16 %v219
      %v395 = vunpack.c.h.b16 %v219
      %v396 = vunpack.c.l.b16 %v220
      %v397 = vunpack.c.l.b16 %v221
      %v398 = vunpack.c.h.b16 %v221
      %v399 = vunpack.c.l.b16 %v222
      %v400 = vunpack.c.l.b16 %v223
      %v401 = vunpack.c.h.b16 %v223
      %v402 = vunpack.c.l.b16 %v224
      %v403 = vunpack.c.l.b16 %v225
      %v404 = vunpack.c.h.b16 %v225
      %v405 = vunpack.c.l.b16 %v226
      %v406 = vunpack.c.l.b16 %v227
      %v407 = vunpack.c.h.b16 %v227
      %v408 = vunpack.c.l.b16 %v228
      %v409 = vunpack.c.l.b16 %v229
      %v410 = vunpack.c.h.b16 %v229
      %v411 = vunpack.c.l.b16 %v230
      %v412 = vunpack.c.l.b16 %v231
      %v413 = vunpack.c.h.b16 %v231
      %v414 = vunpack.c.l.b16 %v232
      %v415 = vunpack.c.l.b16 %v233
      %v416 = vunpack.c.h.b16 %v233
      %v417 = vunpack.c.l.b16 %v234
      %v418 = vunpack.c.l.b16 %v235
      %v419 = vunpack.c.h.b16 %v235
      %v420 = vunpack.c.l.b16 %v236
      %v421 = vunpack.c.l.b16 %v237
      %v422 = vunpack.c.h.b16 %v237
      %v423 = vunpack.c.l.b16 %v238
      %v424 = vunpack.c.l.b16 %v239
      %v425 = vunpack.c.h.b16 %v239
      %v426 = vunpack.c.l.b16 %v240
      %v427 = vunpack.c.l.b16 %v241
      %v428 = vunpack.c.h.b16 %v241
      %v429 = vunpack.c.l.b16 %v242
      %v430 = vunpack.c.l.b16 %v243
      %v431 = vunpack.c.h.b16 %v243
      %v432 = vunpack.c.l.b16 %v244
      %v433 = vunpack.c.l.b16 %v245
      %v434 = vunpack.c.h.b16 %v245
      %v435 = vunpack.c.l.b16 %v246
      %v436 = vunpack.c.l.b16 %v247
      %v437 = vunpack.c.h.b16 %v247
      %v438 = vunpack.c.l.b16 %v248
      %v439 = vunpack.c.l.b16 %v249
      %v440 = vunpack.c.h.b16 %v249
      %v441 = vunpack.c.l.b16 %v250
      %v442 = vunpack.c.l.b16 %v251
      %v443 = vunpack.c.h.b16 %v251
      %v444 = vunpack.c.l.b16 %v252
      %v445 = vunpack.c.l.b16 %v253
      %v446 = vunpack.c.h.b16 %v253
      %v447 = vunpack.c.l.b16 %v254
      %v448 = vunpack.c.l.b16 %v255
      %v449 = vunpack.c.h.b16 %v255
      %v450 = vunpack.c.l.b16 %v256
      %v451 = vunpack.c.l.b16 %v257
      %v452 = vunpack.c.h.b16 %v257
      %v453 = vunpack.c.l.b16 %v258
      %v454 = vunpack.c.l.b16 %v259
      %v455 = vunpack.c.h.b16 %v259
      %v456 = vunpack.c.l.b16 %v260
      %v457 = vpack.c.b16 %v364, %v361
      %v458 = vpack.c.b16 %v365, %v362
      %v459 = vpack.c.b16 %v366, %v363
      %v460 = vpack.c.b16 %v370, %v367
      %v461 = vpack.c.b16 %v371, %v368
      %v462 = vpack.c.b16 %v372, %v369
      %v463 = vpack.c.b16 %v376, %v373
      %v464 = vpack.c.b16 %v377, %v374
      %v465 = vpack.c.b16 %v378, %v375
      %v466 = vpack.c.b16 %v382, %v379
      %v467 = vpack.c.b16 %v383, %v380
      %v468 = vpack.c.b16 %v384, %v381
      %v469 = vpack.c.b16 %v388, %v385
      %v470 = vpack.c.b16 %v389, %v386
      %v471 = vpack.c.b16 %v390, %v387
      %v472 = vpack.c.b16 %v394, %v391
      %v473 = vpack.c.b16 %v395, %v392
      %v474 = vpack.c.b16 %v396, %v393
      %v475 = vpack.c.b16 %v400, %v397
      %v476 = vpack.c.b16 %v401, %v398
      %v477 = vpack.c.b16 %v402, %v399
      %v478 = vpack.c.b16 %v406, %v403
      %v479 = vpack.c.b16 %v407, %v404
      %v480 = vpack.c.b16 %v408, %v405
      %v481 = vpack.c.b16 %v412, %v409
      %v482 = vpack.c.b16 %v413, %v410
      %v483 = vpack.c.b16 %v414, %v411
      %v484 = vpack.c.b16 %v418, %v415
      %v485 = vpack.c.b16 %v419, %v416
      %v486 = vpack.c.b16 %v420, %v417
      %v487 = vpack.c.b16 %v424, %v421
      %v488 = vpack.c.b16 %v425, %v422
      %v489 = vpack.c.b16 %v426, %v423
      %v490 = vpack.c.b16 %v430, %v427
      %v491 = vpack.c.b16 %v431, %v428
      %v492 = vpack.c.b16 %v432, %v429
      %v493 = vpack.c.b16 %v436, %v433
      %v494 = vpack.c.b16 %v437, %v434
      %v495 = vpack.c.b16 %v438, %v435
      %v496 = vpack.c.b16 %v442, %v439
      %v497 = vpack.c.b16 %v443, %v440
      %v498 = vpack.c.b16 %v444, %v441
      %v499 = vpack.c.b16 %v448, %v445
      %v500 = vpack.c.b16 %v449, %v446
      %v501 = vpack.c.b16 %v450, %v447
      %v502 = vpack.c.b16 %v454, %v451
      %v503 = vpack.c.b16 %v455, %v452
      %v504 = vpack.c.b16 %v456, %v453
      %v573 = vunpack.c.l.b16 %v261
      %v574 = vunpack.c.l.b16 %v262
      %v575 = vunpack.c.l.b16 %v263
      %v576 = vunpack.c.l.b16 %v264
      %v577 = vunpack.c.l.b16 %v265
      %v578 = vunpack.c.l.b16 %v266
      %v579 = vunpack.c.l.b16 %v267
      %v580 = vunpack.c.l.b16 %v268
      %v581 = vunpack.c.l.b16 %v269
      %v582 = vunpack.c.l.b16 %v270
      %v583 = vunpack.c.l.b16 %v271
      %v584 = vunpack.c.l.b16 %v272
      %v585 = vunpack.c.l.b16 %v273
      %v586 = vunpack.c.l.b16 %v274
      %v587 = vunpack.c.l.b16 %v275
      %v588 = vunpack.c.l.b16 %v276
      %v589 = vunpack.c.l.b16 %v277
      %v590 = vunpack.c.l.b16 %v278
      %v591 = vunpack.c.l.b16 %v279
      %v592 = vunpack.c.l.b16 %v280
      %v593 = vunpack.c.l.b16 %v281
      %v594 = vunpack.c.l.b16 %v282
      %v595 = vunpack.c.l.b16 %v283
      %v596 = vunpack.c.l.b16 %v284
      %v597 = vunpack.c.l.b16 %v285
      %v598 = vunpack.c.l.b16 %v286
      %v599 = vunpack.c.l.b16 %v287
      %v600 = vunpack.c.l.b16 %v288
      %v601 = vunpack.c.l.b16 %v289
      %v602 = vunpack.c.l.b16 %v290
      %v603 = vunpack.c.l.b16 %v291
      %v604 = vunpack.c.l.b16 %v292
      %v605 = vunpack.c.l.b16 %v293
      %v606 = vunpack.c.l.b16 %v294
      %v607 = vunpack.c.l.b16 %v295
      %v608 = vunpack.c.l.b16 %v296
      %v609 = vpack.c.b16 %v574, %v573
      %v610 = vpack.c.b16 %v576, %v575
      %v611 = vpack.c.b16 %v578, %v577
      %v612 = vpack.c.b16 %v580, %v579
      %v613 = vpack.c.b16 %v582, %v581
      %v614 = vpack.c.b16 %v584, %v583
      %v615 = vpack.c.b16 %v586, %v585
      %v616 = vpack.c.b16 %v588, %v587
      %v617 = vpack.c.b16 %v590, %v589
      %v618 = vpack.c.b16 %v592, %v591
      %v619 = vpack.c.b16 %v594, %v593
      %v620 = vpack.c.b16 %v596, %v595
      %v621 = vpack.c.b16 %v598, %v597
      %v622 = vpack.c.b16 %v600, %v599
      %v623 = vpack.c.b16 %v602, %v601
      %v624 = vpack.c.b16 %v604, %v603
      %v625 = vpack.c.b16 %v606, %v605
      %v626 = vpack.c.b16 %v608, %v607
      %vm645 = vcmask 261120
      %v647 = vsel %vm645, %v459, 0
      %v650 = vsel %vm645, %v462, 0
      %v653 = vsel %vm645, %v465, 0
      %v656 = vsel %vm645, %v468, 0
      %v659 = vsel %vm645, %v471, 0
      %v662 = vsel %vm645, %v474, 0
      %v665 = vsel %vm645, %v477, 0
      %v668 = vsel %vm645, %v480, 0
      %v671 = vsel %vm645, %v483, 0
      %v674 = vsel %vm645, %v486, 0
      %v677 = vsel %vm645, %v489, 0
      %v680 = vsel %vm645, %v492, 0
      %v683 = vsel %vm645, %v495, 0
      %v686 = vsel %vm645, %v498, 0
      %v689 = vsel %vm645, %v501, 0
      %v692 = vsel %vm645, %v504, 0
      %694 = vmatprep.subr.bf16.mxu0 0
      %695 = vmatpush1.bf16.msra.mxu0 %v616
      %696 = vmatprep.subr.bf16.mxu0 0
      %697 = vmatpush1.bf16.msra.mxu0 %v615
      %698 = vmatprep.subr.bf16.mxu0 0
      %699 = vmatpush1.bf16.msra.mxu0 %v614
      %700 = vmatprep.subr.bf16.mxu0 0
      %701 = vmatpush1.bf16.msra.mxu0 %v613
      %702 = vmatprep.subr.bf16.mxu0 0
      %703 = vmatpush1.bf16.msra.mxu0 %v612
      %704 = vmatprep.subr.bf16.mxu0 0
      %705 = vmatpush1.bf16.msra.mxu0 %v611
      %706 = vmatprep.subr.bf16.mxu0 0
      %707 = vmatpush1.bf16.msra.mxu0 %v610
      %708 = vmatprep.subr.bf16.mxu0 0
      %709 = vmatpush1.bf16.msra.mxu0 %v609
      %710 = vmatprep.subr.bf16.mxu0 0
      %711 = vmatpush2.bf16.msra.mxu0 %v624
      %712 = vmatprep.subr.bf16.mxu0 0
      %713 = vmatpush2.bf16.msra.mxu0 %v623
      %714 = vmatprep.subr.bf16.mxu0 0
      %715 = vmatpush2.bf16.msra.mxu0 %v622
      %716 = vmatprep.subr.bf16.mxu0 0
      %717 = vmatpush2.bf16.msra.mxu0 %v621
      %718 = vmatprep.subr.bf16.mxu0 0
      %719 = vmatpush2.bf16.msra.mxu0 %v620
      %720 = vmatprep.subr.bf16.mxu0 0
      %721 = vmatpush2.bf16.msra.mxu0 %v619
      %722 = vmatprep.subr.bf16.mxu0 0
      %723 = vmatpush2.bf16.msra.mxu0 %v618
      %724 = vmatprep.subr.bf16.mxu0 0
      %725 = vmatpush2.bf16.msra.mxu0 %v617
      %726 = vmatprep.mubr.bf16.mxu0 %v458
      %727 = vmatmul.mubr.bf16.gmra.mxu0 %v457
      %v728 = vpop.f32.mrf.mxu0
      %v729 = vadd.f32 0.0, %v728
      %v730 = vpop.f32.mrf.mxu0
      %v731 = vpop.f32.mrf.mxu0
      %v732 = vadd.f32 0.0, %v731
      %v733 = vpop.f32.mrf.mxu0
      %734 = vmatprep.mubr.bf16.mxu0 %v461
      %735 = vmatmul.mubr.bf16.gmra.mxu0 %v460
      %v736 = vpop.f32.mrf.mxu0
      %v737 = vadd.f32 0.0, %v736
      %v738 = vpop.f32.mrf.mxu0
      %v739 = vpop.f32.mrf.mxu0
      %v740 = vadd.f32 0.0, %v739
      %v741 = vpop.f32.mrf.mxu0
      %742 = vmatprep.mubr.bf16.mxu0 %v464
      %743 = vmatmul.mubr.bf16.gmra.mxu0 %v463
      %v744 = vpop.f32.mrf.mxu0
      %v745 = vadd.f32 0.0, %v744
      %v746 = vpop.f32.mrf.mxu0
      %v747 = vpop.f32.mrf.mxu0
      %v748 = vadd.f32 0.0, %v747
      %v749 = vpop.f32.mrf.mxu0
      %750 = vmatprep.mubr.bf16.mxu0 %v467
      %751 = vmatmul.mubr.bf16.gmra.mxu0 %v466
      %v752 = vpop.f32.mrf.mxu0
      %v753 = vadd.f32 0.0, %v752
      %v754 = vpop.f32.mrf.mxu0
      %v755 = vpop.f32.mrf.mxu0
      %v756 = vadd.f32 0.0, %v755
      %v757 = vpop.f32.mrf.mxu0
      %758 = vmatprep.mubr.bf16.mxu0 %v470
      %759 = vmatmul.mubr.bf16.gmra.mxu0 %v469
      %v760 = vpop.f32.mrf.mxu0
      %v761 = vadd.f32 0.0, %v760
      %v762 = vpop.f32.mrf.mxu0
      %v763 = vpop.f32.mrf.mxu0
      %v764 = vadd.f32 0.0, %v763
      %v765 = vpop.f32.mrf.mxu0
      %766 = vmatprep.mubr.bf16.mxu0 %v473
      %767 = vmatmul.mubr.bf16.gmra.mxu0 %v472
      %v768 = vpop.f32.mrf.mxu0
      %v769 = vadd.f32 0.0, %v768
      %v770 = vpop.f32.mrf.mxu0
      %v771 = vpop.f32.mrf.mxu0
      %v772 = vadd.f32 0.0, %v771
      %v773 = vpop.f32.mrf.mxu0
      %774 = vmatprep.mubr.bf16.mxu0 %v476
      %775 = vmatmul.mubr.bf16.gmra.mxu0 %v475
      %v776 = vpop.f32.mrf.mxu0
      %v777 = vadd.f32 0.0, %v776
      %v778 = vpop.f32.mrf.mxu0
      %v779 = vpop.f32.mrf.mxu0
      %v780 = vadd.f32 0.0, %v779
      %v781 = vpop.f32.mrf.mxu0
      %782 = vmatprep.mubr.bf16.mxu0 %v479
      %783 = vmatmul.mubr.bf16.gmra.mxu0 %v478
      %v784 = vpop.f32.mrf.mxu0
      %v785 = vadd.f32 0.0, %v784
      %v786 = vpop.f32.mrf.mxu0
      %v787 = vpop.f32.mrf.mxu0
      %v788 = vadd.f32 0.0, %v787
      %v789 = vpop.f32.mrf.mxu0
      %790 = vmatprep.mubr.bf16.mxu0 %v482
      %791 = vmatmul.mubr.bf16.gmra.mxu0 %v481
      %v792 = vpop.f32.mrf.mxu0
      %v793 = vadd.f32 0.0, %v792
      %v794 = vpop.f32.mrf.mxu0
      %v795 = vpop.f32.mrf.mxu0
      %v796 = vadd.f32 0.0, %v795
      %v797 = vpop.f32.mrf.mxu0
      %798 = vmatprep.mubr.bf16.mxu0 %v485
      %799 = vmatmul.mubr.bf16.gmra.mxu0 %v484
      %v800 = vpop.f32.mrf.mxu0
      %v801 = vadd.f32 0.0, %v800
      %v802 = vpop.f32.mrf.mxu0
      %v803 = vpop.f32.mrf.mxu0
      %v804 = vadd.f32 0.0, %v803
      %v805 = vpop.f32.mrf.mxu0
      %806 = vmatprep.mubr.bf16.mxu0 %v488
      %807 = vmatmul.mubr.bf16.gmra.mxu0 %v487
      %v808 = vpop.f32.mrf.mxu0
      %v809 = vadd.f32 0.0, %v808
      %v810 = vpop.f32.mrf.mxu0
      %v811 = vpop.f32.mrf.mxu0
      %v812 = vadd.f32 0.0, %v811
      %v813 = vpop.f32.mrf.mxu0
      %814 = vmatprep.mubr.bf16.mxu0 %v491
      %815 = vmatmul.mubr.bf16.gmra.mxu0 %v490
      %v816 = vpop.f32.mrf.mxu0
      %v817 = vadd.f32 0.0, %v816
      %v818 = vpop.f32.mrf.mxu0
      %v819 = vpop.f32.mrf.mxu0
      %v820 = vadd.f32 0.0, %v819
      %v821 = vpop.f32.mrf.mxu0
      %822 = vmatprep.mubr.bf16.mxu0 %v494
      %823 = vmatmul.mubr.bf16.gmra.mxu0 %v493
      %v824 = vpop.f32.mrf.mxu0
      %v825 = vadd.f32 0.0, %v824
      %v826 = vpop.f32.mrf.mxu0
      %v827 = vpop.f32.mrf.mxu0
      %v828 = vadd.f32 0.0, %v827
      %v829 = vpop.f32.mrf.mxu0
      %830 = vmatprep.mubr.bf16.mxu0 %v497
      %831 = vmatmul.mubr.bf16.gmra.mxu0 %v496
      %v832 = vpop.f32.mrf.mxu0
      %v833 = vadd.f32 0.0, %v832
      %v834 = vpop.f32.mrf.mxu0
      %v835 = vpop.f32.mrf.mxu0
      %v836 = vadd.f32 0.0, %v835
      %v837 = vpop.f32.mrf.mxu0
      %838 = vmatprep.mubr.bf16.mxu0 %v500
      %839 = vmatmul.mubr.bf16.gmra.mxu0 %v499
      %v840 = vpop.f32.mrf.mxu0
      %v841 = vadd.f32 0.0, %v840
      %v842 = vpop.f32.mrf.mxu0
      %v843 = vpop.f32.mrf.mxu0
      %v844 = vadd.f32 0.0, %v843
      %v845 = vpop.f32.mrf.mxu0
      %846 = vmatprep.mubr.bf16.mxu0 %v503
      %847 = vmatmul.mubr.bf16.gmra.mxu0 %v502
      %v848 = vpop.f32.mrf.mxu0
      %v849 = vadd.f32 0.0, %v848
      %v850 = vpop.f32.mrf.mxu0
      %v851 = vpop.f32.mrf.mxu0
      %v852 = vadd.f32 0.0, %v851
      %v853 = vpop.f32.mrf.mxu0
      %854 = vdwg.mxu0
      %855 = vmatprep.subr.bf16.mxu0 0
      %856 = vmatpush1.bf16.msra.mxu0 0
      %857 = vmatprep.subr.bf16.mxu0 0
      %858 = vmatpush1.bf16.msra.mxu0 0
      %859 = vmatprep.subr.bf16.mxu0 0
      %860 = vmatpush1.bf16.msra.mxu0 0
      %861 = vmatprep.subr.bf16.mxu0 0
      %862 = vmatpush1.bf16.msra.mxu0 0
      %863 = vmatprep.subr.bf16.mxu0 0
      %864 = vmatpush1.bf16.msra.mxu0 0
      %865 = vmatprep.subr.bf16.mxu0 0
      %866 = vmatpush1.bf16.msra.mxu0 0
      %867 = vmatprep.subr.bf16.mxu0 0
      %868 = vmatpush1.bf16.msra.mxu0 %v626
      %869 = vmatprep.subr.bf16.mxu0 0
      %870 = vmatpush1.bf16.msra.mxu0 %v625
      %871 = vmatprep.subr.bf16.mxu0 0
      %872 = vmatpush2.bf16.msra.mxu0 0
      %873 = vmatprep.subr.bf16.mxu0 0
      %874 = vmatpush2.bf16.msra.mxu0 0
      %875 = vmatprep.subr.bf16.mxu0 0
      %876 = vmatpush2.bf16.msra.mxu0 0
      %877 = vmatprep.subr.bf16.mxu0 0
      %878 = vmatpush2.bf16.msra.mxu0 0
      %879 = vmatprep.subr.bf16.mxu0 0
      %880 = vmatpush2.bf16.msra.mxu0 0
      %881 = vmatprep.subr.bf16.mxu0 0
      %882 = vmatpush2.bf16.msra.mxu0 0
      %883 = vmatprep.subr.bf16.mxu0 0
      %884 = vmatpush2.bf16.msra.mxu0 0
      %885 = vmatprep.subr.bf16.mxu0 0
      %886 = vmatpush2.bf16.msra.mxu0 0
      %887 = vmatprep.mubr.bf16.mxu0 0
      %888 = vmatmul.mubr.bf16.gmra.mxu0 %v647
      %v889 = vpop.f32.mrf.mxu0
      %v890 = vadd.f32 %v729, %v889
      %v891 = vpop.f32.mrf.mxu0
      %v892 = vpop.f32.mrf.mxu0
      %v893 = vadd.f32 %v732, %v892
      %v894 = vpop.f32.mrf.mxu0
      %895 = vmatprep.mubr.bf16.mxu0 0
      %896 = vmatmul.mubr.bf16.gmra.mxu0 %v650
      %v897 = vpop.f32.mrf.mxu0
      %v898 = vadd.f32 %v737, %v897
      %v899 = vpop.f32.mrf.mxu0
      %v900 = vpop.f32.mrf.mxu0
      %v901 = vadd.f32 %v740, %v900
      %v902 = vpop.f32.mrf.mxu0
      %903 = vmatprep.mubr.bf16.mxu0 0
      %904 = vmatmul.mubr.bf16.gmra.mxu0 %v653
      %v905 = vpop.f32.mrf.mxu0
      %v906 = vadd.f32 %v745, %v905
      %v907 = vpop.f32.mrf.mxu0
      %v908 = vpop.f32.mrf.mxu0
      %v909 = vadd.f32 %v748, %v908
      %v910 = vpop.f32.mrf.mxu0
      %911 = vmatprep.mubr.bf16.mxu0 0
      %912 = vmatmul.mubr.bf16.gmra.mxu0 %v656
      %v913 = vpop.f32.mrf.mxu0
      %v914 = vadd.f32 %v753, %v913
      %v915 = vpop.f32.mrf.mxu0
      %v916 = vpop.f32.mrf.mxu0
      %v917 = vadd.f32 %v756, %v916
      %v918 = vpop.f32.mrf.mxu0
      %919 = vmatprep.mubr.bf16.mxu0 0
      %920 = vmatmul.mubr.bf16.gmra.mxu0 %v659
      %v921 = vpop.f32.mrf.mxu0
      %v922 = vadd.f32 %v761, %v921
      %v923 = vpop.f32.mrf.mxu0
      %v924 = vpop.f32.mrf.mxu0
      %v925 = vadd.f32 %v764, %v924
      %v926 = vpop.f32.mrf.mxu0
      %927 = vmatprep.mubr.bf16.mxu0 0
      %928 = vmatmul.mubr.bf16.gmra.mxu0 %v662
      %v929 = vpop.f32.mrf.mxu0
      %v930 = vadd.f32 %v769, %v929
      %v931 = vpop.f32.mrf.mxu0
      %v932 = vpop.f32.mrf.mxu0
      %v933 = vadd.f32 %v772, %v932
      %v934 = vpop.f32.mrf.mxu0
      %935 = vmatprep.mubr.bf16.mxu0 0
      %936 = vmatmul.mubr.bf16.gmra.mxu0 %v665
      %v937 = vpop.f32.mrf.mxu0
      %v938 = vadd.f32 %v777, %v937
      %v939 = vpop.f32.mrf.mxu0
      %v940 = vpop.f32.mrf.mxu0
      %v941 = vadd.f32 %v780, %v940
      %v942 = vpop.f32.mrf.mxu0
      %943 = vmatprep.mubr.bf16.mxu0 0
      %944 = vmatmul.mubr.bf16.gmra.mxu0 %v668
      %v945 = vpop.f32.mrf.mxu0
      %v946 = vadd.f32 %v785, %v945
      %v947 = vpop.f32.mrf.mxu0
      %v948 = vpop.f32.mrf.mxu0
      %v949 = vadd.f32 %v788, %v948
      %v950 = vpop.f32.mrf.mxu0
      %951 = vmatprep.mubr.bf16.mxu0 0
      %952 = vmatmul.mubr.bf16.gmra.mxu0 %v671
      %v953 = vpop.f32.mrf.mxu0
      %v954 = vadd.f32 %v793, %v953
      %v955 = vpop.f32.mrf.mxu0
      %v956 = vpop.f32.mrf.mxu0
      %v957 = vadd.f32 %v796, %v956
      %v958 = vpop.f32.mrf.mxu0
      %959 = vmatprep.mubr.bf16.mxu0 0
      %960 = vmatmul.mubr.bf16.gmra.mxu0 %v674
      %v961 = vpop.f32.mrf.mxu0
      %v962 = vadd.f32 %v801, %v961
      %v963 = vpop.f32.mrf.mxu0
      %v964 = vpop.f32.mrf.mxu0
      %v965 = vadd.f32 %v804, %v964
      %v966 = vpop.f32.mrf.mxu0
      %967 = vmatprep.mubr.bf16.mxu0 0
      %968 = vmatmul.mubr.bf16.gmra.mxu0 %v677
      %v969 = vpop.f32.mrf.mxu0
      %v970 = vadd.f32 %v809, %v969
      %v971 = vpop.f32.mrf.mxu0
      %v972 = vpop.f32.mrf.mxu0
      %v973 = vadd.f32 %v812, %v972
      %v974 = vpop.f32.mrf.mxu0
      %975 = vmatprep.mubr.bf16.mxu0 0
      %976 = vmatmul.mubr.bf16.gmra.mxu0 %v680
      %v977 = vpop.f32.mrf.mxu0
      %v978 = vadd.f32 %v817, %v977
      %v979 = vpop.f32.mrf.mxu0
      %v980 = vpop.f32.mrf.mxu0
      %v981 = vadd.f32 %v820, %v980
      %v982 = vpop.f32.mrf.mxu0
      %983 = vmatprep.mubr.bf16.mxu0 0
      %984 = vmatmul.mubr.bf16.gmra.mxu0 %v683
      %v985 = vpop.f32.mrf.mxu0
      %v986 = vadd.f32 %v825, %v985
      %v987 = vpop.f32.mrf.mxu0
      %v988 = vpop.f32.mrf.mxu0
      %v989 = vadd.f32 %v828, %v988
      %v990 = vpop.f32.mrf.mxu0
      %991 = vmatprep.mubr.bf16.mxu0 0
      %992 = vmatmul.mubr.bf16.gmra.mxu0 %v686
      %v993 = vpop.f32.mrf.mxu0
      %v994 = vadd.f32 %v833, %v993
      %v995 = vpop.f32.mrf.mxu0
      %v996 = vpop.f32.mrf.mxu0
      %v997 = vadd.f32 %v836, %v996
      %v998 = vpop.f32.mrf.mxu0
      %999 = vmatprep.mubr.bf16.mxu0 0
      %1000 = vmatmul.mubr.bf16.gmra.mxu0 %v689
      %v1001 = vpop.f32.mrf.mxu0
      %v1002 = vadd.f32 %v841, %v1001
      %v1003 = vpop.f32.mrf.mxu0
      %v1004 = vpop.f32.mrf.mxu0
      %v1005 = vadd.f32 %v844, %v1004
      %v1006 = vpop.f32.mrf.mxu0
      %1007 = vmatprep.mubr.bf16.mxu0 0
      %1008 = vmatmul.mubr.bf16.gmra.mxu0 %v692
      %v1009 = vpop.f32.mrf.mxu0
      %v1010 = vadd.f32 %v849, %v1009
      %v1011 = vpop.f32.mrf.mxu0
      %v1012 = vpop.f32.mrf.mxu0
      %v1013 = vadd.f32 %v852, %v1012
      %v1014 = vpop.f32.mrf.mxu0
      %1015 = vdwg.mxu0
      %vm1016 = vcmp.ge.f32.partialorder %v890, 0.0
      %vm1017 = vcmp.ge.f32.partialorder %v893, 0.0
      %vm1018 = vcmp.ge.f32.partialorder %v898, 0.0
      %vm1019 = vcmp.ge.f32.partialorder %v901, 0.0
      %vm1020 = vcmp.ge.f32.partialorder %v906, 0.0
      %vm1021 = vcmp.ge.f32.partialorder %v909, 0.0
      %vm1022 = vcmp.ge.f32.partialorder %v914, 0.0
      %vm1023 = vcmp.ge.f32.partialorder %v917, 0.0
      %vm1024 = vcmp.ge.f32.partialorder %v922, 0.0
      %vm1025 = vcmp.ge.f32.partialorder %v925, 0.0
      %vm1026 = vcmp.ge.f32.partialorder %v930, 0.0
      %vm1027 = vcmp.ge.f32.partialorder %v933, 0.0
      %vm1028 = vcmp.ge.f32.partialorder %v938, 0.0
      %vm1029 = vcmp.ge.f32.partialorder %v941, 0.0
      %vm1030 = vcmp.ge.f32.partialorder %v946, 0.0
      %vm1031 = vcmp.ge.f32.partialorder %v949, 0.0
      %vm1032 = vcmp.ge.f32.partialorder %v954, 0.0
      %vm1033 = vcmp.ge.f32.partialorder %v957, 0.0
      %vm1034 = vcmp.ge.f32.partialorder %v962, 0.0
      %vm1035 = vcmp.ge.f32.partialorder %v965, 0.0
      %vm1036 = vcmp.ge.f32.partialorder %v970, 0.0
      %vm1037 = vcmp.ge.f32.partialorder %v973, 0.0
      %vm1038 = vcmp.ge.f32.partialorder %v978, 0.0
      %vm1039 = vcmp.ge.f32.partialorder %v981, 0.0
      %vm1040 = vcmp.ge.f32.partialorder %v986, 0.0
      %vm1041 = vcmp.ge.f32.partialorder %v989, 0.0
      %vm1042 = vcmp.ge.f32.partialorder %v994, 0.0
      %vm1043 = vcmp.ge.f32.partialorder %v997, 0.0
      %vm1044 = vcmp.ge.f32.partialorder %v1002, 0.0
      %vm1045 = vcmp.ge.f32.partialorder %v1005, 0.0
      %vm1046 = vcmp.ge.f32.partialorder %v1010, 0.0
      %vm1047 = vcmp.ge.f32.partialorder %v1013, 0.0
      %v1048 = vmul.f32 %v890, 0.01
      %v1049 = vmul.f32 %v893, 0.01
      %v1050 = vmul.f32 %v898, 0.01
      %v1051 = vmul.f32 %v901, 0.01
      %v1052 = vmul.f32 %v906, 0.01
      %v1053 = vmul.f32 %v909, 0.01
      %v1054 = vmul.f32 %v914, 0.01
      %v1055 = vmul.f32 %v917, 0.01
      %v1056 = vmul.f32 %v922, 0.01
      %v1057 = vmul.f32 %v925, 0.01
      %v1058 = vmul.f32 %v930, 0.01
      %v1059 = vmul.f32 %v933, 0.01
      %v1060 = vmul.f32 %v938, 0.01
      %v1061 = vmul.f32 %v941, 0.01
      %v1062 = vmul.f32 %v946, 0.01
      %v1063 = vmul.f32 %v949, 0.01
      %v1064 = vmul.f32 %v954, 0.01
      %v1065 = vmul.f32 %v957, 0.01
      %v1066 = vmul.f32 %v962, 0.01
      %v1067 = vmul.f32 %v965, 0.01
      %v1068 = vmul.f32 %v970, 0.01
      %v1069 = vmul.f32 %v973, 0.01
      %v1070 = vmul.f32 %v978, 0.01
      %v1071 = vmul.f32 %v981, 0.01
      %v1072 = vmul.f32 %v986, 0.01
      %v1073 = vmul.f32 %v989, 0.01
      %v1074 = vmul.f32 %v994, 0.01
      %v1075 = vmul.f32 %v997, 0.01
      %v1076 = vmul.f32 %v1002, 0.01
      %v1077 = vmul.f32 %v1005, 0.01
      %v1078 = vmul.f32 %v1010, 0.01
      %v1079 = vmul.f32 %v1013, 0.01
      %v1080 = vsel %vm1016, %v890, %v1048
      %v1081 = vsel %vm1017, %v893, %v1049
      %v1082 = vsel %vm1018, %v898, %v1050
      %v1083 = vsel %vm1019, %v901, %v1051
      %v1084 = vsel %vm1020, %v906, %v1052
      %v1085 = vsel %vm1021, %v909, %v1053
      %v1086 = vsel %vm1022, %v914, %v1054
      %v1087 = vsel %vm1023, %v917, %v1055
      %v1088 = vsel %vm1024, %v922, %v1056
      %v1089 = vsel %vm1025, %v925, %v1057
      %v1090 = vsel %vm1026, %v930, %v1058
      %v1091 = vsel %vm1027, %v933, %v1059
      %v1092 = vsel %vm1028, %v938, %v1060
      %v1093 = vsel %vm1029, %v941, %v1061
      %v1094 = vsel %vm1030, %v946, %v1062
      %v1095 = vsel %vm1031, %v949, %v1063
      %v1096 = vsel %vm1032, %v954, %v1064
      %v1097 = vsel %vm1033, %v957, %v1065
      %v1098 = vsel %vm1034, %v962, %v1066
      %v1099 = vsel %vm1035, %v965, %v1067
      %v1100 = vsel %vm1036, %v970, %v1068
      %v1101 = vsel %vm1037, %v973, %v1069
      %v1102 = vsel %vm1038, %v978, %v1070
      %v1103 = vsel %vm1039, %v981, %v1071
      %v1104 = vsel %vm1040, %v986, %v1072
      %v1105 = vsel %vm1041, %v989, %v1073
      %v1106 = vsel %vm1042, %v994, %v1074
      %v1107 = vsel %vm1043, %v997, %v1075
      %v1108 = vsel %vm1044, %v1002, %v1076
      %v1109 = vsel %vm1045, %v1005, %v1077
      %v1110 = vsel %vm1046, %v1010, %v1078
      %v1111 = vsel %vm1047, %v1013, %v1079
      %v1112 = vld [vmem:[%s2] sm:$0x1]
      %v1114 = vlaneseq
      %v1115 = vshrl.u32 %v1114, 7
      %v1116 = vsub.s32 0, %v1115
      %v1117 = vrot.slane %v1112, %v1116
      %v1119 = vadd.f32 %v1080, %v1117
      %v1120 = vadd.f32 %v1081, %v1117
      %v1121 = vadd.f32 %v1082, %v1117
      %v1122 = vadd.f32 %v1083, %v1117
      %v1123 = vadd.f32 %v1084, %v1117
      %v1124 = vadd.f32 %v1085, %v1117
      %v1125 = vadd.f32 %v1086, %v1117
      %v1126 = vadd.f32 %v1087, %v1117
      %v1127 = vadd.f32 %v1088, %v1117
      %v1128 = vadd.f32 %v1089, %v1117
      %v1129 = vadd.f32 %v1090, %v1117
      %v1130 = vadd.f32 %v1091, %v1117
      %v1131 = vadd.f32 %v1092, %v1117
      %v1132 = vadd.f32 %v1093, %v1117
      %v1133 = vadd.f32 %v1094, %v1117
      %v1134 = vadd.f32 %v1095, %v1117
      %v1135 = vadd.f32 %v1096, %v1117
      %v1136 = vadd.f32 %v1097, %v1117
      %v1137 = vadd.f32 %v1098, %v1117
      %v1138 = vadd.f32 %v1099, %v1117
      %v1139 = vadd.f32 %v1100, %v1117
      %v1140 = vadd.f32 %v1101, %v1117
      %v1141 = vadd.f32 %v1102, %v1117
      %v1142 = vadd.f32 %v1103, %v1117
      %v1143 = vadd.f32 %v1104, %v1117
      %v1144 = vadd.f32 %v1105, %v1117
      %v1145 = vadd.f32 %v1106, %v1117
      %v1146 = vadd.f32 %v1107, %v1117
      %v1147 = vadd.f32 %v1108, %v1117
      %v1148 = vadd.f32 %v1109, %v1117
      %v1149 = vadd.f32 %v1110, %v1117
      %v1150 = vadd.f32 %v1111, %v1117
      %1151 = vst.msk [vmem:[%s192] sm:$0xff] %vm645, %v1119
      %1152 = vst.msk [vmem:[%s192 + $0x8] sm:$0xff] %vm645, %v1120
      %1153 = vst.msk [vmem:[%s192 + $0x10] sm:$0xff] %vm645, %v1121
      %1154 = vst.msk [vmem:[%s192 + $0x18] sm:$0xff] %vm645, %v1122
      %1155 = vst.msk [vmem:[%s192 + $0x20] sm:$0xff] %vm645, %v1123
      %1156 = vst.msk [vmem:[%s192 + $0x28] sm:$0xff] %vm645, %v1124
      %1157 = vst.msk [vmem:[%s192 + $0x30] sm:$0xff] %vm645, %v1125
      %1158 = vst.msk [vmem:[%s192 + $0x38] sm:$0xff] %vm645, %v1126
      %1159 = vst.msk [vmem:[%s192 + $0x40] sm:$0xff] %vm645, %v1127
      %1160 = vst.msk [vmem:[%s192 + $0x48] sm:$0xff] %vm645, %v1128
      %1161 = vst.msk [vmem:[%s192 + $0x50] sm:$0xff] %vm645, %v1129
      %1162 = vst.msk [vmem:[%s192 + $0x58] sm:$0xff] %vm645, %v1130
      %1163 = vst.msk [vmem:[%s192 + $0x60] sm:$0xff] %vm645, %v1131
      %1164 = vst.msk [vmem:[%s192 + $0x68] sm:$0xff] %vm645, %v1132
      %1165 = vst.msk [vmem:[%s192 + $0x70] sm:$0xff] %vm645, %v1133
      %1166 = vst.msk [vmem:[%s192 + $0x78] sm:$0xff] %vm645, %v1134
      %1167 = vst.msk [vmem:[%s192 + $0x80] sm:$0xff] %vm645, %v1135
      %1168 = vst.msk [vmem:[%s192 + $0x88] sm:$0xff] %vm645, %v1136
      %1169 = vst.msk [vmem:[%s192 + $0x90] sm:$0xff] %vm645, %v1137
      %1170 = vst.msk [vmem:[%s192 + $0x98] sm:$0xff] %vm645, %v1138
      %1171 = vst.msk [vmem:[%s192 + $0xa0] sm:$0xff] %vm645, %v1139
      %1172 = vst.msk [vmem:[%s192 + $0xa8] sm:$0xff] %vm645, %v1140
      %1173 = vst.msk [vmem:[%s192 + $0xb0] sm:$0xff] %vm645, %v1141
      %1174 = vst.msk [vmem:[%s192 + $0xb8] sm:$0xff] %vm645, %v1142
      %1175 = vst.msk [vmem:[%s192 + $0xc0] sm:$0xff] %vm645, %v1143
      %1176 = vst.msk [vmem:[%s192 + $0xc8] sm:$0xff] %vm645, %v1144
      %1177 = vst.msk [vmem:[%s192 + $0xd0] sm:$0xff] %vm645, %v1145
      %1178 = vst.msk [vmem:[%s192 + $0xd8] sm:$0xff] %vm645, %v1146
      %1179 = vst.msk [vmem:[%s192 + $0xe0] sm:$0xff] %vm645, %v1147
      %1180 = vst.msk [vmem:[%s192 + $0xe8] sm:$0xff] %vm645, %v1148
      %1181 = vst.msk [vmem:[%s192 + $0xf0] sm:$0xff] %vm645, %v1149
      %1182 = vst.msk [vmem:[%s192 + $0xf8] sm:$0xff] %vm645, %v1150
      %p1183 = scmp.lt.s32.totalorder %s18, 1
      %s1184 = scalar_select %p1183, %s18, 1
      %p1185 = scmp.lt.s32.totalorder %s19, 7
      %s1186 = scalar_select %p1185, %s19, 7
      %s1187 = smul.addr %s1186, 32
      %s1188 = smul.addr %s1184, 256
      %s1189 = sadd.s32 %s1187, %s1188
      %s1190 = smul.addr %s1189, 8
      %s1191 = scalar_lea.vmem %s3, %s1190
      // Predicated region
      $region33: #{upblock_forward.7} parent=31 // pred_check
        %p1192 = pneg %p114
      $region34: #{upblock_forward.7} parent=31 // pred_check_branch
        %1194 = sbr.rel (%p1192) target = $region36
      $region35: #{upblock_forward.7} parent=31 // pred_region
        _
      $region36: #{upblock_forward.7} parent=31 // pred_fallthru
        _
    $region32: #{upblock_forward.7} parent=5 // pred_fallthru
      _
    %p1195 = scmp.le.s32.totalorder 2, %s9
    // Predicated region
    $region37: #{upblock_forward.7} parent=5 // pred_check
      %p1196 = pneg %p1195
    $region38: #{upblock_forward.7} parent=5 // pred_check_branch
      %1198 = sbr.rel (%p1196) target = $region40
    $region39: #{upblock_forward.7} parent=5 // pred_region
      %s1199 = ssub.s32 %s9, 2
      // Predicated region
      $region41: #{upblock_forward.7} parent=39 // pred_check
        %p1200 = pneg %p120
      $region42: #{upblock_forward.7} parent=39 // pred_check_branch
        %1202 = sbr.rel (%p1200) target = $region44
      $region43: #{upblock_forward.7} parent=39 // pred_region
        %p1203 = scmp.lt.s32.totalorder %s20, 1
        %s1204 = scalar_select %p1203, %s20, 1
        %p1205 = scmp.lt.s32.totalorder %s21, 7
        %s1206 = scalar_select %p1205, %s21, 7
        %s1207 = smul.addr %s1206, 32
        %s1208 = smul.addr %s1204, 256
        %s1209 = sadd.s32 %s1207, %s1208
        %s1210 = smul.addr %s1209, 8
        %s1211 = scalar_lea.vmem %s3, %s1210
      $region44: #{upblock_forward.7} parent=39 // pred_fallthru
        _
    $region40: #{upblock_forward.7} parent=5 // pred_fallthru
      _
  $region6: #{upblock_forward.7} parent=0 // loop_footer
    %s13 = sadd.s32 1, %s9
  $region7: #{upblock_forward.7} parent=0 // loop_footer_branch
    %8 = sbr.rel target = $region3
  $region8: #{upblock_forward.7} parent=0 // loop_exit
    _

// kernel: upblock_forward.8
$region0: #{upblock_forward.8}
  #allocation0 [shape = 'u32[]', space=smem, size = 0x4, offset = 0x4, fixed_abs, tag = 'smem constant byte address 0x4 - core index']
  #allocation1 [shape = 'u32[144,128]{1,0:T(1,128)}', space=vmem, size = 0x12000, scoped, tag = 'internal scratch']
  %s0 = inlined_call_operand.vmem [shape: bf16[2,10,16,16,96], index: 0, kind: input, shape index: {}]
  %s1 = inlined_call_operand.vmem [shape: bf16[3,96,32], index: 1, kind: input, shape index: {}]
  %s2 = inlined_call_operand.vmem [shape: f32[1,32], index: 2, kind: input, shape index: {}]
  %s3 = inlined_call_operand.vmem [shape: f32[2,8,16,16,32], index: 3, kind: output, shape index: {}]
  %s4 = sld [smem:[#allocation0]]
  $region45: #{upblock_forward.8} parent=0
    _
  %s6 = ssub.s32 1, %s4
  %s7 = scalar_select 0, %s6, %s4
  loop: start=0, step=1, limit=18
  $region2: #{upblock_forward.8} parent=0 // loop_pre_header
    _
  $region3: #{upblock_forward.8} parent=0 // loop_header
    %s9 = sphi 0, %s13
    %p10 = scmp.ge.s32.totalorder %s9, 18
    %s16 = sphi 0, %s28
    %s17 = sphi 0, %s24
    %s18 = sphi 0, %s16
    %s19 = sphi 0, %s17
    %s20 = sphi 0, %s18
    %s21 = sphi 0, %s19
    %s31 = sphi 0, %s33
    %s34 = sphi 0, %s31
    %s35 = sphi 0, %s34
    %s51 = sphi 0, %s35
    %s55 = sphi 0, %s55
    %s57 = sphi 0, %s55
    %s58 = sphi 0, %s57
    %s72 = sphi 0, %s58
    %s76 = sphi 0, %s76
    %s78 = sphi 0, %s76
    %s79 = sphi 0, %s78
    %s93 = sphi 0, %s79
    %s101 = sphi 0, %s103
    %s104 = sphi 0, %s101
    %s105 = sphi 0, %s104
    %s121 = sphi 0, %s105
  $region4: #{upblock_forward.8} parent=0 // loop_header_branch
    %12 = sbr.rel (%p10) target = $region8
  $region5: #{upblock_forward.8} parent=0 // loop_body
    %s14 = ssub.s32 %s9, 1
    %s15 = ssub.s32 %s9, 2
    %s22 = sadd.s32 1, %s17
    %p23 = scmp.ge.s32.totalorder %s22, 8
    %s24 = scalar_select %p23, 0, %s22
    %s25 = sadd.s32 1, %s16
    %s26 = scalar_select %p23, %s25, %s16
    %p27 = scmp.ge.s32.totalorder %s26, 2
    %s28 = scalar_select %p27, 0, %s26
    %s29 = ssub.s32 %s16, %s28
    %p30 = scmp.eq.s32.totalorder %s29, 0
    %s32 = sadd.s32 %s31, 1
    %s33 = scalar_select %p30, %s31, %s32
    %p36 = pneg %p30
    %p37 = scmp.eq.s32.totalorder %s9, 15
    %p38 = por %p36, %p37
    %p39 = scmp.ne.s32.totalorder %s31, %s34
    %p40 = scmp.eq.s32.totalorder %s9, 0
    %p41 = por %p39, %p40
    %p42 = scmp.ne.s32.totalorder %s31, %s34
    %p43 = scmp.eq.s32.totalorder %s14, 15
    %p44 = por %p42, %p43
    %p45 = scmp.ne.s32.totalorder %s34, %s35
    %p46 = scmp.eq.s32.totalorder %s14, 0
    %p47 = por %p45, %p46
    %p48 = scmp.ne.s32.totalorder %s34, %s35
    %p49 = scmp.eq.s32.totalorder %s15, 15
    %p50 = por %p48, %p49
    %p52 = scmp.ne.s32.totalorder %s35, %s51
    %p53 = scmp.eq.s32.totalorder %s15, 0
    %p54 = por %p52, %p53
    %s56 = sadd.s32 %s55, 1
    %p59 = scmp.eq.s32.totalorder %s9, 15
    %p60 = scmp.ne.s32.totalorder %s55, %s57
    %p61 = scmp.eq.s32.totalorder %s9, 0
    %p62 = por %p60, %p61
    %p63 = scmp.ne.s32.totalorder %s55, %s57
    %p64 = scmp.eq.s32.totalorder %s14, 15
    %p65 = por %p63, %p64
    %p66 = scmp.ne.s32.totalorder %s57, %s58
    %p67 = scmp.eq.s32.totalorder %s14, 0
    %p68 = por %p66, %p67
    %p69 = scmp.ne.s32.totalorder %s57, %s58
    %p70 = scmp.eq.s32.totalorder %s15, 15
    %p71 = por %p69, %p70
    %p73 = scmp.ne.s32.totalorder %s58, %s72
    %p74 = scmp.eq.s32.totalorder %s15, 0
    %p75 = por %p73, %p74
    %s77 = sadd.s32 %s76, 1
    %p80 = scmp.eq.s32.totalorder %s9, 15
    %p81 = scmp.ne.s32.totalorder %s76, %s78
    %p82 = scmp.eq.s32.totalorder %s9, 0
    %p83 = por %p81, %p82
    %p84 = scmp.ne.s32.totalorder %s76, %s78
    %p85 = scmp.eq.s32.totalorder %s14, 15
    %p86 = por %p84, %p85
    %p87 = scmp.ne.s32.totalorder %s78, %s79
    %p88 = scmp.eq.s32.totalorder %s14, 0
    %p89 = por %p87, %p88
    %p90 = scmp.ne.s32.totalorder %s78, %s79
    %p91 = scmp.eq.s32.totalorder %s15, 15
    %p92 = por %p90, %p91
    %p94 = scmp.ne.s32.totalorder %s79, %s93
    %p95 = scmp.eq.s32.totalorder %s15, 0
    %p96 = por %p94, %p95
    %s97 = ssub.s32 %s16, %s28
    %s98 = ssub.s32 %s17, %s24
    %s99 = sor.u32 %s97, %s98
    %p100 = scmp.eq.s32.totalorder %s99, 0
    %s102 = sadd.s32 %s101, 1
    %s103 = scalar_select %p100, %s101, %s102
    %p106 = pneg %p100
    %p107 = scmp.eq.s32.totalorder %s9, 15
    %p108 = por %p106, %p107
    %p109 = scmp.ne.s32.totalorder %s101, %s104
    %p110 = scmp.eq.s32.totalorder %s9, 0
    %p111 = por %p109, %p110
    %p112 = scmp.ne.s32.totalorder %s101, %s104
    %p113 = scmp.eq.s32.totalorder %s14, 15
    %p114 = por %p112, %p113
    %p115 = scmp.ne.s32.totalorder %s104, %s105
    %p116 = scmp.eq.s32.totalorder %s14, 0
    %p117 = por %p115, %p116
    %p118 = scmp.ne.s32.totalorder %s104, %s105
    %p119 = scmp.eq.s32.totalorder %s15, 15
    %p120 = por %p118, %p119
    %p122 = scmp.ne.s32.totalorder %s105, %s121
    %p123 = scmp.eq.s32.totalorder %s15, 0
    %p124 = por %p122, %p123
    %p125 = scmp.le.s32.totalorder 1, %s9
    %p126 = scmp.lt.s32.totalorder %s9, 17
    %p127 = pnand %p125, %p126
    %p128 = pneg %p127
    // Predicated region
    $region9: #{upblock_forward.8} parent=5 // pred_check
      _
    $region10: #{upblock_forward.8} parent=5 // pred_check_branch
      %130 = sbr.rel (%p127) target = $region12
    $region11: #{upblock_forward.8} parent=5 // pred_region
      %s131 = ssub.s32 %s9, 1
      // Predicated region
      $region13: #{upblock_forward.8} parent=11 // pred_check
        %p132 = pneg %p68
      $region14: #{upblock_forward.8} parent=11 // pred_check_branch
        %134 = sbr.rel (%p132) target = $region16
      $region15: #{upblock_forward.8} parent=11 // pred_region
        _
      $region16: #{upblock_forward.8} parent=11 // pred_fallthru
        _
      // Predicated region
      $region17: #{upblock_forward.8} parent=11 // pred_check
        %p135 = pneg %p89
      $region18: #{upblock_forward.8} parent=11 // pred_check_branch
        %137 = sbr.rel (%p135) target = $region20
      $region19: #{upblock_forward.8} parent=11 // pred_region
        _
      $region20: #{upblock_forward.8} parent=11 // pred_fallthru
        _
    $region12: #{upblock_forward.8} parent=5 // pred_fallthru
      _
    %p138 = scmp.lt.s32.totalorder %s9, 16
    // Predicated region
    $region21: #{upblock_forward.8} parent=5 // pred_check
      %p139 = pneg %p138
    $region22: #{upblock_forward.8} parent=5 // pred_check_branch
      %141 = sbr.rel (%p139) target = $region24
    $region23: #{upblock_forward.8} parent=5 // pred_region
      // Predicated region
      $region25: #{upblock_forward.8} parent=23 // pred_check
        %p142 = pneg %p41
      $region26: #{upblock_forward.8} parent=23 // pred_check_branch
        %144 = sbr.rel (%p142) target = $region28
      $region27: #{upblock_forward.8} parent=23 // pred_region
        %p145 = scmp.lt.s32.totalorder %s16, 1
        %s146 = scalar_select %p145, %s16, 1
        %s147 = smul.addr %s146, 320
        %s148 = smul.addr %s147, 4
        %s149 = scalar_lea.vmem %s0, %s148
      $region28: #{upblock_forward.8} parent=23 // pred_fallthru
        _
    $region24: #{upblock_forward.8} parent=5 // pred_fallthru
      _
    %p150 = scmp.le.s32.totalorder 1, %s9
    %p151 = scmp.lt.s32.totalorder %s9, 17
    %p152 = pnand %p150, %p151
    %p153 = pneg %p152
    // Predicated region
    $region29: #{upblock_forward.8} parent=5 // pred_check
      _
    $region30: #{upblock_forward.8} parent=5 // pred_check_branch
      %155 = sbr.rel (%p152) target = $region32
    $region31: #{upblock_forward.8} parent=5 // pred_region
      %s156 = ssub.s32 %s9, 1
      %p157 = scmp.lt.s32.totalorder %s18, 1
      %s158 = scalar_select %p157, %s18, 1
      %s159 = smul.addr %s158, 320
      %s160 = smul.addr %s159, 4
      %s161 = scalar_lea.vmem %s0, %s160
      %p162 = pneg %p47
      %p163 = pneg %p44
      %p164 = pneg %p68
      %p165 = pneg %p65
      %p166 = pneg %p89
      %p167 = pneg %p86
      %p168 = pneg %p117
      %p169 = pneg %p114
      %p170 = scmp.lt.s32.totalorder %s18, 1
      %s171 = scalar_select %p170, %s18, 1
      %p172 = scmp.lt.s32.totalorder %s19, 7
      %s173 = scalar_select %p172, %s19, 7
      %s174 = smul.addr %s173, 32
      %s175 = smul.addr %s171, 256
      %s176 = sadd.s32 %s174, %s175
      %s177 = smul.addr %s176, 8
      %s178 = scalar_lea.vmem %s3, %s177
      %p179 = scmp.lt.s32.totalorder %s18, 1
      %s180 = scalar_select %p179, %s18, 1
      %s181 = smul.addr %s180, 320
      %s182 = smul.addr %s181, 4
      %s183 = scalar_lea.vmem %s0, %s182
      %p184 = scmp.lt.s32.totalorder %s18, 1
      %s185 = scalar_select %p184, %s18, 1
      %p186 = scmp.lt.s32.totalorder %s19, 7
      %s187 = scalar_select %p186, %s19, 7
      %s188 = smul.addr %s187, 32
      %s189 = smul.addr %s185, 256
      %s190 = sadd.s32 %s188, %s189
      %s191 = smul.addr %s190, 8
      %s192 = scalar_lea.vmem %s3, %s191
      %s194 = smul.u32 %s19, 32
      %s195 = smul.addr %s194, 4
      %s196 = scalar_lea.vmem %s183, %s195
      %v197 = vld [vmem:[%s196] sm:$0xf]
      %v198 = vld [vmem:[%s196 + $0x4] sm:$0xf]
      %v199 = vld [vmem:[%s196 + $0x8] sm:$0xf]
      %v200 = vld [vmem:[%s196 + $0xc] sm:$0xf]
      %v201 = vld [vmem:[%s196 + $0x10] sm:$0xf]
      %v202 = vld [vmem:[%s196 + $0x14] sm:$0xf]
      %v203 = vld [vmem:[%s196 + $0x18] sm:$0xf]
      %v204 = vld [vmem:[%s196 + $0x1c] sm:$0xf]
      %v205 = vld [vmem:[%s196 + $0x20] sm:$0xf]
      %v206 = vld [vmem:[%s196 + $0x24] sm:$0xf]
      %v207 = vld [vmem:[%s196 + $0x28] sm:$0xf]
      %v208 = vld [vmem:[%s196 + $0x2c] sm:$0xf]
      %v209 = vld [vmem:[%s196 + $0x30] sm:$0xf]
      %v210 = vld [vmem:[%s196 + $0x34] sm:$0xf]
      %v211 = vld [vmem:[%s196 + $0x38] sm:$0xf]
      %v212 = vld [vmem:[%s196 + $0x3c] sm:$0xf]
      %v213 = vld [vmem:[%s196 + $0x40] sm:$0xf]
      %v214 = vld [vmem:[%s196 + $0x44] sm:$0xf]
      %v215 = vld [vmem:[%s196 + $0x48] sm:$0xf]
      %v216 = vld [vmem:[%s196 + $0x4c] sm:$0xf]
      %v217 = vld [vmem:[%s196 + $0x50] sm:$0xf]
      %v218 = vld [vmem:[%s196 + $0x54] sm:$0xf]
      %v219 = vld [vmem:[%s196 + $0x58] sm:$0xf]
      %v220 = vld [vmem:[%s196 + $0x5c] sm:$0xf]
      %v221 = vld [vmem:[%s196 + $0x60] sm:$0xf]
      %v222 = vld [vmem:[%s196 + $0x64] sm:$0xf]
      %v223 = vld [vmem:[%s196 + $0x68] sm:$0xf]
      %v224 = vld [vmem:[%s196 + $0x6c] sm:$0xf]
      %v225 = vld [vmem:[%s196 + $0x70] sm:$0xf]
      %v226 = vld [vmem:[%s196 + $0x74] sm:$0xf]
      %v227 = vld [vmem:[%s196 + $0x78] sm:$0xf]
      %v228 = vld [vmem:[%s196 + $0x7c] sm:$0xf]
      %v229 = vld [vmem:[%s1] sm:$0xf]
      %v230 = vld [vmem:[%s1 + $0x4] sm:$0xf]
      %v231 = vld [vmem:[%s1 + $0x8] sm:$0xf]
      %v232 = vld [vmem:[%s1 + $0xc] sm:$0xf]
      %v233 = vld [vmem:[%s1 + $0x10] sm:$0xf]
      %v234 = vld [vmem:[%s1 + $0x14] sm:$0xf]
      %v235 = vld [vmem:[%s1 + $0x18] sm:$0xf]
      %v236 = vld [vmem:[%s1 + $0x1c] sm:$0xf]
      %v237 = vld [vmem:[%s1 + $0x20] sm:$0xf]
      %v238 = vld [vmem:[%s1 + $0x24] sm:$0xf]
      %v239 = vld [vmem:[%s1 + $0x28] sm:$0xf]
      %v240 = vld [vmem:[%s1 + $0x2c] sm:$0xf]
      %s241 = sadd.s32 %s19, 1
      %s242 = smul.u32 %s241, 32
      %s243 = smul.addr %s242, 4
      %s244 = scalar_lea.vmem %s183, %s243
      %v245 = vld [vmem:[%s244] sm:$0xf]
      %v246 = vld [vmem:[%s244 + $0x4] sm:$0xf]
      %v247 = vld [vmem:[%s244 + $0x8] sm:$0xf]
      %v248 = vld [vmem:[%s244 + $0xc] sm:$0xf]
      %v249 = vld [vmem:[%s244 + $0x10] sm:$0xf]
      %v250 = vld [vmem:[%s244 + $0x14] sm:$0xf]
      %v251 = vld [vmem:[%s244 + $0x18] sm:$0xf]
      %v252 = vld [vmem:[%s244 + $0x1c] sm:$0xf]
      %v253 = vld [vmem:[%s244 + $0x20] sm:$0xf]
      %v254 = vld [vmem:[%s244 + $0x24] sm:$0xf]
      %v255 = vld [vmem:[%s244 + $0x28] sm:$0xf]
      %v256 = vld [vmem:[%s244 + $0x2c] sm:$0xf]
      %v257 = vld [vmem:[%s244 + $0x30] sm:$0xf]
      %v258 = vld [vmem:[%s244 + $0x34] sm:$0xf]
      %v259 = vld [vmem:[%s244 + $0x38] sm:$0xf]
      %v260 = vld [vmem:[%s244 + $0x3c] sm:$0xf]
      %v261 = vld [vmem:[%s244 + $0x40] sm:$0xf]
      %v262 = vld [vmem:[%s244 + $0x44] sm:$0xf]
      %v263 = vld [vmem:[%s244 + $0x48] sm:$0xf]
      %v264 = vld [vmem:[%s244 + $0x4c] sm:$0xf]
      %v265 = vld [vmem:[%s244 + $0x50] sm:$0xf]
      %v266 = vld [vmem:[%s244 + $0x54] sm:$0xf]
      %v267 = vld [vmem:[%s244 + $0x58] sm:$0xf]
      %v268 = vld [vmem:[%s244 + $0x5c] sm:$0xf]
      %v269 = vld [vmem:[%s244 + $0x60] sm:$0xf]
      %v270 = vld [vmem:[%s244 + $0x64] sm:$0xf]
      %v271 = vld [vmem:[%s244 + $0x68] sm:$0xf]
      %v272 = vld [vmem:[%s244 + $0x6c] sm:$0xf]
      %v273 = vld [vmem:[%s244 + $0x70] sm:$0xf]
      %v274 = vld [vmem:[%s244 + $0x74] sm:$0xf]
      %v275 = vld [vmem:[%s244 + $0x78] sm:$0xf]
      %v276 = vld [vmem:[%s244 + $0x7c] sm:$0xf]
      %s277 = scalar_lea.vmem %s1, 48
      %v278 = vld [vmem:[%s277] sm:$0xf]
      %v279 = vld [vmem:[%s277 + $0x4] sm:$0xf]
      %v280 = vld [vmem:[%s277 + $0x8] sm:$0xf]
      %v281 = vld [vmem:[%s277 + $0xc] sm:$0xf]
      %v282 = vld [vmem:[%s277 + $0x10] sm:$0xf]
      %v283 = vld [vmem:[%s277 + $0x14] sm:$0xf]
      %v284 = vld [vmem:[%s277 + $0x18] sm:$0xf]
      %v285 = vld [vmem:[%s277 + $0x1c] sm:$0xf]
      %v286 = vld [vmem:[%s277 + $0x20] sm:$0xf]
      %v287 = vld [vmem:[%s277 + $0x24] sm:$0xf]
      %v288 = vld [vmem:[%s277 + $0x28] sm:$0xf]
      %v289 = vld [vmem:[%s277 + $0x2c] sm:$0xf]
      %v322 = vunpack.c.l.b16 %v245
      %v323 = vunpack.c.l.b16 %v246
      %v324 = vunpack.c.l.b16 %v247
      %v325 = vunpack.c.l.b16 %v248
      %v326 = vunpack.c.l.b16 %v249
      %v327 = vunpack.c.l.b16 %v250
      %v328 = vunpack.c.l.b16 %v251
      %v329 = vunpack.c.l.b16 %v252
      %v330 = vunpack.c.l.b16 %v253
      %v331 = vunpack.c.l.b16 %v254
      %v332 = vunpack.c.l.b16 %v255
      %v333 = vunpack.c.l.b16 %v256
      %v334 = vunpack.c.l.b16 %v257
      %v335 = vunpack.c.l.b16 %v258
      %v336 = vunpack.c.l.b16 %v259
      %v337 = vunpack.c.l.b16 %v260
      %v338 = vunpack.c.l.b16 %v261
      %v339 = vunpack.c.l.b16 %v262
      %v340 = vunpack.c.l.b16 %v263
      %v341 = vunpack.c.l.b16 %v264
      %v342 = vunpack.c.l.b16 %v265
      %v343 = vunpack.c.l.b16 %v266
      %v344 = vunpack.c.l.b16 %v267
      %v345 = vunpack.c.l.b16 %v268
      %v346 = vunpack.c.l.b16 %v269
      %v347 = vunpack.c.l.b16 %v270
      %v348 = vunpack.c.l.b16 %v271
      %v349 = vunpack.c.l.b16 %v272
      %v350 = vunpack.c.l.b16 %v273
      %v351 = vunpack.c.l.b16 %v274
      %v352 = vunpack.c.l.b16 %v275
      %v353 = vunpack.c.l.b16 %v276
      %v354 = vpack.c.b16 %v323, %v322
      %v355 = vpack.c.b16 %v325, %v324
      %v356 = vpack.c.b16 %v327, %v326
      %v357 = vpack.c.b16 %v329, %v328
      %v358 = vpack.c.b16 %v331, %v330
      %v359 = vpack.c.b16 %v333, %v332
      %v360 = vpack.c.b16 %v335, %v334
      %v361 = vpack.c.b16 %v337, %v336
      %v362 = vpack.c.b16 %v339, %v338
      %v363 = vpack.c.b16 %v341, %v340
      %v364 = vpack.c.b16 %v343, %v342
      %v365 = vpack.c.b16 %v345, %v344
      %v366 = vpack.c.b16 %v347, %v346
      %v367 = vpack.c.b16 %v349, %v348
      %v368 = vpack.c.b16 %v351, %v350
      %v369 = vpack.c.b16 %v353, %v352
      %v382 = vunpack.c.l.b16 %v278
      %v383 = vunpack.c.l.b16 %v279
      %v384 = vunpack.c.l.b16 %v280
      %v385 = vunpack.c.l.b16 %v281
      %v386 = vunpack.c.l.b16 %v282
      %v387 = vunpack.c.l.b16 %v283
      %v388 = vunpack.c.l.b16 %v284
      %v389 = vunpack.c.l.b16 %v285
      %v390 = vunpack.c.l.b16 %v286
      %v391 = vunpack.c.l.b16 %v287
      %v392 = vunpack.c.l.b16 %v288
      %v393 = vunpack.c.l.b16 %v289
      %v394 = vpack.c.b16 %v383, %v382
      %v395 = vpack.c.b16 %v385, %v384
      %v396 = vpack.c.b16 %v387, %v386
      %v397 = vpack.c.b16 %v389, %v388
      %v398 = vpack.c.b16 %v391, %v390
      %v399 = vpack.c.b16 %v393, %v392
      %vm406 = vcmask 785408
      %v408 = vsel %vm406, %v354, 0
      %v411 = vsel %vm406, %v355, 0
      %v414 = vsel %vm406, %v356, 0
      %v417 = vsel %vm406, %v357, 0
      %v420 = vsel %vm406, %v358, 0
      %v423 = vsel %vm406, %v359, 0
      %v426 = vsel %vm406, %v360, 0
      %v429 = vsel %vm406, %v361, 0
      %v432 = vsel %vm406, %v362, 0
      %v435 = vsel %vm406, %v363, 0
      %v438 = vsel %vm406, %v364, 0
      %v441 = vsel %vm406, %v365, 0
      %v444 = vsel %vm406, %v366, 0
      %v447 = vsel %vm406, %v367, 0
      %v450 = vsel %vm406, %v368, 0
      %v453 = vsel %vm406, %v369, 0
      %455 = vmatprep.subr.bf16.mxu0 0
      %456 = vmatpush1.bf16.msra.mxu0 0
      %457 = vmatprep.subr.bf16.mxu0 0
      %458 = vmatpush1.bf16.msra.mxu0 0
      %459 = vmatprep.subr.bf16.mxu0 0
      %460 = vmatpush1.bf16.msra.mxu0 %v399
      %461 = vmatprep.subr.bf16.mxu0 0
      %462 = vmatpush1.bf16.msra.mxu0 %v398
      %463 = vmatprep.subr.bf16.mxu0 0
      %464 = vmatpush1.bf16.msra.mxu0 %v397
      %465 = vmatprep.subr.bf16.mxu0 0
      %466 = vmatpush1.bf16.msra.mxu0 %v396
      %467 = vmatprep.subr.bf16.mxu0 0
      %468 = vmatpush1.bf16.msra.mxu0 %v395
      %469 = vmatprep.subr.bf16.mxu0 0
      %470 = vmatpush1.bf16.msra.mxu0 %v394
      %471 = vmatprep.subr.bf16.mxu0 0
      %472 = vmatpush2.bf16.msra.mxu0 0
      %473 = vmatprep.subr.bf16.mxu0 0
      %474 = vmatpush2.bf16.msra.mxu0 0
      %475 = vmatprep.subr.bf16.mxu0 0
      %476 = vmatpush2.bf16.msra.mxu0 0
      %477 = vmatprep.subr.bf16.mxu0 0
      %478 = vmatpush2.bf16.msra.mxu0 0
      %479 = vmatprep.subr.bf16.mxu0 0
      %480 = vmatpush2.bf16.msra.mxu0 0
      %481 = vmatprep.subr.bf16.mxu0 0
      %482 = vmatpush2.bf16.msra.mxu0 0
      %483 = vmatprep.subr.bf16.mxu0 0
      %484 = vmatpush2.bf16.msra.mxu0 0
      %485 = vmatprep.subr.bf16.mxu0 0
      %486 = vmatpush2.bf16.msra.mxu0 0
      %487 = vmatprep.mubr.bf16.mxu0 0
      %488 = vmatmul.mubr.bf16.gmra.mxu0 %v408
      %v489 = vpop.f32.mrf.mxu0
      %v490 = vadd.f32 0.0, %v489
      %v491 = vpop.f32.mrf.mxu0
      %v492 = vpop.f32.mrf.mxu0
      %v493 = vadd.f32 0.0, %v492
      %v494 = vpop.f32.mrf.mxu0
      %495 = vmatprep.mubr.bf16.mxu0 0
      %496 = vmatmul.mubr.bf16.gmra.mxu0 %v411
      %v497 = vpop.f32.mrf.mxu0
      %v498 = vadd.f32 0.0, %v497
      %v499 = vpop.f32.mrf.mxu0
      %v500 = vpop.f32.mrf.mxu0
      %v501 = vadd.f32 0.0, %v500
      %v502 = vpop.f32.mrf.mxu0
      %503 = vmatprep.mubr.bf16.mxu0 0
      %504 = vmatmul.mubr.bf16.gmra.mxu0 %v414
      %v505 = vpop.f32.mrf.mxu0
      %v506 = vadd.f32 0.0, %v505
      %v507 = vpop.f32.mrf.mxu0
      %v508 = vpop.f32.mrf.mxu0
      %v509 = vadd.f32 0.0, %v508
      %v510 = vpop.f32.mrf.mxu0
      %511 = vmatprep.mubr.bf16.mxu0 0
      %512 = vmatmul.mubr.bf16.gmra.mxu0 %v417
      %v513 = vpop.f32.mrf.mxu0
      %v514 = vadd.f32 0.0, %v513
      %v515 = vpop.f32.mrf.mxu0
      %v516 = vpop.f32.mrf.mxu0
      %v517 = vadd.f32 0.0, %v516
      %v518 = vpop.f32.mrf.mxu0
      %519 = vmatprep.mubr.bf16.mxu0 0
      %520 = vmatmul.mubr.bf16.gmra.mxu0 %v420
      %v521 = vpop.f32.mrf.mxu0
      %v522 = vadd.f32 0.0, %v521
      %v523 = vpop.f32.mrf.mxu0
      %v524 = vpop.f32.mrf.mxu0
      %v525 = vadd.f32 0.0, %v524
      %v526 = vpop.f32.mrf.mxu0
      %527 = vmatprep.mubr.bf16.mxu0 0
      %528 = vmatmul.mubr.bf16.gmra.mxu0 %v423
      %v529 = vpop.f32.mrf.mxu0
      %v530 = vadd.f32 0.0, %v529
      %v531 = vpop.f32.mrf.mxu0
      %v532 = vpop.f32.mrf.mxu0
      %v533 = vadd.f32 0.0, %v532
      %v534 = vpop.f32.mrf.mxu0
      %535 = vmatprep.mubr.bf16.mxu0 0
      %536 = vmatmul.mubr.bf16.gmra.mxu0 %v426
      %v537 = vpop.f32.mrf.mxu0
      %v538 = vadd.f32 0.0, %v537
      %v539 = vpop.f32.mrf.mxu0
      %v540 = vpop.f32.mrf.mxu0
      %v541 = vadd.f32 0.0, %v540
      %v542 = vpop.f32.mrf.mxu0
      %543 = vmatprep.mubr.bf16.mxu0 0
      %544 = vmatmul.mubr.bf16.gmra.mxu0 %v429
      %v545 = vpop.f32.mrf.mxu0
      %v546 = vadd.f32 0.0, %v545
      %v547 = vpop.f32.mrf.mxu0
      %v548 = vpop.f32.mrf.mxu0
      %v549 = vadd.f32 0.0, %v548
      %v550 = vpop.f32.mrf.mxu0
      %551 = vmatprep.mubr.bf16.mxu0 0
      %552 = vmatmul.mubr.bf16.gmra.mxu0 %v432
      %v553 = vpop.f32.mrf.mxu0
      %v554 = vadd.f32 0.0, %v553
      %v555 = vpop.f32.mrf.mxu0
      %v556 = vpop.f32.mrf.mxu0
      %v557 = vadd.f32 0.0, %v556
      %v558 = vpop.f32.mrf.mxu0
      %559 = vmatprep.mubr.bf16.mxu0 0
      %560 = vmatmul.mubr.bf16.gmra.mxu0 %v435
      %v561 = vpop.f32.mrf.mxu0
      %v562 = vadd.f32 0.0, %v561
      %v563 = vpop.f32.mrf.mxu0
      %v564 = vpop.f32.mrf.mxu0
      %v565 = vadd.f32 0.0, %v564
      %v566 = vpop.f32.mrf.mxu0
      %567 = vmatprep.mubr.bf16.mxu0 0
      %568 = vmatmul.mubr.bf16.gmra.mxu0 %v438
      %v569 = vpop.f32.mrf.mxu0
      %v570 = vadd.f32 0.0, %v569
      %v571 = vpop.f32.mrf.mxu0
      %v572 = vpop.f32.mrf.mxu0
      %v573 = vadd.f32 0.0, %v572
      %v574 = vpop.f32.mrf.mxu0
      %575 = vmatprep.mubr.bf16.mxu0 0
      %576 = vmatmul.mubr.bf16.gmra.mxu0 %v441
      %v577 = vpop.f32.mrf.mxu0
      %v578 = vadd.f32 0.0, %v577
      %v579 = vpop.f32.mrf.mxu0
      %v580 = vpop.f32.mrf.mxu0
      %v581 = vadd.f32 0.0, %v580
      %v582 = vpop.f32.mrf.mxu0
      %583 = vmatprep.mubr.bf16.mxu0 0
      %584 = vmatmul.mubr.bf16.gmra.mxu0 %v444
      %v585 = vpop.f32.mrf.mxu0
      %v586 = vadd.f32 0.0, %v585
      %v587 = vpop.f32.mrf.mxu0
      %v588 = vpop.f32.mrf.mxu0
      %v589 = vadd.f32 0.0, %v588
      %v590 = vpop.f32.mrf.mxu0
      %591 = vmatprep.mubr.bf16.mxu0 0
      %592 = vmatmul.mubr.bf16.gmra.mxu0 %v447
      %v593 = vpop.f32.mrf.mxu0
      %v594 = vadd.f32 0.0, %v593
      %v595 = vpop.f32.mrf.mxu0
      %v596 = vpop.f32.mrf.mxu0
      %v597 = vadd.f32 0.0, %v596
      %v598 = vpop.f32.mrf.mxu0
      %599 = vmatprep.mubr.bf16.mxu0 0
      %600 = vmatmul.mubr.bf16.gmra.mxu0 %v450
      %v601 = vpop.f32.mrf.mxu0
      %v602 = vadd.f32 0.0, %v601
      %v603 = vpop.f32.mrf.mxu0
      %v604 = vpop.f32.mrf.mxu0
      %v605 = vadd.f32 0.0, %v604
      %v606 = vpop.f32.mrf.mxu0
      %607 = vmatprep.mubr.bf16.mxu0 0
      %608 = vmatmul.mubr.bf16.gmra.mxu0 %v453
      %v609 = vpop.f32.mrf.mxu0
      %v610 = vadd.f32 0.0, %v609
      %v611 = vpop.f32.mrf.mxu0
      %v612 = vpop.f32.mrf.mxu0
      %v613 = vadd.f32 0.0, %v612
      %v614 = vpop.f32.mrf.mxu0
      %615 = vdwg.mxu0
      %v648 = vunpack.c.l.b16 %v197
      %v649 = vunpack.c.l.b16 %v198
      %v650 = vunpack.c.l.b16 %v199
      %v651 = vunpack.c.l.b16 %v200
      %v652 = vunpack.c.l.b16 %v201
      %v653 = vunpack.c.l.b16 %v202
      %v654 = vunpack.c.l.b16 %v203
      %v655 = vunpack.c.l.b16 %v204
      %v656 = vunpack.c.l.b16 %v205
      %v657 = vunpack.c.l.b16 %v206
      %v658 = vunpack.c.l.b16 %v207
      %v659 = vunpack.c.l.b16 %v208
      %v660 = vunpack.c.l.b16 %v209
      %v661 = vunpack.c.l.b16 %v210
      %v662 = vunpack.c.l.b16 %v211
      %v663 = vunpack.c.l.b16 %v212
      %v664 = vunpack.c.l.b16 %v213
      %v665 = vunpack.c.l.b16 %v214
      %v666 = vunpack.c.l.b16 %v215
      %v667 = vunpack.c.l.b16 %v216
      %v668 = vunpack.c.l.b16 %v217
      %v669 = vunpack.c.l.b16 %v218
      %v670 = vunpack.c.l.b16 %v219
      %v671 = vunpack.c.l.b16 %v220
      %v672 = vunpack.c.l.b16 %v221
      %v673 = vunpack.c.l.b16 %v222
      %v674 = vunpack.c.l.b16 %v223
      %v675 = vunpack.c.l.b16 %v224
      %v676 = vunpack.c.l.b16 %v225
      %v677 = vunpack.c.l.b16 %v226
      %v678 = vunpack.c.l.b16 %v227
      %v679 = vunpack.c.l.b16 %v228
      %v680 = vpack.c.b16 %v649, %v648
      %v681 = vpack.c.b16 %v651, %v650
      %v682 = vpack.c.b16 %v653, %v652
      %v683 = vpack.c.b16 %v655, %v654
      %v684 = vpack.c.b16 %v657, %v656
      %v685 = vpack.c.b16 %v659, %v658
      %v686 = vpack.c.b16 %v661, %v660
      %v687 = vpack.c.b16 %v663, %v662
      %v688 = vpack.c.b16 %v665, %v664
      %v689 = vpack.c.b16 %v667, %v666
      %v690 = vpack.c.b16 %v669, %v668
      %v691 = vpack.c.b16 %v671, %v670
      %v692 = vpack.c.b16 %v673, %v672
      %v693 = vpack.c.b16 %v675, %v674
      %v694 = vpack.c.b16 %v677, %v676
      %v695 = vpack.c.b16 %v679, %v678
      %v708 = vunpack.c.l.b16 %v229
      %v709 = vunpack.c.l.b16 %v230
      %v710 = vunpack.c.l.b16 %v231
      %v711 = vunpack.c.l.b16 %v232
      %v712 = vunpack.c.l.b16 %v233
      %v713 = vunpack.c.l.b16 %v234
      %v714 = vunpack.c.l.b16 %v235
      %v715 = vunpack.c.l.b16 %v236
      %v716 = vunpack.c.l.b16 %v237
      %v717 = vunpack.c.l.b16 %v238
      %v718 = vunpack.c.l.b16 %v239
      %v719 = vunpack.c.l.b16 %v240
      %v720 = vpack.c.b16 %v709, %v708
      %v721 = vpack.c.b16 %v711, %v710
      %v722 = vpack.c.b16 %v713, %v712
      %v723 = vpack.c.b16 %v715, %v714
      %v724 = vpack.c.b16 %v717, %v716
      %v725 = vpack.c.b16 %v719, %v718
      %v733 = vsel %vm406, %v680, 0
      %v736 = vsel %vm406, %v681, 0
      %v739 = vsel %vm406, %v682, 0
      %v742 = vsel %vm406, %v683, 0
      %v745 = vsel %vm406, %v684, 0
      %v748 = vsel %vm406, %v685, 0
      %v751 = vsel %vm406, %v686, 0
      %v754 = vsel %vm406, %v687, 0
      %v757 = vsel %vm406, %v688, 0
      %v760 = vsel %vm406, %v689, 0
      %v763 = vsel %vm406, %v690, 0
      %v766 = vsel %vm406, %v691, 0
      %v769 = vsel %vm406, %v692, 0
      %v772 = vsel %vm406, %v693, 0
      %v775 = vsel %vm406, %v694, 0
      %v778 = vsel %vm406, %v695, 0
      %780 = vmatprep.subr.bf16.mxu0 0
      %781 = vmatpush1.bf16.msra.mxu0 0
      %782 = vmatprep.subr.bf16.mxu0 0
      %783 = vmatpush1.bf16.msra.mxu0 0
      %784 = vmatprep.subr.bf16.mxu0 0
      %785 = vmatpush1.bf16.msra.mxu0 %v725
      %786 = vmatprep.subr.bf16.mxu0 0
      %787 = vmatpush1.bf16.msra.mxu0 %v724
      %788 = vmatprep.subr.bf16.mxu0 0
      %789 = vmatpush1.bf16.msra.mxu0 %v723
      %790 = vmatprep.subr.bf16.mxu0 0
      %791 = vmatpush1.bf16.msra.mxu0 %v722
      %792 = vmatprep.subr.bf16.mxu0 0
      %793 = vmatpush1.bf16.msra.mxu0 %v721
      %794 = vmatprep.subr.bf16.mxu0 0
      %795 = vmatpush1.bf16.msra.mxu0 %v720
      %796 = vmatprep.subr.bf16.mxu0 0
      %797 = vmatpush2.bf16.msra.mxu0 0
      %798 = vmatprep.subr.bf16.mxu0 0
      %799 = vmatpush2.bf16.msra.mxu0 0
      %800 = vmatprep.subr.bf16.mxu0 0
      %801 = vmatpush2.bf16.msra.mxu0 0
      %802 = vmatprep.subr.bf16.mxu0 0
      %803 = vmatpush2.bf16.msra.mxu0 0
      %804 = vmatprep.subr.bf16.mxu0 0
      %805 = vmatpush2.bf16.msra.mxu0 0
      %806 = vmatprep.subr.bf16.mxu0 0
      %807 = vmatpush2.bf16.msra.mxu0 0
      %808 = vmatprep.subr.bf16.mxu0 0
      %809 = vmatpush2.bf16.msra.mxu0 0
      %810 = vmatprep.subr.bf16.mxu0 0
      %811 = vmatpush2.bf16.msra.mxu0 0
      %812 = vmatprep.mubr.bf16.mxu0 0
      %813 = vmatmul.mubr.bf16.gmra.mxu0 %v733
      %v814 = vpop.f32.mrf.mxu0
      %v815 = vadd.f32 %v490, %v814
      %v816 = vpop.f32.mrf.mxu0
      %v817 = vpop.f32.mrf.mxu0
      %v818 = vadd.f32 %v493, %v817
      %v819 = vpop.f32.mrf.mxu0
      %820 = vmatprep.mubr.bf16.mxu0 0
      %821 = vmatmul.mubr.bf16.gmra.mxu0 %v736
      %v822 = vpop.f32.mrf.mxu0
      %v823 = vadd.f32 %v498, %v822
      %v824 = vpop.f32.mrf.mxu0
      %v825 = vpop.f32.mrf.mxu0
      %v826 = vadd.f32 %v501, %v825
      %v827 = vpop.f32.mrf.mxu0
      %828 = vmatprep.mubr.bf16.mxu0 0
      %829 = vmatmul.mubr.bf16.gmra.mxu0 %v739
      %v830 = vpop.f32.mrf.mxu0
      %v831 = vadd.f32 %v506, %v830
      %v832 = vpop.f32.mrf.mxu0
      %v833 = vpop.f32.mrf.mxu0
      %v834 = vadd.f32 %v509, %v833
      %v835 = vpop.f32.mrf.mxu0
      %836 = vmatprep.mubr.bf16.mxu0 0
      %837 = vmatmul.mubr.bf16.gmra.mxu0 %v742
      %v838 = vpop.f32.mrf.mxu0
      %v839 = vadd.f32 %v514, %v838
      %v840 = vpop.f32.mrf.mxu0
      %v841 = vpop.f32.mrf.mxu0
      %v842 = vadd.f32 %v517, %v841
      %v843 = vpop.f32.mrf.mxu0
      %844 = vmatprep.mubr.bf16.mxu0 0
      %845 = vmatmul.mubr.bf16.gmra.mxu0 %v745
      %v846 = vpop.f32.mrf.mxu0
      %v847 = vadd.f32 %v522, %v846
      %v848 = vpop.f32.mrf.mxu0
      %v849 = vpop.f32.mrf.mxu0
      %v850 = vadd.f32 %v525, %v849
      %v851 = vpop.f32.mrf.mxu0
      %852 = vmatprep.mubr.bf16.mxu0 0
      %853 = vmatmul.mubr.bf16.gmra.mxu0 %v748
      %v854 = vpop.f32.mrf.mxu0
      %v855 = vadd.f32 %v530, %v854
      %v856 = vpop.f32.mrf.mxu0
      %v857 = vpop.f32.mrf.mxu0
      %v858 = vadd.f32 %v533, %v857
      %v859 = vpop.f32.mrf.mxu0
      %860 = vmatprep.mubr.bf16.mxu0 0
      %861 = vmatmul.mubr.bf16.gmra.mxu0 %v751
      %v862 = vpop.f32.mrf.mxu0
      %v863 = vadd.f32 %v538, %v862
      %v864 = vpop.f32.mrf.mxu0
      %v865 = vpop.f32.mrf.mxu0
      %v866 = vadd.f32 %v541, %v865
      %v867 = vpop.f32.mrf.mxu0
      %868 = vmatprep.mubr.bf16.mxu0 0
      %869 = vmatmul.mubr.bf16.gmra.mxu0 %v754
      %v870 = vpop.f32.mrf.mxu0
      %v871 = vadd.f32 %v546, %v870
      %v872 = vpop.f32.mrf.mxu0
      %v873 = vpop.f32.mrf.mxu0
      %v874 = vadd.f32 %v549, %v873
      %v875 = vpop.f32.mrf.mxu0
      %876 = vmatprep.mubr.bf16.mxu0 0
      %877 = vmatmul.mubr.bf16.gmra.mxu0 %v757
      %v878 = vpop.f32.mrf.mxu0
      %v879 = vadd.f32 %v554, %v878
      %v880 = vpop.f32.mrf.mxu0
      %v881 = vpop.f32.mrf.mxu0
      %v882 = vadd.f32 %v557, %v881
      %v883 = vpop.f32.mrf.mxu0
      %884 = vmatprep.mubr.bf16.mxu0 0
      %885 = vmatmul.mubr.bf16.gmra.mxu0 %v760
      %v886 = vpop.f32.mrf.mxu0
      %v887 = vadd.f32 %v562, %v886
      %v888 = vpop.f32.mrf.mxu0
      %v889 = vpop.f32.mrf.mxu0
      %v890 = vadd.f32 %v565, %v889
      %v891 = vpop.f32.mrf.mxu0
      %892 = vmatprep.mubr.bf16.mxu0 0
      %893 = vmatmul.mubr.bf16.gmra.mxu0 %v763
      %v894 = vpop.f32.mrf.mxu0
      %v895 = vadd.f32 %v570, %v894
      %v896 = vpop.f32.mrf.mxu0
      %v897 = vpop.f32.mrf.mxu0
      %v898 = vadd.f32 %v573, %v897
      %v899 = vpop.f32.mrf.mxu0
      %900 = vmatprep.mubr.bf16.mxu0 0
      %901 = vmatmul.mubr.bf16.gmra.mxu0 %v766
      %v902 = vpop.f32.mrf.mxu0
      %v903 = vadd.f32 %v578, %v902
      %v904 = vpop.f32.mrf.mxu0
      %v905 = vpop.f32.mrf.mxu0
      %v906 = vadd.f32 %v581, %v905
      %v907 = vpop.f32.mrf.mxu0
      %908 = vmatprep.mubr.bf16.mxu0 0
      %909 = vmatmul.mubr.bf16.gmra.mxu0 %v769
      %v910 = vpop.f32.mrf.mxu0
      %v911 = vadd.f32 %v586, %v910
      %v912 = vpop.f32.mrf.mxu0
      %v913 = vpop.f32.mrf.mxu0
      %v914 = vadd.f32 %v589, %v913
      %v915 = vpop.f32.mrf.mxu0
      %916 = vmatprep.mubr.bf16.mxu0 0
      %917 = vmatmul.mubr.bf16.gmra.mxu0 %v772
      %v918 = vpop.f32.mrf.mxu0
      %v919 = vadd.f32 %v594, %v918
      %v920 = vpop.f32.mrf.mxu0
      %v921 = vpop.f32.mrf.mxu0
      %v922 = vadd.f32 %v597, %v921
      %v923 = vpop.f32.mrf.mxu0
      %924 = vmatprep.mubr.bf16.mxu0 0
      %925 = vmatmul.mubr.bf16.gmra.mxu0 %v775
      %v926 = vpop.f32.mrf.mxu0
      %v927 = vadd.f32 %v602, %v926
      %v928 = vpop.f32.mrf.mxu0
      %v929 = vpop.f32.mrf.mxu0
      %v930 = vadd.f32 %v605, %v929
      %v931 = vpop.f32.mrf.mxu0
      %932 = vmatprep.mubr.bf16.mxu0 0
      %933 = vmatmul.mubr.bf16.gmra.mxu0 %v778
      %v934 = vpop.f32.mrf.mxu0
      %v935 = vadd.f32 %v610, %v934
      %v936 = vpop.f32.mrf.mxu0
      %v937 = vpop.f32.mrf.mxu0
      %v938 = vadd.f32 %v613, %v937
      %v939 = vpop.f32.mrf.mxu0
      %940 = vdwg.mxu0
      %s941 = sadd.s32 %s19, 2
      %s942 = smul.u32 %s941, 32
      %s943 = smul.addr %s942, 4
      %s944 = scalar_lea.vmem %s183, %s943
      %v945 = vld [vmem:[%s944] sm:$0xf]
      %v946 = vld [vmem:[%s944 + $0x4] sm:$0xf]
      %v947 = vld [vmem:[%s944 + $0x8] sm:$0xf]
      %v948 = vld [vmem:[%s944 + $0xc] sm:$0xf]
      %v949 = vld [vmem:[%s944 + $0x10] sm:$0xf]
      %v950 = vld [vmem:[%s944 + $0x14] sm:$0xf]
      %v951 = vld [vmem:[%s944 + $0x18] sm:$0xf]
      %v952 = vld [vmem:[%s944 + $0x1c] sm:$0xf]
      %v953 = vld [vmem:[%s944 + $0x20] sm:$0xf]
      %v954 = vld [vmem:[%s944 + $0x24] sm:$0xf]
      %v955 = vld [vmem:[%s944 + $0x28] sm:$0xf]
      %v956 = vld [vmem:[%s944 + $0x2c] sm:$0xf]
      %v957 = vld [vmem:[%s944 + $0x30] sm:$0xf]
      %v958 = vld [vmem:[%s944 + $0x34] sm:$0xf]
      %v959 = vld [vmem:[%s944 + $0x38] sm:$0xf]
      %v960 = vld [vmem:[%s944 + $0x3c] sm:$0xf]
      %v961 = vld [vmem:[%s944 + $0x40] sm:$0xf]
      %v962 = vld [vmem:[%s944 + $0x44] sm:$0xf]
      %v963 = vld [vmem:[%s944 + $0x48] sm:$0xf]
      %v964 = vld [vmem:[%s944 + $0x4c] sm:$0xf]
      %v965 = vld [vmem:[%s944 + $0x50] sm:$0xf]
      %v966 = vld [vmem:[%s944 + $0x54] sm:$0xf]
      %v967 = vld [vmem:[%s944 + $0x58] sm:$0xf]
      %v968 = vld [vmem:[%s944 + $0x5c] sm:$0xf]
      %v969 = vld [vmem:[%s944 + $0x60] sm:$0xf]
      %v970 = vld [vmem:[%s944 + $0x64] sm:$0xf]
      %v971 = vld [vmem:[%s944 + $0x68] sm:$0xf]
      %v972 = vld [vmem:[%s944 + $0x6c] sm:$0xf]
      %v973 = vld [vmem:[%s944 + $0x70] sm:$0xf]
      %v974 = vld [vmem:[%s944 + $0x74] sm:$0xf]
      %v975 = vld [vmem:[%s944 + $0x78] sm:$0xf]
      %v976 = vld [vmem:[%s944 + $0x7c] sm:$0xf]
      %s977 = scalar_lea.vmem %s1, 96
      %v978 = vld [vmem:[%s977] sm:$0xf]
      %v979 = vld [vmem:[%s977 + $0x4] sm:$0xf]
      %v980 = vld [vmem:[%s977 + $0x8] sm:$0xf]
      %v981 = vld [vmem:[%s977 + $0xc] sm:$0xf]
      %v982 = vld [vmem:[%s977 + $0x10] sm:$0xf]
      %v983 = vld [vmem:[%s977 + $0x14] sm:$0xf]
      %v984 = vld [vmem:[%s977 + $0x18] sm:$0xf]
      %v985 = vld [vmem:[%s977 + $0x1c] sm:$0xf]
      %v986 = vld [vmem:[%s977 + $0x20] sm:$0xf]
      %v987 = vld [vmem:[%s977 + $0x24] sm:$0xf]
      %v988 = vld [vmem:[%s977 + $0x28] sm:$0xf]
      %v989 = vld [vmem:[%s977 + $0x2c] sm:$0xf]
      %v1022 = vunpack.c.l.b16 %v945
      %v1023 = vunpack.c.l.b16 %v946
      %v1024 = vunpack.c.l.b16 %v947
      %v1025 = vunpack.c.l.b16 %v948
      %v1026 = vunpack.c.l.b16 %v949
      %v1027 = vunpack.c.l.b16 %v950
      %v1028 = vunpack.c.l.b16 %v951
      %v1029 = vunpack.c.l.b16 %v952
      %v1030 = vunpack.c.l.b16 %v953
      %v1031 = vunpack.c.l.b16 %v954
      %v1032 = vunpack.c.l.b16 %v955
      %v1033 = vunpack.c.l.b16 %v956
      %v1034 = vunpack.c.l.b16 %v957
      %v1035 = vunpack.c.l.b16 %v958
      %v1036 = vunpack.c.l.b16 %v959
      %v1037 = vunpack.c.l.b16 %v960
      %v1038 = vunpack.c.l.b16 %v961
      %v1039 = vunpack.c.l.b16 %v962
      %v1040 = vunpack.c.l.b16 %v963
      %v1041 = vunpack.c.l.b16 %v964
      %v1042 = vunpack.c.l.b16 %v965
      %v1043 = vunpack.c.l.b16 %v966
      %v1044 = vunpack.c.l.b16 %v967
      %v1045 = vunpack.c.l.b16 %v968
      %v1046 = vunpack.c.l.b16 %v969
      %v1047 = vunpack.c.l.b16 %v970
      %v1048 = vunpack.c.l.b16 %v971
      %v1049 = vunpack.c.l.b16 %v972
      %v1050 = vunpack.c.l.b16 %v973
      %v1051 = vunpack.c.l.b16 %v974
      %v1052 = vunpack.c.l.b16 %v975
      %v1053 = vunpack.c.l.b16 %v976
      %v1054 = vpack.c.b16 %v1023, %v1022
      %v1055 = vpack.c.b16 %v1025, %v1024
      %v1056 = vpack.c.b16 %v1027, %v1026
      %v1057 = vpack.c.b16 %v1029, %v1028
      %v1058 = vpack.c.b16 %v1031, %v1030
      %v1059 = vpack.c.b16 %v1033, %v1032
      %v1060 = vpack.c.b16 %v1035, %v1034
      %v1061 = vpack.c.b16 %v1037, %v1036
      %v1062 = vpack.c.b16 %v1039, %v1038
      %v1063 = vpack.c.b16 %v1041, %v1040
      %v1064 = vpack.c.b16 %v1043, %v1042
      %v1065 = vpack.c.b16 %v1045, %v1044
      %v1066 = vpack.c.b16 %v1047, %v1046
      %v1067 = vpack.c.b16 %v1049, %v1048
      %v1068 = vpack.c.b16 %v1051, %v1050
      %v1069 = vpack.c.b16 %v1053, %v1052
      %v1082 = vunpack.c.l.b16 %v978
      %v1083 = vunpack.c.l.b16 %v979
      %v1084 = vunpack.c.l.b16 %v980
      %v1085 = vunpack.c.l.b16 %v981
      %v1086 = vunpack.c.l.b16 %v982
      %v1087 = vunpack.c.l.b16 %v983
      %v1088 = vunpack.c.l.b16 %v984
      %v1089 = vunpack.c.l.b16 %v985
      %v1090 = vunpack.c.l.b16 %v986
      %v1091 = vunpack.c.l.b16 %v987
      %v1092 = vunpack.c.l.b16 %v988
      %v1093 = vunpack.c.l.b16 %v989
      %v1094 = vpack.c.b16 %v1083, %v1082
      %v1095 = vpack.c.b16 %v1085, %v1084
      %v1096 = vpack.c.b16 %v1087, %v1086
      %v1097 = vpack.c.b16 %v1089, %v1088
      %v1098 = vpack.c.b16 %v1091, %v1090
      %v1099 = vpack.c.b16 %v1093, %v1092
      %v1107 = vsel %vm406, %v1054, 0
      %v1110 = vsel %vm406, %v1055, 0
      %v1113 = vsel %vm406, %v1056, 0
      %v1116 = vsel %vm406, %v1057, 0
      %v1119 = vsel %vm406, %v1058, 0
      %v1122 = vsel %vm406, %v1059, 0
      %v1125 = vsel %vm406, %v1060, 0
      %v1128 = vsel %vm406, %v1061, 0
      %v1131 = vsel %vm406, %v1062, 0
      %v1134 = vsel %vm406, %v1063, 0
      %v1137 = vsel %vm406, %v1064, 0
      %v1140 = vsel %vm406, %v1065, 0
      %v1143 = vsel %vm406, %v1066, 0
      %v1146 = vsel %vm406, %v1067, 0
      %v1149 = vsel %vm406, %v1068, 0
      %v1152 = vsel %vm406, %v1069, 0
      %1154 = vmatprep.subr.bf16.mxu0 0
      %1155 = vmatpush1.bf16.msra.mxu0 0
      %1156 = vmatprep.subr.bf16.mxu0 0
      %1157 = vmatpush1.bf16.msra.mxu0 0
      %1158 = vmatprep.subr.bf16.mxu0 0
      %1159 = vmatpush1.bf16.msra.mxu0 %v1099
      %1160 = vmatprep.subr.bf16.mxu0 0
      %1161 = vmatpush1.bf16.msra.mxu0 %v1098
      %1162 = vmatprep.subr.bf16.mxu0 0
      %1163 = vmatpush1.bf16.msra.mxu0 %v1097
      %1164 = vmatprep.subr.bf16.mxu0 0
      %1165 = vmatpush1.bf16.msra.mxu0 %v1096
      %1166 = vmatprep.subr.bf16.mxu0 0
      %1167 = vmatpush1.bf16.msra.mxu0 %v1095
      %1168 = vmatprep.subr.bf16.mxu0 0
      %1169 = vmatpush1.bf16.msra.mxu0 %v1094
      %1170 = vmatprep.subr.bf16.mxu0 0
      %1171 = vmatpush2.bf16.msra.mxu0 0
      %1172 = vmatprep.subr.bf16.mxu0 0
      %1173 = vmatpush2.bf16.msra.mxu0 0
      %1174 = vmatprep.subr.bf16.mxu0 0
      %1175 = vmatpush2.bf16.msra.mxu0 0
      %1176 = vmatprep.subr.bf16.mxu0 0
      %1177 = vmatpush2.bf16.msra.mxu0 0
      %1178 = vmatprep.subr.bf16.mxu0 0
      %1179 = vmatpush2.bf16.msra.mxu0 0
      %1180 = vmatprep.subr.bf16.mxu0 0
      %1181 = vmatpush2.bf16.msra.mxu0 0
      %1182 = vmatprep.subr.bf16.mxu0 0
      %1183 = vmatpush2.bf16.msra.mxu0 0
      %1184 = vmatprep.subr.bf16.mxu0 0
      %1185 = vmatpush2.bf16.msra.mxu0 0
      %1186 = vmatprep.mubr.bf16.mxu0 0
      %1187 = vmatmul.mubr.bf16.gmra.mxu0 %v1107
      %v1188 = vpop.f32.mrf.mxu0
      %v1189 = vadd.f32 0.0, %v1188
      %v1190 = vpop.f32.mrf.mxu0
      %v1191 = vpop.f32.mrf.mxu0
      %v1192 = vadd.f32 0.0, %v1191
      %v1193 = vpop.f32.mrf.mxu0
      %1194 = vmatprep.mubr.bf16.mxu0 0
      %1195 = vmatmul.mubr.bf16.gmra.mxu0 %v1110
      %v1196 = vpop.f32.mrf.mxu0
      %v1197 = vadd.f32 0.0, %v1196
      %v1198 = vpop.f32.mrf.mxu0
      %v1199 = vpop.f32.mrf.mxu0
      %v1200 = vadd.f32 0.0, %v1199
      %v1201 = vpop.f32.mrf.mxu0
      %1202 = vmatprep.mubr.bf16.mxu0 0
      %1203 = vmatmul.mubr.bf16.gmra.mxu0 %v1113
      %v1204 = vpop.f32.mrf.mxu0
      %v1205 = vadd.f32 0.0, %v1204
      %v1206 = vpop.f32.mrf.mxu0
      %v1207 = vpop.f32.mrf.mxu0
      %v1208 = vadd.f32 0.0, %v1207
      %v1209 = vpop.f32.mrf.mxu0
      %1210 = vmatprep.mubr.bf16.mxu0 0
      %1211 = vmatmul.mubr.bf16.gmra.mxu0 %v1116
      %v1212 = vpop.f32.mrf.mxu0
      %v1213 = vadd.f32 0.0, %v1212
      %v1214 = vpop.f32.mrf.mxu0
      %v1215 = vpop.f32.mrf.mxu0
      %v1216 = vadd.f32 0.0, %v1215
      %v1217 = vpop.f32.mrf.mxu0
      %1218 = vmatprep.mubr.bf16.mxu0 0
      %1219 = vmatmul.mubr.bf16.gmra.mxu0 %v1119
      %v1220 = vpop.f32.mrf.mxu0
      %v1221 = vadd.f32 0.0, %v1220
      %v1222 = vpop.f32.mrf.mxu0
      %v1223 = vpop.f32.mrf.mxu0
      %v1224 = vadd.f32 0.0, %v1223
      %v1225 = vpop.f32.mrf.mxu0
      %1226 = vmatprep.mubr.bf16.mxu0 0
      %1227 = vmatmul.mubr.bf16.gmra.mxu0 %v1122
      %v1228 = vpop.f32.mrf.mxu0
      %v1229 = vadd.f32 0.0, %v1228
      %v1230 = vpop.f32.mrf.mxu0
      %v1231 = vpop.f32.mrf.mxu0
      %v1232 = vadd.f32 0.0, %v1231
      %v1233 = vpop.f32.mrf.mxu0
      %1234 = vmatprep.mubr.bf16.mxu0 0
      %1235 = vmatmul.mubr.bf16.gmra.mxu0 %v1125
      %v1236 = vpop.f32.mrf.mxu0
      %v1237 = vadd.f32 0.0, %v1236
      %v1238 = vpop.f32.mrf.mxu0
      %v1239 = vpop.f32.mrf.mxu0
      %v1240 = vadd.f32 0.0, %v1239
      %v1241 = vpop.f32.mrf.mxu0
      %1242 = vmatprep.mubr.bf16.mxu0 0
      %1243 = vmatmul.mubr.bf16.gmra.mxu0 %v1128
      %v1244 = vpop.f32.mrf.mxu0
      %v1245 = vadd.f32 0.0, %v1244
      %v1246 = vpop.f32.mrf.mxu0
      %v1247 = vpop.f32.mrf.mxu0
      %v1248 = vadd.f32 0.0, %v1247
      %v1249 = vpop.f32.mrf.mxu0
      %1250 = vmatprep.mubr.bf16.mxu0 0
      %1251 = vmatmul.mubr.bf16.gmra.mxu0 %v1131
      %v1252 = vpop.f32.mrf.mxu0
      %v1253 = vadd.f32 0.0, %v1252
      %v1254 = vpop.f32.mrf.mxu0
      %v1255 = vpop.f32.mrf.mxu0
      %v1256 = vadd.f32 0.0, %v1255
      %v1257 = vpop.f32.mrf.mxu0
      %1258 = vmatprep.mubr.bf16.mxu0 0
      %1259 = vmatmul.mubr.bf16.gmra.mxu0 %v1134
      %v1260 = vpop.f32.mrf.mxu0
      %v1261 = vadd.f32 0.0, %v1260
      %v1262 = vpop.f32.mrf.mxu0
      %v1263 = vpop.f32.mrf.mxu0
      %v1264 = vadd.f32 0.0, %v1263
      %v1265 = vpop.f32.mrf.mxu0
      %1266 = vmatprep.mubr.bf16.mxu0 0
      %1267 = vmatmul.mubr.bf16.gmra.mxu0 %v1137
      %v1268 = vpop.f32.mrf.mxu0
      %v1269 = vadd.f32 0.0, %v1268
      %v1270 = vpop.f32.mrf.mxu0
      %v1271 = vpop.f32.mrf.mxu0
      %v1272 = vadd.f32 0.0, %v1271
      %v1273 = vpop.f32.mrf.mxu0
      %1274 = vmatprep.mubr.bf16.mxu0 0
      %1275 = vmatmul.mubr.bf16.gmra.mxu0 %v1140
      %v1276 = vpop.f32.mrf.mxu0
      %v1277 = vadd.f32 0.0, %v1276
      %v1278 = vpop.f32.mrf.mxu0
      %v1279 = vpop.f32.mrf.mxu0
      %v1280 = vadd.f32 0.0, %v1279
      %v1281 = vpop.f32.mrf.mxu0
      %1282 = vmatprep.mubr.bf16.mxu0 0
      %1283 = vmatmul.mubr.bf16.gmra.mxu0 %v1143
      %v1284 = vpop.f32.mrf.mxu0
      %v1285 = vadd.f32 0.0, %v1284
      %v1286 = vpop.f32.mrf.mxu0
      %v1287 = vpop.f32.mrf.mxu0
      %v1288 = vadd.f32 0.0, %v1287
      %v1289 = vpop.f32.mrf.mxu0
      %1290 = vmatprep.mubr.bf16.mxu0 0
      %1291 = vmatmul.mubr.bf16.gmra.mxu0 %v1146
      %v1292 = vpop.f32.mrf.mxu0
      %v1293 = vadd.f32 0.0, %v1292
      %v1294 = vpop.f32.mrf.mxu0
      %v1295 = vpop.f32.mrf.mxu0
      %v1296 = vadd.f32 0.0, %v1295
      %v1297 = vpop.f32.mrf.mxu0
      %1298 = vmatprep.mubr.bf16.mxu0 0
      %1299 = vmatmul.mubr.bf16.gmra.mxu0 %v1149
      %v1300 = vpop.f32.mrf.mxu0
      %v1301 = vadd.f32 0.0, %v1300
      %v1302 = vpop.f32.mrf.mxu0
      %v1303 = vpop.f32.mrf.mxu0
      %v1304 = vadd.f32 0.0, %v1303
      %v1305 = vpop.f32.mrf.mxu0
      %1306 = vmatprep.mubr.bf16.mxu0 0
      %1307 = vmatmul.mubr.bf16.gmra.mxu0 %v1152
      %v1308 = vpop.f32.mrf.mxu0
      %v1309 = vadd.f32 0.0, %v1308
      %v1310 = vpop.f32.mrf.mxu0
      %v1311 = vpop.f32.mrf.mxu0
      %v1312 = vadd.f32 0.0, %v1311
      %v1313 = vpop.f32.mrf.mxu0
      %1314 = vdwg.mxu0
      %v1315 = vadd.f32 %v815, %v1189
      %v1316 = vadd.f32 %v818, %v1192
      %v1317 = vadd.f32 %v823, %v1197
      %v1318 = vadd.f32 %v826, %v1200
      %v1319 = vadd.f32 %v831, %v1205
      %v1320 = vadd.f32 %v834, %v1208
      %v1321 = vadd.f32 %v839, %v1213
      %v1322 = vadd.f32 %v842, %v1216
      %v1323 = vadd.f32 %v847, %v1221
      %v1324 = vadd.f32 %v850, %v1224
      %v1325 = vadd.f32 %v855, %v1229
      %v1326 = vadd.f32 %v858, %v1232
      %v1327 = vadd.f32 %v863, %v1237
      %v1328 = vadd.f32 %v866, %v1240
      %v1329 = vadd.f32 %v871, %v1245
      %v1330 = vadd.f32 %v874, %v1248
      %v1331 = vadd.f32 %v879, %v1253
      %v1332 = vadd.f32 %v882, %v1256
      %v1333 = vadd.f32 %v887, %v1261
      %v1334 = vadd.f32 %v890, %v1264
      %v1335 = vadd.f32 %v895, %v1269
      %v1336 = vadd.f32 %v898, %v1272
      %v1337 = vadd.f32 %v903, %v1277
      %v1338 = vadd.f32 %v906, %v1280
      %v1339 = vadd.f32 %v911, %v1285
      %v1340 = vadd.f32 %v914, %v1288
      %v1341 = vadd.f32 %v919, %v1293
      %v1342 = vadd.f32 %v922, %v1296
      %v1343 = vadd.f32 %v927, %v1301
      %v1344 = vadd.f32 %v930, %v1304
      %v1345 = vadd.f32 %v935, %v1309
      %v1346 = vadd.f32 %v938, %v1312
      %vm1347 = vcmp.ge.f32.partialorder %v1315, 0.0
      %vm1348 = vcmp.ge.f32.partialorder %v1316, 0.0
      %vm1349 = vcmp.ge.f32.partialorder %v1317, 0.0
      %vm1350 = vcmp.ge.f32.partialorder %v1318, 0.0
      %vm1351 = vcmp.ge.f32.partialorder %v1319, 0.0
      %vm1352 = vcmp.ge.f32.partialorder %v1320, 0.0
      %vm1353 = vcmp.ge.f32.partialorder %v1321, 0.0
      %vm1354 = vcmp.ge.f32.partialorder %v1322, 0.0
      %vm1355 = vcmp.ge.f32.partialorder %v1323, 0.0
      %vm1356 = vcmp.ge.f32.partialorder %v1324, 0.0
      %vm1357 = vcmp.ge.f32.partialorder %v1325, 0.0
      %vm1358 = vcmp.ge.f32.partialorder %v1326, 0.0
      %vm1359 = vcmp.ge.f32.partialorder %v1327, 0.0
      %vm1360 = vcmp.ge.f32.partialorder %v1328, 0.0
      %vm1361 = vcmp.ge.f32.partialorder %v1329, 0.0
      %vm1362 = vcmp.ge.f32.partialorder %v1330, 0.0
      %vm1363 = vcmp.ge.f32.partialorder %v1331, 0.0
      %vm1364 = vcmp.ge.f32.partialorder %v1332, 0.0
      %vm1365 = vcmp.ge.f32.partialorder %v1333, 0.0
      %vm1366 = vcmp.ge.f32.partialorder %v1334, 0.0
      %vm1367 = vcmp.ge.f32.partialorder %v1335, 0.0
      %vm1368 = vcmp.ge.f32.partialorder %v1336, 0.0
      %vm1369 = vcmp.ge.f32.partialorder %v1337, 0.0
      %vm1370 = vcmp.ge.f32.partialorder %v1338, 0.0
      %vm1371 = vcmp.ge.f32.partialorder %v1339, 0.0
      %vm1372 = vcmp.ge.f32.partialorder %v1340, 0.0
      %vm1373 = vcmp.ge.f32.partialorder %v1341, 0.0
      %vm1374 = vcmp.ge.f32.partialorder %v1342, 0.0
      %vm1375 = vcmp.ge.f32.partialorder %v1343, 0.0
      %vm1376 = vcmp.ge.f32.partialorder %v1344, 0.0
      %vm1377 = vcmp.ge.f32.partialorder %v1345, 0.0
      %vm1378 = vcmp.ge.f32.partialorder %v1346, 0.0
      %v1379 = vmul.f32 %v1315, 0.01
      %v1380 = vmul.f32 %v1316, 0.01
      %v1381 = vmul.f32 %v1317, 0.01
      %v1382 = vmul.f32 %v1318, 0.01
      %v1383 = vmul.f32 %v1319, 0.01
      %v1384 = vmul.f32 %v1320, 0.01
      %v1385 = vmul.f32 %v1321, 0.01
      %v1386 = vmul.f32 %v1322, 0.01
      %v1387 = vmul.f32 %v1323, 0.01
      %v1388 = vmul.f32 %v1324, 0.01
      %v1389 = vmul.f32 %v1325, 0.01
      %v1390 = vmul.f32 %v1326, 0.01
      %v1391 = vmul.f32 %v1327, 0.01
      %v1392 = vmul.f32 %v1328, 0.01
      %v1393 = vmul.f32 %v1329, 0.01
      %v1394 = vmul.f32 %v1330, 0.01
      %v1395 = vmul.f32 %v1331, 0.01
      %v1396 = vmul.f32 %v1332, 0.01
      %v1397 = vmul.f32 %v1333, 0.01
      %v1398 = vmul.f32 %v1334, 0.01
      %v1399 = vmul.f32 %v1335, 0.01
      %v1400 = vmul.f32 %v1336, 0.01
      %v1401 = vmul.f32 %v1337, 0.01
      %v1402 = vmul.f32 %v1338, 0.01
      %v1403 = vmul.f32 %v1339, 0.01
      %v1404 = vmul.f32 %v1340, 0.01
      %v1405 = vmul.f32 %v1341, 0.01
      %v1406 = vmul.f32 %v1342, 0.01
      %v1407 = vmul.f32 %v1343, 0.01
      %v1408 = vmul.f32 %v1344, 0.01
      %v1409 = vmul.f32 %v1345, 0.01
      %v1410 = vmul.f32 %v1346, 0.01
      %v1411 = vsel %vm1347, %v1315, %v1379
      %v1412 = vsel %vm1348, %v1316, %v1380
      %v1413 = vsel %vm1349, %v1317, %v1381
      %v1414 = vsel %vm1350, %v1318, %v1382
      %v1415 = vsel %vm1351, %v1319, %v1383
      %v1416 = vsel %vm1352, %v1320, %v1384
      %v1417 = vsel %vm1353, %v1321, %v1385
      %v1418 = vsel %vm1354, %v1322, %v1386
      %v1419 = vsel %vm1355, %v1323, %v1387
      %v1420 = vsel %vm1356, %v1324, %v1388
      %v1421 = vsel %vm1357, %v1325, %v1389
      %v1422 = vsel %vm1358, %v1326, %v1390
      %v1423 = vsel %vm1359, %v1327, %v1391
      %v1424 = vsel %vm1360, %v1328, %v1392
      %v1425 = vsel %vm1361, %v1329, %v1393
      %v1426 = vsel %vm1362, %v1330, %v1394
      %v1427 = vsel %vm1363, %v1331, %v1395
      %v1428 = vsel %vm1364, %v1332, %v1396
      %v1429 = vsel %vm1365, %v1333, %v1397
      %v1430 = vsel %vm1366, %v1334, %v1398
      %v1431 = vsel %vm1367, %v1335, %v1399
      %v1432 = vsel %vm1368, %v1336, %v1400
      %v1433 = vsel %vm1369, %v1337, %v1401
      %v1434 = vsel %vm1370, %v1338, %v1402
      %v1435 = vsel %vm1371, %v1339, %v1403
      %v1436 = vsel %vm1372, %v1340, %v1404
      %v1437 = vsel %vm1373, %v1341, %v1405
      %v1438 = vsel %vm1374, %v1342, %v1406
      %v1439 = vsel %vm1375, %v1343, %v1407
      %v1440 = vsel %vm1376, %v1344, %v1408
      %v1441 = vsel %vm1377, %v1345, %v1409
      %v1442 = vsel %vm1378, %v1346, %v1410
      %v1443 = vld [vmem:[%s2] sm:$0x1]
      %v1445 = vlaneseq
      %v1446 = vshrl.u32 %v1445, 7
      %v1447 = vsub.s32 0, %v1446
      %v1448 = vrot.slane %v1443, %v1447
      %v1450 = vadd.f32 %v1411, %v1448
      %v1451 = vadd.f32 %v1412, %v1448
      %v1452 = vadd.f32 %v1413, %v1448
      %v1453 = vadd.f32 %v1414, %v1448
      %v1454 = vadd.f32 %v1415, %v1448
      %v1455 = vadd.f32 %v1416, %v1448
      %v1456 = vadd.f32 %v1417, %v1448
      %v1457 = vadd.f32 %v1418, %v1448
      %v1458 = vadd.f32 %v1419, %v1448
      %v1459 = vadd.f32 %v1420, %v1448
      %v1460 = vadd.f32 %v1421, %v1448
      %v1461 = vadd.f32 %v1422, %v1448
      %v1462 = vadd.f32 %v1423, %v1448
      %v1463 = vadd.f32 %v1424, %v1448
      %v1464 = vadd.f32 %v1425, %v1448
      %v1465 = vadd.f32 %v1426, %v1448
      %v1466 = vadd.f32 %v1427, %v1448
      %v1467 = vadd.f32 %v1428, %v1448
      %v1468 = vadd.f32 %v1429, %v1448
      %v1469 = vadd.f32 %v1430, %v1448
      %v1470 = vadd.f32 %v1431, %v1448
      %v1471 = vadd.f32 %v1432, %v1448
      %v1472 = vadd.f32 %v1433, %v1448
      %v1473 = vadd.f32 %v1434, %v1448
      %v1474 = vadd.f32 %v1435, %v1448
      %v1475 = vadd.f32 %v1436, %v1448
      %v1476 = vadd.f32 %v1437, %v1448
      %v1477 = vadd.f32 %v1438, %v1448
      %v1478 = vadd.f32 %v1439, %v1448
      %v1479 = vadd.f32 %v1440, %v1448
      %v1480 = vadd.f32 %v1441, %v1448
      %v1481 = vadd.f32 %v1442, %v1448
      %vm1482 = vcmask 261120
      %1483 = vst.msk [vmem:[%s192] sm:$0xff] %vm1482, %v1450
      %1484 = vst.msk [vmem:[%s192 + $0x8] sm:$0xff] %vm1482, %v1451
      %1485 = vst.msk [vmem:[%s192 + $0x10] sm:$0xff] %vm1482, %v1452
      %1486 = vst.msk [vmem:[%s192 + $0x18] sm:$0xff] %vm1482, %v1453
      %1487 = vst.msk [vmem:[%s192 + $0x20] sm:$0xff] %vm1482, %v1454
      %1488 = vst.msk [vmem:[%s192 + $0x28] sm:$0xff] %vm1482, %v1455
      %1489 = vst.msk [vmem:[%s192 + $0x30] sm:$0xff] %vm1482, %v1456
      %1490 = vst.msk [vmem:[%s192 + $0x38] sm:$0xff] %vm1482, %v1457
      %1491 = vst.msk [vmem:[%s192 + $0x40] sm:$0xff] %vm1482, %v1458
      %1492 = vst.msk [vmem:[%s192 + $0x48] sm:$0xff] %vm1482, %v1459
      %1493 = vst.msk [vmem:[%s192 + $0x50] sm:$0xff] %vm1482, %v1460
      %1494 = vst.msk [vmem:[%s192 + $0x58] sm:$0xff] %vm1482, %v1461
      %1495 = vst.msk [vmem:[%s192 + $0x60] sm:$0xff] %vm1482, %v1462
      %1496 = vst.msk [vmem:[%s192 + $0x68] sm:$0xff] %vm1482, %v1463
      %1497 = vst.msk [vmem:[%s192 + $0x70] sm:$0xff] %vm1482, %v1464
      %1498 = vst.msk [vmem:[%s192 + $0x78] sm:$0xff] %vm1482, %v1465
      %1499 = vst.msk [vmem:[%s192 + $0x80] sm:$0xff] %vm1482, %v1466
      %1500 = vst.msk [vmem:[%s192 + $0x88] sm:$0xff] %vm1482, %v1467
      %1501 = vst.msk [vmem:[%s192 + $0x90] sm:$0xff] %vm1482, %v1468
      %1502 = vst.msk [vmem:[%s192 + $0x98] sm:$0xff] %vm1482, %v1469
      %1503 = vst.msk [vmem:[%s192 + $0xa0] sm:$0xff] %vm1482, %v1470
      %1504 = vst.msk [vmem:[%s192 + $0xa8] sm:$0xff] %vm1482, %v1471
      %1505 = vst.msk [vmem:[%s192 + $0xb0] sm:$0xff] %vm1482, %v1472
      %1506 = vst.msk [vmem:[%s192 + $0xb8] sm:$0xff] %vm1482, %v1473
      %1507 = vst.msk [vmem:[%s192 + $0xc0] sm:$0xff] %vm1482, %v1474
      %1508 = vst.msk [vmem:[%s192 + $0xc8] sm:$0xff] %vm1482, %v1475
      %1509 = vst.msk [vmem:[%s192 + $0xd0] sm:$0xff] %vm1482, %v1476
      %1510 = vst.msk [vmem:[%s192 + $0xd8] sm:$0xff] %vm1482, %v1477
      %1511 = vst.msk [vmem:[%s192 + $0xe0] sm:$0xff] %vm1482, %v1478
      %1512 = vst.msk [vmem:[%s192 + $0xe8] sm:$0xff] %vm1482, %v1479
      %1513 = vst.msk [vmem:[%s192 + $0xf0] sm:$0xff] %vm1482, %v1480
      %1514 = vst.msk [vmem:[%s192 + $0xf8] sm:$0xff] %vm1482, %v1481
      %p1515 = scmp.lt.s32.totalorder %s18, 1
      %s1516 = scalar_select %p1515, %s18, 1
      %p1517 = scmp.lt.s32.totalorder %s19, 7
      %s1518 = scalar_select %p1517, %s19, 7
      %s1519 = smul.addr %s1518, 32
      %s1520 = smul.addr %s1516, 256
      %s1521 = sadd.s32 %s1519, %s1520
      %s1522 = smul.addr %s1521, 8
      %s1523 = scalar_lea.vmem %s3, %s1522
      // Predicated region
      $region33: #{upblock_forward.8} parent=31 // pred_check
        %p1524 = pneg %p114
      $region34: #{upblock_forward.8} parent=31 // pred_check_branch
        %1526 = sbr.rel (%p1524) target = $region36
      $region35: #{upblock_forward.8} parent=31 // pred_region
        _
      $region36: #{upblock_forward.8} parent=31 // pred_fallthru
        _
    $region32: #{upblock_forward.8} parent=5 // pred_fallthru
      _
    %p1527 = scmp.le.s32.totalorder 2, %s9
    // Predicated region
    $region37: #{upblock_forward.8} parent=5 // pred_check
      %p1528 = pneg %p1527
    $region38: #{upblock_forward.8} parent=5 // pred_check_branch
      %1530 = sbr.rel (%p1528) target = $region40
    $region39: #{upblock_forward.8} parent=5 // pred_region
      %s1531 = ssub.s32 %s9, 2
      // Predicated region
      $region41: #{upblock_forward.8} parent=39 // pred_check
        %p1532 = pneg %p120
      $region42: #{upblock_forward.8} parent=39 // pred_check_branch
        %1534 = sbr.rel (%p1532) target = $region44
      $region43: #{upblock_forward.8} parent=39 // pred_region
        %p1535 = scmp.lt.s32.totalorder %s20, 1
        %s1536 = scalar_select %p1535, %s20, 1
        %p1537 = scmp.lt.s32.totalorder %s21, 7
        %s1538 = scalar_select %p1537, %s21, 7
        %s1539 = smul.addr %s1538, 32
        %s1540 = smul.addr %s1536, 256
        %s1541 = sadd.s32 %s1539, %s1540
        %s1542 = smul.addr %s1541, 8
        %s1543 = scalar_lea.vmem %s3, %s1542
      $region44: #{upblock_forward.8} parent=39 // pred_fallthru
        _
    $region40: #{upblock_forward.8} parent=5 // pred_fallthru
      _
  $region6: #{upblock_forward.8} parent=0 // loop_footer
    %s13 = sadd.s32 1, %s9
  $region7: #{upblock_forward.8} parent=0 // loop_footer_branch
    %8 = sbr.rel target = $region3
  $region8: #{upblock_forward.8} parent=0 // loop_exit
    _

// kernel: upblock_forward.9
$region0: #{upblock_forward.9}
  #allocation0 [shape = 'u32[]', space=smem, size = 0x4, offset = 0x4, fixed_abs, tag = 'smem constant byte address 0x4 - core index']
  #allocation1 [shape = 'u32[144,128]{1,0:T(1,128)}', space=vmem, size = 0x12000, scoped, tag = 'internal scratch']
  %s0 = inlined_call_operand.vmem [shape: bf16[2,10,16,16,288], index: 0, kind: input, shape index: {}]
  %s1 = inlined_call_operand.vmem [shape: bf16[3,288,32], index: 1, kind: input, shape index: {}]
  %s2 = inlined_call_operand.vmem [shape: f32[1,32], index: 2, kind: input, shape index: {}]
  %s3 = inlined_call_operand.hbm [shape: f32[2,8,16,16,32], index: 3, kind: output, shape index: {}]
  %s4 = sld [smem:[#allocation0]]
  $region45: #{upblock_forward.9} parent=0
    _
  %s6 = ssub.s32 1, %s4
  %s7 = scalar_select 0, %s6, %s4
  $region1: #{upblock_forward.9} parent=0
    #allocation2 [shape = 'u8[262144]{0}', space=vmem, size = 0x40000, scoped, tag = 'output window, operand 0']
    #allocation3 [shape = 's32[2]{0}', space=sflag, size = 0x8, scoped, tag = 'scoped memory for upblock_forward.9']
    %8 = vsyncpa [#allocation3], 0
    %s9 = scalar_lea.sflag [#allocation3], 1
    %10 = vsyncpa %s9, 0
    loop: start=0, step=1, limit=18
    $region2: #{upblock_forward.9} parent=1 // loop_pre_header
      _
    $region3: #{upblock_forward.9} parent=1 // loop_header
      %s12 = sphi 0, %s16
      %p13 = scmp.ge.s32.totalorder %s12, 18
      %s19 = sphi 0, %s31
      %s20 = sphi 0, %s27
      %s21 = sphi 0, %s19
      %s22 = sphi 0, %s20
      %s23 = sphi 0, %s21
      %s24 = sphi 0, %s22
      %s34 = sphi 0, %s36
      %s37 = sphi 0, %s34
      %s38 = sphi 0, %s37
      %s54 = sphi 0, %s38
      %s58 = sphi 0, %s58
      %s60 = sphi 0, %s58
      %s61 = sphi 0, %s60
      %s75 = sphi 0, %s61
      %s79 = sphi 0, %s79
      %s81 = sphi 0, %s79
      %s82 = sphi 0, %s81
      %s96 = sphi 0, %s82
      %s104 = sphi 0, %s106
      %s107 = sphi 0, %s104
      %s108 = sphi 0, %s107
      %s124 = sphi 0, %s108
    $region4: #{upblock_forward.9} parent=1 // loop_header_branch
      %15 = sbr.rel (%p13) target = $region8
    $region5: #{upblock_forward.9} parent=1 // loop_body
      %s17 = ssub.s32 %s12, 1
      %s18 = ssub.s32 %s12, 2
      %s25 = sadd.s32 1, %s20
      %p26 = scmp.ge.s32.totalorder %s25, 8
      %s27 = scalar_select %p26, 0, %s25
      %s28 = sadd.s32 1, %s19
      %s29 = scalar_select %p26, %s28, %s19
      %p30 = scmp.ge.s32.totalorder %s29, 2
      %s31 = scalar_select %p30, 0, %s29
      %s32 = ssub.s32 %s19, %s31
      %p33 = scmp.eq.s32.totalorder %s32, 0
      %s35 = sadd.s32 %s34, 1
      %s36 = scalar_select %p33, %s34, %s35
      %p39 = pneg %p33
      %p40 = scmp.eq.s32.totalorder %s12, 15
      %p41 = por %p39, %p40
      %p42 = scmp.ne.s32.totalorder %s34, %s37
      %p43 = scmp.eq.s32.totalorder %s12, 0
      %p44 = por %p42, %p43
      %p45 = scmp.ne.s32.totalorder %s34, %s37
      %p46 = scmp.eq.s32.totalorder %s17, 15
      %p47 = por %p45, %p46
      %p48 = scmp.ne.s32.totalorder %s37, %s38
      %p49 = scmp.eq.s32.totalorder %s17, 0
      %p50 = por %p48, %p49
      %p51 = scmp.ne.s32.totalorder %s37, %s38
      %p52 = scmp.eq.s32.totalorder %s18, 15
      %p53 = por %p51, %p52
      %p55 = scmp.ne.s32.totalorder %s38, %s54
      %p56 = scmp.eq.s32.totalorder %s18, 0
      %p57 = por %p55, %p56
      %s59 = sadd.s32 %s58, 1
      %p62 = scmp.eq.s32.totalorder %s12, 15
      %p63 = scmp.ne.s32.totalorder %s58, %s60
      %p64 = scmp.eq.s32.totalorder %s12, 0
      %p65 = por %p63, %p64
      %p66 = scmp.ne.s32.totalorder %s58, %s60
      %p67 = scmp.eq.s32.totalorder %s17, 15
      %p68 = por %p66, %p67
      %p69 = scmp.ne.s32.totalorder %s60, %s61
      %p70 = scmp.eq.s32.totalorder %s17, 0
      %p71 = por %p69, %p70
      %p72 = scmp.ne.s32.totalorder %s60, %s61
      %p73 = scmp.eq.s32.totalorder %s18, 15
      %p74 = por %p72, %p73
      %p76 = scmp.ne.s32.totalorder %s61, %s75
      %p77 = scmp.eq.s32.totalorder %s18, 0
      %p78 = por %p76, %p77
      %s80 = sadd.s32 %s79, 1
      %p83 = scmp.eq.s32.totalorder %s12, 15
      %p84 = scmp.ne.s32.totalorder %s79, %s81
      %p85 = scmp.eq.s32.totalorder %s12, 0
      %p86 = por %p84, %p85
      %p87 = scmp.ne.s32.totalorder %s79, %s81
      %p88 = scmp.eq.s32.totalorder %s17, 15
      %p89 = por %p87, %p88
      %p90 = scmp.ne.s32.totalorder %s81, %s82
      %p91 = scmp.eq.s32.totalorder %s17, 0
      %p92 = por %p90, %p91
      %p93 = scmp.ne.s32.totalorder %s81, %s82
      %p94 = scmp.eq.s32.totalorder %s18, 15
      %p95 = por %p93, %p94
      %p97 = scmp.ne.s32.totalorder %s82, %s96
      %p98 = scmp.eq.s32.totalorder %s18, 0
      %p99 = por %p97, %p98
      %s100 = ssub.s32 %s19, %s31
      %s101 = ssub.s32 %s20, %s27
      %s102 = sor.u32 %s100, %s101
      %p103 = scmp.eq.s32.totalorder %s102, 0
      %s105 = sadd.s32 %s104, 1
      %s106 = scalar_select %p103, %s104, %s105
      %p109 = pneg %p103
      %p110 = scmp.eq.s32.totalorder %s12, 15
      %p111 = por %p109, %p110
      %p112 = scmp.ne.s32.totalorder %s104, %s107
      %p113 = scmp.eq.s32.totalorder %s12, 0
      %p114 = por %p112, %p113
      %p115 = scmp.ne.s32.totalorder %s104, %s107
      %p116 = scmp.eq.s32.totalorder %s17, 15
      %p117 = por %p115, %p116
      %p118 = scmp.ne.s32.totalorder %s107, %s108
      %p119 = scmp.eq.s32.totalorder %s17, 0
      %p120 = por %p118, %p119
      %p121 = scmp.ne.s32.totalorder %s107, %s108
      %p122 = scmp.eq.s32.totalorder %s18, 15
      %p123 = por %p121, %p122
      %p125 = scmp.ne.s32.totalorder %s108, %s124
      %p126 = scmp.eq.s32.totalorder %s18, 0
      %p127 = por %p125, %p126
      %p128 = scmp.le.s32.totalorder 1, %s12
      %p129 = scmp.lt.s32.totalorder %s12, 17
      %p130 = pnand %p128, %p129
      %p131 = pneg %p130
      // Predicated region
      $region9: #{upblock_forward.9} parent=5 // pred_check
        _
      $region10: #{upblock_forward.9} parent=5 // pred_check_branch
        %133 = sbr.rel (%p130) target = $region12
      $region11: #{upblock_forward.9} parent=5 // pred_region
        %s134 = ssub.s32 %s12, 1
        // Predicated region
        $region13: #{upblock_forward.9} parent=11 // pred_check
          %p135 = pneg %p71
        $region14: #{upblock_forward.9} parent=11 // pred_check_branch
          %137 = sbr.rel (%p135) target = $region16
        $region15: #{upblock_forward.9} parent=11 // pred_region
          _
        $region16: #{upblock_forward.9} parent=11 // pred_fallthru
          _
        // Predicated region
        $region17: #{upblock_forward.9} parent=11 // pred_check
          %p138 = pneg %p92
        $region18: #{upblock_forward.9} parent=11 // pred_check_branch
          %140 = sbr.rel (%p138) target = $region20
        $region19: #{upblock_forward.9} parent=11 // pred_region
          _
        $region20: #{upblock_forward.9} parent=11 // pred_fallthru
          _
      $region12: #{upblock_forward.9} parent=5 // pred_fallthru
        _
      %p141 = scmp.lt.s32.totalorder %s12, 16
      // Predicated region
      $region21: #{upblock_forward.9} parent=5 // pred_check
        %p142 = pneg %p141
      $region22: #{upblock_forward.9} parent=5 // pred_check_branch
        %144 = sbr.rel (%p142) target = $region24
      $region23: #{upblock_forward.9} parent=5 // pred_region
        // Predicated region
        $region25: #{upblock_forward.9} parent=23 // pred_check
          %p145 = pneg %p44
        $region26: #{upblock_forward.9} parent=23 // pred_check_branch
          %147 = sbr.rel (%p145) target = $region28
        $region27: #{upblock_forward.9} parent=23 // pred_region
          %p148 = scmp.lt.s32.totalorder %s19, 1
          %s149 = scalar_select %p148, %s19, 1
          %s150 = smul.addr %s149, 960
          %s151 = smul.addr %s150, 4
          %s152 = scalar_lea.vmem %s0, %s151
        $region28: #{upblock_forward.9} parent=23 // pred_fallthru
          _
      $region24: #{upblock_forward.9} parent=5 // pred_fallthru
        _
      %p153 = scmp.le.s32.totalorder 1, %s12
      %p154 = scmp.lt.s32.totalorder %s12, 17
      %p155 = pnand %p153, %p154
      %p156 = pneg %p155
      // Predicated region
      $region29: #{upblock_forward.9} parent=5 // pred_check
        _
      $region30: #{upblock_forward.9} parent=5 // pred_check_branch
        %158 = sbr.rel (%p155) target = $region32
      $region31: #{upblock_forward.9} parent=5 // pred_region
        %s159 = ssub.s32 %s12, 1
        %p160 = scmp.lt.s32.totalorder %s21, 1
        %s161 = scalar_select %p160, %s21, 1
        %s162 = smul.addr %s161, 960
        %s163 = smul.addr %s162, 4
        %s164 = scalar_lea.vmem %s0, %s163
        %p165 = pneg %p50
        %p166 = pneg %p47
        %p167 = pneg %p71
        %p168 = pneg %p68
        %p169 = pneg %p92
        %p170 = pneg %p89
        %p171 = pneg %p120
        %p172 = pneg %p117
        %s173 = sand.u32 %s107, 1
        %s174 = scalar_lea.sflag [#allocation3], %s173
        %s175 = sand.u32 %s107, 1
        %s176 = smul.addr %s175, 256
        %s177 = scalar_lea.vmem [#allocation2], %s176
        %p178 = scmp.lt.s32.totalorder %s21, 1
        %s179 = scalar_select %p178, %s21, 1
        %s180 = smul.addr %s179, 960
        %s181 = smul.addr %s180, 4
        %s182 = scalar_lea.vmem %s0, %s181
        %s184 = smul.u32 %s22, 96
        %s185 = smul.addr %s184, 4
        %s186 = scalar_lea.vmem %s182, %s185
        %v187 = vld [vmem:[%s186] sm:$0xff]
        %v188 = vld [vmem:[%s186 + $0x8] sm:$0xf]
        %v189 = vld [vmem:[%s186 + $0xc] sm:$0xff]
        %v190 = vld [vmem:[%s186 + $0x14] sm:$0xf]
        %v191 = vld [vmem:[%s186 + $0x18] sm:$0xff]
        %v192 = vld [vmem:[%s186 + $0x20] sm:$0xf]
        %v193 = vld [vmem:[%s186 + $0x24] sm:$0xff]
        %v194 = vld [vmem:[%s186 + $0x2c] sm:$0xf]
        %v195 = vld [vmem:[%s186 + $0x30] sm:$0xff]
        %v196 = vld [vmem:[%s186 + $0x38] sm:$0xf]
        %v197 = vld [vmem:[%s186 + $0x3c] sm:$0xff]
        %v198 = vld [vmem:[%s186 + $0x44] sm:$0xf]
        %v199 = vld [vmem:[%s186 + $0x48] sm:$0xff]
        %v200 = vld [vmem:[%s186 + $0x50] sm:$0xf]
        %v201 = vld [vmem:[%s186 + $0x54] sm:$0xff]
        %v202 = vld [vmem:[%s186 + $0x5c] sm:$0xf]
        %v203 = vld [vmem:[%s186 + $0x60] sm:$0xff]
        %v204 = vld [vmem:[%s186 + $0x68] sm:$0xf]
        %v205 = vld [vmem:[%s186 + $0x6c] sm:$0xff]
        %v206 = vld [vmem:[%s186 + $0x74] sm:$0xf]
        %v207 = vld [vmem:[%s186 + $0x78] sm:$0xff]
        %v208 = vld [vmem:[%s186 + $0x80] sm:$0xf]
        %v209 = vld [vmem:[%s186 + $0x84] sm:$0xff]
        %v210 = vld [vmem:[%s186 + $0x8c] sm:$0xf]
        %v211 = vld [vmem:[%s186 + $0x90] sm:$0xff]
        %v212 = vld [vmem:[%s186 + $0x98] sm:$0xf]
        %v213 = vld [vmem:[%s186 + $0x9c] sm:$0xff]
        %v214 = vld [vmem:[%s186 + $0xa4] sm:$0xf]
        %v215 = vld [vmem:[%s186 + $0xa8] sm:$0xff]
        %v216 = vld [vmem:[%s186 + $0xb0] sm:$0xf]
        %v217 = vld [vmem:[%s186 + $0xb4] sm:$0xff]
        %v218 = vld [vmem:[%s186 + $0xbc] sm:$0xf]
        %v219 = vld [vmem:[%s186 + $0xc0] sm:$0xff]
        %v220 = vld [vmem:[%s186 + $0xc8] sm:$0xf]
        %v221 = vld [vmem:[%s186 + $0xcc] sm:$0xff]
        %v222 = vld [vmem:[%s186 + $0xd4] sm:$0xf]
        %v223 = vld [vmem:[%s186 + $0xd8] sm:$0xff]
        %v224 = vld [vmem:[%s186 + $0xe0] sm:$0xf]
        %v225 = vld [vmem:[%s186 + $0xe4] sm:$0xff]
        %v226 = vld [vmem:[%s186 + $0xec] sm:$0xf]
        %v227 = vld [vmem:[%s186 + $0xf0] sm:$0xff]
        %v228 = vld [vmem:[%s186 + $0xf8] sm:$0xf]
        %v229 = vld [vmem:[%s186 + $0xfc] sm:$0xff]
        %v230 = vld [vmem:[%s186 + $0x104] sm:$0xf]
        %v231 = vld [vmem:[%s186 + $0x108] sm:$0xff]
        %v232 = vld [vmem:[%s186 + $0x110] sm:$0xf]
        %v233 = vld [vmem:[%s186 + $0x114] sm:$0xff]
        %v234 = vld [vmem:[%s186 + $0x11c] sm:$0xf]
        %v235 = vld [vmem:[%s186 + $0x120] sm:$0xff]
        %v236 = vld [vmem:[%s186 + $0x128] sm:$0xf]
        %v237 = vld [vmem:[%s186 + $0x12c] sm:$0xff]
        %v238 = vld [vmem:[%s186 + $0x134] sm:$0xf]
        %v239 = vld [vmem:[%s186 + $0x138] sm:$0xff]
        %v240 = vld [vmem:[%s186 + $0x140] sm:$0xf]
        %v241 = vld [vmem:[%s186 + $0x144] sm:$0xff]
        %v242 = vld [vmem:[%s186 + $0x14c] sm:$0xf]
        %v243 = vld [vmem:[%s186 + $0x150] sm:$0xff]
        %v244 = vld [vmem:[%s186 + $0x158] sm:$0xf]
        %v245 = vld [vmem:[%s186 + $0x15c] sm:$0xff]
        %v246 = vld [vmem:[%s186 + $0x164] sm:$0xf]
        %v247 = vld [vmem:[%s186 + $0x168] sm:$0xff]
        %v248 = vld [vmem:[%s186 + $0x170] sm:$0xf]
        %v249 = vld [vmem:[%s186 + $0x174] sm:$0xff]
        %v250 = vld [vmem:[%s186 + $0x17c] sm:$0xf]
        %v251 = vld [vmem:[%s1] sm:$0xf]
        %v252 = vld [vmem:[%s1 + $0x4] sm:$0xf]
        %v253 = vld [vmem:[%s1 + $0x8] sm:$0xf]
        %v254 = vld [vmem:[%s1 + $0xc] sm:$0xf]
        %v255 = vld [vmem:[%s1 + $0x10] sm:$0xf]
        %v256 = vld [vmem:[%s1 + $0x14] sm:$0xf]
        %v257 = vld [vmem:[%s1 + $0x18] sm:$0xf]
        %v258 = vld [vmem:[%s1 + $0x1c] sm:$0xf]
        %v259 = vld [vmem:[%s1 + $0x20] sm:$0xf]
        %v260 = vld [vmem:[%s1 + $0x24] sm:$0xf]
        %v261 = vld [vmem:[%s1 + $0x28] sm:$0xf]
        %v262 = vld [vmem:[%s1 + $0x2c] sm:$0xf]
        %v263 = vld [vmem:[%s1 + $0x30] sm:$0xf]
        %v264 = vld [vmem:[%s1 + $0x34] sm:$0xf]
        %v265 = vld [vmem:[%s1 + $0x38] sm:$0xf]
        %v266 = vld [vmem:[%s1 + $0x3c] sm:$0xf]
        %v267 = vld [vmem:[%s1 + $0x40] sm:$0xf]
        %v268 = vld [vmem:[%s1 + $0x44] sm:$0xf]
        %v269 = vld [vmem:[%s1 + $0x48] sm:$0xf]
        %v270 = vld [vmem:[%s1 + $0x4c] sm:$0xf]
        %v271 = vld [vmem:[%s1 + $0x50] sm:$0xf]
        %v272 = vld [vmem:[%s1 + $0x54] sm:$0xf]
        %v273 = vld [vmem:[%s1 + $0x58] sm:$0xf]
        %v274 = vld [vmem:[%s1 + $0x5c] sm:$0xf]
        %v275 = vld [vmem:[%s1 + $0x60] sm:$0xf]
        %v276 = vld [vmem:[%s1 + $0x64] sm:$0xf]
        %v277 = vld [vmem:[%s1 + $0x68] sm:$0xf]
        %v278 = vld [vmem:[%s1 + $0x6c] sm:$0xf]
        %v279 = vld [vmem:[%s1 + $0x70] sm:$0xf]
        %v280 = vld [vmem:[%s1 + $0x74] sm:$0xf]
        %v281 = vld [vmem:[%s1 + $0x78] sm:$0xf]
        %v282 = vld [vmem:[%s1 + $0x7c] sm:$0xf]
        %v283 = vld [vmem:[%s1 + $0x80] sm:$0xf]
        %v284 = vld [vmem:[%s1 + $0x84] sm:$0xf]
        %v285 = vld [vmem:[%s1 + $0x88] sm:$0xf]
        %v286 = vld [vmem:[%s1 + $0x8c] sm:$0xf]
        %s287 = sadd.s32 %s22, 1
        %s288 = smul.u32 %s287, 96
        %s289 = smul.addr %s288, 4
        %s290 = scalar_lea.vmem %s182, %s289
        %v291 = vld [vmem:[%s290] sm:$0xff]
        %v292 = vld [vmem:[%s290 + $0x8] sm:$0xf]
        %v293 = vld [vmem:[%s290 + $0xc] sm:$0xff]
        %v294 = vld [vmem:[%s290 + $0x14] sm:$0xf]
        %v295 = vld [vmem:[%s290 + $0x18] sm:$0xff]
        %v296 = vld [vmem:[%s290 + $0x20] sm:$0xf]
        %v297 = vld [vmem:[%s290 + $0x24] sm:$0xff]
        %v298 = vld [vmem:[%s290 + $0x2c] sm:$0xf]
        %v299 = vld [vmem:[%s290 + $0x30] sm:$0xff]
        %v300 = vld [vmem:[%s290 + $0x38] sm:$0xf]
        %v301 = vld [vmem:[%s290 + $0x3c] sm:$0xff]
        %v302 = vld [vmem:[%s290 + $0x44] sm:$0xf]
        %v303 = vld [vmem:[%s290 + $0x48] sm:$0xff]
        %v304 = vld [vmem:[%s290 + $0x50] sm:$0xf]
        %v305 = vld [vmem:[%s290 + $0x54] sm:$0xff]
        %v306 = vld [vmem:[%s290 + $0x5c] sm:$0xf]
        %v307 = vld [vmem:[%s290 + $0x60] sm:$0xff]
        %v308 = vld [vmem:[%s290 + $0x68] sm:$0xf]
        %v309 = vld [vmem:[%s290 + $0x6c] sm:$0xff]
        %v310 = vld [vmem:[%s290 + $0x74] sm:$0xf]
        %v311 = vld [vmem:[%s290 + $0x78] sm:$0xff]
        %v312 = vld [vmem:[%s290 + $0x80] sm:$0xf]
        %v313 = vld [vmem:[%s290 + $0x84] sm:$0xff]
        %v314 = vld [vmem:[%s290 + $0x8c] sm:$0xf]
        %v315 = vld [vmem:[%s290 + $0x90] sm:$0xff]
        %v316 = vld [vmem:[%s290 + $0x98] sm:$0xf]
        %v317 = vld [vmem:[%s290 + $0x9c] sm:$0xff]
        %v318 = vld [vmem:[%s290 + $0xa4] sm:$0xf]
        %v319 = vld [vmem:[%s290 + $0xa8] sm:$0xff]
        %v320 = vld [vmem:[%s290 + $0xb0] sm:$0xf]
        %v321 = vld [vmem:[%s290 + $0xb4] sm:$0xff]
        %v322 = vld [vmem:[%s290 + $0xbc] sm:$0xf]
        %v323 = vld [vmem:[%s290 + $0xc0] sm:$0xff]
        %v324 = vld [vmem:[%s290 + $0xc8] sm:$0xf]
        %v325 = vld [vmem:[%s290 + $0xcc] sm:$0xff]
        %v326 = vld [vmem:[%s290 + $0xd4] sm:$0xf]
        %v327 = vld [vmem:[%s290 + $0xd8] sm:$0xff]
        %v328 = vld [vmem:[%s290 + $0xe0] sm:$0xf]
        %v329 = vld [vmem:[%s290 + $0xe4] sm:$0xff]
        %v330 = vld [vmem:[%s290 + $0xec] sm:$0xf]
        %v331 = vld [vmem:[%s290 + $0xf0] sm:$0xff]
        %v332 = vld [vmem:[%s290 + $0xf8] sm:$0xf]
        %v333 = vld [vmem:[%s290 + $0xfc] sm:$0xff]
        %v334 = vld [vmem:[%s290 + $0x104] sm:$0xf]
        %v335 = vld [vmem:[%s290 + $0x108] sm:$0xff]
        %v336 = vld [vmem:[%s290 + $0x110] sm:$0xf]
        %v337 = vld [vmem:[%s290 + $0x114] sm:$0xff]
        %v338 = vld [vmem:[%s290 + $0x11c] sm:$0xf]
        %v339 = vld [vmem:[%s290 + $0x120] sm:$0xff]
        %v340 = vld [vmem:[%s290 + $0x128] sm:$0xf]
        %v341 = vld [vmem:[%s290 + $0x12c] sm:$0xff]
        %v342 = vld [vmem:[%s290 + $0x134] sm:$0xf]
        %v343 = vld [vmem:[%s290 + $0x138] sm:$0xff]
        %v344 = vld [vmem:[%s290 + $0x140] sm:$0xf]
        %v345 = vld [vmem:[%s290 + $0x144] sm:$0xff]
        %v346 = vld [vmem:[%s290 + $0x14c] sm:$0xf]
        %v347 = vld [vmem:[%s290 + $0x150] sm:$0xff]
        %v348 = vld [vmem:[%s290 + $0x158] sm:$0xf]
        %v349 = vld [vmem:[%s290 + $0x15c] sm:$0xff]
        %v350 = vld [vmem:[%s290 + $0x164] sm:$0xf]
        %v351 = vld [vmem:[%s290 + $0x168] sm:$0xff]
        %v352 = vld [vmem:[%s290 + $0x170] sm:$0xf]
        %v353 = vld [vmem:[%s290 + $0x174] sm:$0xff]
        %v354 = vld [vmem:[%s290 + $0x17c] sm:$0xf]
        %s355 = scalar_lea.vmem %s1, 144
        %v356 = vld [vmem:[%s355] sm:$0xf]
        %v357 = vld [vmem:[%s355 + $0x4] sm:$0xf]
        %v358 = vld [vmem:[%s355 + $0x8] sm:$0xf]
        %v359 = vld [vmem:[%s355 + $0xc] sm:$0xf]
        %v360 = vld [vmem:[%s355 + $0x10] sm:$0xf]
        %v361 = vld [vmem:[%s355 + $0x14] sm:$0xf]
        %v362 = vld [vmem:[%s355 + $0x18] sm:$0xf]
        %v363 = vld [vmem:[%s355 + $0x1c] sm:$0xf]
        %v364 = vld [vmem:[%s355 + $0x20] sm:$0xf]
        %v365 = vld [vmem:[%s355 + $0x24] sm:$0xf]
        %v366 = vld [vmem:[%s355 + $0x28] sm:$0xf]
        %v367 = vld [vmem:[%s355 + $0x2c] sm:$0xf]
        %v368 = vld [vmem:[%s355 + $0x30] sm:$0xf]
        %v369 = vld [vmem:[%s355 + $0x34] sm:$0xf]
        %v370 = vld [vmem:[%s355 + $0x38] sm:$0xf]
        %v371 = vld [vmem:[%s355 + $0x3c] sm:$0xf]
        %v372 = vld [vmem:[%s355 + $0x40] sm:$0xf]
        %v373 = vld [vmem:[%s355 + $0x44] sm:$0xf]
        %v374 = vld [vmem:[%s355 + $0x48] sm:$0xf]
        %v375 = vld [vmem:[%s355 + $0x4c] sm:$0xf]
        %v376 = vld [vmem:[%s355 + $0x50] sm:$0xf]
        %v377 = vld [vmem:[%s355 + $0x54] sm:$0xf]
        %v378 = vld [vmem:[%s355 + $0x58] sm:$0xf]
        %v379 = vld [vmem:[%s355 + $0x5c] sm:$0xf]
        %v380 = vld [vmem:[%s355 + $0x60] sm:$0xf]
        %v381 = vld [vmem:[%s355 + $0x64] sm:$0xf]
        %v382 = vld [vmem:[%s355 + $0x68] sm:$0xf]
        %v383 = vld [vmem:[%s355 + $0x6c] sm:$0xf]
        %v384 = vld [vmem:[%s355 + $0x70] sm:$0xf]
        %v385 = vld [vmem:[%s355 + $0x74] sm:$0xf]
        %v386 = vld [vmem:[%s355 + $0x78] sm:$0xf]
        %v387 = vld [vmem:[%s355 + $0x7c] sm:$0xf]
        %v388 = vld [vmem:[%s355 + $0x80] sm:$0xf]
        %v389 = vld [vmem:[%s355 + $0x84] sm:$0xf]
        %v390 = vld [vmem:[%s355 + $0x88] sm:$0xf]
        %v391 = vld [vmem:[%s355 + $0x8c] sm:$0xf]
        %v456 = vunpack.c.l.b16 %v291
        %v457 = vunpack.c.h.b16 %v291
        %v458 = vunpack.c.l.b16 %v292
        %v459 = vunpack.c.l.b16 %v293
        %v460 = vunpack.c.h.b16 %v293
        %v461 = vunpack.c.l.b16 %v294
        %v462 = vunpack.c.l.b16 %v295
        %v463 = vunpack.c.h.b16 %v295
        %v464 = vunpack.c.l.b16 %v296
        %v465 = vunpack.c.l.b16 %v297
        %v466 = vunpack.c.h.b16 %v297
        %v467 = vunpack.c.l.b16 %v298
        %v468 = vunpack.c.l.b16 %v299
        %v469 = vunpack.c.h.b16 %v299
        %v470 = vunpack.c.l.b16 %v300
        %v471 = vunpack.c.l.b16 %v301
        %v472 = vunpack.c.h.b16 %v301
        %v473 = vunpack.c.l.b16 %v302
        %v474 = vunpack.c.l.b16 %v303
        %v475 = vunpack.c.h.b16 %v303
        %v476 = vunpack.c.l.b16 %v304
        %v477 = vunpack.c.l.b16 %v305
        %v478 = vunpack.c.h.b16 %v305
        %v479 = vunpack.c.l.b16 %v306
        %v480 = vunpack.c.l.b16 %v307
        %v481 = vunpack.c.h.b16 %v307
        %v482 = vunpack.c.l.b16 %v308
        %v483 = vunpack.c.l.b16 %v309
        %v484 = vunpack.c.h.b16 %v309
        %v485 = vunpack.c.l.b16 %v310
        %v486 = vunpack.c.l.b16 %v311
        %v487 = vunpack.c.h.b16 %v311
        %v488 = vunpack.c.l.b16 %v312
        %v489 = vunpack.c.l.b16 %v313
        %v490 = vunpack.c.h.b16 %v313
        %v491 = vunpack.c.l.b16 %v314
        %v492 = vunpack.c.l.b16 %v315
        %v493 = vunpack.c.h.b16 %v315
        %v494 = vunpack.c.l.b16 %v316
        %v495 = vunpack.c.l.b16 %v317
        %v496 = vunpack.c.h.b16 %v317
        %v497 = vunpack.c.l.b16 %v318
        %v498 = vunpack.c.l.b16 %v319
        %v499 = vunpack.c.h.b16 %v319
        %v500 = vunpack.c.l.b16 %v320
        %v501 = vunpack.c.l.b16 %v321
        %v502 = vunpack.c.h.b16 %v321
        %v503 = vunpack.c.l.b16 %v322
        %v504 = vunpack.c.l.b16 %v323
        %v505 = vunpack.c.h.b16 %v323
        %v506 = vunpack.c.l.b16 %v324
        %v507 = vunpack.c.l.b16 %v325
        %v508 = vunpack.c.h.b16 %v325
        %v509 = vunpack.c.l.b16 %v326
        %v510 = vunpack.c.l.b16 %v327
        %v511 = vunpack.c.h.b16 %v327
        %v512 = vunpack.c.l.b16 %v328
        %v513 = vunpack.c.l.b16 %v329
        %v514 = vunpack.c.h.b16 %v329
        %v515 = vunpack.c.l.b16 %v330
        %v516 = vunpack.c.l.b16 %v331
        %v517 = vunpack.c.h.b16 %v331
        %v518 = vunpack.c.l.b16 %v332
        %v519 = vunpack.c.l.b16 %v333
        %v520 = vunpack.c.h.b16 %v333
        %v521 = vunpack.c.l.b16 %v334
        %v522 = vunpack.c.l.b16 %v335
        %v523 = vunpack.c.h.b16 %v335
        %v524 = vunpack.c.l.b16 %v336
        %v525 = vunpack.c.l.b16 %v337
        %v526 = vunpack.c.h.b16 %v337
        %v527 = vunpack.c.l.b16 %v338
        %v528 = vunpack.c.l.b16 %v339
        %v529 = vunpack.c.h.b16 %v339
        %v530 = vunpack.c.l.b16 %v340
        %v531 = vunpack.c.l.b16 %v341
        %v532 = vunpack.c.h.b16 %v341
        %v533 = vunpack.c.l.b16 %v342
        %v534 = vunpack.c.l.b16 %v343
        %v535 = vunpack.c.h.b16 %v343
        %v536 = vunpack.c.l.b16 %v344
        %v537 = vunpack.c.l.b16 %v345
        %v538 = vunpack.c.h.b16 %v345
        %v539 = vunpack.c.l.b16 %v346
        %v540 = vunpack.c.l.b16 %v347
        %v541 = vunpack.c.h.b16 %v347
        %v542 = vunpack.c.l.b16 %v348
        %v543 = vunpack.c.l.b16 %v349
        %v544 = vunpack.c.h.b16 %v349
        %v545 = vunpack.c.l.b16 %v350
        %v546 = vunpack.c.l.b16 %v351
        %v547 = vunpack.c.h.b16 %v351
        %v548 = vunpack.c.l.b16 %v352
        %v549 = vunpack.c.l.b16 %v353
        %v550 = vunpack.c.h.b16 %v353
        %v551 = vunpack.c.l.b16 %v354
        %v552 = vpack.c.b16 %v459, %v456
        %v553 = vpack.c.b16 %v460, %v457
        %v554 = vpack.c.b16 %v461, %v458
        %v555 = vpack.c.b16 %v465, %v462
        %v556 = vpack.c.b16 %v466, %v463
        %v557 = vpack.c.b16 %v467, %v464
        %v558 = vpack.c.b16 %v471, %v468
        %v559 = vpack.c.b16 %v472, %v469
        %v560 = vpack.c.b16 %v473, %v470
        %v561 = vpack.c.b16 %v477, %v474
        %v562 = vpack.c.b16 %v478, %v475
        %v563 = vpack.c.b16 %v479, %v476
        %v564 = vpack.c.b16 %v483, %v480
        %v565 = vpack.c.b16 %v484, %v481
        %v566 = vpack.c.b16 %v485, %v482
        %v567 = vpack.c.b16 %v489, %v486
        %v568 = vpack.c.b16 %v490, %v487
        %v569 = vpack.c.b16 %v491, %v488
        %v570 = vpack.c.b16 %v495, %v492
        %v571 = vpack.c.b16 %v496, %v493
        %v572 = vpack.c.b16 %v497, %v494
        %v573 = vpack.c.b16 %v501, %v498
        %v574 = vpack.c.b16 %v502, %v499
        %v575 = vpack.c.b16 %v503, %v500
        %v576 = vpack.c.b16 %v507, %v504
        %v577 = vpack.c.b16 %v508, %v505
        %v578 = vpack.c.b16 %v509, %v506
        %v579 = vpack.c.b16 %v513, %v510
        %v580 = vpack.c.b16 %v514, %v511
        %v581 = vpack.c.b16 %v515, %v512
        %v582 = vpack.c.b16 %v519, %v516
        %v583 = vpack.c.b16 %v520, %v517
        %v584 = vpack.c.b16 %v521, %v518
        %v585 = vpack.c.b16 %v525, %v522
        %v586 = vpack.c.b16 %v526, %v523
        %v587 = vpack.c.b16 %v527, %v524
        %v588 = vpack.c.b16 %v531, %v528
        %v589 = vpack.c.b16 %v532, %v529
        %v590 = vpack.c.b16 %v533, %v530
        %v591 = vpack.c.b16 %v537, %v534
        %v592 = vpack.c.b16 %v538, %v535
        %v593 = vpack.c.b16 %v539, %v536
        %v594 = vpack.c.b16 %v543, %v540
        %v595 = vpack.c.b16 %v544, %v541
        %v596 = vpack.c.b16 %v545, %v542
        %v597 = vpack.c.b16 %v549, %v546
        %v598 = vpack.c.b16 %v550, %v547
        %v599 = vpack.c.b16 %v551, %v548
        %v668 = vunpack.c.l.b16 %v356
        %v669 = vunpack.c.l.b16 %v357
        %v670 = vunpack.c.l.b16 %v358
        %v671 = vunpack.c.l.b16 %v359
        %v672 = vunpack.c.l.b16 %v360
        %v673 = vunpack.c.l.b16 %v361
        %v674 = vunpack.c.l.b16 %v362
        %v675 = vunpack.c.l.b16 %v363
        %v676 = vunpack.c.l.b16 %v364
        %v677 = vunpack.c.l.b16 %v365
        %v678 = vunpack.c.l.b16 %v366
        %v679 = vunpack.c.l.b16 %v367
        %v680 = vunpack.c.l.b16 %v368
        %v681 = vunpack.c.l.b16 %v369
        %v682 = vunpack.c.l.b16 %v370
        %v683 = vunpack.c.l.b16 %v371
        %v684 = vunpack.c.l.b16 %v372
        %v685 = vunpack.c.l.b16 %v373
        %v686 = vunpack.c.l.b16 %v374
        %v687 = vunpack.c.l.b16 %v375
        %v688 = vunpack.c.l.b16 %v376
        %v689 = vunpack.c.l.b16 %v377
        %v690 = vunpack.c.l.b16 %v378
        %v691 = vunpack.c.l.b16 %v379
        %v692 = vunpack.c.l.b16 %v380
        %v693 = vunpack.c.l.b16 %v381
        %v694 = vunpack.c.l.b16 %v382
        %v695 = vunpack.c.l.b16 %v383
        %v696 = vunpack.c.l.b16 %v384
        %v697 = vunpack.c.l.b16 %v385
        %v698 = vunpack.c.l.b16 %v386
        %v699 = vunpack.c.l.b16 %v387
        %v700 = vunpack.c.l.b16 %v388
        %v701 = vunpack.c.l.b16 %v389
        %v702 = vunpack.c.l.b16 %v390
        %v703 = vunpack.c.l.b16 %v391
        %v704 = vpack.c.b16 %v669, %v668
        %v705 = vpack.c.b16 %v671, %v670
        %v706 = vpack.c.b16 %v673, %v672
        %v707 = vpack.c.b16 %v675, %v674
        %v708 = vpack.c.b16 %v677, %v676
        %v709 = vpack.c.b16 %v679, %v678
        %v710 = vpack.c.b16 %v681, %v680
        %v711 = vpack.c.b16 %v683, %v682
        %v712 = vpack.c.b16 %v685, %v684
        %v713 = vpack.c.b16 %v687, %v686
        %v714 = vpack.c.b16 %v689, %v688
        %v715 = vpack.c.b16 %v691, %v690
        %v716 = vpack.c.b16 %v693, %v692
        %v717 = vpack.c.b16 %v695, %v694
        %v718 = vpack.c.b16 %v697, %v696
        %v719 = vpack.c.b16 %v699, %v698
        %v720 = vpack.c.b16 %v701, %v700
        %v721 = vpack.c.b16 %v703, %v702
        %vm740 = vcmask 261120
        %v742 = vsel %vm740, %v554, 0
        %v745 = vsel %vm740, %v557, 0
        %v748 = vsel %vm740, %v560, 0
        %v751 = vsel %vm740, %v563, 0
        %v754 = vsel %vm740, %v566, 0
        %v757 = vsel %vm740, %v569, 0
        %v760 = vsel %vm740, %v572, 0
        %v763 = vsel %vm740, %v575, 0
        %v766 = vsel %vm740, %v578, 0
        %v769 = vsel %vm740, %v581, 0
        %v772 = vsel %vm740, %v584, 0
        %v775 = vsel %vm740, %v587, 0
        %v778 = vsel %vm740, %v590, 0
        %v781 = vsel %vm740, %v593, 0
        %v784 = vsel %vm740, %v596, 0
        %v787 = vsel %vm740, %v599, 0
        %789 = vmatprep.subr.bf16.mxu0 0
        %790 = vmatpush1.bf16.msra.mxu0 %v711
        %791 = vmatprep.subr.bf16.mxu0 0
        %792 = vmatpush1.bf16.msra.mxu0 %v710
        %793 = vmatprep.subr.bf16.mxu0 0
        %794 = vmatpush1.bf16.msra.mxu0 %v709
        %795 = vmatprep.subr.bf16.mxu0 0
        %796 = vmatpush1.bf16.msra.mxu0 %v708
        %797 = vmatprep.subr.bf16.mxu0 0
        %798 = vmatpush1.bf16.msra.mxu0 %v707
        %799 = vmatprep.subr.bf16.mxu0 0
        %800 = vmatpush1.bf16.msra.mxu0 %v706
        %801 = vmatprep.subr.bf16.mxu0 0
        %802 = vmatpush1.bf16.msra.mxu0 %v705
        %803 = vmatprep.subr.bf16.mxu0 0
        %804 = vmatpush1.bf16.msra.mxu0 %v704
        %805 = vmatprep.subr.bf16.mxu0 0
        %806 = vmatpush2.bf16.msra.mxu0 %v719
        %807 = vmatprep.subr.bf16.mxu0 0
        %808 = vmatpush2.bf16.msra.mxu0 %v718
        %809 = vmatprep.subr.bf16.mxu0 0
        %810 = vmatpush2.bf16.msra.mxu0 %v717
        %811 = vmatprep.subr.bf16.mxu0 0
        %812 = vmatpush2.bf16.msra.mxu0 %v716
        %813 = vmatprep.subr.bf16.mxu0 0
        %814 = vmatpush2.bf16.msra.mxu0 %v715
        %815 = vmatprep.subr.bf16.mxu0 0
        %816 = vmatpush2.bf16.msra.mxu0 %v714
        %817 = vmatprep.subr.bf16.mxu0 0
        %818 = vmatpush2.bf16.msra.mxu0 %v713
        %819 = vmatprep.subr.bf16.mxu0 0
        %820 = vmatpush2.bf16.msra.mxu0 %v712
        %821 = vmatprep.mubr.bf16.mxu0 %v553
        %822 = vmatmul.mubr.bf16.gmra.mxu0 %v552
        %v823 = vpop.f32.mrf.mxu0
        %v824 = vadd.f32 0.0, %v823
        %v825 = vpop.f32.mrf.mxu0
        %v826 = vpop.f32.mrf.mxu0
        %v827 = vadd.f32 0.0, %v826
        %v828 = vpop.f32.mrf.mxu0
        %829 = vmatprep.mubr.bf16.mxu0 %v556
        %830 = vmatmul.mubr.bf16.gmra.mxu0 %v555
        %v831 = vpop.f32.mrf.mxu0
        %v832 = vadd.f32 0.0, %v831
        %v833 = vpop.f32.mrf.mxu0
        %v834 = vpop.f32.mrf.mxu0
        %v835 = vadd.f32 0.0, %v834
        %v836 = vpop.f32.mrf.mxu0
        %837 = vmatprep.mubr.bf16.mxu0 %v559
        %838 = vmatmul.mubr.bf16.gmra.mxu0 %v558
        %v839 = vpop.f32.mrf.mxu0
        %v840 = vadd.f32 0.0, %v839
        %v841 = vpop.f32.mrf.mxu0
        %v842 = vpop.f32.mrf.mxu0
        %v843 = vadd.f32 0.0, %v842
        %v844 = vpop.f32.mrf.mxu0
        %845 = vmatprep.mubr.bf16.mxu0 %v562
        %846 = vmatmul.mubr.bf16.gmra.mxu0 %v561
        %v847 = vpop.f32.mrf.mxu0
        %v848 = vadd.f32 0.0, %v847
        %v849 = vpop.f32.mrf.mxu0
        %v850 = vpop.f32.mrf.mxu0
        %v851 = vadd.f32 0.0, %v850
        %v852 = vpop.f32.mrf.mxu0
        %853 = vmatprep.mubr.bf16.mxu0 %v565
        %854 = vmatmul.mubr.bf16.gmra.mxu0 %v564
        %v855 = vpop.f32.mrf.mxu0
        %v856 = vadd.f32 0.0, %v855
        %v857 = vpop.f32.mrf.mxu0
        %v858 = vpop.f32.mrf.mxu0
        %v859 = vadd.f32 0.0, %v858
        %v860 = vpop.f32.mrf.mxu0
        %861 = vmatprep.mubr.bf16.mxu0 %v568
        %862 = vmatmul.mubr.bf16.gmra.mxu0 %v567
        %v863 = vpop.f32.mrf.mxu0
        %v864 = vadd.f32 0.0, %v863
        %v865 = vpop.f32.mrf.mxu0
        %v866 = vpop.f32.mrf.mxu0
        %v867 = vadd.f32 0.0, %v866
        %v868 = vpop.f32.mrf.mxu0
        %869 = vmatprep.mubr.bf16.mxu0 %v571
        %870 = vmatmul.mubr.bf16.gmra.mxu0 %v570
        %v871 = vpop.f32.mrf.mxu0
        %v872 = vadd.f32 0.0, %v871
        %v873 = vpop.f32.mrf.mxu0
        %v874 = vpop.f32.mrf.mxu0
        %v875 = vadd.f32 0.0, %v874
        %v876 = vpop.f32.mrf.mxu0
        %877 = vmatprep.mubr.bf16.mxu0 %v574
        %878 = vmatmul.mubr.bf16.gmra.mxu0 %v573
        %v879 = vpop.f32.mrf.mxu0
        %v880 = vadd.f32 0.0, %v879
        %v881 = vpop.f32.mrf.mxu0
        %v882 = vpop.f32.mrf.mxu0
        %v883 = vadd.f32 0.0, %v882
        %v884 = vpop.f32.mrf.mxu0
        %885 = vmatprep.mubr.bf16.mxu0 %v577
        %886 = vmatmul.mubr.bf16.gmra.mxu0 %v576
        %v887 = vpop.f32.mrf.mxu0
        %v888 = vadd.f32 0.0, %v887
        %v889 = vpop.f32.mrf.mxu0
        %v890 = vpop.f32.mrf.mxu0
        %v891 = vadd.f32 0.0, %v890
        %v892 = vpop.f32.mrf.mxu0
        %893 = vmatprep.mubr.bf16.mxu0 %v580
        %894 = vmatmul.mubr.bf16.gmra.mxu0 %v579
        %v895 = vpop.f32.mrf.mxu0
        %v896 = vadd.f32 0.0, %v895
        %v897 = vpop.f32.mrf.mxu0
        %v898 = vpop.f32.mrf.mxu0
        %v899 = vadd.f32 0.0, %v898
        %v900 = vpop.f32.mrf.mxu0
        %901 = vmatprep.mubr.bf16.mxu0 %v583
        %902 = vmatmul.mubr.bf16.gmra.mxu0 %v582
        %v903 = vpop.f32.mrf.mxu0
        %v904 = vadd.f32 0.0, %v903
        %v905 = vpop.f32.mrf.mxu0
        %v906 = vpop.f32.mrf.mxu0
        %v907 = vadd.f32 0.0, %v906
        %v908 = vpop.f32.mrf.mxu0
        %909 = vmatprep.mubr.bf16.mxu0 %v586
        %910 = vmatmul.mubr.bf16.gmra.mxu0 %v585
        %v911 = vpop.f32.mrf.mxu0
        %v912 = vadd.f32 0.0, %v911
        %v913 = vpop.f32.mrf.mxu0
        %v914 = vpop.f32.mrf.mxu0
        %v915 = vadd.f32 0.0, %v914
        %v916 = vpop.f32.mrf.mxu0
        %917 = vmatprep.mubr.bf16.mxu0 %v589
        %918 = vmatmul.mubr.bf16.gmra.mxu0 %v588
        %v919 = vpop.f32.mrf.mxu0
        %v920 = vadd.f32 0.0, %v919
        %v921 = vpop.f32.mrf.mxu0
        %v922 = vpop.f32.mrf.mxu0
        %v923 = vadd.f32 0.0, %v922
        %v924 = vpop.f32.mrf.mxu0
        %925 = vmatprep.mubr.bf16.mxu0 %v592
        %926 = vmatmul.mubr.bf16.gmra.mxu0 %v591
        %v927 = vpop.f32.mrf.mxu0
        %v928 = vadd.f32 0.0, %v927
        %v929 = vpop.f32.mrf.mxu0
        %v930 = vpop.f32.mrf.mxu0
        %v931 = vadd.f32 0.0, %v930
        %v932 = vpop.f32.mrf.mxu0
        %933 = vmatprep.mubr.bf16.mxu0 %v595
        %934 = vmatmul.mubr.bf16.gmra.mxu0 %v594
        %v935 = vpop.f32.mrf.mxu0
        %v936 = vadd.f32 0.0, %v935
        %v937 = vpop.f32.mrf.mxu0
        %v938 = vpop.f32.mrf.mxu0
        %v939 = vadd.f32 0.0, %v938
        %v940 = vpop.f32.mrf.mxu0
        %941 = vmatprep.mubr.bf16.mxu0 %v598
        %942 = vmatmul.mubr.bf16.gmra.mxu0 %v597
        %v943 = vpop.f32.mrf.mxu0
        %v944 = vadd.f32 0.0, %v943
        %v945 = vpop.f32.mrf.mxu0
        %v946 = vpop.f32.mrf.mxu0
        %v947 = vadd.f32 0.0, %v946
        %v948 = vpop.f32.mrf.mxu0
        %949 = vdwg.mxu0
        %950 = vmatprep.subr.bf16.mxu0 0
        %951 = vmatpush1.bf16.msra.mxu0 0
        %952 = vmatprep.subr.bf16.mxu0 0
        %953 = vmatpush1.bf16.msra.mxu0 0
        %954 = vmatprep.subr.bf16.mxu0 0
        %955 = vmatpush1.bf16.msra.mxu0 0
        %956 = vmatprep.subr.bf16.mxu0 0
        %957 = vmatpush1.bf16.msra.mxu0 0
        %958 = vmatprep.subr.bf16.mxu0 0
        %959 = vmatpush1.bf16.msra.mxu0 0
        %960 = vmatprep.subr.bf16.mxu0 0
        %961 = vmatpush1.bf16.msra.mxu0 0
        %962 = vmatprep.subr.bf16.mxu0 0
        %963 = vmatpush1.bf16.msra.mxu0 %v721
        %964 = vmatprep.subr.bf16.mxu0 0
        %965 = vmatpush1.bf16.msra.mxu0 %v720
        %966 = vmatprep.subr.bf16.mxu0 0
        %967 = vmatpush2.bf16.msra.mxu0 0
        %968 = vmatprep.subr.bf16.mxu0 0
        %969 = vmatpush2.bf16.msra.mxu0 0
        %970 = vmatprep.subr.bf16.mxu0 0
        %971 = vmatpush2.bf16.msra.mxu0 0
        %972 = vmatprep.subr.bf16.mxu0 0
        %973 = vmatpush2.bf16.msra.mxu0 0
        %974 = vmatprep.subr.bf16.mxu0 0
        %975 = vmatpush2.bf16.msra.mxu0 0
        %976 = vmatprep.subr.bf16.mxu0 0
        %977 = vmatpush2.bf16.msra.mxu0 0
        %978 = vmatprep.subr.bf16.mxu0 0
        %979 = vmatpush2.bf16.msra.mxu0 0
        %980 = vmatprep.subr.bf16.mxu0 0
        %981 = vmatpush2.bf16.msra.mxu0 0
        %982 = vmatprep.mubr.bf16.mxu0 0
        %983 = vmatmul.mubr.bf16.gmra.mxu0 %v742
        %v984 = vpop.f32.mrf.mxu0
        %v985 = vadd.f32 %v824, %v984
        %v986 = vpop.f32.mrf.mxu0
        %v987 = vpop.f32.mrf.mxu0
        %v988 = vadd.f32 %v827, %v987
        %v989 = vpop.f32.mrf.mxu0
        %990 = vmatprep.mubr.bf16.mxu0 0
        %991 = vmatmul.mubr.bf16.gmra.mxu0 %v745
        %v992 = vpop.f32.mrf.mxu0
        %v993 = vadd.f32 %v832, %v992
        %v994 = vpop.f32.mrf.mxu0
        %v995 = vpop.f32.mrf.mxu0
        %v996 = vadd.f32 %v835, %v995
        %v997 = vpop.f32.mrf.mxu0
        %998 = vmatprep.mubr.bf16.mxu0 0
        %999 = vmatmul.mubr.bf16.gmra.mxu0 %v748
        %v1000 = vpop.f32.mrf.mxu0
        %v1001 = vadd.f32 %v840, %v1000
        %v1002 = vpop.f32.mrf.mxu0
        %v1003 = vpop.f32.mrf.mxu0
        %v1004 = vadd.f32 %v843, %v1003
        %v1005 = vpop.f32.mrf.mxu0
        %1006 = vmatprep.mubr.bf16.mxu0 0
        %1007 = vmatmul.mubr.bf16.gmra.mxu0 %v751
        %v1008 = vpop.f32.mrf.mxu0
        %v1009 = vadd.f32 %v848, %v1008
        %v1010 = vpop.f32.mrf.mxu0
        %v1011 = vpop.f32.mrf.mxu0
        %v1012 = vadd.f32 %v851, %v1011
        %v1013 = vpop.f32.mrf.mxu0
        %1014 = vmatprep.mubr.bf16.mxu0 0
        %1015 = vmatmul.mubr.bf16.gmra.mxu0 %v754
        %v1016 = vpop.f32.mrf.mxu0
        %v1017 = vadd.f32 %v856, %v1016
        %v1018 = vpop.f32.mrf.mxu0
        %v1019 = vpop.f32.mrf.mxu0
        %v1020 = vadd.f32 %v859, %v1019
        %v1021 = vpop.f32.mrf.mxu0
        %1022 = vmatprep.mubr.bf16.mxu0 0
        %1023 = vmatmul.mubr.bf16.gmra.mxu0 %v757
        %v1024 = vpop.f32.mrf.mxu0
        %v1025 = vadd.f32 %v864, %v1024
        %v1026 = vpop.f32.mrf.mxu0
        %v1027 = vpop.f32.mrf.mxu0
        %v1028 = vadd.f32 %v867, %v1027
        %v1029 = vpop.f32.mrf.mxu0
        %1030 = vmatprep.mubr.bf16.mxu0 0
        %1031 = vmatmul.mubr.bf16.gmra.mxu0 %v760
        %v1032 = vpop.f32.mrf.mxu0
        %v1033 = vadd.f32 %v872, %v1032
        %v1034 = vpop.f32.mrf.mxu0
        %v1035 = vpop.f32.mrf.mxu0
        %v1036 = vadd.f32 %v875, %v1035
        %v1037 = vpop.f32.mrf.mxu0
        %1038 = vmatprep.mubr.bf16.mxu0 0
        %1039 = vmatmul.mubr.bf16.gmra.mxu0 %v763
        %v1040 = vpop.f32.mrf.mxu0
        %v1041 = vadd.f32 %v880, %v1040
        %v1042 = vpop.f32.mrf.mxu0
        %v1043 = vpop.f32.mrf.mxu0
        %v1044 = vadd.f32 %v883, %v1043
        %v1045 = vpop.f32.mrf.mxu0
        %1046 = vmatprep.mubr.bf16.mxu0 0
        %1047 = vmatmul.mubr.bf16.gmra.mxu0 %v766
        %v1048 = vpop.f32.mrf.mxu0
        %v1049 = vadd.f32 %v888, %v1048
        %v1050 = vpop.f32.mrf.mxu0
        %v1051 = vpop.f32.mrf.mxu0
        %v1052 = vadd.f32 %v891, %v1051
        %v1053 = vpop.f32.mrf.mxu0
        %1054 = vmatprep.mubr.bf16.mxu0 0
        %1055 = vmatmul.mubr.bf16.gmra.mxu0 %v769
        %v1056 = vpop.f32.mrf.mxu0
        %v1057 = vadd.f32 %v896, %v1056
        %v1058 = vpop.f32.mrf.mxu0
        %v1059 = vpop.f32.mrf.mxu0
        %v1060 = vadd.f32 %v899, %v1059
        %v1061 = vpop.f32.mrf.mxu0
        %1062 = vmatprep.mubr.bf16.mxu0 0
        %1063 = vmatmul.mubr.bf16.gmra.mxu0 %v772
        %v1064 = vpop.f32.mrf.mxu0
        %v1065 = vadd.f32 %v904, %v1064
        %v1066 = vpop.f32.mrf.mxu0
        %v1067 = vpop.f32.mrf.mxu0
        %v1068 = vadd.f32 %v907, %v1067
        %v1069 = vpop.f32.mrf.mxu0
        %1070 = vmatprep.mubr.bf16.mxu0 0
        %1071 = vmatmul.mubr.bf16.gmra.mxu0 %v775
        %v1072 = vpop.f32.mrf.mxu0
        %v1073 = vadd.f32 %v912, %v1072
        %v1074 = vpop.f32.mrf.mxu0
        %v1075 = vpop.f32.mrf.mxu0
        %v1076 = vadd.f32 %v915, %v1075
        %v1077 = vpop.f32.mrf.mxu0
        %1078 = vmatprep.mubr.bf16.mxu0 0
        %1079 = vmatmul.mubr.bf16.gmra.mxu0 %v778
        %v1080 = vpop.f32.mrf.mxu0
        %v1081 = vadd.f32 %v920, %v1080
        %v1082 = vpop.f32.mrf.mxu0
        %v1083 = vpop.f32.mrf.mxu0
        %v1084 = vadd.f32 %v923, %v1083
        %v1085 = vpop.f32.mrf.mxu0
        %1086 = vmatprep.mubr.bf16.mxu0 0
        %1087 = vmatmul.mubr.bf16.gmra.mxu0 %v781
        %v1088 = vpop.f32.mrf.mxu0
        %v1089 = vadd.f32 %v928, %v1088
        %v1090 = vpop.f32.mrf.mxu0
        %v1091 = vpop.f32.mrf.mxu0
        %v1092 = vadd.f32 %v931, %v1091
        %v1093 = vpop.f32.mrf.mxu0
        %1094 = vmatprep.mubr.bf16.mxu0 0
        %1095 = vmatmul.mubr.bf16.gmra.mxu0 %v784
        %v1096 = vpop.f32.mrf.mxu0
        %v1097 = vadd.f32 %v936, %v1096
        %v1098 = vpop.f32.mrf.mxu0
        %v1099 = vpop.f32.mrf.mxu0
        %v1100 = vadd.f32 %v939, %v1099
        %v1101 = vpop.f32.mrf.mxu0
        %1102 = vmatprep.mubr.bf16.mxu0 0
        %1103 = vmatmul.mubr.bf16.gmra.mxu0 %v787
        %v1104 = vpop.f32.mrf.mxu0
        %v1105 = vadd.f32 %v944, %v1104
        %v1106 = vpop.f32.mrf.mxu0
        %v1107 = vpop.f32.mrf.mxu0
        %v1108 = vadd.f32 %v947, %v1107
        %v1109 = vpop.f32.mrf.mxu0
        %1110 = vdwg.mxu0
        %v1175 = vunpack.c.l.b16 %v187
        %v1176 = vunpack.c.h.b16 %v187
        %v1177 = vunpack.c.l.b16 %v188
        %v1178 = vunpack.c.l.b16 %v189
        %v1179 = vunpack.c.h.b16 %v189
        %v1180 = vunpack.c.l.b16 %v190
        %v1181 = vunpack.c.l.b16 %v191
        %v1182 = vunpack.c.h.b16 %v191
        %v1183 = vunpack.c.l.b16 %v192
        %v1184 = vunpack.c.l.b16 %v193
        %v1185 = vunpack.c.h.b16 %v193
        %v1186 = vunpack.c.l.b16 %v194
        %v1187 = vunpack.c.l.b16 %v195
        %v1188 = vunpack.c.h.b16 %v195
        %v1189 = vunpack.c.l.b16 %v196
        %v1190 = vunpack.c.l.b16 %v197
        %v1191 = vunpack.c.h.b16 %v197
        %v1192 = vunpack.c.l.b16 %v198
        %v1193 = vunpack.c.l.b16 %v199
        %v1194 = vunpack.c.h.b16 %v199
        %v1195 = vunpack.c.l.b16 %v200
        %v1196 = vunpack.c.l.b16 %v201
        %v1197 = vunpack.c.h.b16 %v201
        %v1198 = vunpack.c.l.b16 %v202
        %v1199 = vunpack.c.l.b16 %v203
        %v1200 = vunpack.c.h.b16 %v203
        %v1201 = vunpack.c.l.b16 %v204
        %v1202 = vunpack.c.l.b16 %v205
        %v1203 = vunpack.c.h.b16 %v205
        %v1204 = vunpack.c.l.b16 %v206
        %v1205 = vunpack.c.l.b16 %v207
        %v1206 = vunpack.c.h.b16 %v207
        %v1207 = vunpack.c.l.b16 %v208
        %v1208 = vunpack.c.l.b16 %v209
        %v1209 = vunpack.c.h.b16 %v209
        %v1210 = vunpack.c.l.b16 %v210
        %v1211 = vunpack.c.l.b16 %v211
        %v1212 = vunpack.c.h.b16 %v211
        %v1213 = vunpack.c.l.b16 %v212
        %v1214 = vunpack.c.l.b16 %v213
        %v1215 = vunpack.c.h.b16 %v213
        %v1216 = vunpack.c.l.b16 %v214
        %v1217 = vunpack.c.l.b16 %v215
        %v1218 = vunpack.c.h.b16 %v215
        %v1219 = vunpack.c.l.b16 %v216
        %v1220 = vunpack.c.l.b16 %v217
        %v1221 = vunpack.c.h.b16 %v217
        %v1222 = vunpack.c.l.b16 %v218
        %v1223 = vunpack.c.l.b16 %v219
        %v1224 = vunpack.c.h.b16 %v219
        %v1225 = vunpack.c.l.b16 %v220
        %v1226 = vunpack.c.l.b16 %v221
        %v1227 = vunpack.c.h.b16 %v221
        %v1228 = vunpack.c.l.b16 %v222
        %v1229 = vunpack.c.l.b16 %v223
        %v1230 = vunpack.c.h.b16 %v223
        %v1231 = vunpack.c.l.b16 %v224
        %v1232 = vunpack.c.l.b16 %v225
        %v1233 = vunpack.c.h.b16 %v225
        %v1234 = vunpack.c.l.b16 %v226
        %v1235 = vunpack.c.l.b16 %v227
        %v1236 = vunpack.c.h.b16 %v227
        %v1237 = vunpack.c.l.b16 %v228
        %v1238 = vunpack.c.l.b16 %v229
        %v1239 = vunpack.c.h.b16 %v229
        %v1240 = vunpack.c.l.b16 %v230
        %v1241 = vunpack.c.l.b16 %v231
        %v1242 = vunpack.c.h.b16 %v231
        %v1243 = vunpack.c.l.b16 %v232
        %v1244 = vunpack.c.l.b16 %v233
        %v1245 = vunpack.c.h.b16 %v233
        %v1246 = vunpack.c.l.b16 %v234
        %v1247 = vunpack.c.l.b16 %v235
        %v1248 = vunpack.c.h.b16 %v235
        %v1249 = vunpack.c.l.b16 %v236
        %v1250 = vunpack.c.l.b16 %v237
        %v1251 = vunpack.c.h.b16 %v237
        %v1252 = vunpack.c.l.b16 %v238
        %v1253 = vunpack.c.l.b16 %v239
        %v1254 = vunpack.c.h.b16 %v239
        %v1255 = vunpack.c.l.b16 %v240
        %v1256 = vunpack.c.l.b16 %v241
        %v1257 = vunpack.c.h.b16 %v241
        %v1258 = vunpack.c.l.b16 %v242
        %v1259 = vunpack.c.l.b16 %v243
        %v1260 = vunpack.c.h.b16 %v243
        %v1261 = vunpack.c.l.b16 %v244
        %v1262 = vunpack.c.l.b16 %v245
        %v1263 = vunpack.c.h.b16 %v245
        %v1264 = vunpack.c.l.b16 %v246
        %v1265 = vunpack.c.l.b16 %v247
        %v1266 = vunpack.c.h.b16 %v247
        %v1267 = vunpack.c.l.b16 %v248
        %v1268 = vunpack.c.l.b16 %v249
        %v1269 = vunpack.c.h.b16 %v249
        %v1270 = vunpack.c.l.b16 %v250
        %v1271 = vpack.c.b16 %v1178, %v1175
        %v1272 = vpack.c.b16 %v1179, %v1176
        %v1273 = vpack.c.b16 %v1180, %v1177
        %v1274 = vpack.c.b16 %v1184, %v1181
        %v1275 = vpack.c.b16 %v1185, %v1182
        %v1276 = vpack.c.b16 %v1186, %v1183
        %v1277 = vpack.c.b16 %v1190, %v1187
        %v1278 = vpack.c.b16 %v1191, %v1188
        %v1279 = vpack.c.b16 %v1192, %v1189
        %v1280 = vpack.c.b16 %v1196, %v1193
        %v1281 = vpack.c.b16 %v1197, %v1194
        %v1282 = vpack.c.b16 %v1198, %v1195
        %v1283 = vpack.c.b16 %v1202, %v1199
        %v1284 = vpack.c.b16 %v1203, %v1200
        %v1285 = vpack.c.b16 %v1204, %v1201
        %v1286 = vpack.c.b16 %v1208, %v1205
        %v1287 = vpack.c.b16 %v1209, %v1206
        %v1288 = vpack.c.b16 %v1210, %v1207
        %v1289 = vpack.c.b16 %v1214, %v1211
        %v1290 = vpack.c.b16 %v1215, %v1212
        %v1291 = vpack.c.b16 %v1216, %v1213
        %v1292 = vpack.c.b16 %v1220, %v1217
        %v1293 = vpack.c.b16 %v1221, %v1218
        %v1294 = vpack.c.b16 %v1222, %v1219
        %v1295 = vpack.c.b16 %v1226, %v1223
        %v1296 = vpack.c.b16 %v1227, %v1224
        %v1297 = vpack.c.b16 %v1228, %v1225
        %v1298 = vpack.c.b16 %v1232, %v1229
        %v1299 = vpack.c.b16 %v1233, %v1230
        %v1300 = vpack.c.b16 %v1234, %v1231
        %v1301 = vpack.c.b16 %v1238, %v1235
        %v1302 = vpack.c.b16 %v1239, %v1236
        %v1303 = vpack.c.b16 %v1240, %v1237
        %v1304 = vpack.c.b16 %v1244, %v1241
        %v1305 = vpack.c.b16 %v1245, %v1242
        %v1306 = vpack.c.b16 %v1246, %v1243
        %v1307 = vpack.c.b16 %v1250, %v1247
        %v1308 = vpack.c.b16 %v1251, %v1248
        %v1309 = vpack.c.b16 %v1252, %v1249
        %v1310 = vpack.c.b16 %v1256, %v1253
        %v1311 = vpack.c.b16 %v1257, %v1254
        %v1312 = vpack.c.b16 %v1258, %v1255
        %v1313 = vpack.c.b16 %v1262, %v1259
        %v1314 = vpack.c.b16 %v1263, %v1260
        %v1315 = vpack.c.b16 %v1264, %v1261
        %v1316 = vpack.c.b16 %v1268, %v1265
        %v1317 = vpack.c.b16 %v1269, %v1266
        %v1318 = vpack.c.b16 %v1270, %v1267
        %v1387 = vunpack.c.l.b16 %v251
        %v1388 = vunpack.c.l.b16 %v252
        %v1389 = vunpack.c.l.b16 %v253
        %v1390 = vunpack.c.l.b16 %v254
        %v1391 = vunpack.c.l.b16 %v255
        %v1392 = vunpack.c.l.b16 %v256
        %v1393 = vunpack.c.l.b16 %v257
        %v1394 = vunpack.c.l.b16 %v258
        %v1395 = vunpack.c.l.b16 %v259
        %v1396 = vunpack.c.l.b16 %v260
        %v1397 = vunpack.c.l.b16 %v261
        %v1398 = vunpack.c.l.b16 %v262
        %v1399 = vunpack.c.l.b16 %v263
        %v1400 = vunpack.c.l.b16 %v264
        %v1401 = vunpack.c.l.b16 %v265
        %v1402 = vunpack.c.l.b16 %v266
        %v1403 = vunpack.c.l.b16 %v267
        %v1404 = vunpack.c.l.b16 %v268
        %v1405 = vunpack.c.l.b16 %v269
        %v1406 = vunpack.c.l.b16 %v270
        %v1407 = vunpack.c.l.b16 %v271
        %v1408 = vunpack.c.l.b16 %v272
        %v1409 = vunpack.c.l.b16 %v273
        %v1410 = vunpack.c.l.b16 %v274
        %v1411 = vunpack.c.l.b16 %v275
        %v1412 = vunpack.c.l.b16 %v276
        %v1413 = vunpack.c.l.b16 %v277
        %v1414 = vunpack.c.l.b16 %v278
        %v1415 = vunpack.c.l.b16 %v279
        %v1416 = vunpack.c.l.b16 %v280
        %v1417 = vunpack.c.l.b16 %v281
        %v1418 = vunpack.c.l.b16 %v282
        %v1419 = vunpack.c.l.b16 %v283
        %v1420 = vunpack.c.l.b16 %v284
        %v1421 = vunpack.c.l.b16 %v285
        %v1422 = vunpack.c.l.b16 %v286
        %v1423 = vpack.c.b16 %v1388, %v1387
        %v1424 = vpack.c.b16 %v1390, %v1389
        %v1425 = vpack.c.b16 %v1392, %v1391
        %v1426 = vpack.c.b16 %v1394, %v1393
        %v1427 = vpack.c.b16 %v1396, %v1395
        %v1428 = vpack.c.b16 %v1398, %v1397
        %v1429 = vpack.c.b16 %v1400, %v1399
        %v1430 = vpack.c.b16 %v1402, %v1401
        %v1431 = vpack.c.b16 %v1404, %v1403
        %v1432 = vpack.c.b16 %v1406, %v1405
        %v1433 = vpack.c.b16 %v1408, %v1407
        %v1434 = vpack.c.b16 %v1410, %v1409
        %v1435 = vpack.c.b16 %v1412, %v1411
        %v1436 = vpack.c.b16 %v1414, %v1413
        %v1437 = vpack.c.b16 %v1416, %v1415
        %v1438 = vpack.c.b16 %v1418, %v1417
        %v1439 = vpack.c.b16 %v1420, %v1419
        %v1440 = vpack.c.b16 %v1422, %v1421
        %v1460 = vsel %vm740, %v1273, 0
        %v1463 = vsel %vm740, %v1276, 0
        %v1466 = vsel %vm740, %v1279, 0
        %v1469 = vsel %vm740, %v1282, 0
        %v1472 = vsel %vm740, %v1285, 0
        %v1475 = vsel %vm740, %v1288, 0
        %v1478 = vsel %vm740, %v1291, 0
        %v1481 = vsel %vm740, %v1294, 0
        %v1484 = vsel %vm740, %v1297, 0
        %v1487 = vsel %vm740, %v1300, 0
        %v1490 = vsel %vm740, %v1303, 0
        %v1493 = vsel %vm740, %v1306, 0
        %v1496 = vsel %vm740, %v1309, 0
        %v1499 = vsel %vm740, %v1312, 0
        %v1502 = vsel %vm740, %v1315, 0
        %v1505 = vsel %vm740, %v1318, 0
        %1507 = vmatprep.subr.bf16.mxu0 0
        %1508 = vmatpush1.bf16.msra.mxu0 %v1430
        %1509 = vmatprep.subr.bf16.mxu0 0
        %1510 = vmatpush1.bf16.msra.mxu0 %v1429
        %1511 = vmatprep.subr.bf16.mxu0 0
        %1512 = vmatpush1.bf16.msra.mxu0 %v1428
        %1513 = vmatprep.subr.bf16.mxu0 0
        %1514 = vmatpush1.bf16.msra.mxu0 %v1427
        %1515 = vmatprep.subr.bf16.mxu0 0
        %1516 = vmatpush1.bf16.msra.mxu0 %v1426
        %1517 = vmatprep.subr.bf16.mxu0 0
        %1518 = vmatpush1.bf16.msra.mxu0 %v1425
        %1519 = vmatprep.subr.bf16.mxu0 0
        %1520 = vmatpush1.bf16.msra.mxu0 %v1424
        %1521 = vmatprep.subr.bf16.mxu0 0
        %1522 = vmatpush1.bf16.msra.mxu0 %v1423
        %1523 = vmatprep.subr.bf16.mxu0 0
        %1524 = vmatpush2.bf16.msra.mxu0 %v1438
        %1525 = vmatprep.subr.bf16.mxu0 0
        %1526 = vmatpush2.bf16.msra.mxu0 %v1437
        %1527 = vmatprep.subr.bf16.mxu0 0
        %1528 = vmatpush2.bf16.msra.mxu0 %v1436
        %1529 = vmatprep.subr.bf16.mxu0 0
        %1530 = vmatpush2.bf16.msra.mxu0 %v1435
        %1531 = vmatprep.subr.bf16.mxu0 0
        %1532 = vmatpush2.bf16.msra.mxu0 %v1434
        %1533 = vmatprep.subr.bf16.mxu0 0
        %1534 = vmatpush2.bf16.msra.mxu0 %v1433
        %1535 = vmatprep.subr.bf16.mxu0 0
        %1536 = vmatpush2.bf16.msra.mxu0 %v1432
        %1537 = vmatprep.subr.bf16.mxu0 0
        %1538 = vmatpush2.bf16.msra.mxu0 %v1431
        %1539 = vmatprep.mubr.bf16.mxu0 %v1272
        %1540 = vmatmul.mubr.bf16.gmra.mxu0 %v1271
        %v1541 = vpop.f32.mrf.mxu0
        %v1542 = vadd.f32 %v985, %v1541
        %v1543 = vpop.f32.mrf.mxu0
        %v1544 = vpop.f32.mrf.mxu0
        %v1545 = vadd.f32 %v988, %v1544
        %v1546 = vpop.f32.mrf.mxu0
        %1547 = vmatprep.mubr.bf16.mxu0 %v1275
        %1548 = vmatmul.mubr.bf16.gmra.mxu0 %v1274
        %v1549 = vpop.f32.mrf.mxu0
        %v1550 = vadd.f32 %v993, %v1549
        %v1551 = vpop.f32.mrf.mxu0
        %v1552 = vpop.f32.mrf.mxu0
        %v1553 = vadd.f32 %v996, %v1552
        %v1554 = vpop.f32.mrf.mxu0
        %1555 = vmatprep.mubr.bf16.mxu0 %v1278
        %1556 = vmatmul.mubr.bf16.gmra.mxu0 %v1277
        %v1557 = vpop.f32.mrf.mxu0
        %v1558 = vadd.f32 %v1001, %v1557
        %v1559 = vpop.f32.mrf.mxu0
        %v1560 = vpop.f32.mrf.mxu0
        %v1561 = vadd.f32 %v1004, %v1560
        %v1562 = vpop.f32.mrf.mxu0
        %1563 = vmatprep.mubr.bf16.mxu0 %v1281
        %1564 = vmatmul.mubr.bf16.gmra.mxu0 %v1280
        %v1565 = vpop.f32.mrf.mxu0
        %v1566 = vadd.f32 %v1009, %v1565
        %v1567 = vpop.f32.mrf.mxu0
        %v1568 = vpop.f32.mrf.mxu0
        %v1569 = vadd.f32 %v1012, %v1568
        %v1570 = vpop.f32.mrf.mxu0
        %1571 = vmatprep.mubr.bf16.mxu0 %v1284
        %1572 = vmatmul.mubr.bf16.gmra.mxu0 %v1283
        %v1573 = vpop.f32.mrf.mxu0
        %v1574 = vadd.f32 %v1017, %v1573
        %v1575 = vpop.f32.mrf.mxu0
        %v1576 = vpop.f32.mrf.mxu0
        %v1577 = vadd.f32 %v1020, %v1576
        %v1578 = vpop.f32.mrf.mxu0
        %1579 = vmatprep.mubr.bf16.mxu0 %v1287
        %1580 = vmatmul.mubr.bf16.gmra.mxu0 %v1286
        %v1581 = vpop.f32.mrf.mxu0
        %v1582 = vadd.f32 %v1025, %v1581
        %v1583 = vpop.f32.mrf.mxu0
        %v1584 = vpop.f32.mrf.mxu0
        %v1585 = vadd.f32 %v1028, %v1584
        %v1586 = vpop.f32.mrf.mxu0
        %1587 = vmatprep.mubr.bf16.mxu0 %v1290
        %1588 = vmatmul.mubr.bf16.gmra.mxu0 %v1289
        %v1589 = vpop.f32.mrf.mxu0
        %v1590 = vadd.f32 %v1033, %v1589
        %v1591 = vpop.f32.mrf.mxu0
        %v1592 = vpop.f32.mrf.mxu0
        %v1593 = vadd.f32 %v1036, %v1592
        %v1594 = vpop.f32.mrf.mxu0
        %1595 = vmatprep.mubr.bf16.mxu0 %v1293
        %1596 = vmatmul.mubr.bf16.gmra.mxu0 %v1292
        %v1597 = vpop.f32.mrf.mxu0
        %v1598 = vadd.f32 %v1041, %v1597
        %v1599 = vpop.f32.mrf.mxu0
        %v1600 = vpop.f32.mrf.mxu0
        %v1601 = vadd.f32 %v1044, %v1600
        %v1602 = vpop.f32.mrf.mxu0
        %1603 = vmatprep.mubr.bf16.mxu0 %v1296
        %1604 = vmatmul.mubr.bf16.gmra.mxu0 %v1295
        %v1605 = vpop.f32.mrf.mxu0
        %v1606 = vadd.f32 %v1049, %v1605
        %v1607 = vpop.f32.mrf.mxu0
        %v1608 = vpop.f32.mrf.mxu0
        %v1609 = vadd.f32 %v1052, %v1608
        %v1610 = vpop.f32.mrf.mxu0
        %1611 = vmatprep.mubr.bf16.mxu0 %v1299
        %1612 = vmatmul.mubr.bf16.gmra.mxu0 %v1298
        %v1613 = vpop.f32.mrf.mxu0
        %v1614 = vadd.f32 %v1057, %v1613
        %v1615 = vpop.f32.mrf.mxu0
        %v1616 = vpop.f32.mrf.mxu0
        %v1617 = vadd.f32 %v1060, %v1616
        %v1618 = vpop.f32.mrf.mxu0
        %1619 = vmatprep.mubr.bf16.mxu0 %v1302
        %1620 = vmatmul.mubr.bf16.gmra.mxu0 %v1301
        %v1621 = vpop.f32.mrf.mxu0
        %v1622 = vadd.f32 %v1065, %v1621
        %v1623 = vpop.f32.mrf.mxu0
        %v1624 = vpop.f32.mrf.mxu0
        %v1625 = vadd.f32 %v1068, %v1624
        %v1626 = vpop.f32.mrf.mxu0
        %1627 = vmatprep.mubr.bf16.mxu0 %v1305
        %1628 = vmatmul.mubr.bf16.gmra.mxu0 %v1304
        %v1629 = vpop.f32.mrf.mxu0
        %v1630 = vadd.f32 %v1073, %v1629
        %v1631 = vpop.f32.mrf.mxu0
        %v1632 = vpop.f32.mrf.mxu0
        %v1633 = vadd.f32 %v1076, %v1632
        %v1634 = vpop.f32.mrf.mxu0
        %1635 = vmatprep.mubr.bf16.mxu0 %v1308
        %1636 = vmatmul.mubr.bf16.gmra.mxu0 %v1307
        %v1637 = vpop.f32.mrf.mxu0
        %v1638 = vadd.f32 %v1081, %v1637
        %v1639 = vpop.f32.mrf.mxu0
        %v1640 = vpop.f32.mrf.mxu0
        %v1641 = vadd.f32 %v1084, %v1640
        %v1642 = vpop.f32.mrf.mxu0
        %1643 = vmatprep.mubr.bf16.mxu0 %v1311
        %1644 = vmatmul.mubr.bf16.gmra.mxu0 %v1310
        %v1645 = vpop.f32.mrf.mxu0
        %v1646 = vadd.f32 %v1089, %v1645
        %v1647 = vpop.f32.mrf.mxu0
        %v1648 = vpop.f32.mrf.mxu0
        %v1649 = vadd.f32 %v1092, %v1648
        %v1650 = vpop.f32.mrf.mxu0
        %1651 = vmatprep.mubr.bf16.mxu0 %v1314
        %1652 = vmatmul.mubr.bf16.gmra.mxu0 %v1313
        %v1653 = vpop.f32.mrf.mxu0
        %v1654 = vadd.f32 %v1097, %v1653
        %v1655 = vpop.f32.mrf.mxu0
        %v1656 = vpop.f32.mrf.mxu0
        %v1657 = vadd.f32 %v1100, %v1656
        %v1658 = vpop.f32.mrf.mxu0
        %1659 = vmatprep.mubr.bf16.mxu0 %v1317
        %1660 = vmatmul.mubr.bf16.gmra.mxu0 %v1316
        %v1661 = vpop.f32.mrf.mxu0
        %v1662 = vadd.f32 %v1105, %v1661
        %v1663 = vpop.f32.mrf.mxu0
        %v1664 = vpop.f32.mrf.mxu0
        %v1665 = vadd.f32 %v1108, %v1664
        %v1666 = vpop.f32.mrf.mxu0
        %1667 = vdwg.mxu0
        %1668 = vmatprep.subr.bf16.mxu0 0
        %1669 = vmatpush1.bf16.msra.mxu0 0
        %1670 = vmatprep.subr.bf16.mxu0 0
        %1671 = vmatpush1.bf16.msra.mxu0 0
        %1672 = vmatprep.subr.bf16.mxu0 0
        %1673 = vmatpush1.bf16.msra.mxu0 0
        %1674 = vmatprep.subr.bf16.mxu0 0
        %1675 = vmatpush1.bf16.msra.mxu0 0
        %1676 = vmatprep.subr.bf16.mxu0 0
        %1677 = vmatpush1.bf16.msra.mxu0 0
        %1678 = vmatprep.subr.bf16.mxu0 0
        %1679 = vmatpush1.bf16.msra.mxu0 0
        %1680 = vmatprep.subr.bf16.mxu0 0
        %1681 = vmatpush1.bf16.msra.mxu0 %v1440
        %1682 = vmatprep.subr.bf16.mxu0 0
        %1683 = vmatpush1.bf16.msra.mxu0 %v1439
        %1684 = vmatprep.subr.bf16.mxu0 0
        %1685 = vmatpush2.bf16.msra.mxu0 0
        %1686 = vmatprep.subr.bf16.mxu0 0
        %1687 = vmatpush2.bf16.msra.mxu0 0
        %1688 = vmatprep.subr.bf16.mxu0 0
        %1689 = vmatpush2.bf16.msra.mxu0 0
        %1690 = vmatprep.subr.bf16.mxu0 0
        %1691 = vmatpush2.bf16.msra.mxu0 0
        %1692 = vmatprep.subr.bf16.mxu0 0
        %1693 = vmatpush2.bf16.msra.mxu0 0
        %1694 = vmatprep.subr.bf16.mxu0 0
        %1695 = vmatpush2.bf16.msra.mxu0 0
        %1696 = vmatprep.subr.bf16.mxu0 0
        %1697 = vmatpush2.bf16.msra.mxu0 0
        %1698 = vmatprep.subr.bf16.mxu0 0
        %1699 = vmatpush2.bf16.msra.mxu0 0
        %1700 = vmatprep.mubr.bf16.mxu0 0
        %1701 = vmatmul.mubr.bf16.gmra.mxu0 %v1460
        %v1702 = vpop.f32.mrf.mxu0
        %v1703 = vadd.f32 %v1542, %v1702
        %v1704 = vpop.f32.mrf.mxu0
        %v1705 = vpop.f32.mrf.mxu0
        %v1706 = vadd.f32 %v1545, %v1705
        %v1707 = vpop.f32.mrf.mxu0
        %1708 = vmatprep.mubr.bf16.mxu0 0
        %1709 = vmatmul.mubr.bf16.gmra.mxu0 %v1463
        %v1710 = vpop.f32.mrf.mxu0
        %v1711 = vadd.f32 %v1550, %v1710
        %v1712 = vpop.f32.mrf.mxu0
        %v1713 = vpop.f32.mrf.mxu0
        %v1714 = vadd.f32 %v1553, %v1713
        %v1715 = vpop.f32.mrf.mxu0
        %1716 = vmatprep.mubr.bf16.mxu0 0
        %1717 = vmatmul.mubr.bf16.gmra.mxu0 %v1466
        %v1718 = vpop.f32.mrf.mxu0
        %v1719 = vadd.f32 %v1558, %v1718
        %v1720 = vpop.f32.mrf.mxu0
        %v1721 = vpop.f32.mrf.mxu0
        %v1722 = vadd.f32 %v1561, %v1721
        %v1723 = vpop.f32.mrf.mxu0
        %1724 = vmatprep.mubr.bf16.mxu0 0
        %1725 = vmatmul.mubr.bf16.gmra.mxu0 %v1469
        %v1726 = vpop.f32.mrf.mxu0
        %v1727 = vadd.f32 %v1566, %v1726
        %v1728 = vpop.f32.mrf.mxu0
        %v1729 = vpop.f32.mrf.mxu0
        %v1730 = vadd.f32 %v1569, %v1729
        %v1731 = vpop.f32.mrf.mxu0
        %1732 = vmatprep.mubr.bf16.mxu0 0
        %1733 = vmatmul.mubr.bf16.gmra.mxu0 %v1472
        %v1734 = vpop.f32.mrf.mxu0
        %v1735 = vadd.f32 %v1574, %v1734
        %v1736 = vpop.f32.mrf.mxu0
        %v1737 = vpop.f32.mrf.mxu0
        %v1738 = vadd.f32 %v1577, %v1737
        %v1739 = vpop.f32.mrf.mxu0
        %1740 = vmatprep.mubr.bf16.mxu0 0
        %1741 = vmatmul.mubr.bf16.gmra.mxu0 %v1475
        %v1742 = vpop.f32.mrf.mxu0
        %v1743 = vadd.f32 %v1582, %v1742
        %v1744 = vpop.f32.mrf.mxu0
        %v1745 = vpop.f32.mrf.mxu0
        %v1746 = vadd.f32 %v1585, %v1745
        %v1747 = vpop.f32.mrf.mxu0
        %1748 = vmatprep.mubr.bf16.mxu0 0
        %1749 = vmatmul.mubr.bf16.gmra.mxu0 %v1478
        %v1750 = vpop.f32.mrf.mxu0
        %v1751 = vadd.f32 %v1590, %v1750
        %v1752 = vpop.f32.mrf.mxu0
        %v1753 = vpop.f32.mrf.mxu0
        %v1754 = vadd.f32 %v1593, %v1753
        %v1755 = vpop.f32.mrf.mxu0
        %1756 = vmatprep.mubr.bf16.mxu0 0
        %1757 = vmatmul.mubr.bf16.gmra.mxu0 %v1481
        %v1758 = vpop.f32.mrf.mxu0
        %v1759 = vadd.f32 %v1598, %v1758
        %v1760 = vpop.f32.mrf.mxu0
        %v1761 = vpop.f32.mrf.mxu0
        %v1762 = vadd.f32 %v1601, %v1761
        %v1763 = vpop.f32.mrf.mxu0
        %1764 = vmatprep.mubr.bf16.mxu0 0
        %1765 = vmatmul.mubr.bf16.gmra.mxu0 %v1484
        %v1766 = vpop.f32.mrf.mxu0
        %v1767 = vadd.f32 %v1606, %v1766
        %v1768 = vpop.f32.mrf.mxu0
        %v1769 = vpop.f32.mrf.mxu0
        %v1770 = vadd.f32 %v1609, %v1769
        %v1771 = vpop.f32.mrf.mxu0
        %1772 = vmatprep.mubr.bf16.mxu0 0
        %1773 = vmatmul.mubr.bf16.gmra.mxu0 %v1487
        %v1774 = vpop.f32.mrf.mxu0
        %v1775 = vadd.f32 %v1614, %v1774
        %v1776 = vpop.f32.mrf.mxu0
        %v1777 = vpop.f32.mrf.mxu0
        %v1778 = vadd.f32 %v1617, %v1777
        %v1779 = vpop.f32.mrf.mxu0
        %1780 = vmatprep.mubr.bf16.mxu0 0
        %1781 = vmatmul.mubr.bf16.gmra.mxu0 %v1490
        %v1782 = vpop.f32.mrf.mxu0
        %v1783 = vadd.f32 %v1622, %v1782
        %v1784 = vpop.f32.mrf.mxu0
        %v1785 = vpop.f32.mrf.mxu0
        %v1786 = vadd.f32 %v1625, %v1785
        %v1787 = vpop.f32.mrf.mxu0
        %1788 = vmatprep.mubr.bf16.mxu0 0
        %1789 = vmatmul.mubr.bf16.gmra.mxu0 %v1493
        %v1790 = vpop.f32.mrf.mxu0
        %v1791 = vadd.f32 %v1630, %v1790
        %v1792 = vpop.f32.mrf.mxu0
        %v1793 = vpop.f32.mrf.mxu0
        %v1794 = vadd.f32 %v1633, %v1793
        %v1795 = vpop.f32.mrf.mxu0
        %1796 = vmatprep.mubr.bf16.mxu0 0
        %1797 = vmatmul.mubr.bf16.gmra.mxu0 %v1496
        %v1798 = vpop.f32.mrf.mxu0
        %v1799 = vadd.f32 %v1638, %v1798
        %v1800 = vpop.f32.mrf.mxu0
        %v1801 = vpop.f32.mrf.mxu0
        %v1802 = vadd.f32 %v1641, %v1801
        %v1803 = vpop.f32.mrf.mxu0
        %1804 = vmatprep.mubr.bf16.mxu0 0
        %1805 = vmatmul.mubr.bf16.gmra.mxu0 %v1499
        %v1806 = vpop.f32.mrf.mxu0
        %v1807 = vadd.f32 %v1646, %v1806
        %v1808 = vpop.f32.mrf.mxu0
        %v1809 = vpop.f32.mrf.mxu0
        %v1810 = vadd.f32 %v1649, %v1809
        %v1811 = vpop.f32.mrf.mxu0
        %1812 = vmatprep.mubr.bf16.mxu0 0
        %1813 = vmatmul.mubr.bf16.gmra.mxu0 %v1502
        %v1814 = vpop.f32.mrf.mxu0
        %v1815 = vadd.f32 %v1654, %v1814
        %v1816 = vpop.f32.mrf.mxu0
        %v1817 = vpop.f32.mrf.mxu0
        %v1818 = vadd.f32 %v1657, %v1817
        %v1819 = vpop.f32.mrf.mxu0
        %1820 = vmatprep.mubr.bf16.mxu0 0
        %1821 = vmatmul.mubr.bf16.gmra.mxu0 %v1505
        %v1822 = vpop.f32.mrf.mxu0
        %v1823 = vadd.f32 %v1662, %v1822
        %v1824 = vpop.f32.mrf.mxu0
        %v1825 = vpop.f32.mrf.mxu0
        %v1826 = vadd.f32 %v1665, %v1825
        %v1827 = vpop.f32.mrf.mxu0
        %1828 = vdwg.mxu0
        %s1829 = sadd.s32 %s22, 2
        %s1830 = smul.u32 %s1829, 96
        %s1831 = smul.addr %s1830, 4
        %s1832 = scalar_lea.vmem %s182, %s1831
        %v1833 = vld [vmem:[%s1832] sm:$0xff]
        %v1834 = vld [vmem:[%s1832 + $0x8] sm:$0xf]
        %v1835 = vld [vmem:[%s1832 + $0xc] sm:$0xff]
        %v1836 = vld [vmem:[%s1832 + $0x14] sm:$0xf]
        %v1837 = vld [vmem:[%s1832 + $0x18] sm:$0xff]
        %v1838 = vld [vmem:[%s1832 + $0x20] sm:$0xf]
        %v1839 = vld [vmem:[%s1832 + $0x24] sm:$0xff]
        %v1840 = vld [vmem:[%s1832 + $0x2c] sm:$0xf]
        %v1841 = vld [vmem:[%s1832 + $0x30] sm:$0xff]
        %v1842 = vld [vmem:[%s1832 + $0x38] sm:$0xf]
        %v1843 = vld [vmem:[%s1832 + $0x3c] sm:$0xff]
        %v1844 = vld [vmem:[%s1832 + $0x44] sm:$0xf]
        %v1845 = vld [vmem:[%s1832 + $0x48] sm:$0xff]
        %v1846 = vld [vmem:[%s1832 + $0x50] sm:$0xf]
        %v1847 = vld [vmem:[%s1832 + $0x54] sm:$0xff]
        %v1848 = vld [vmem:[%s1832 + $0x5c] sm:$0xf]
        %v1849 = vld [vmem:[%s1832 + $0x60] sm:$0xff]
        %v1850 = vld [vmem:[%s1832 + $0x68] sm:$0xf]
        %v1851 = vld [vmem:[%s1832 + $0x6c] sm:$0xff]
        %v1852 = vld [vmem:[%s1832 + $0x74] sm:$0xf]
        %v1853 = vld [vmem:[%s1832 + $0x78] sm:$0xff]
        %v1854 = vld [vmem:[%s1832 + $0x80] sm:$0xf]
        %v1855 = vld [vmem:[%s1832 + $0x84] sm:$0xff]
        %v1856 = vld [vmem:[%s1832 + $0x8c] sm:$0xf]
        %v1857 = vld [vmem:[%s1832 + $0x90] sm:$0xff]
        %v1858 = vld [vmem:[%s1832 + $0x98] sm:$0xf]
        %v1859 = vld [vmem:[%s1832 + $0x9c] sm:$0xff]
        %v1860 = vld [vmem:[%s1832 + $0xa4] sm:$0xf]
        %v1861 = vld [vmem:[%s1832 + $0xa8] sm:$0xff]
        %v1862 = vld [vmem:[%s1832 + $0xb0] sm:$0xf]
        %v1863 = vld [vmem:[%s1832 + $0xb4] sm:$0xff]
        %v1864 = vld [vmem:[%s1832 + $0xbc] sm:$0xf]
        %v1865 = vld [vmem:[%s1832 + $0xc0] sm:$0xff]
        %v1866 = vld [vmem:[%s1832 + $0xc8] sm:$0xf]
        %v1867 = vld [vmem:[%s1832 + $0xcc] sm:$0xff]
        %v1868 = vld [vmem:[%s1832 + $0xd4] sm:$0xf]
        %v1869 = vld [vmem:[%s1832 + $0xd8] sm:$0xff]
        %v1870 = vld [vmem:[%s1832 + $0xe0] sm:$0xf]
        %v1871 = vld [vmem:[%s1832 + $0xe4] sm:$0xff]
        %v1872 = vld [vmem:[%s1832 + $0xec] sm:$0xf]
        %v1873 = vld [vmem:[%s1832 + $0xf0] sm:$0xff]
        %v1874 = vld [vmem:[%s1832 + $0xf8] sm:$0xf]
        %v1875 = vld [vmem:[%s1832 + $0xfc] sm:$0xff]
        %v1876 = vld [vmem:[%s1832 + $0x104] sm:$0xf]
        %v1877 = vld [vmem:[%s1832 + $0x108] sm:$0xff]
        %v1878 = vld [vmem:[%s1832 + $0x110] sm:$0xf]
        %v1879 = vld [vmem:[%s1832 + $0x114] sm:$0xff]
        %v1880 = vld [vmem:[%s1832 + $0x11c] sm:$0xf]
        %v1881 = vld [vmem:[%s1832 + $0x120] sm:$0xff]
        %v1882 = vld [vmem:[%s1832 + $0x128] sm:$0xf]
        %v1883 = vld [vmem:[%s1832 + $0x12c] sm:$0xff]
        %v1884 = vld [vmem:[%s1832 + $0x134] sm:$0xf]
        %v1885 = vld [vmem:[%s1832 + $0x138] sm:$0xff]
        %v1886 = vld [vmem:[%s1832 + $0x140] sm:$0xf]
        %v1887 = vld [vmem:[%s1832 + $0x144] sm:$0xff]
        %v1888 = vld [vmem:[%s1832 + $0x14c] sm:$0xf]
        %v1889 = vld [vmem:[%s1832 + $0x150] sm:$0xff]
        %v1890 = vld [vmem:[%s1832 + $0x158] sm:$0xf]
        %v1891 = vld [vmem:[%s1832 + $0x15c] sm:$0xff]
        %v1892 = vld [vmem:[%s1832 + $0x164] sm:$0xf]
        %v1893 = vld [vmem:[%s1832 + $0x168] sm:$0xff]
        %v1894 = vld [vmem:[%s1832 + $0x170] sm:$0xf]
        %v1895 = vld [vmem:[%s1832 + $0x174] sm:$0xff]
        %v1896 = vld [vmem:[%s1832 + $0x17c] sm:$0xf]
        %s1897 = scalar_lea.vmem %s1, 288
        %v1898 = vld [vmem:[%s1897] sm:$0xf]
        %v1899 = vld [vmem:[%s1897 + $0x4] sm:$0xf]
        %v1900 = vld [vmem:[%s1897 + $0x8] sm:$0xf]
        %v1901 = vld [vmem:[%s1897 + $0xc] sm:$0xf]
        %v1902 = vld [vmem:[%s1897 + $0x10] sm:$0xf]
        %v1903 = vld [vmem:[%s1897 + $0x14] sm:$0xf]
        %v1904 = vld [vmem:[%s1897 + $0x18] sm:$0xf]
        %v1905 = vld [vmem:[%s1897 + $0x1c] sm:$0xf]
        %v1906 = vld [vmem:[%s1897 + $0x20] sm:$0xf]
        %v1907 = vld [vmem:[%s1897 + $0x24] sm:$0xf]
        %v1908 = vld [vmem:[%s1897 + $0x28] sm:$0xf]
        %v1909 = vld [vmem:[%s1897 + $0x2c] sm:$0xf]
        %v1910 = vld [vmem:[%s1897 + $0x30] sm:$0xf]
        %v1911 = vld [vmem:[%s1897 + $0x34] sm:$0xf]
        %v1912 = vld [vmem:[%s1897 + $0x38] sm:$0xf]
        %v1913 = vld [vmem:[%s1897 + $0x3c] sm:$0xf]
        %v1914 = vld [vmem:[%s1897 + $0x40] sm:$0xf]
        %v1915 = vld [vmem:[%s1897 + $0x44] sm:$0xf]
        %v1916 = vld [vmem:[%s1897 + $0x48] sm:$0xf]
        %v1917 = vld [vmem:[%s1897 + $0x4c] sm:$0xf]
        %v1918 = vld [vmem:[%s1897 + $0x50] sm:$0xf]
        %v1919 = vld [vmem:[%s1897 + $0x54] sm:$0xf]
        %v1920 = vld [vmem:[%s1897 + $0x58] sm:$0xf]
        %v1921 = vld [vmem:[%s1897 + $0x5c] sm:$0xf]
        %v1922 = vld [vmem:[%s1897 + $0x60] sm:$0xf]
        %v1923 = vld [vmem:[%s1897 + $0x64] sm:$0xf]
        %v1924 = vld [vmem:[%s1897 + $0x68] sm:$0xf]
        %v1925 = vld [vmem:[%s1897 + $0x6c] sm:$0xf]
        %v1926 = vld [vmem:[%s1897 + $0x70] sm:$0xf]
        %v1927 = vld [vmem:[%s1897 + $0x74] sm:$0xf]
        %v1928 = vld [vmem:[%s1897 + $0x78] sm:$0xf]
        %v1929 = vld [vmem:[%s1897 + $0x7c] sm:$0xf]
        %v1930 = vld [vmem:[%s1897 + $0x80] sm:$0xf]
        %v1931 = vld [vmem:[%s1897 + $0x84] sm:$0xf]
        %v1932 = vld [vmem:[%s1897 + $0x88] sm:$0xf]
        %v1933 = vld [vmem:[%s1897 + $0x8c] sm:$0xf]
        %v1998 = vunpack.c.l.b16 %v1833
        %v1999 = vunpack.c.h.b16 %v1833
        %v2000 = vunpack.c.l.b16 %v1834
        %v2001 = vunpack.c.l.b16 %v1835
        %v2002 = vunpack.c.h.b16 %v1835
        %v2003 = vunpack.c.l.b16 %v1836
        %v2004 = vunpack.c.l.b16 %v1837
        %v2005 = vunpack.c.h.b16 %v1837
        %v2006 = vunpack.c.l.b16 %v1838
        %v2007 = vunpack.c.l.b16 %v1839
        %v2008 = vunpack.c.h.b16 %v1839
        %v2009 = vunpack.c.l.b16 %v1840
        %v2010 = vunpack.c.l.b16 %v1841
        %v2011 = vunpack.c.h.b16 %v1841
        %v2012 = vunpack.c.l.b16 %v1842
        %v2013 = vunpack.c.l.b16 %v1843
        %v2014 = vunpack.c.h.b16 %v1843
        %v2015 = vunpack.c.l.b16 %v1844
        %v2016 = vunpack.c.l.b16 %v1845
        %v2017 = vunpack.c.h.b16 %v1845
        %v2018 = vunpack.c.l.b16 %v1846
        %v2019 = vunpack.c.l.b16 %v1847
        %v2020 = vunpack.c.h.b16 %v1847
        %v2021 = vunpack.c.l.b16 %v1848
        %v2022 = vunpack.c.l.b16 %v1849
        %v2023 = vunpack.c.h.b16 %v1849
        %v2024 = vunpack.c.l.b16 %v1850
        %v2025 = vunpack.c.l.b16 %v1851
        %v2026 = vunpack.c.h.b16 %v1851
        %v2027 = vunpack.c.l.b16 %v1852
        %v2028 = vunpack.c.l.b16 %v1853
        %v2029 = vunpack.c.h.b16 %v1853
        %v2030 = vunpack.c.l.b16 %v1854
        %v2031 = vunpack.c.l.b16 %v1855
        %v2032 = vunpack.c.h.b16 %v1855
        %v2033 = vunpack.c.l.b16 %v1856
        %v2034 = vunpack.c.l.b16 %v1857
        %v2035 = vunpack.c.h.b16 %v1857
        %v2036 = vunpack.c.l.b16 %v1858
        %v2037 = vunpack.c.l.b16 %v1859
        %v2038 = vunpack.c.h.b16 %v1859
        %v2039 = vunpack.c.l.b16 %v1860
        %v2040 = vunpack.c.l.b16 %v1861
        %v2041 = vunpack.c.h.b16 %v1861
        %v2042 = vunpack.c.l.b16 %v1862
        %v2043 = vunpack.c.l.b16 %v1863
        %v2044 = vunpack.c.h.b16 %v1863
        %v2045 = vunpack.c.l.b16 %v1864
        %v2046 = vunpack.c.l.b16 %v1865
        %v2047 = vunpack.c.h.b16 %v1865
        %v2048 = vunpack.c.l.b16 %v1866
        %v2049 = vunpack.c.l.b16 %v1867
        %v2050 = vunpack.c.h.b16 %v1867
        %v2051 = vunpack.c.l.b16 %v1868
        %v2052 = vunpack.c.l.b16 %v1869
        %v2053 = vunpack.c.h.b16 %v1869
        %v2054 = vunpack.c.l.b16 %v1870
        %v2055 = vunpack.c.l.b16 %v1871
        %v2056 = vunpack.c.h.b16 %v1871
        %v2057 = vunpack.c.l.b16 %v1872
        %v2058 = vunpack.c.l.b16 %v1873
        %v2059 = vunpack.c.h.b16 %v1873
        %v2060 = vunpack.c.l.b16 %v1874
        %v2061 = vunpack.c.l.b16 %v1875
        %v2062 = vunpack.c.h.b16 %v1875
        %v2063 = vunpack.c.l.b16 %v1876
        %v2064 = vunpack.c.l.b16 %v1877
        %v2065 = vunpack.c.h.b16 %v1877
        %v2066 = vunpack.c.l.b16 %v1878
        %v2067 = vunpack.c.l.b16 %v1879
        %v2068 = vunpack.c.h.b16 %v1879
        %v2069 = vunpack.c.l.b16 %v1880
        %v2070 = vunpack.c.l.b16 %v1881
        %v2071 = vunpack.c.h.b16 %v1881
        %v2072 = vunpack.c.l.b16 %v1882
        %v2073 = vunpack.c.l.b16 %v1883
        %v2074 = vunpack.c.h.b16 %v1883
        %v2075 = vunpack.c.l.b16 %v1884
        %v2076 = vunpack.c.l.b16 %v1885
        %v2077 = vunpack.c.h.b16 %v1885
        %v2078 = vunpack.c.l.b16 %v1886
        %v2079 = vunpack.c.l.b16 %v1887
        %v2080 = vunpack.c.h.b16 %v1887
        %v2081 = vunpack.c.l.b16 %v1888
        %v2082 = vunpack.c.l.b16 %v1889
        %v2083 = vunpack.c.h.b16 %v1889
        %v2084 = vunpack.c.l.b16 %v1890
        %v2085 = vunpack.c.l.b16 %v1891
        %v2086 = vunpack.c.h.b16 %v1891
        %v2087 = vunpack.c.l.b16 %v1892
        %v2088 = vunpack.c.l.b16 %v1893
        %v2089 = vunpack.c.h.b16 %v1893
        %v2090 = vunpack.c.l.b16 %v1894
        %v2091 = vunpack.c.l.b16 %v1895
        %v2092 = vunpack.c.h.b16 %v1895
        %v2093 = vunpack.c.l.b16 %v1896
        %v2094 = vpack.c.b16 %v2001, %v1998
        %v2095 = vpack.c.b16 %v2002, %v1999
        %v2096 = vpack.c.b16 %v2003, %v2000
        %v2097 = vpack.c.b16 %v2007, %v2004
        %v2098 = vpack.c.b16 %v2008, %v2005
        %v2099 = vpack.c.b16 %v2009, %v2006
        %v2100 = vpack.c.b16 %v2013, %v2010
        %v2101 = vpack.c.b16 %v2014, %v2011
        %v2102 = vpack.c.b16 %v2015, %v2012
        %v2103 = vpack.c.b16 %v2019, %v2016
        %v2104 = vpack.c.b16 %v2020, %v2017
        %v2105 = vpack.c.b16 %v2021, %v2018
        %v2106 = vpack.c.b16 %v2025, %v2022
        %v2107 = vpack.c.b16 %v2026, %v2023
        %v2108 = vpack.c.b16 %v2027, %v2024
        %v2109 = vpack.c.b16 %v2031, %v2028
        %v2110 = vpack.c.b16 %v2032, %v2029
        %v2111 = vpack.c.b16 %v2033, %v2030
        %v2112 = vpack.c.b16 %v2037, %v2034
        %v2113 = vpack.c.b16 %v2038, %v2035
        %v2114 = vpack.c.b16 %v2039, %v2036
        %v2115 = vpack.c.b16 %v2043, %v2040
        %v2116 = vpack.c.b16 %v2044, %v2041
        %v2117 = vpack.c.b16 %v2045, %v2042
        %v2118 = vpack.c.b16 %v2049, %v2046
        %v2119 = vpack.c.b16 %v2050, %v2047
        %v2120 = vpack.c.b16 %v2051, %v2048
        %v2121 = vpack.c.b16 %v2055, %v2052
        %v2122 = vpack.c.b16 %v2056, %v2053
        %v2123 = vpack.c.b16 %v2057, %v2054
        %v2124 = vpack.c.b16 %v2061, %v2058
        %v2125 = vpack.c.b16 %v2062, %v2059
        %v2126 = vpack.c.b16 %v2063, %v2060
        %v2127 = vpack.c.b16 %v2067, %v2064
        %v2128 = vpack.c.b16 %v2068, %v2065
        %v2129 = vpack.c.b16 %v2069, %v2066
        %v2130 = vpack.c.b16 %v2073, %v2070
        %v2131 = vpack.c.b16 %v2074, %v2071
        %v2132 = vpack.c.b16 %v2075, %v2072
        %v2133 = vpack.c.b16 %v2079, %v2076
        %v2134 = vpack.c.b16 %v2080, %v2077
        %v2135 = vpack.c.b16 %v2081, %v2078
        %v2136 = vpack.c.b16 %v2085, %v2082
        %v2137 = vpack.c.b16 %v2086, %v2083
        %v2138 = vpack.c.b16 %v2087, %v2084
        %v2139 = vpack.c.b16 %v2091, %v2088
        %v2140 = vpack.c.b16 %v2092, %v2089
        %v2141 = vpack.c.b16 %v2093, %v2090
        %v2210 = vunpack.c.l.b16 %v1898
        %v2211 = vunpack.c.l.b16 %v1899
        %v2212 = vunpack.c.l.b16 %v1900
        %v2213 = vunpack.c.l.b16 %v1901
        %v2214 = vunpack.c.l.b16 %v1902
        %v2215 = vunpack.c.l.b16 %v1903
        %v2216 = vunpack.c.l.b16 %v1904
        %v2217 = vunpack.c.l.b16 %v1905
        %v2218 = vunpack.c.l.b16 %v1906
        %v2219 = vunpack.c.l.b16 %v1907
        %v2220 = vunpack.c.l.b16 %v1908
        %v2221 = vunpack.c.l.b16 %v1909
        %v2222 = vunpack.c.l.b16 %v1910
        %v2223 = vunpack.c.l.b16 %v1911
        %v2224 = vunpack.c.l.b16 %v1912
        %v2225 = vunpack.c.l.b16 %v1913
        %v2226 = vunpack.c.l.b16 %v1914
        %v2227 = vunpack.c.l.b16 %v1915
        %v2228 = vunpack.c.l.b16 %v1916
        %v2229 = vunpack.c.l.b16 %v1917
        %v2230 = vunpack.c.l.b16 %v1918
        %v2231 = vunpack.c.l.b16 %v1919
        %v2232 = vunpack.c.l.b16 %v1920
        %v2233 = vunpack.c.l.b16 %v1921
        %v2234 = vunpack.c.l.b16 %v1922
        %v2235 = vunpack.c.l.b16 %v1923
        %v2236 = vunpack.c.l.b16 %v1924
        %v2237 = vunpack.c.l.b16 %v1925
        %v2238 = vunpack.c.l.b16 %v1926
        %v2239 = vunpack.c.l.b16 %v1927
        %v2240 = vunpack.c.l.b16 %v1928
        %v2241 = vunpack.c.l.b16 %v1929
        %v2242 = vunpack.c.l.b16 %v1930
        %v2243 = vunpack.c.l.b16 %v1931
        %v2244 = vunpack.c.l.b16 %v1932
        %v2245 = vunpack.c.l.b16 %v1933
        %v2246 = vpack.c.b16 %v2211, %v2210
        %v2247 = vpack.c.b16 %v2213, %v2212
        %v2248 = vpack.c.b16 %v2215, %v2214
        %v2249 = vpack.c.b16 %v2217, %v2216
        %v2250 = vpack.c.b16 %v2219, %v2218
        %v2251 = vpack.c.b16 %v2221, %v2220
        %v2252 = vpack.c.b16 %v2223, %v2222
        %v2253 = vpack.c.b16 %v2225, %v2224
        %v2254 = vpack.c.b16 %v2227, %v2226
        %v2255 = vpack.c.b16 %v2229, %v2228
        %v2256 = vpack.c.b16 %v2231, %v2230
        %v2257 = vpack.c.b16 %v2233, %v2232
        %v2258 = vpack.c.b16 %v2235, %v2234
        %v2259 = vpack.c.b16 %v2237, %v2236
        %v2260 = vpack.c.b16 %v2239, %v2238
        %v2261 = vpack.c.b16 %v2241, %v2240
        %v2262 = vpack.c.b16 %v2243, %v2242
        %v2263 = vpack.c.b16 %v2245, %v2244
        %v2283 = vsel %vm740, %v2096, 0
        %v2286 = vsel %vm740, %v2099, 0
        %v2289 = vsel %vm740, %v2102, 0
        %v2292 = vsel %vm740, %v2105, 0
        %v2295 = vsel %vm740, %v2108, 0
        %v2298 = vsel %vm740, %v2111, 0
        %v2301 = vsel %vm740, %v2114, 0
        %v2304 = vsel %vm740, %v2117, 0
        %v2307 = vsel %vm740, %v2120, 0
        %v2310 = vsel %vm740, %v2123, 0
        %v2313 = vsel %vm740, %v2126, 0
        %v2316 = vsel %vm740, %v2129, 0
        %v2319 = vsel %vm740, %v2132, 0
        %v2322 = vsel %vm740, %v2135, 0
        %v2325 = vsel %vm740, %v2138, 0
        %v2328 = vsel %vm740, %v2141, 0
        %2330 = vmatprep.subr.bf16.mxu0 0
        %2331 = vmatpush1.bf16.msra.mxu0 %v2253
        %2332 = vmatprep.subr.bf16.mxu0 0
        %2333 = vmatpush1.bf16.msra.mxu0 %v2252
        %2334 = vmatprep.subr.bf16.mxu0 0
        %2335 = vmatpush1.bf16.msra.mxu0 %v2251
        %2336 = vmatprep.subr.bf16.mxu0 0
        %2337 = vmatpush1.bf16.msra.mxu0 %v2250
        %2338 = vmatprep.subr.bf16.mxu0 0
        %2339 = vmatpush1.bf16.msra.mxu0 %v2249
        %2340 = vmatprep.subr.bf16.mxu0 0
        %2341 = vmatpush1.bf16.msra.mxu0 %v2248
        %2342 = vmatprep.subr.bf16.mxu0 0
        %2343 = vmatpush1.bf16.msra.mxu0 %v2247
        %2344 = vmatprep.subr.bf16.mxu0 0
        %2345 = vmatpush1.bf16.msra.mxu0 %v2246
        %2346 = vmatprep.subr.bf16.mxu0 0
        %2347 = vmatpush2.bf16.msra.mxu0 %v2261
        %2348 = vmatprep.subr.bf16.mxu0 0
        %2349 = vmatpush2.bf16.msra.mxu0 %v2260
        %2350 = vmatprep.subr.bf16.mxu0 0
        %2351 = vmatpush2.bf16.msra.mxu0 %v2259
        %2352 = vmatprep.subr.bf16.mxu0 0
        %2353 = vmatpush2.bf16.msra.mxu0 %v2258
        %2354 = vmatprep.subr.bf16.mxu0 0
        %2355 = vmatpush2.bf16.msra.mxu0 %v2257
        %2356 = vmatprep.subr.bf16.mxu0 0
        %2357 = vmatpush2.bf16.msra.mxu0 %v2256
        %2358 = vmatprep.subr.bf16.mxu0 0
        %2359 = vmatpush2.bf16.msra.mxu0 %v2255
        %2360 = vmatprep.subr.bf16.mxu0 0
        %2361 = vmatpush2.bf16.msra.mxu0 %v2254
        %2362 = vmatprep.mubr.bf16.mxu0 %v2095
        %2363 = vmatmul.mubr.bf16.gmra.mxu0 %v2094
        %v2364 = vpop.f32.mrf.mxu0
        %v2365 = vadd.f32 0.0, %v2364
        %v2366 = vpop.f32.mrf.mxu0
        %v2367 = vpop.f32.mrf.mxu0
        %v2368 = vadd.f32 0.0, %v2367
        %v2369 = vpop.f32.mrf.mxu0
        %2370 = vmatprep.mubr.bf16.mxu0 %v2098
        %2371 = vmatmul.mubr.bf16.gmra.mxu0 %v2097
        %v2372 = vpop.f32.mrf.mxu0
        %v2373 = vadd.f32 0.0, %v2372
        %v2374 = vpop.f32.mrf.mxu0
        %v2375 = vpop.f32.mrf.mxu0
        %v2376 = vadd.f32 0.0, %v2375
        %v2377 = vpop.f32.mrf.mxu0
        %2378 = vmatprep.mubr.bf16.mxu0 %v2101
        %2379 = vmatmul.mubr.bf16.gmra.mxu0 %v2100
        %v2380 = vpop.f32.mrf.mxu0
        %v2381 = vadd.f32 0.0, %v2380
        %v2382 = vpop.f32.mrf.mxu0
        %v2383 = vpop.f32.mrf.mxu0
        %v2384 = vadd.f32 0.0, %v2383
        %v2385 = vpop.f32.mrf.mxu0
        %2386 = vmatprep.mubr.bf16.mxu0 %v2104
        %2387 = vmatmul.mubr.bf16.gmra.mxu0 %v2103
        %v2388 = vpop.f32.mrf.mxu0
        %v2389 = vadd.f32 0.0, %v2388
        %v2390 = vpop.f32.mrf.mxu0
        %v2391 = vpop.f32.mrf.mxu0
        %v2392 = vadd.f32 0.0, %v2391
        %v2393 = vpop.f32.mrf.mxu0
        %2394 = vmatprep.mubr.bf16.mxu0 %v2107
        %2395 = vmatmul.mubr.bf16.gmra.mxu0 %v2106
        %v2396 = vpop.f32.mrf.mxu0
        %v2397 = vadd.f32 0.0, %v2396
        %v2398 = vpop.f32.mrf.mxu0
        %v2399 = vpop.f32.mrf.mxu0
        %v2400 = vadd.f32 0.0, %v2399
        %v2401 = vpop.f32.mrf.mxu0
        %2402 = vmatprep.mubr.bf16.mxu0 %v2110
        %2403 = vmatmul.mubr.bf16.gmra.mxu0 %v2109
        %v2404 = vpop.f32.mrf.mxu0
        %v2405 = vadd.f32 0.0, %v2404
        %v2406 = vpop.f32.mrf.mxu0
        %v2407 = vpop.f32.mrf.mxu0
        %v2408 = vadd.f32 0.0, %v2407
        %v2409 = vpop.f32.mrf.mxu0
        %2410 = vmatprep.mubr.bf16.mxu0 %v2113
        %2411 = vmatmul.mubr.bf16.gmra.mxu0 %v2112
        %v2412 = vpop.f32.mrf.mxu0
        %v2413 = vadd.f32 0.0, %v2412
        %v2414 = vpop.f32.mrf.mxu0
        %v2415 = vpop.f32.mrf.mxu0
        %v2416 = vadd.f32 0.0, %v2415
        %v2417 = vpop.f32.mrf.mxu0
        %2418 = vmatprep.mubr.bf16.mxu0 %v2116
        %2419 = vmatmul.mubr.bf16.gmra.mxu0 %v2115
        %v2420 = vpop.f32.mrf.mxu0
        %v2421 = vadd.f32 0.0, %v2420
        %v2422 = vpop.f32.mrf.mxu0
        %v2423 = vpop.f32.mrf.mxu0
        %v2424 = vadd.f32 0.0, %v2423
        %v2425 = vpop.f32.mrf.mxu0
        %2426 = vmatprep.mubr.bf16.mxu0 %v2119
        %2427 = vmatmul.mubr.bf16.gmra.mxu0 %v2118
        %v2428 = vpop.f32.mrf.mxu0
        %v2429 = vadd.f32 0.0, %v2428
        %v2430 = vpop.f32.mrf.mxu0
        %v2431 = vpop.f32.mrf.mxu0
        %v2432 = vadd.f32 0.0, %v2431
        %v2433 = vpop.f32.mrf.mxu0
        %2434 = vmatprep.mubr.bf16.mxu0 %v2122
        %2435 = vmatmul.mubr.bf16.gmra.mxu0 %v2121
        %v2436 = vpop.f32.mrf.mxu0
        %v2437 = vadd.f32 0.0, %v2436
        %v2438 = vpop.f32.mrf.mxu0
        %v2439 = vpop.f32.mrf.mxu0
        %v2440 = vadd.f32 0.0, %v2439
        %v2441 = vpop.f32.mrf.mxu0
        %2442 = vmatprep.mubr.bf16.mxu0 %v2125
        %2443 = vmatmul.mubr.bf16.gmra.mxu0 %v2124
        %v2444 = vpop.f32.mrf.mxu0
        %v2445 = vadd.f32 0.0, %v2444
        %v2446 = vpop.f32.mrf.mxu0
        %v2447 = vpop.f32.mrf.mxu0
        %v2448 = vadd.f32 0.0, %v2447
        %v2449 = vpop.f32.mrf.mxu0
        %2450 = vmatprep.mubr.bf16.mxu0 %v2128
        %2451 = vmatmul.mubr.bf16.gmra.mxu0 %v2127
        %v2452 = vpop.f32.mrf.mxu0
        %v2453 = vadd.f32 0.0, %v2452
        %v2454 = vpop.f32.mrf.mxu0
        %v2455 = vpop.f32.mrf.mxu0
        %v2456 = vadd.f32 0.0, %v2455
        %v2457 = vpop.f32.mrf.mxu0
        %2458 = vmatprep.mubr.bf16.mxu0 %v2131
        %2459 = vmatmul.mubr.bf16.gmra.mxu0 %v2130
        %v2460 = vpop.f32.mrf.mxu0
        %v2461 = vadd.f32 0.0, %v2460
        %v2462 = vpop.f32.mrf.mxu0
        %v2463 = vpop.f32.mrf.mxu0
        %v2464 = vadd.f32 0.0, %v2463
        %v2465 = vpop.f32.mrf.mxu0
        %2466 = vmatprep.mubr.bf16.mxu0 %v2134
        %2467 = vmatmul.mubr.bf16.gmra.mxu0 %v2133
        %v2468 = vpop.f32.mrf.mxu0
        %v2469 = vadd.f32 0.0, %v2468
        %v2470 = vpop.f32.mrf.mxu0
        %v2471 = vpop.f32.mrf.mxu0
        %v2472 = vadd.f32 0.0, %v2471
        %v2473 = vpop.f32.mrf.mxu0
        %2474 = vmatprep.mubr.bf16.mxu0 %v2137
        %2475 = vmatmul.mubr.bf16.gmra.mxu0 %v2136
        %v2476 = vpop.f32.mrf.mxu0
        %v2477 = vadd.f32 0.0, %v2476
        %v2478 = vpop.f32.mrf.mxu0
        %v2479 = vpop.f32.mrf.mxu0
        %v2480 = vadd.f32 0.0, %v2479
        %v2481 = vpop.f32.mrf.mxu0
        %2482 = vmatprep.mubr.bf16.mxu0 %v2140
        %2483 = vmatmul.mubr.bf16.gmra.mxu0 %v2139
        %v2484 = vpop.f32.mrf.mxu0
        %v2485 = vadd.f32 0.0, %v2484
        %v2486 = vpop.f32.mrf.mxu0
        %v2487 = vpop.f32.mrf.mxu0
        %v2488 = vadd.f32 0.0, %v2487
        %v2489 = vpop.f32.mrf.mxu0
        %2490 = vdwg.mxu0
        %2491 = vmatprep.subr.bf16.mxu0 0
        %2492 = vmatpush1.bf16.msra.mxu0 0
        %2493 = vmatprep.subr.bf16.mxu0 0
        %2494 = vmatpush1.bf16.msra.mxu0 0
        %2495 = vmatprep.subr.bf16.mxu0 0
        %2496 = vmatpush1.bf16.msra.mxu0 0
        %2497 = vmatprep.subr.bf16.mxu0 0
        %2498 = vmatpush1.bf16.msra.mxu0 0
        %2499 = vmatprep.subr.bf16.mxu0 0
        %2500 = vmatpush1.bf16.msra.mxu0 0
        %2501 = vmatprep.subr.bf16.mxu0 0
        %2502 = vmatpush1.bf16.msra.mxu0 0
        %2503 = vmatprep.subr.bf16.mxu0 0
        %2504 = vmatpush1.bf16.msra.mxu0 %v2263
        %2505 = vmatprep.subr.bf16.mxu0 0
        %2506 = vmatpush1.bf16.msra.mxu0 %v2262
        %2507 = vmatprep.subr.bf16.mxu0 0
        %2508 = vmatpush2.bf16.msra.mxu0 0
        %2509 = vmatprep.subr.bf16.mxu0 0
        %2510 = vmatpush2.bf16.msra.mxu0 0
        %2511 = vmatprep.subr.bf16.mxu0 0
        %2512 = vmatpush2.bf16.msra.mxu0 0
        %2513 = vmatprep.subr.bf16.mxu0 0
        %2514 = vmatpush2.bf16.msra.mxu0 0
        %2515 = vmatprep.subr.bf16.mxu0 0
        %2516 = vmatpush2.bf16.msra.mxu0 0
        %2517 = vmatprep.subr.bf16.mxu0 0
        %2518 = vmatpush2.bf16.msra.mxu0 0
        %2519 = vmatprep.subr.bf16.mxu0 0
        %2520 = vmatpush2.bf16.msra.mxu0 0
        %2521 = vmatprep.subr.bf16.mxu0 0
        %2522 = vmatpush2.bf16.msra.mxu0 0
        %2523 = vmatprep.mubr.bf16.mxu0 0
        %2524 = vmatmul.mubr.bf16.gmra.mxu0 %v2283
        %v2525 = vpop.f32.mrf.mxu0
        %v2526 = vadd.f32 %v2365, %v2525
        %v2527 = vpop.f32.mrf.mxu0
        %v2528 = vpop.f32.mrf.mxu0
        %v2529 = vadd.f32 %v2368, %v2528
        %v2530 = vpop.f32.mrf.mxu0
        %2531 = vmatprep.mubr.bf16.mxu0 0
        %2532 = vmatmul.mubr.bf16.gmra.mxu0 %v2286
        %v2533 = vpop.f32.mrf.mxu0
        %v2534 = vadd.f32 %v2373, %v2533
        %v2535 = vpop.f32.mrf.mxu0
        %v2536 = vpop.f32.mrf.mxu0
        %v2537 = vadd.f32 %v2376, %v2536
        %v2538 = vpop.f32.mrf.mxu0
        %2539 = vmatprep.mubr.bf16.mxu0 0
        %2540 = vmatmul.mubr.bf16.gmra.mxu0 %v2289
        %v2541 = vpop.f32.mrf.mxu0
        %v2542 = vadd.f32 %v2381, %v2541
        %v2543 = vpop.f32.mrf.mxu0
        %v2544 = vpop.f32.mrf.mxu0
        %v2545 = vadd.f32 %v2384, %v2544
        %v2546 = vpop.f32.mrf.mxu0
        %2547 = vmatprep.mubr.bf16.mxu0 0
        %2548 = vmatmul.mubr.bf16.gmra.mxu0 %v2292
        %v2549 = vpop.f32.mrf.mxu0
        %v2550 = vadd.f32 %v2389, %v2549
        %v2551 = vpop.f32.mrf.mxu0
        %v2552 = vpop.f32.mrf.mxu0
        %v2553 = vadd.f32 %v2392, %v2552
        %v2554 = vpop.f32.mrf.mxu0
        %2555 = vmatprep.mubr.bf16.mxu0 0
        %2556 = vmatmul.mubr.bf16.gmra.mxu0 %v2295
        %v2557 = vpop.f32.mrf.mxu0
        %v2558 = vadd.f32 %v2397, %v2557
        %v2559 = vpop.f32.mrf.mxu0
        %v2560 = vpop.f32.mrf.mxu0
        %v2561 = vadd.f32 %v2400, %v2560
        %v2562 = vpop.f32.mrf.mxu0
        %2563 = vmatprep.mubr.bf16.mxu0 0
        %2564 = vmatmul.mubr.bf16.gmra.mxu0 %v2298
        %v2565 = vpop.f32.mrf.mxu0
        %v2566 = vadd.f32 %v2405, %v2565
        %v2567 = vpop.f32.mrf.mxu0
        %v2568 = vpop.f32.mrf.mxu0
        %v2569 = vadd.f32 %v2408, %v2568
        %v2570 = vpop.f32.mrf.mxu0
        %2571 = vmatprep.mubr.bf16.mxu0 0
        %2572 = vmatmul.mubr.bf16.gmra.mxu0 %v2301
        %v2573 = vpop.f32.mrf.mxu0
        %v2574 = vadd.f32 %v2413, %v2573
        %v2575 = vpop.f32.mrf.mxu0
        %v2576 = vpop.f32.mrf.mxu0
        %v2577 = vadd.f32 %v2416, %v2576
        %v2578 = vpop.f32.mrf.mxu0
        %2579 = vmatprep.mubr.bf16.mxu0 0
        %2580 = vmatmul.mubr.bf16.gmra.mxu0 %v2304
        %v2581 = vpop.f32.mrf.mxu0
        %v2582 = vadd.f32 %v2421, %v2581
        %v2583 = vpop.f32.mrf.mxu0
        %v2584 = vpop.f32.mrf.mxu0
        %v2585 = vadd.f32 %v2424, %v2584
        %v2586 = vpop.f32.mrf.mxu0
        %2587 = vmatprep.mubr.bf16.mxu0 0
        %2588 = vmatmul.mubr.bf16.gmra.mxu0 %v2307
        %v2589 = vpop.f32.mrf.mxu0
        %v2590 = vadd.f32 %v2429, %v2589
        %v2591 = vpop.f32.mrf.mxu0
        %v2592 = vpop.f32.mrf.mxu0
        %v2593 = vadd.f32 %v2432, %v2592
        %v2594 = vpop.f32.mrf.mxu0
        %2595 = vmatprep.mubr.bf16.mxu0 0
        %2596 = vmatmul.mubr.bf16.gmra.mxu0 %v2310
        %v2597 = vpop.f32.mrf.mxu0
        %v2598 = vadd.f32 %v2437, %v2597
        %v2599 = vpop.f32.mrf.mxu0
        %v2600 = vpop.f32.mrf.mxu0
        %v2601 = vadd.f32 %v2440, %v2600
        %v2602 = vpop.f32.mrf.mxu0
        %2603 = vmatprep.mubr.bf16.mxu0 0
        %2604 = vmatmul.mubr.bf16.gmra.mxu0 %v2313
        %v2605 = vpop.f32.mrf.mxu0
        %v2606 = vadd.f32 %v2445, %v2605
        %v2607 = vpop.f32.mrf.mxu0
        %v2608 = vpop.f32.mrf.mxu0
        %v2609 = vadd.f32 %v2448, %v2608
        %v2610 = vpop.f32.mrf.mxu0
        %2611 = vmatprep.mubr.bf16.mxu0 0
        %2612 = vmatmul.mubr.bf16.gmra.mxu0 %v2316
        %v2613 = vpop.f32.mrf.mxu0
        %v2614 = vadd.f32 %v2453, %v2613
        %v2615 = vpop.f32.mrf.mxu0
        %v2616 = vpop.f32.mrf.mxu0
        %v2617 = vadd.f32 %v2456, %v2616
        %v2618 = vpop.f32.mrf.mxu0
        %2619 = vmatprep.mubr.bf16.mxu0 0
        %2620 = vmatmul.mubr.bf16.gmra.mxu0 %v2319
        %v2621 = vpop.f32.mrf.mxu0
        %v2622 = vadd.f32 %v2461, %v2621
        %v2623 = vpop.f32.mrf.mxu0
        %v2624 = vpop.f32.mrf.mxu0
        %v2625 = vadd.f32 %v2464, %v2624
        %v2626 = vpop.f32.mrf.mxu0
        %2627 = vmatprep.mubr.bf16.mxu0 0
        %2628 = vmatmul.mubr.bf16.gmra.mxu0 %v2322
        %v2629 = vpop.f32.mrf.mxu0
        %v2630 = vadd.f32 %v2469, %v2629
        %v2631 = vpop.f32.mrf.mxu0
        %v2632 = vpop.f32.mrf.mxu0
        %v2633 = vadd.f32 %v2472, %v2632
        %v2634 = vpop.f32.mrf.mxu0
        %2635 = vmatprep.mubr.bf16.mxu0 0
        %2636 = vmatmul.mubr.bf16.gmra.mxu0 %v2325
        %v2637 = vpop.f32.mrf.mxu0
        %v2638 = vadd.f32 %v2477, %v2637
        %v2639 = vpop.f32.mrf.mxu0
        %v2640 = vpop.f32.mrf.mxu0
        %v2641 = vadd.f32 %v2480, %v2640
        %v2642 = vpop.f32.mrf.mxu0
        %2643 = vmatprep.mubr.bf16.mxu0 0
        %2644 = vmatmul.mubr.bf16.gmra.mxu0 %v2328
        %v2645 = vpop.f32.mrf.mxu0
        %v2646 = vadd.f32 %v2485, %v2645
        %v2647 = vpop.f32.mrf.mxu0
        %v2648 = vpop.f32.mrf.mxu0
        %v2649 = vadd.f32 %v2488, %v2648
        %v2650 = vpop.f32.mrf.mxu0
        %2651 = vdwg.mxu0
        %v2652 = vadd.f32 %v1703, %v2526
        %v2653 = vadd.f32 %v1706, %v2529
        %v2654 = vadd.f32 %v1711, %v2534
        %v2655 = vadd.f32 %v1714, %v2537
        %v2656 = vadd.f32 %v1719, %v2542
        %v2657 = vadd.f32 %v1722, %v2545
        %v2658 = vadd.f32 %v1727, %v2550
        %v2659 = vadd.f32 %v1730, %v2553
        %v2660 = vadd.f32 %v1735, %v2558
        %v2661 = vadd.f32 %v1738, %v2561
        %v2662 = vadd.f32 %v1743, %v2566
        %v2663 = vadd.f32 %v1746, %v2569
        %v2664 = vadd.f32 %v1751, %v2574
        %v2665 = vadd.f32 %v1754, %v2577
        %v2666 = vadd.f32 %v1759, %v2582
        %v2667 = vadd.f32 %v1762, %v2585
        %v2668 = vadd.f32 %v1767, %v2590
        %v2669 = vadd.f32 %v1770, %v2593
        %v2670 = vadd.f32 %v1775, %v2598
        %v2671 = vadd.f32 %v1778, %v2601
        %v2672 = vadd.f32 %v1783, %v2606
        %v2673 = vadd.f32 %v1786, %v2609
        %v2674 = vadd.f32 %v1791, %v2614
        %v2675 = vadd.f32 %v1794, %v2617
        %v2676 = vadd.f32 %v1799, %v2622
        %v2677 = vadd.f32 %v1802, %v2625
        %v2678 = vadd.f32 %v1807, %v2630
        %v2679 = vadd.f32 %v1810, %v2633
        %v2680 = vadd.f32 %v1815, %v2638
        %v2681 = vadd.f32 %v1818, %v2641
        %v2682 = vadd.f32 %v1823, %v2646
        %v2683 = vadd.f32 %v1826, %v2649
        %vm2684 = vcmp.ge.f32.partialorder %v2652, 0.0
        %vm2685 = vcmp.ge.f32.partialorder %v2653, 0.0
        %vm2686 = vcmp.ge.f32.partialorder %v2654, 0.0
        %vm2687 = vcmp.ge.f32.partialorder %v2655, 0.0
        %vm2688 = vcmp.ge.f32.partialorder %v2656, 0.0
        %vm2689 = vcmp.ge.f32.partialorder %v2657, 0.0
        %vm2690 = vcmp.ge.f32.partialorder %v2658, 0.0
        %vm2691 = vcmp.ge.f32.partialorder %v2659, 0.0
        %vm2692 = vcmp.ge.f32.partialorder %v2660, 0.0
        %vm2693 = vcmp.ge.f32.partialorder %v2661, 0.0
        %vm2694 = vcmp.ge.f32.partialorder %v2662, 0.0
        %vm2695 = vcmp.ge.f32.partialorder %v2663, 0.0
        %vm2696 = vcmp.ge.f32.partialorder %v2664, 0.0
        %vm2697 = vcmp.ge.f32.partialorder %v2665, 0.0
        %vm2698 = vcmp.ge.f32.partialorder %v2666, 0.0
        %vm2699 = vcmp.ge.f32.partialorder %v2667, 0.0
        %vm2700 = vcmp.ge.f32.partialorder %v2668, 0.0
        %vm2701 = vcmp.ge.f32.partialorder %v2669, 0.0
        %vm2702 = vcmp.ge.f32.partialorder %v2670, 0.0
        %vm2703 = vcmp.ge.f32.partialorder %v2671, 0.0
        %vm2704 = vcmp.ge.f32.partialorder %v2672, 0.0
        %vm2705 = vcmp.ge.f32.partialorder %v2673, 0.0
        %vm2706 = vcmp.ge.f32.partialorder %v2674, 0.0
        %vm2707 = vcmp.ge.f32.partialorder %v2675, 0.0
        %vm2708 = vcmp.ge.f32.partialorder %v2676, 0.0
        %vm2709 = vcmp.ge.f32.partialorder %v2677, 0.0
        %vm2710 = vcmp.ge.f32.partialorder %v2678, 0.0
        %vm2711 = vcmp.ge.f32.partialorder %v2679, 0.0
        %vm2712 = vcmp.ge.f32.partialorder %v2680, 0.0
        %vm2713 = vcmp.ge.f32.partialorder %v2681, 0.0
        %vm2714 = vcmp.ge.f32.partialorder %v2682, 0.0
        %vm2715 = vcmp.ge.f32.partialorder %v2683, 0.0
        %v2716 = vmul.f32 %v2652, 0.01
        %v2717 = vmul.f32 %v2653, 0.01
        %v2718 = vmul.f32 %v2654, 0.01
        %v2719 = vmul.f32 %v2655, 0.01
        %v2720 = vmul.f32 %v2656, 0.01
        %v2721 = vmul.f32 %v2657, 0.01
        %v2722 = vmul.f32 %v2658, 0.01
        %v2723 = vmul.f32 %v2659, 0.01
        %v2724 = vmul.f32 %v2660, 0.01
        %v2725 = vmul.f32 %v2661, 0.01
        %v2726 = vmul.f32 %v2662, 0.01
        %v2727 = vmul.f32 %v2663, 0.01
        %v2728 = vmul.f32 %v2664, 0.01
        %v2729 = vmul.f32 %v2665, 0.01
        %v2730 = vmul.f32 %v2666, 0.01
        %v2731 = vmul.f32 %v2667, 0.01
        %v2732 = vmul.f32 %v2668, 0.01
        %v2733 = vmul.f32 %v2669, 0.01
        %v2734 = vmul.f32 %v2670, 0.01
        %v2735 = vmul.f32 %v2671, 0.01
        %v2736 = vmul.f32 %v2672, 0.01
        %v2737 = vmul.f32 %v2673, 0.01
        %v2738 = vmul.f32 %v2674, 0.01
        %v2739 = vmul.f32 %v2675, 0.01
        %v2740 = vmul.f32 %v2676, 0.01
        %v2741 = vmul.f32 %v2677, 0.01
        %v2742 = vmul.f32 %v2678, 0.01
        %v2743 = vmul.f32 %v2679, 0.01
        %v2744 = vmul.f32 %v2680, 0.01
        %v2745 = vmul.f32 %v2681, 0.01
        %v2746 = vmul.f32 %v2682, 0.01
        %v2747 = vmul.f32 %v2683, 0.01
        %v2748 = vsel %vm2684, %v2652, %v2716
        %v2749 = vsel %vm2685, %v2653, %v2717
        %v2750 = vsel %vm2686, %v2654, %v2718
        %v2751 = vsel %vm2687, %v2655, %v2719
        %v2752 = vsel %vm2688, %v2656, %v2720
        %v2753 = vsel %vm2689, %v2657, %v2721
        %v2754 = vsel %vm2690, %v2658, %v2722
        %v2755 = vsel %vm2691, %v2659, %v2723
        %v2756 = vsel %vm2692, %v2660, %v2724
        %v2757 = vsel %vm2693, %v2661, %v2725
        %v2758 = vsel %vm2694, %v2662, %v2726
        %v2759 = vsel %vm2695, %v2663, %v2727
        %v2760 = vsel %vm2696, %v2664, %v2728
        %v2761 = vsel %vm2697, %v2665, %v2729
        %v2762 = vsel %vm2698, %v2666, %v2730
        %v2763 = vsel %vm2699, %v2667, %v2731
        %v2764 = vsel %vm2700, %v2668, %v2732
        %v2765 = vsel %vm2701, %v2669, %v2733
        %v2766 = vsel %vm2702, %v2670, %v2734
        %v2767 = vsel %vm2703, %v2671, %v2735
        %v2768 = vsel %vm2704, %v2672, %v2736
        %v2769 = vsel %vm2705, %v2673, %v2737
        %v2770 = vsel %vm2706, %v2674, %v2738
        %v2771 = vsel %vm2707, %v2675, %v2739
        %v2772 = vsel %vm2708, %v2676, %v2740
        %v2773 = vsel %vm2709, %v2677, %v2741
        %v2774 = vsel %vm2710, %v2678, %v2742
        %v2775 = vsel %vm2711, %v2679, %v2743
        %v2776 = vsel %vm2712, %v2680, %v2744
        %v2777 = vsel %vm2713, %v2681, %v2745
        %v2778 = vsel %vm2714, %v2682, %v2746
        %v2779 = vsel %vm2715, %v2683, %v2747
        %v2780 = vld [vmem:[%s2] sm:$0x1]
        %v2782 = vlaneseq
        %v2783 = vshrl.u32 %v2782, 7
        %v2784 = vsub.s32 0, %v2783
        %v2785 = vrot.slane %v2780, %v2784
        %v2787 = vadd.f32 %v2748, %v2785
        %v2788 = vadd.f32 %v2749, %v2785
        %v2789 = vadd.f32 %v2750, %v2785
        %v2790 = vadd.f32 %v2751, %v2785
        %v2791 = vadd.f32 %v2752, %v2785
        %v2792 = vadd.f32 %v2753, %v2785
        %v2793 = vadd.f32 %v2754, %v2785
        %v2794 = vadd.f32 %v2755, %v2785
        %v2795 = vadd.f32 %v2756, %v2785
        %v2796 = vadd.f32 %v2757, %v2785
        %v2797 = vadd.f32 %v2758, %v2785
        %v2798 = vadd.f32 %v2759, %v2785
        %v2799 = vadd.f32 %v2760, %v2785
        %v2800 = vadd.f32 %v2761, %v2785
        %v2801 = vadd.f32 %v2762, %v2785
        %v2802 = vadd.f32 %v2763, %v2785
        %v2803 = vadd.f32 %v2764, %v2785
        %v2804 = vadd.f32 %v2765, %v2785
        %v2805 = vadd.f32 %v2766, %v2785
        %v2806 = vadd.f32 %v2767, %v2785
        %v2807 = vadd.f32 %v2768, %v2785
        %v2808 = vadd.f32 %v2769, %v2785
        %v2809 = vadd.f32 %v2770, %v2785
        %v2810 = vadd.f32 %v2771, %v2785
        %v2811 = vadd.f32 %v2772, %v2785
        %v2812 = vadd.f32 %v2773, %v2785
        %v2813 = vadd.f32 %v2774, %v2785
        %v2814 = vadd.f32 %v2775, %v2785
        %v2815 = vadd.f32 %v2776, %v2785
        %v2816 = vadd.f32 %v2777, %v2785
        %v2817 = vadd.f32 %v2778, %v2785
        %v2818 = vadd.f32 %v2779, %v2785
        %2819 = vst.msk [vmem:[%s177] sm:$0xff] %vm740, %v2787
        %2820 = vst.msk [vmem:[%s177 + $0x8] sm:$0xff] %vm740, %v2788
        %2821 = vst.msk [vmem:[%s177 + $0x10] sm:$0xff] %vm740, %v2789
        %2822 = vst.msk [vmem:[%s177 + $0x18] sm:$0xff] %vm740, %v2790
        %2823 = vst.msk [vmem:[%s177 + $0x20] sm:$0xff] %vm740, %v2791
        %2824 = vst.msk [vmem:[%s177 + $0x28] sm:$0xff] %vm740, %v2792
        %2825 = vst.msk [vmem:[%s177 + $0x30] sm:$0xff] %vm740, %v2793
        %2826 = vst.msk [vmem:[%s177 + $0x38] sm:$0xff] %vm740, %v2794
        %2827 = vst.msk [vmem:[%s177 + $0x40] sm:$0xff] %vm740, %v2795
        %2828 = vst.msk [vmem:[%s177 + $0x48] sm:$0xff] %vm740, %v2796
        %2829 = vst.msk [vmem:[%s177 + $0x50] sm:$0xff] %vm740, %v2797
        %2830 = vst.msk [vmem:[%s177 + $0x58] sm:$0xff] %vm740, %v2798
        %2831 = vst.msk [vmem:[%s177 + $0x60] sm:$0xff] %vm740, %v2799
        %2832 = vst.msk [vmem:[%s177 + $0x68] sm:$0xff] %vm740, %v2800
        %2833 = vst.msk [vmem:[%s177 + $0x70] sm:$0xff] %vm740, %v2801
        %2834 = vst.msk [vmem:[%s177 + $0x78] sm:$0xff] %vm740, %v2802
        %2835 = vst.msk [vmem:[%s177 + $0x80] sm:$0xff] %vm740, %v2803
        %2836 = vst.msk [vmem:[%s177 + $0x88] sm:$0xff] %vm740, %v2804
        %2837 = vst.msk [vmem:[%s177 + $0x90] sm:$0xff] %vm740, %v2805
        %2838 = vst.msk [vmem:[%s177 + $0x98] sm:$0xff] %vm740, %v2806
        %2839 = vst.msk [vmem:[%s177 + $0xa0] sm:$0xff] %vm740, %v2807
        %2840 = vst.msk [vmem:[%s177 + $0xa8] sm:$0xff] %vm740, %v2808
        %2841 = vst.msk [vmem:[%s177 + $0xb0] sm:$0xff] %vm740, %v2809
        %2842 = vst.msk [vmem:[%s177 + $0xb8] sm:$0xff] %vm740, %v2810
        %2843 = vst.msk [vmem:[%s177 + $0xc0] sm:$0xff] %vm740, %v2811
        %2844 = vst.msk [vmem:[%s177 + $0xc8] sm:$0xff] %vm740, %v2812
        %2845 = vst.msk [vmem:[%s177 + $0xd0] sm:$0xff] %vm740, %v2813
        %2846 = vst.msk [vmem:[%s177 + $0xd8] sm:$0xff] %vm740, %v2814
        %2847 = vst.msk [vmem:[%s177 + $0xe0] sm:$0xff] %vm740, %v2815
        %2848 = vst.msk [vmem:[%s177 + $0xe8] sm:$0xff] %vm740, %v2816
        %2849 = vst.msk [vmem:[%s177 + $0xf0] sm:$0xff] %vm740, %v2817
        %2850 = vst.msk [vmem:[%s177 + $0xf8] sm:$0xff] %vm740, %v2818
        %s2851 = sand.u32 %s107, 1
        %s2852 = scalar_lea.sflag [#allocation3], %s2851
        %s2853 = sand.u32 %s107, 1
        %s2854 = smul.addr %s2853, 256
        %s2855 = scalar_lea.vmem [#allocation2], %s2854
        // Predicated region
        $region33: #{upblock_forward.9} parent=31 // pred_check
          %p2856 = pneg %p117
        $region34: #{upblock_forward.9} parent=31 // pred_check_branch
          %2858 = sbr.rel (%p2856) target = $region36
        $region35: #{upblock_forward.9} parent=31 // pred_region
          %s2860 = ssub.s32 4096, 4096
          %2861 = vsyncadd %s2852, %s2860
          %s2862 = smul.addr %s22, 32
          %s2863 = smul.addr %s21, 256
          %s2864 = sadd.s32 %s2862, %s2863
          %s2865 = smul.addr %s2864, 128
          %s2866 = scalar_lea.hbm %s3, %s2865
          %s2867 = sshll.u32 %s2855, 4
          %s2868 = int_to_ptr.vmem [resolvable:$true] %s2867
          %2873 = dma.vmem_to_hbm [thread:$0]  %s2868, 4096, %s2866, %s2852, 128, 128, 8
        $region36: #{upblock_forward.9} parent=31 // pred_fallthru
          _
      $region32: #{upblock_forward.9} parent=5 // pred_fallthru
        _
      %p2874 = scmp.le.s32.totalorder 2, %s12
      // Predicated region
      $region37: #{upblock_forward.9} parent=5 // pred_check
        %p2875 = pneg %p2874
      $region38: #{upblock_forward.9} parent=5 // pred_check_branch
        %2877 = sbr.rel (%p2875) target = $region40
      $region39: #{upblock_forward.9} parent=5 // pred_region
        %s2878 = ssub.s32 %s12, 2
        // Predicated region
        $region41: #{upblock_forward.9} parent=39 // pred_check
          %p2879 = pneg %p123
        $region42: #{upblock_forward.9} parent=39 // pred_check_branch
          %2881 = sbr.rel (%p2879) target = $region44
        $region43: #{upblock_forward.9} parent=39 // pred_region
          %s2882 = sand.u32 %s108, 1
          %s2883 = scalar_lea.sflag [#allocation3], %s2882
          %s2884 = sand.u32 %s108, 1
          %s2885 = smul.addr %s2884, 256
          %s2886 = scalar_lea.vmem [#allocation2], %s2885
          %2887 = dma.done %s2883, 4096
        $region44: #{upblock_forward.9} parent=39 // pred_fallthru
          _
      $region40: #{upblock_forward.9} parent=5 // pred_fallthru
        _
    $region6: #{upblock_forward.9} parent=1 // loop_footer
      %s16 = sadd.s32 1, %s12
    $region7: #{upblock_forward.9} parent=1 // loop_footer_branch
      %11 = sbr.rel target = $region3
    $region8: #{upblock_forward.9} parent=1 // loop_exit
      _
    %2888 = vsyncpa [#allocation3], 1
    %s2889 = scalar_lea.sflag [#allocation3], 1
    %2890 = vsyncpa %s2889, 1

</llo_original>
